<compile_context>
chip_gen: v7x
topology: tpu7x:2x2x1
jax: 0.10.0
libtpu: 0.0.40
codegen_flags: <defaults>
</compile_context>

<pallas_src>
import jax
import jax.numpy as jnp
from jax.experimental import pallas as pl
from jax.experimental.pallas import tpu as pltpu

EPS = 1e-5


# ----------------------------- Pallas kernels ------------------------------

def _conv_bn_relu_pool_kernel(p_ref, w_ref, b_ref, o_ref):
    """Fused Conv(3x3,s2,p0) + folded-BN + ReLU + MaxPool(2x2) for one image.

    p_ref: (1, 4, K, P) bf16 im2col patches, one slab per 2x2-pool position.
    w_ref: (Cout, K)    bf16 conv weights with the BN scale folded in.
    b_ref: (Cout, 1)    f32  conv bias with the BN shift folded in.
    o_ref: (1, Cout, P) pooled activation (P = Hp*Wp -> lane-dense store).
    """
    w = w_ref[...]
    y0 = jnp.dot(w, p_ref[0, 0], preferred_element_type=jnp.float32)
    y1 = jnp.dot(w, p_ref[0, 1], preferred_element_type=jnp.float32)
    y2 = jnp.dot(w, p_ref[0, 2], preferred_element_type=jnp.float32)
    y3 = jnp.dot(w, p_ref[0, 3], preferred_element_type=jnp.float32)
    # relu(max(.)) == max(relu(.)): pool first, then a single cheap epilogue.
    m = jnp.maximum(jnp.maximum(y0, y1), jnp.maximum(y2, y3))
    o_ref[0] = jnp.maximum(m + b_ref[...], 0.0).astype(o_ref.dtype)


def _mlp_kernel(x_ref, w1_ref, b1_ref, w2_ref, b2_ref, o_ref):
    h = jnp.dot(x_ref[...], w1_ref[...], preferred_element_type=jnp.float32)
    h = jnp.maximum(h + b1_ref[...], 0.0)                            # fc1+ReLU
    o_ref[...] = (jnp.dot(h, w2_ref[...], preferred_element_type=jnp.float32)
                  + b2_ref[...])                                     # fc2


# ------------------------------ Pallas wrappers -----------------------------

def conv_bn_relu_pool(patches, wmat, bias, out_dtype):
    """patches: (N, 4, K, P) bf16; wmat: (Cout, K) bf16 -> (N, Cout, P)."""
    N, _, K, P = patches.shape
    Cout = wmat.shape[0]
    return pl.pallas_call(
        _conv_bn_relu_pool_kernel,
        out_shape=jax.ShapeDtypeStruct((N, Cout, P), out_dtype),
        grid=(N,),
        in_specs=[
            pl.BlockSpec((1, 4, K, P), lambda n: (n, 0, 0, 0)),
            pl.BlockSpec((Cout, K), lambda n: (0, 0)),
            pl.BlockSpec((Cout, 1), lambda n: (0, 0)),
        ],
        out_specs=pl.BlockSpec((1, Cout, P), lambda n: (n, 0, 0)),
        compiler_params=pltpu.CompilerParams(
            dimension_semantics=("parallel",)),
    )(patches, wmat, bias)


def mlp(x, w1, b1, w2, b2):
    N, D = x.shape
    H = w1.shape[1]
    O = w2.shape[1]
    return pl.pallas_call(
        _mlp_kernel,
        out_shape=jax.ShapeDtypeStruct((N, O), jnp.float32),
        grid=(1,),
        in_specs=[
            pl.BlockSpec((N, D), lambda i: (0, 0)),
            pl.BlockSpec((D, H), lambda i: (0, 0)),
            pl.BlockSpec((1, H), lambda i: (0, 0)),
            pl.BlockSpec((H, O), lambda i: (0, 0)),
            pl.BlockSpec((1, O), lambda i: (0, 0)),
        ],
        out_specs=pl.BlockSpec((N, O), lambda i: (0, 0)),
    )(x, w1, b1, w2, b2)


# ------------------------------ plain-JAX glue ------------------------------

def pool_patches(x, Hp, Wp):
    """x: (N, C, H, W) -> (N, 4, C*9, Hp*Wp) bf16 patches.

    Axis 1 enumerates the 2x2 max-pool positions (dr, dc).  For each position,
    pooled output (r, c) corresponds to conv output (2r+dr, 2c+dc), whose
    receptive field starts at input (4r+2dr, 4c+2dc).  The K axis holds the
    3x3xC window in (c, kh, kw) order, matching w.reshape(Cout, C*9).
    """
    N, C, _, _ = x.shape
    x = x.astype(jnp.bfloat16)                     # bf16 MXU inputs, half DMA
    per_pos = []
    for dr in (0, 1):
        for dc in (0, 1):
            slabs = []
            for kh in range(3):
                for kw in range(3):
                    r0 = 2 * dr + kh
                    c0 = 2 * dc + kw
                    slabs.append(x[:, :, r0:r0 + 4 * (Hp - 1) + 1:4,
                                   c0:c0 + 4 * (Wp - 1) + 1:4])
            p = jnp.stack(slabs, axis=2)           # (N, C, 9, Hp, Wp)
            per_pos.append(p.reshape(N, C * 9, Hp * Wp))
    return jnp.stack(per_pos, axis=1)              # (N, 4, 9C, Hp*Wp)


def init_params(key):
    ks = jax.random.split(key, 16)

    def conv_block(kw_, kb_, kg_, kbe_, cin, cout):
        w = 0.1 * jax.random.normal(kw_, (cout, cin, 3, 3), jnp.float32)
        b = 0.05 * jax.random.normal(kb_, (cout,), jnp.float32)
        gamma = 1.0 + 0.1 * jax.random.normal(kg_, (cout,), jnp.float32)
        beta = 0.1 * jax.random.normal(kbe_, (cout,), jnp.float32)
        rmean = jnp.zeros((cout,), jnp.float32)    # BN running stats (inference)
        rvar = jnp.ones((cout,), jnp.float32)
        scale = gamma / jnp.sqrt(rvar + EPS)
        shift = beta - rmean * scale
        # Fold BN into the conv: w' = w * scale, b' = b * scale + shift.
        k = 9 * cin
        kpad = ((k + 7) // 8) * 8                  # align contraction dim
        wmat = w.reshape(cout, k) * scale[:, None]  # (c, kh, kw) flat order
        if kpad != k:
            wmat = jnp.pad(wmat, ((0, 0), (0, kpad - k)))
        bias = (b * scale + shift).reshape(cout, 1)
        return dict(wmat=wmat.astype(jnp.bfloat16), bias=bias)

    return {
        "layer1": conv_block(ks[0], ks[1], ks[2], ks[3], 3, 16),
        "layer2": conv_block(ks[4], ks[5], ks[6], ks[7], 16, 32),
        "layer3": conv_block(ks[8], ks[9], ks[10], ks[11], 32, 64),
        "fc1_w": 0.05 * jax.random.normal(ks[12], (3 * 3 * 64, 10), jnp.float32),
        "fc1_b": 0.05 * jax.random.normal(ks[13], (1, 10), jnp.float32),
        "fc2_w": 0.05 * jax.random.normal(ks[14], (10, 2), jnp.float32),
        "fc2_b": 0.05 * jax.random.normal(ks[15], (1, 2), jnp.float32),
    }


def cnn_forward(x_nchw, params):
    x = x_nchw                                      # NCHW, exactly like PyTorch
    N = x.shape[0]
    for name in ("layer1", "layer2", "layer3"):
        p = params[name]
        H, W = x.shape[2], x.shape[3]
        Ho, Wo = (H - 3) // 2 + 1, (W - 3) // 2 + 1
        Hp, Wp = Ho // 2, Wo // 2
        patches = pool_patches(x, Hp, Wp)           # (N, 4, 9C, Hp*Wp) bf16
        K, Kpad = patches.shape[2], p["wmat"].shape[1]
        if Kpad != K:                               # zero-pad K (layer1: 27->32)
            patches = jnp.pad(patches, ((0, 0), (0, 0), (0, Kpad - K), (0, 0)))
        out_dtype = jnp.float32 if name == "layer3" else jnp.bfloat16
        y = conv_bn_relu_pool(patches, p["wmat"], p["bias"], out_dtype)
        x = y.reshape(N, -1, Hp, Wp)                # stays NCHW / C-major
    # flatten matches PyTorch's out.view(B, -1) on NCHW: (C, H, W) order, free.
    feat = x.reshape(N, -1)                         # (N, 576), f32
    return mlp(feat, params["fc1_w"], params["fc1_b"],
               params["fc2_w"], params["fc2_b"])


if __name__ == "__main__":
    key = jax.random.PRNGKey(0)
    kx, kp = jax.random.split(key)
    params = init_params(kp)
    # spatial size 224 is forced by fc1 expecting 3*3*64 = 576 features; batch=2.
    x = jax.random.normal(kx, (2, 3, 224, 224), jnp.float32)        # NCHW input
    out = jax.jit(cnn_forward)(x, params)
    out = jax.block_until_ready(out)
    assert out.shape == (2, 2) and out.dtype == jnp.float32
    print("KERNEL_OK")
</pallas_src>

<mosaic_0001>
module attributes {stable_mosaic.version = 11 : i64} {
  func.func @_conv_bn_relu_pool_kernel(%arg0: i32, %arg1: memref<1x4x32x3025xbf16, #tpu.memory_space<vmem>>, %arg2: memref<16x32xbf16, #tpu.memory_space<vmem>>, %arg3: memref<16x1xf32, #tpu.memory_space<vmem>>, %arg4: memref<1x16x3025xbf16, #tpu.memory_space<vmem>>) attributes {dimension_semantics = [#tpu.dimension_semantics<parallel>], iteration_bounds = array<i64: 2>, scalar_prefetch = 0 : i64, scratch_operands = 0 : i64, tpu.core_type = #tpu.core_type<tc>, window_params = [{transform_indices = @transform_0, window_bounds = array<i64: 1, 4, 32, 3025>}, {pipeline_mode = #tpu.pipeline_mode<synchronous>, transform_indices = @transform_1, window_bounds = array<i64: 16, 32>}, {pipeline_mode = #tpu.pipeline_mode<synchronous>, transform_indices = @transform_2, window_bounds = array<i64: 16, 1>}, {transform_indices = @transform_3, window_bounds = array<i64: 1, 16, 3025>}]} {
    %c0 = arith.constant 0 : index
    %c0_0 = arith.constant 0 : index
    %0 = vector.load %arg2[%c0, %c0_0] : memref<16x32xbf16, #tpu.memory_space<vmem>>, vector<16x32xbf16>
    %c0_1 = arith.constant 0 : index
    %c0_2 = arith.constant 0 : index
    %c0_3 = arith.constant 0 : index
    %c0_4 = arith.constant 0 : index
    %1 = vector.load %arg1[%c0_1, %c0_2, %c0_3, %c0_4] : memref<1x4x32x3025xbf16, #tpu.memory_space<vmem>>, vector<1x1x32x3025xbf16>
    %2 = vector.shape_cast %1 : vector<1x1x32x3025xbf16> to vector<32x3025xbf16>
    %cst = arith.constant dense<0.000000e+00> : vector<16x3025xf32>
    %3 = tpu.matmul %0, %2, %cst {dimension_numbers = #tpu.dot_dimension_numbers<[1], [0], [0], [1], [0, 0, 1, 1], [], []>} : vector<16x32xbf16>, vector<32x3025xbf16>, vector<16x3025xf32> -> vector<16x3025xf32>
    %c0_5 = arith.constant 0 : index
    %c1 = arith.constant 1 : index
    %c0_6 = arith.constant 0 : index
    %c0_7 = arith.constant 0 : index
    %4 = vector.load %arg1[%c0_5, %c1, %c0_6, %c0_7] : memref<1x4x32x3025xbf16, #tpu.memory_space<vmem>>, vector<1x1x32x3025xbf16>
    %5 = vector.shape_cast %4 : vector<1x1x32x3025xbf16> to vector<32x3025xbf16>
    %cst_8 = arith.constant dense<0.000000e+00> : vector<16x3025xf32>
    %6 = tpu.matmul %0, %5, %cst_8 {dimension_numbers = #tpu.dot_dimension_numbers<[1], [0], [0], [1], [0, 0, 1, 1], [], []>} : vector<16x32xbf16>, vector<32x3025xbf16>, vector<16x3025xf32> -> vector<16x3025xf32>
    %c0_9 = arith.constant 0 : index
    %c2 = arith.constant 2 : index
    %c0_10 = arith.constant 0 : index
    %c0_11 = arith.constant 0 : index
    %7 = vector.load %arg1[%c0_9, %c2, %c0_10, %c0_11] : memref<1x4x32x3025xbf16, #tpu.memory_space<vmem>>, vector<1x1x32x3025xbf16>
    %8 = vector.shape_cast %7 : vector<1x1x32x3025xbf16> to vector<32x3025xbf16>
    %cst_12 = arith.constant dense<0.000000e+00> : vector<16x3025xf32>
    %9 = tpu.matmul %0, %8, %cst_12 {dimension_numbers = #tpu.dot_dimension_numbers<[1], [0], [0], [1], [0, 0, 1, 1], [], []>} : vector<16x32xbf16>, vector<32x3025xbf16>, vector<16x3025xf32> -> vector<16x3025xf32>
    %c0_13 = arith.constant 0 : index
    %c3 = arith.constant 3 : index
    %c0_14 = arith.constant 0 : index
    %c0_15 = arith.constant 0 : index
    %10 = vector.load %arg1[%c0_13, %c3, %c0_14, %c0_15] : memref<1x4x32x3025xbf16, #tpu.memory_space<vmem>>, vector<1x1x32x3025xbf16>
    %11 = vector.shape_cast %10 : vector<1x1x32x3025xbf16> to vector<32x3025xbf16>
    %cst_16 = arith.constant dense<0.000000e+00> : vector<16x3025xf32>
    %12 = tpu.matmul %0, %11, %cst_16 {dimension_numbers = #tpu.dot_dimension_numbers<[1], [0], [0], [1], [0, 0, 1, 1], [], []>} : vector<16x32xbf16>, vector<32x3025xbf16>, vector<16x3025xf32> -> vector<16x3025xf32>
    %13 = arith.maximumf %3, %6 : vector<16x3025xf32>
    %14 = arith.maximumf %9, %12 : vector<16x3025xf32>
    %15 = arith.maximumf %13, %14 : vector<16x3025xf32>
    %c0_17 = arith.constant 0 : index
    %c0_18 = arith.constant 0 : index
    %16 = vector.load %arg3[%c0_17, %c0_18] : memref<16x1xf32, #tpu.memory_space<vmem>>, vector<16x1xf32>
    %17 = vector.broadcast %16 : vector<16x1xf32> to vector<16x3025xf32>
    %18 = arith.addf %15, %17 : vector<16x3025xf32>
    %cst_19 = arith.constant 0.000000e+00 : f32
    %19 = vector.broadcast %cst_19 : f32 to vector<16x3025xf32>
    %20 = arith.maximumf %18, %19 : vector<16x3025xf32>
    %21 = arith.truncf %20 : vector<16x3025xf32> to vector<16x3025xbf16>
    %c0_20 = arith.constant 0 : index
    %c0_21 = arith.constant 0 : index
    %c0_22 = arith.constant 0 : index
    %22 = vector.load %arg4[%c0_20, %c0_21, %c0_22] : memref<1x16x3025xbf16, #tpu.memory_space<vmem>>, vector<1x16x3025xbf16>
    %23 = vector.shape_cast %22 : vector<1x16x3025xbf16> to vector<16x3025xbf16>
    %24 = vector.shape_cast %21 : vector<16x3025xbf16> to vector<1x16x3025xbf16>
    tpu.vector_store %arg4[%c0_20, %c0_21, %c0_22], %24 {strides = array<i32>} : memref<1x16x3025xbf16, #tpu.memory_space<vmem>>, vector<1x16x3025xbf16>,
    return
  }
  func.func @transform_0(%arg0: i32) -> (i32, i32, i32, i32) {
    %c0_i32 = arith.constant 0 : i32
    %c0_i32_0 = arith.constant 0 : i32
    %c0_i32_1 = arith.constant 0 : i32
    %c0_i32_2 = arith.constant 0 : i32
    return %arg0, %c0_i32, %c0_i32_0, %c0_i32_1 : i32, i32, i32, i32
  }
  func.func @transform_1(%arg0: i32) -> (i32, i32) {
    %c0_i32 = arith.constant 0 : i32
    %c0_i32_0 = arith.constant 0 : i32
    %c0_i32_1 = arith.constant 0 : i32
    return %c0_i32, %c0_i32_0 : i32, i32
  }
  func.func @transform_2(%arg0: i32) -> (i32, i32) {
    %c0_i32 = arith.constant 0 : i32
    %c0_i32_0 = arith.constant 0 : i32
    %c0_i32_1 = arith.constant 0 : i32
    return %c0_i32, %c0_i32_0 : i32, i32
  }
  func.func @transform_3(%arg0: i32) -> (i32, i32, i32) {
    %c0_i32 = arith.constant 0 : i32
    %c0_i32_0 = arith.constant 0 : i32
    %c0_i32_1 = arith.constant 0 : i32
    return %arg0, %c0_i32, %c0_i32_0 : i32, i32, i32
  }
}

module attributes {stable_mosaic.version = 11 : i64} {
  func.func @_conv_bn_relu_pool_kernel(%arg0: i32, %arg1: memref<1x4x144x169xbf16, #tpu.memory_space<vmem>>, %arg2: memref<32x144xbf16, #tpu.memory_space<vmem>>, %arg3: memref<32x1xf32, #tpu.memory_space<vmem>>, %arg4: memref<1x32x169xbf16, #tpu.memory_space<vmem>>) attributes {dimension_semantics = [#tpu.dimension_semantics<parallel>], iteration_bounds = array<i64: 2>, scalar_prefetch = 0 : i64, scratch_operands = 0 : i64, tpu.core_type = #tpu.core_type<tc>, window_params = [{transform_indices = @transform_0, window_bounds = array<i64: 1, 4, 144, 169>}, {pipeline_mode = #tpu.pipeline_mode<synchronous>, transform_indices = @transform_1, window_bounds = array<i64: 32, 144>}, {pipeline_mode = #tpu.pipeline_mode<synchronous>, transform_indices = @transform_2, window_bounds = array<i64: 32, 1>}, {transform_indices = @transform_3, window_bounds = array<i64: 1, 32, 169>}]} {
    %c0 = arith.constant 0 : index
    %c0_0 = arith.constant 0 : index
    %0 = vector.load %arg2[%c0, %c0_0] : memref<32x144xbf16, #tpu.memory_space<vmem>>, vector<32x144xbf16>
    %c0_1 = arith.constant 0 : index
    %c0_2 = arith.constant 0 : index
    %c0_3 = arith.constant 0 : index
    %c0_4 = arith.constant 0 : index
    %1 = vector.load %arg1[%c0_1, %c0_2, %c0_3, %c0_4] : memref<1x4x144x169xbf16, #tpu.memory_space<vmem>>, vector<1x1x144x169xbf16>
    %2 = vector.shape_cast %1 : vector<1x1x144x169xbf16> to vector<144x169xbf16>
    %cst = arith.constant dense<0.000000e+00> : vector<32x169xf32>
    %3 = tpu.matmul %0, %2, %cst {dimension_numbers = #tpu.dot_dimension_numbers<[1], [0], [0], [1], [0, 0, 1, 1], [], []>} : vector<32x144xbf16>, vector<144x169xbf16>, vector<32x169xf32> -> vector<32x169xf32>
    %c0_5 = arith.constant 0 : index
    %c1 = arith.constant 1 : index
    %c0_6 = arith.constant 0 : index
    %c0_7 = arith.constant 0 : index
    %4 = vector.load %arg1[%c0_5, %c1, %c0_6, %c0_7] : memref<1x4x144x169xbf16, #tpu.memory_space<vmem>>, vector<1x1x144x169xbf16>
    %5 = vector.shape_cast %4 : vector<1x1x144x169xbf16> to vector<144x169xbf16>
    %cst_8 = arith.constant dense<0.000000e+00> : vector<32x169xf32>
    %6 = tpu.matmul %0, %5, %cst_8 {dimension_numbers = #tpu.dot_dimension_numbers<[1], [0], [0], [1], [0, 0, 1, 1], [], []>} : vector<32x144xbf16>, vector<144x169xbf16>, vector<32x169xf32> -> vector<32x169xf32>
    %c0_9 = arith.constant 0 : index
    %c2 = arith.constant 2 : index
    %c0_10 = arith.constant 0 : index
    %c0_11 = arith.constant 0 : index
    %7 = vector.load %arg1[%c0_9, %c2, %c0_10, %c0_11] : memref<1x4x144x169xbf16, #tpu.memory_space<vmem>>, vector<1x1x144x169xbf16>
    %8 = vector.shape_cast %7 : vector<1x1x144x169xbf16> to vector<144x169xbf16>
    %cst_12 = arith.constant dense<0.000000e+00> : vector<32x169xf32>
    %9 = tpu.matmul %0, %8, %cst_12 {dimension_numbers = #tpu.dot_dimension_numbers<[1], [0], [0], [1], [0, 0, 1, 1], [], []>} : vector<32x144xbf16>, vector<144x169xbf16>, vector<32x169xf32> -> vector<32x169xf32>
    %c0_13 = arith.constant 0 : index
    %c3 = arith.constant 3 : index
    %c0_14 = arith.constant 0 : index
    %c0_15 = arith.constant 0 : index
    %10 = vector.load %arg1[%c0_13, %c3, %c0_14, %c0_15] : memref<1x4x144x169xbf16, #tpu.memory_space<vmem>>, vector<1x1x144x169xbf16>
    %11 = vector.shape_cast %10 : vector<1x1x144x169xbf16> to vector<144x169xbf16>
    %cst_16 = arith.constant dense<0.000000e+00> : vector<32x169xf32>
    %12 = tpu.matmul %0, %11, %cst_16 {dimension_numbers = #tpu.dot_dimension_numbers<[1], [0], [0], [1], [0, 0, 1, 1], [], []>} : vector<32x144xbf16>, vector<144x169xbf16>, vector<32x169xf32> -> vector<32x169xf32>
    %13 = arith.maximumf %3, %6 : vector<32x169xf32>
    %14 = arith.maximumf %9, %12 : vector<32x169xf32>
    %15 = arith.maximumf %13, %14 : vector<32x169xf32>
    %c0_17 = arith.constant 0 : index
    %c0_18 = arith.constant 0 : index
    %16 = vector.load %arg3[%c0_17, %c0_18] : memref<32x1xf32, #tpu.memory_space<vmem>>, vector<32x1xf32>
    %17 = vector.broadcast %16 : vector<32x1xf32> to vector<32x169xf32>
    %18 = arith.addf %15, %17 : vector<32x169xf32>
    %cst_19 = arith.constant 0.000000e+00 : f32
    %19 = vector.broadcast %cst_19 : f32 to vector<32x169xf32>
    %20 = arith.maximumf %18, %19 : vector<32x169xf32>
    %21 = arith.truncf %20 : vector<32x169xf32> to vector<32x169xbf16>
    %c0_20 = arith.constant 0 : index
    %c0_21 = arith.constant 0 : index
    %c0_22 = arith.constant 0 : index
    %22 = vector.load %arg4[%c0_20, %c0_21, %c0_22] : memref<1x32x169xbf16, #tpu.memory_space<vmem>>, vector<1x32x169xbf16>
    %23 = vector.shape_cast %22 : vector<1x32x169xbf16> to vector<32x169xbf16>
    %24 = vector.shape_cast %21 : vector<32x169xbf16> to vector<1x32x169xbf16>
    tpu.vector_store %arg4[%c0_20, %c0_21, %c0_22], %24 {strides = array<i32>} : memref<1x32x169xbf16, #tpu.memory_space<vmem>>, vector<1x32x169xbf16>,
    return
  }
  func.func @transform_0(%arg0: i32) -> (i32, i32, i32, i32) {
    %c0_i32 = arith.constant 0 : i32
    %c0_i32_0 = arith.constant 0 : i32
    %c0_i32_1 = arith.constant 0 : i32
    %c0_i32_2 = arith.constant 0 : i32
    return %arg0, %c0_i32, %c0_i32_0, %c0_i32_1 : i32, i32, i32, i32
  }
  func.func @transform_1(%arg0: i32) -> (i32, i32) {
    %c0_i32 = arith.constant 0 : i32
    %c0_i32_0 = arith.constant 0 : i32
    %c0_i32_1 = arith.constant 0 : i32
    return %c0_i32, %c0_i32_0 : i32, i32
  }
  func.func @transform_2(%arg0: i32) -> (i32, i32) {
    %c0_i32 = arith.constant 0 : i32
    %c0_i32_0 = arith.constant 0 : i32
    %c0_i32_1 = arith.constant 0 : i32
    return %c0_i32, %c0_i32_0 : i32, i32
  }
  func.func @transform_3(%arg0: i32) -> (i32, i32, i32) {
    %c0_i32 = arith.constant 0 : i32
    %c0_i32_0 = arith.constant 0 : i32
    %c0_i32_1 = arith.constant 0 : i32
    return %arg0, %c0_i32, %c0_i32_0 : i32, i32, i32
  }
}

module attributes {stable_mosaic.version = 11 : i64} {
  func.func @_conv_bn_relu_pool_kernel(%arg0: i32, %arg1: memref<1x4x288x9xbf16, #tpu.memory_space<vmem>>, %arg2: memref<64x288xbf16, #tpu.memory_space<vmem>>, %arg3: memref<64x1xf32, #tpu.memory_space<vmem>>, %arg4: memref<1x64x9xf32, #tpu.memory_space<vmem>>) attributes {dimension_semantics = [#tpu.dimension_semantics<parallel>], iteration_bounds = array<i64: 2>, scalar_prefetch = 0 : i64, scratch_operands = 0 : i64, tpu.core_type = #tpu.core_type<tc>, window_params = [{transform_indices = @transform_0, window_bounds = array<i64: 1, 4, 288, 9>}, {pipeline_mode = #tpu.pipeline_mode<synchronous>, transform_indices = @transform_1, window_bounds = array<i64: 64, 288>}, {pipeline_mode = #tpu.pipeline_mode<synchronous>, transform_indices = @transform_2, window_bounds = array<i64: 64, 1>}, {transform_indices = @transform_3, window_bounds = array<i64: 1, 64, 9>}]} {
    %c0 = arith.constant 0 : index
    %c0_0 = arith.constant 0 : index
    %0 = vector.load %arg2[%c0, %c0_0] : memref<64x288xbf16, #tpu.memory_space<vmem>>, vector<64x288xbf16>
    %c0_1 = arith.constant 0 : index
    %c0_2 = arith.constant 0 : index
    %c0_3 = arith.constant 0 : index
    %c0_4 = arith.constant 0 : index
    %1 = vector.load %arg1[%c0_1, %c0_2, %c0_3, %c0_4] : memref<1x4x288x9xbf16, #tpu.memory_space<vmem>>, vector<1x1x288x9xbf16>
    %2 = vector.shape_cast %1 : vector<1x1x288x9xbf16> to vector<288x9xbf16>
    %cst = arith.constant dense<0.000000e+00> : vector<64x9xf32>
    %3 = tpu.matmul %0, %2, %cst {dimension_numbers = #tpu.dot_dimension_numbers<[1], [0], [0], [1], [0, 0, 1, 1], [], []>} : vector<64x288xbf16>, vector<288x9xbf16>, vector<64x9xf32> -> vector<64x9xf32>
    %c0_5 = arith.constant 0 : index
    %c1 = arith.constant 1 : index
    %c0_6 = arith.constant 0 : index
    %c0_7 = arith.constant 0 : index
    %4 = vector.load %arg1[%c0_5, %c1, %c0_6, %c0_7] : memref<1x4x288x9xbf16, #tpu.memory_space<vmem>>, vector<1x1x288x9xbf16>
    %5 = vector.shape_cast %4 : vector<1x1x288x9xbf16> to vector<288x9xbf16>
    %cst_8 = arith.constant dense<0.000000e+00> : vector<64x9xf32>
    %6 = tpu.matmul %0, %5, %cst_8 {dimension_numbers = #tpu.dot_dimension_numbers<[1], [0], [0], [1], [0, 0, 1, 1], [], []>} : vector<64x288xbf16>, vector<288x9xbf16>, vector<64x9xf32> -> vector<64x9xf32>
    %c0_9 = arith.constant 0 : index
    %c2 = arith.constant 2 : index
    %c0_10 = arith.constant 0 : index
    %c0_11 = arith.constant 0 : index
    %7 = vector.load %arg1[%c0_9, %c2, %c0_10, %c0_11] : memref<1x4x288x9xbf16, #tpu.memory_space<vmem>>, vector<1x1x288x9xbf16>
    %8 = vector.shape_cast %7 : vector<1x1x288x9xbf16> to vector<288x9xbf16>
    %cst_12 = arith.constant dense<0.000000e+00> : vector<64x9xf32>
    %9 = tpu.matmul %0, %8, %cst_12 {dimension_numbers = #tpu.dot_dimension_numbers<[1], [0], [0], [1], [0, 0, 1, 1], [], []>} : vector<64x288xbf16>, vector<288x9xbf16>, vector<64x9xf32> -> vector<64x9xf32>
    %c0_13 = arith.constant 0 : index
    %c3 = arith.constant 3 : index
    %c0_14 = arith.constant 0 : index
    %c0_15 = arith.constant 0 : index
    %10 = vector.load %arg1[%c0_13, %c3, %c0_14, %c0_15] : memref<1x4x288x9xbf16, #tpu.memory_space<vmem>>, vector<1x1x288x9xbf16>
    %11 = vector.shape_cast %10 : vector<1x1x288x9xbf16> to vector<288x9xbf16>
    %cst_16 = arith.constant dense<0.000000e+00> : vector<64x9xf32>
    %12 = tpu.matmul %0, %11, %cst_16 {dimension_numbers = #tpu.dot_dimension_numbers<[1], [0], [0], [1], [0, 0, 1, 1], [], []>} : vector<64x288xbf16>, vector<288x9xbf16>, vector<64x9xf32> -> vector<64x9xf32>
    %13 = arith.maximumf %3, %6 : vector<64x9xf32>
    %14 = arith.maximumf %9, %12 : vector<64x9xf32>
    %15 = arith.maximumf %13, %14 : vector<64x9xf32>
    %c0_17 = arith.constant 0 : index
    %c0_18 = arith.constant 0 : index
    %16 = vector.load %arg3[%c0_17, %c0_18] : memref<64x1xf32, #tpu.memory_space<vmem>>, vector<64x1xf32>
    %17 = vector.broadcast %16 : vector<64x1xf32> to vector<64x9xf32>
    %18 = arith.addf %15, %17 : vector<64x9xf32>
    %cst_19 = arith.constant 0.000000e+00 : f32
    %19 = vector.broadcast %cst_19 : f32 to vector<64x9xf32>
    %20 = arith.maximumf %18, %19 : vector<64x9xf32>
    %c0_20 = arith.constant 0 : index
    %c0_21 = arith.constant 0 : index
    %c0_22 = arith.constant 0 : index
    %21 = vector.load %arg4[%c0_20, %c0_21, %c0_22] : memref<1x64x9xf32, #tpu.memory_space<vmem>>, vector<1x64x9xf32>
    %22 = vector.shape_cast %21 : vector<1x64x9xf32> to vector<64x9xf32>
    %23 = vector.shape_cast %20 : vector<64x9xf32> to vector<1x64x9xf32>
    tpu.vector_store %arg4[%c0_20, %c0_21, %c0_22], %23 {strides = array<i32>} : memref<1x64x9xf32, #tpu.memory_space<vmem>>, vector<1x64x9xf32>,
    return
  }
  func.func @transform_0(%arg0: i32) -> (i32, i32, i32, i32) {
    %c0_i32 = arith.constant 0 : i32
    %c0_i32_0 = arith.constant 0 : i32
    %c0_i32_1 = arith.constant 0 : i32
    %c0_i32_2 = arith.constant 0 : i32
    return %arg0, %c0_i32, %c0_i32_0, %c0_i32_1 : i32, i32, i32, i32
  }
  func.func @transform_1(%arg0: i32) -> (i32, i32) {
    %c0_i32 = arith.constant 0 : i32
    %c0_i32_0 = arith.constant 0 : i32
    %c0_i32_1 = arith.constant 0 : i32
    return %c0_i32, %c0_i32_0 : i32, i32
  }
  func.func @transform_2(%arg0: i32) -> (i32, i32) {
    %c0_i32 = arith.constant 0 : i32
    %c0_i32_0 = arith.constant 0 : i32
    %c0_i32_1 = arith.constant 0 : i32
    return %c0_i32, %c0_i32_0 : i32, i32
  }
  func.func @transform_3(%arg0: i32) -> (i32, i32, i32) {
    %c0_i32 = arith.constant 0 : i32
    %c0_i32_0 = arith.constant 0 : i32
    %c0_i32_1 = arith.constant 0 : i32
    return %arg0, %c0_i32, %c0_i32_0 : i32, i32, i32
  }
}

module attributes {stable_mosaic.version = 11 : i64} {
  func.func @_mlp_kernel(%arg0: i32, %arg1: memref<2x576xf32, #tpu.memory_space<vmem>>, %arg2: memref<576x10xf32, #tpu.memory_space<vmem>>, %arg3: memref<1x10xf32, #tpu.memory_space<vmem>>, %arg4: memref<10x2xf32, #tpu.memory_space<vmem>>, %arg5: memref<1x2xf32, #tpu.memory_space<vmem>>, %arg6: memref<2x2xf32, #tpu.memory_space<vmem>>) attributes {dimension_semantics = [#tpu.dimension_semantics<arbitrary>], iteration_bounds = array<i64: 1>, scalar_prefetch = 0 : i64, scratch_operands = 0 : i64, tpu.core_type = #tpu.core_type<tc>, window_params = [{pipeline_mode = #tpu.pipeline_mode<synchronous>, transform_indices = @transform_0, window_bounds = array<i64: 2, 576>}, {pipeline_mode = #tpu.pipeline_mode<synchronous>, transform_indices = @transform_1, window_bounds = array<i64: 576, 10>}, {pipeline_mode = #tpu.pipeline_mode<synchronous>, transform_indices = @transform_2, window_bounds = array<i64: 1, 10>}, {pipeline_mode = #tpu.pipeline_mode<synchronous>, transform_indices = @transform_3, window_bounds = array<i64: 10, 2>}, {pipeline_mode = #tpu.pipeline_mode<synchronous>, transform_indices = @transform_4, window_bounds = array<i64: 1, 2>}, {pipeline_mode = #tpu.pipeline_mode<synchronous>, transform_indices = @transform_5, window_bounds = array<i64: 2, 2>}]} {
    %c0 = arith.constant 0 : index
    %c0_0 = arith.constant 0 : index
    %0 = vector.load %arg1[%c0, %c0_0] : memref<2x576xf32, #tpu.memory_space<vmem>>, vector<2x576xf32>
    %c0_1 = arith.constant 0 : index
    %c0_2 = arith.constant 0 : index
    %1 = vector.load %arg2[%c0_1, %c0_2] : memref<576x10xf32, #tpu.memory_space<vmem>>, vector<576x10xf32>
    %cst = arith.constant dense<0.000000e+00> : vector<2x10xf32>
    %2 = tpu.matmul %0, %1, %cst {dimension_numbers = #tpu.dot_dimension_numbers<[1], [0], [0], [1], [0, 0, 1, 1], [], []>} : vector<2x576xf32>, vector<576x10xf32>, vector<2x10xf32> -> vector<2x10xf32>
    %c0_3 = arith.constant 0 : index
    %c0_4 = arith.constant 0 : index
    %3 = vector.load %arg3[%c0_3, %c0_4] : memref<1x10xf32, #tpu.memory_space<vmem>>, vector<1x10xf32>
    %4 = vector.broadcast %3 : vector<1x10xf32> to vector<2x10xf32>
    %5 = arith.addf %2, %4 : vector<2x10xf32>
    %cst_5 = arith.constant 0.000000e+00 : f32
    %6 = vector.broadcast %cst_5 : f32 to vector<2x10xf32>
    %7 = arith.maximumf %5, %6 : vector<2x10xf32>
    %c0_6 = arith.constant 0 : index
    %c0_7 = arith.constant 0 : index
    %8 = vector.load %arg4[%c0_6, %c0_7] : memref<10x2xf32, #tpu.memory_space<vmem>>, vector<10x2xf32>
    %cst_8 = arith.constant dense<0.000000e+00> : vector<2x2xf32>
    %9 = tpu.matmul %7, %8, %cst_8 {dimension_numbers = #tpu.dot_dimension_numbers<[1], [0], [0], [1], [0, 0, 1, 1], [], []>} : vector<2x10xf32>, vector<10x2xf32>, vector<2x2xf32> -> vector<2x2xf32>
    %c0_9 = arith.constant 0 : index
    %c0_10 = arith.constant 0 : index
    %10 = vector.load %arg5[%c0_9, %c0_10] : memref<1x2xf32, #tpu.memory_space<vmem>>, vector<1x2xf32>
    %11 = vector.broadcast %10 : vector<1x2xf32> to vector<2x2xf32>
    %12 = arith.addf %9, %11 : vector<2x2xf32>
    %c0_11 = arith.constant 0 : index
    %c0_12 = arith.constant 0 : index
    %13 = vector.load %arg6[%c0_11, %c0_12] : memref<2x2xf32, #tpu.memory_space<vmem>>, vector<2x2xf32>
    tpu.vector_store %arg6[%c0_11, %c0_12], %12 {strides = array<i32>} : memref<2x2xf32, #tpu.memory_space<vmem>>, vector<2x2xf32>,
    return
  }
  func.func @transform_0(%arg0: i32) -> (i32, i32) {
    %c0_i32 = arith.constant 0 : i32
    %c0_i32_0 = arith.constant 0 : i32
    %c0_i32_1 = arith.constant 0 : i32
    return %c0_i32, %c0_i32_0 : i32, i32
  }
  func.func @transform_1(%arg0: i32) -> (i32, i32) {
    %c0_i32 = arith.constant 0 : i32
    %c0_i32_0 = arith.constant 0 : i32
    %c0_i32_1 = arith.constant 0 : i32
    return %c0_i32, %c0_i32_0 : i32, i32
  }
  func.func @transform_2(%arg0: i32) -> (i32, i32) {
    %c0_i32 = arith.constant 0 : i32
    %c0_i32_0 = arith.constant 0 : i32
    %c0_i32_1 = arith.constant 0 : i32
    return %c0_i32, %c0_i32_0 : i32, i32
  }
  func.func @transform_3(%arg0: i32) -> (i32, i32) {
    %c0_i32 = arith.constant 0 : i32
    %c0_i32_0 = arith.constant 0 : i32
    %c0_i32_1 = arith.constant 0 : i32
    return %c0_i32, %c0_i32_0 : i32, i32
  }
  func.func @transform_4(%arg0: i32) -> (i32, i32) {
    %c0_i32 = arith.constant 0 : i32
    %c0_i32_0 = arith.constant 0 : i32
    %c0_i32_1 = arith.constant 0 : i32
    return %c0_i32, %c0_i32_0 : i32, i32
  }
  func.func @transform_5(%arg0: i32) -> (i32, i32) {
    %c0_i32 = arith.constant 0 : i32
    %c0_i32_0 = arith.constant 0 : i32
    %c0_i32_1 = arith.constant 0 : i32
    return %c0_i32, %c0_i32_0 : i32, i32
  }
}

</mosaic_0001>

<llo_original>
// kernel: cnn_forward.4
$region0: #{cnn_forward.4}
  #allocation0 [shape = 'u32[]', space=smem, size = 0x4, offset = 0x4, fixed_abs, tag = 'smem constant byte address 0x4 - core index']
  #allocation1 [shape = 'u32[144,128]{1,0:T(1,128)}', space=vmem, size = 0x12000, scoped, tag = 'internal scratch']
  %s0 = inlined_call_operand.vmem [shape: bf16[2,4,32,3025], index: 0, kind: input, shape index: {}]
  %s1 = inlined_call_operand.vmem [shape: bf16[16,32], index: 1, kind: input, shape index: {}]
  %s2 = inlined_call_operand.vmem [shape: f32[16,1], index: 2, kind: input, shape index: {}]
  %s3 = inlined_call_operand.vmem [shape: bf16[2,16,3025], index: 3, kind: output, shape index: {}]
  %s4 = sld [smem:[#allocation0]]
  $region45: #{cnn_forward.4} parent=0
    _
  %s6 = ssub.s32 1, %s4
  %s7 = scalar_select 0, %s6, %s4
  loop: start=0, step=1, limit=4
  $region2: #{cnn_forward.4} parent=0 // loop_pre_header
    _
  $region3: #{cnn_forward.4} parent=0 // loop_header
    %s9 = sphi 0, %s13
    %p10 = scmp.ge.s32.totalorder %s9, 4
    %s19 = sphi 0, %s21
    %s22 = sphi 0, %s19
    %s23 = sphi 0, %s22
    %s39 = sphi 0, %s23
    %s43 = sphi 0, %s43
    %s45 = sphi 0, %s43
    %s46 = sphi 0, %s45
    %s60 = sphi 0, %s46
    %s64 = sphi 0, %s64
    %s66 = sphi 0, %s64
    %s67 = sphi 0, %s66
    %s81 = sphi 0, %s67
    %s87 = sphi 0, %s89
    %s90 = sphi 0, %s87
    %s91 = sphi 0, %s90
    %s107 = sphi 0, %s91
  $region4: #{cnn_forward.4} parent=0 // loop_header_branch
    %12 = sbr.rel (%p10) target = $region8
  $region5: #{cnn_forward.4} parent=0 // loop_body
    %s14 = ssub.s32 %s9, 1
    %s15 = ssub.s32 %s9, 2
    %s16 = sadd.s32 %s9, 1
    %s17 = ssub.s32 %s9, %s16
    %p18 = scmp.eq.s32.totalorder %s17, 0
    %s20 = sadd.s32 %s19, 1
    %s21 = scalar_select %p18, %s19, %s20
    %p24 = pneg %p18
    %p25 = scmp.eq.s32.totalorder %s9, 1
    %p26 = por %p24, %p25
    %p27 = scmp.ne.s32.totalorder %s19, %s22
    %p28 = scmp.eq.s32.totalorder %s9, 0
    %p29 = por %p27, %p28
    %p30 = scmp.ne.s32.totalorder %s19, %s22
    %p31 = scmp.eq.s32.totalorder %s14, 1
    %p32 = por %p30, %p31
    %p33 = scmp.ne.s32.totalorder %s22, %s23
    %p34 = scmp.eq.s32.totalorder %s14, 0
    %p35 = por %p33, %p34
    %p36 = scmp.ne.s32.totalorder %s22, %s23
    %p37 = scmp.eq.s32.totalorder %s15, 1
    %p38 = por %p36, %p37
    %p40 = scmp.ne.s32.totalorder %s23, %s39
    %p41 = scmp.eq.s32.totalorder %s15, 0
    %p42 = por %p40, %p41
    %s44 = sadd.s32 %s43, 1
    %p47 = scmp.eq.s32.totalorder %s9, 1
    %p48 = scmp.ne.s32.totalorder %s43, %s45
    %p49 = scmp.eq.s32.totalorder %s9, 0
    %p50 = por %p48, %p49
    %p51 = scmp.ne.s32.totalorder %s43, %s45
    %p52 = scmp.eq.s32.totalorder %s14, 1
    %p53 = por %p51, %p52
    %p54 = scmp.ne.s32.totalorder %s45, %s46
    %p55 = scmp.eq.s32.totalorder %s14, 0
    %p56 = por %p54, %p55
    %p57 = scmp.ne.s32.totalorder %s45, %s46
    %p58 = scmp.eq.s32.totalorder %s15, 1
    %p59 = por %p57, %p58
    %p61 = scmp.ne.s32.totalorder %s46, %s60
    %p62 = scmp.eq.s32.totalorder %s15, 0
    %p63 = por %p61, %p62
    %s65 = sadd.s32 %s64, 1
    %p68 = scmp.eq.s32.totalorder %s9, 1
    %p69 = scmp.ne.s32.totalorder %s64, %s66
    %p70 = scmp.eq.s32.totalorder %s9, 0
    %p71 = por %p69, %p70
    %p72 = scmp.ne.s32.totalorder %s64, %s66
    %p73 = scmp.eq.s32.totalorder %s14, 1
    %p74 = por %p72, %p73
    %p75 = scmp.ne.s32.totalorder %s66, %s67
    %p76 = scmp.eq.s32.totalorder %s14, 0
    %p77 = por %p75, %p76
    %p78 = scmp.ne.s32.totalorder %s66, %s67
    %p79 = scmp.eq.s32.totalorder %s15, 1
    %p80 = por %p78, %p79
    %p82 = scmp.ne.s32.totalorder %s67, %s81
    %p83 = scmp.eq.s32.totalorder %s15, 0
    %p84 = por %p82, %p83
    %s85 = ssub.s32 %s9, %s16
    %p86 = scmp.eq.s32.totalorder %s85, 0
    %s88 = sadd.s32 %s87, 1
    %s89 = scalar_select %p86, %s87, %s88
    %p92 = pneg %p86
    %p93 = scmp.eq.s32.totalorder %s9, 1
    %p94 = por %p92, %p93
    %p95 = scmp.ne.s32.totalorder %s87, %s90
    %p96 = scmp.eq.s32.totalorder %s9, 0
    %p97 = por %p95, %p96
    %p98 = scmp.ne.s32.totalorder %s87, %s90
    %p99 = scmp.eq.s32.totalorder %s14, 1
    %p100 = por %p98, %p99
    %p101 = scmp.ne.s32.totalorder %s90, %s91
    %p102 = scmp.eq.s32.totalorder %s14, 0
    %p103 = por %p101, %p102
    %p104 = scmp.ne.s32.totalorder %s90, %s91
    %p105 = scmp.eq.s32.totalorder %s15, 1
    %p106 = por %p104, %p105
    %p108 = scmp.ne.s32.totalorder %s91, %s107
    %p109 = scmp.eq.s32.totalorder %s15, 0
    %p110 = por %p108, %p109
    %p111 = scmp.le.s32.totalorder 1, %s9
    %p112 = scmp.lt.s32.totalorder %s9, 3
    %p113 = pnand %p111, %p112
    %p114 = pneg %p113
    // Predicated region
    $region9: #{cnn_forward.4} parent=5 // pred_check
      _
    $region10: #{cnn_forward.4} parent=5 // pred_check_branch
      %116 = sbr.rel (%p113) target = $region12
    $region11: #{cnn_forward.4} parent=5 // pred_region
      %s117 = ssub.s32 %s9, 1
      // Predicated region
      $region13: #{cnn_forward.4} parent=11 // pred_check
        %p118 = pneg %p56
      $region14: #{cnn_forward.4} parent=11 // pred_check_branch
        %120 = sbr.rel (%p118) target = $region16
      $region15: #{cnn_forward.4} parent=11 // pred_region
        _
      $region16: #{cnn_forward.4} parent=11 // pred_fallthru
        _
      // Predicated region
      $region17: #{cnn_forward.4} parent=11 // pred_check
        %p121 = pneg %p77
      $region18: #{cnn_forward.4} parent=11 // pred_check_branch
        %123 = sbr.rel (%p121) target = $region20
      $region19: #{cnn_forward.4} parent=11 // pred_region
        _
      $region20: #{cnn_forward.4} parent=11 // pred_fallthru
        _
    $region12: #{cnn_forward.4} parent=5 // pred_fallthru
      _
    %p124 = scmp.lt.s32.totalorder %s9, 2
    // Predicated region
    $region21: #{cnn_forward.4} parent=5 // pred_check
      %p125 = pneg %p124
    $region22: #{cnn_forward.4} parent=5 // pred_check_branch
      %127 = sbr.rel (%p125) target = $region24
    $region23: #{cnn_forward.4} parent=5 // pred_region
      // Predicated region
      $region25: #{cnn_forward.4} parent=23 // pred_check
        %p128 = pneg %p29
      $region26: #{cnn_forward.4} parent=23 // pred_check_branch
        %130 = sbr.rel (%p128) target = $region28
      $region27: #{cnn_forward.4} parent=23 // pred_region
        %p131 = scmp.lt.s32.totalorder %s9, 1
        %s132 = scalar_select %p131, %s9, 1
        %s133 = smul.addr %s132, 384
        %s134 = smul.addr %s133, 4
        %s135 = scalar_lea.vmem %s0, %s134
      $region28: #{cnn_forward.4} parent=23 // pred_fallthru
        _
    $region24: #{cnn_forward.4} parent=5 // pred_fallthru
      _
    %p136 = scmp.le.s32.totalorder 1, %s9
    %p137 = scmp.lt.s32.totalorder %s9, 3
    %p138 = pnand %p136, %p137
    %p139 = pneg %p138
    // Predicated region
    $region29: #{cnn_forward.4} parent=5 // pred_check
      _
    $region30: #{cnn_forward.4} parent=5 // pred_check_branch
      %141 = sbr.rel (%p138) target = $region32
    $region31: #{cnn_forward.4} parent=5 // pred_region
      %s142 = ssub.s32 %s9, 1
      %p143 = scmp.lt.s32.totalorder %s14, 1
      %s144 = scalar_select %p143, %s14, 1
      %s145 = smul.addr %s144, 384
      %s146 = smul.addr %s145, 4
      %s147 = scalar_lea.vmem %s0, %s146
      %p148 = pneg %p35
      %p149 = pneg %p32
      %p150 = pneg %p56
      %p151 = pneg %p53
      %p152 = pneg %p77
      %p153 = pneg %p74
      %p154 = pneg %p103
      %p155 = pneg %p100
      %p156 = scmp.lt.s32.totalorder %s14, 1
      %s157 = scalar_select %p156, %s14, 1
      %s158 = smul.addr %s157, 48
      %s159 = smul.addr %s158, 4
      %s160 = scalar_lea.vmem %s3, %s159
      %p161 = scmp.lt.s32.totalorder %s14, 1
      %s162 = scalar_select %p161, %s14, 1
      %s163 = smul.addr %s162, 384
      %s164 = smul.addr %s163, 4
      %s165 = scalar_lea.vmem %s0, %s164
      %p166 = scmp.lt.s32.totalorder %s14, 1
      %s167 = scalar_select %p166, %s14, 1
      %s168 = smul.addr %s167, 48
      %s169 = smul.addr %s168, 4
      %s170 = scalar_lea.vmem %s3, %s169
      %v172 = vld [vmem:[%s1] sm:$0xf]
      %v173 = vld [vmem:[%s1 + $0x4] sm:$0xf]
      %v174 = vld [vmem:[%s165] sm:$0xff]
      %v175 = vld [vmem:[%s165 + $0x8] sm:$0xff]
      %v176 = vld [vmem:[%s165 + $0x10] sm:$0xff]
      %v177 = vld [vmem:[%s165 + $0x18] sm:$0xff]
      %v178 = vld [vmem:[%s165 + $0x20] sm:$0xff]
      %v179 = vld [vmem:[%s165 + $0x28] sm:$0xff]
      %v180 = vld [vmem:[%s165 + $0x30] sm:$0xff]
      %v181 = vld [vmem:[%s165 + $0x38] sm:$0xff]
      %v182 = vld [vmem:[%s165 + $0x40] sm:$0xff]
      %v183 = vld [vmem:[%s165 + $0x48] sm:$0xff]
      %v184 = vld [vmem:[%s165 + $0x50] sm:$0xff]
      %v185 = vld [vmem:[%s165 + $0x58] sm:$0xff]
      %v186 = vld [vmem:[%s165 + $0x60] sm:$0xff]
      %v187 = vld [vmem:[%s165 + $0x68] sm:$0xff]
      %v188 = vld [vmem:[%s165 + $0x70] sm:$0xff]
      %v189 = vld [vmem:[%s165 + $0x78] sm:$0xff]
      %v190 = vld [vmem:[%s165 + $0x80] sm:$0xff]
      %v191 = vld [vmem:[%s165 + $0x88] sm:$0xff]
      %v192 = vld [vmem:[%s165 + $0x90] sm:$0xff]
      %v193 = vld [vmem:[%s165 + $0x98] sm:$0xff]
      %v194 = vld [vmem:[%s165 + $0xa0] sm:$0xff]
      %v195 = vld [vmem:[%s165 + $0xa8] sm:$0xff]
      %v196 = vld [vmem:[%s165 + $0xb0] sm:$0xff]
      %v197 = vld [vmem:[%s165 + $0xb8] sm:$0xff]
      %v198 = vld [vmem:[%s165 + $0xc0] sm:$0xff]
      %v199 = vld [vmem:[%s165 + $0xc8] sm:$0xff]
      %v200 = vld [vmem:[%s165 + $0xd0] sm:$0xff]
      %v201 = vld [vmem:[%s165 + $0xd8] sm:$0xff]
      %v202 = vld [vmem:[%s165 + $0xe0] sm:$0xff]
      %v203 = vld [vmem:[%s165 + $0xe8] sm:$0xff]
      %v204 = vld [vmem:[%s165 + $0xf0] sm:$0xff]
      %v205 = vld [vmem:[%s165 + $0xf8] sm:$0xff]
      %v206 = vld [vmem:[%s165 + $0x100] sm:$0xff]
      %v207 = vld [vmem:[%s165 + $0x108] sm:$0xff]
      %v208 = vld [vmem:[%s165 + $0x110] sm:$0xff]
      %v209 = vld [vmem:[%s165 + $0x118] sm:$0xff]
      %v210 = vld [vmem:[%s165 + $0x120] sm:$0xff]
      %v211 = vld [vmem:[%s165 + $0x128] sm:$0xff]
      %v212 = vld [vmem:[%s165 + $0x130] sm:$0xff]
      %v213 = vld [vmem:[%s165 + $0x138] sm:$0xff]
      %v214 = vld [vmem:[%s165 + $0x140] sm:$0xff]
      %v215 = vld [vmem:[%s165 + $0x148] sm:$0xff]
      %v216 = vld [vmem:[%s165 + $0x150] sm:$0xff]
      %v217 = vld [vmem:[%s165 + $0x158] sm:$0xff]
      %v218 = vld [vmem:[%s165 + $0x160] sm:$0xff]
      %v219 = vld [vmem:[%s165 + $0x168] sm:$0xff]
      %v220 = vld [vmem:[%s165 + $0x170] sm:$0xff]
      %v221 = vld [vmem:[%s165 + $0x178] sm:$0xff]
      %v224 = vunpack.c.l.b16 %v172
      %v225 = vunpack.c.l.b16 %v173
      %v226 = vpack.c.b16 %v225, %v224
      %v275 = vunpack.c.l.b16 %v174
      %v276 = vunpack.c.h.b16 %v174
      %v277 = vunpack.c.l.b16 %v175
      %v278 = vunpack.c.h.b16 %v175
      %v279 = vunpack.c.l.b16 %v176
      %v280 = vunpack.c.h.b16 %v176
      %v281 = vunpack.c.l.b16 %v177
      %v282 = vunpack.c.h.b16 %v177
      %v283 = vunpack.c.l.b16 %v178
      %v284 = vunpack.c.h.b16 %v178
      %v285 = vunpack.c.l.b16 %v179
      %v286 = vunpack.c.h.b16 %v179
      %v287 = vunpack.c.l.b16 %v180
      %v288 = vunpack.c.h.b16 %v180
      %v289 = vunpack.c.l.b16 %v181
      %v290 = vunpack.c.h.b16 %v181
      %v291 = vunpack.c.l.b16 %v182
      %v292 = vunpack.c.h.b16 %v182
      %v293 = vunpack.c.l.b16 %v183
      %v294 = vunpack.c.h.b16 %v183
      %v295 = vunpack.c.l.b16 %v184
      %v296 = vunpack.c.h.b16 %v184
      %v297 = vunpack.c.l.b16 %v185
      %v298 = vunpack.c.h.b16 %v185
      %v299 = vunpack.c.l.b16 %v186
      %v300 = vunpack.c.h.b16 %v186
      %v301 = vunpack.c.l.b16 %v187
      %v302 = vunpack.c.h.b16 %v187
      %v303 = vunpack.c.l.b16 %v188
      %v304 = vunpack.c.h.b16 %v188
      %v305 = vunpack.c.l.b16 %v189
      %v306 = vunpack.c.h.b16 %v189
      %v307 = vunpack.c.l.b16 %v190
      %v308 = vunpack.c.h.b16 %v190
      %v309 = vunpack.c.l.b16 %v191
      %v310 = vunpack.c.h.b16 %v191
      %v311 = vunpack.c.l.b16 %v192
      %v312 = vunpack.c.h.b16 %v192
      %v313 = vunpack.c.l.b16 %v193
      %v314 = vunpack.c.h.b16 %v193
      %v315 = vunpack.c.l.b16 %v194
      %v316 = vunpack.c.h.b16 %v194
      %v317 = vunpack.c.l.b16 %v195
      %v318 = vunpack.c.h.b16 %v195
      %v319 = vunpack.c.l.b16 %v196
      %v320 = vunpack.c.h.b16 %v196
      %v321 = vunpack.c.l.b16 %v197
      %v322 = vunpack.c.h.b16 %v197
      %v323 = vunpack.c.l.b16 %v198
      %v324 = vunpack.c.h.b16 %v198
      %v325 = vunpack.c.l.b16 %v199
      %v326 = vunpack.c.h.b16 %v199
      %v327 = vunpack.c.l.b16 %v200
      %v328 = vunpack.c.h.b16 %v200
      %v329 = vunpack.c.l.b16 %v201
      %v330 = vunpack.c.h.b16 %v201
      %v331 = vunpack.c.l.b16 %v202
      %v332 = vunpack.c.h.b16 %v202
      %v333 = vunpack.c.l.b16 %v203
      %v334 = vunpack.c.h.b16 %v203
      %v335 = vunpack.c.l.b16 %v204
      %v336 = vunpack.c.h.b16 %v204
      %v337 = vunpack.c.l.b16 %v205
      %v338 = vunpack.c.h.b16 %v205
      %v339 = vunpack.c.l.b16 %v206
      %v340 = vunpack.c.h.b16 %v206
      %v341 = vunpack.c.l.b16 %v207
      %v342 = vunpack.c.h.b16 %v207
      %v343 = vunpack.c.l.b16 %v208
      %v344 = vunpack.c.h.b16 %v208
      %v345 = vunpack.c.l.b16 %v209
      %v346 = vunpack.c.h.b16 %v209
      %v347 = vunpack.c.l.b16 %v210
      %v348 = vunpack.c.h.b16 %v210
      %v349 = vunpack.c.l.b16 %v211
      %v350 = vunpack.c.h.b16 %v211
      %v351 = vunpack.c.l.b16 %v212
      %v352 = vunpack.c.h.b16 %v212
      %v353 = vunpack.c.l.b16 %v213
      %v354 = vunpack.c.h.b16 %v213
      %v355 = vunpack.c.l.b16 %v214
      %v356 = vunpack.c.h.b16 %v214
      %v357 = vunpack.c.l.b16 %v215
      %v358 = vunpack.c.h.b16 %v215
      %v359 = vunpack.c.l.b16 %v216
      %v360 = vunpack.c.h.b16 %v216
      %v361 = vunpack.c.l.b16 %v217
      %v362 = vunpack.c.h.b16 %v217
      %v363 = vunpack.c.l.b16 %v218
      %v364 = vunpack.c.h.b16 %v218
      %v365 = vunpack.c.l.b16 %v219
      %v366 = vunpack.c.h.b16 %v219
      %v367 = vunpack.c.l.b16 %v220
      %v368 = vunpack.c.h.b16 %v220
      %v369 = vunpack.c.l.b16 %v221
      %v370 = vunpack.c.h.b16 %v221
      %v371 = vpack.c.b16 %v299, %v275
      %v372 = vpack.c.b16 %v300, %v276
      %v373 = vpack.c.b16 %v301, %v277
      %v374 = vpack.c.b16 %v302, %v278
      %v375 = vpack.c.b16 %v303, %v279
      %v376 = vpack.c.b16 %v304, %v280
      %v377 = vpack.c.b16 %v305, %v281
      %v378 = vpack.c.b16 %v306, %v282
      %v379 = vpack.c.b16 %v307, %v283
      %v380 = vpack.c.b16 %v308, %v284
      %v381 = vpack.c.b16 %v309, %v285
      %v382 = vpack.c.b16 %v310, %v286
      %v383 = vpack.c.b16 %v311, %v287
      %v384 = vpack.c.b16 %v312, %v288
      %v385 = vpack.c.b16 %v313, %v289
      %v386 = vpack.c.b16 %v314, %v290
      %v387 = vpack.c.b16 %v315, %v291
      %v388 = vpack.c.b16 %v316, %v292
      %v389 = vpack.c.b16 %v317, %v293
      %v390 = vpack.c.b16 %v318, %v294
      %v391 = vpack.c.b16 %v319, %v295
      %v392 = vpack.c.b16 %v320, %v296
      %v393 = vpack.c.b16 %v321, %v297
      %v394 = vpack.c.b16 %v322, %v298
      %v395 = vpack.c.b16 %v347, %v323
      %v396 = vpack.c.b16 %v348, %v324
      %v397 = vpack.c.b16 %v349, %v325
      %v398 = vpack.c.b16 %v350, %v326
      %v399 = vpack.c.b16 %v351, %v327
      %v400 = vpack.c.b16 %v352, %v328
      %v401 = vpack.c.b16 %v353, %v329
      %v402 = vpack.c.b16 %v354, %v330
      %v403 = vpack.c.b16 %v355, %v331
      %v404 = vpack.c.b16 %v356, %v332
      %v405 = vpack.c.b16 %v357, %v333
      %v406 = vpack.c.b16 %v358, %v334
      %v407 = vpack.c.b16 %v359, %v335
      %v408 = vpack.c.b16 %v360, %v336
      %v409 = vpack.c.b16 %v361, %v337
      %v410 = vpack.c.b16 %v362, %v338
      %v411 = vpack.c.b16 %v363, %v339
      %v412 = vpack.c.b16 %v364, %v340
      %v413 = vpack.c.b16 %v365, %v341
      %v414 = vpack.c.b16 %v366, %v342
      %v415 = vpack.c.b16 %v367, %v343
      %v416 = vpack.c.b16 %v368, %v344
      %v417 = vpack.c.b16 %v369, %v345
      %v418 = vpack.c.b16 %v370, %v346
      %vm467 = vcmask 261120
      %v469 = vsel %vm467, %v226, 0
      %471 = vmatprep.subr.bf16.mxu0 %v372
      %472 = vmatpush1.bf16.msra.mxu0 %v371
      %473 = vmatprep.subr.bf16.mxu0 %v396
      %474 = vmatpush1.bf16.msra.mxu0 %v395
      %475 = vmatprep.subr.bf16.mxu0 0
      %476 = vmatpush1.bf16.msra.mxu0 0
      %477 = vmatprep.subr.bf16.mxu0 0
      %478 = vmatpush1.bf16.msra.mxu0 0
      %479 = vmatprep.subr.bf16.mxu0 0
      %480 = vmatpush1.bf16.msra.mxu0 0
      %481 = vmatprep.subr.bf16.mxu0 0
      %482 = vmatpush1.bf16.msra.mxu0 0
      %483 = vmatprep.subr.bf16.mxu0 0
      %484 = vmatpush1.bf16.msra.mxu0 0
      %485 = vmatprep.subr.bf16.mxu0 0
      %486 = vmatpush1.bf16.msra.mxu0 0
      %487 = vmatprep.subr.bf16.mxu0 0
      %488 = vmatpush1.bf16.msra.mxu0 0
      %489 = vmatprep.subr.bf16.mxu0 0
      %490 = vmatpush1.bf16.msra.mxu0 0
      %491 = vmatprep.subr.bf16.mxu0 0
      %492 = vmatpush1.bf16.msra.mxu0 0
      %493 = vmatprep.subr.bf16.mxu0 0
      %494 = vmatpush1.bf16.msra.mxu0 0
      %495 = vmatprep.subr.bf16.mxu0 0
      %496 = vmatpush1.bf16.msra.mxu0 0
      %497 = vmatprep.subr.bf16.mxu0 0
      %498 = vmatpush1.bf16.msra.mxu0 0
      %499 = vmatprep.subr.bf16.mxu0 0
      %500 = vmatpush1.bf16.msra.mxu0 0
      %501 = vmatprep.subr.bf16.mxu0 0
      %502 = vmatpush1.bf16.msra.mxu0 0
      %503 = vmatprep.mubr.bf16.mxu0 0
      %504 = vmatmul.mubr.bf16.gmra.mrb[0].mxu0 %v469
      %v505 = vpop.f32.mrb[0].mxu0
      %v506 = vadd.f32 0.0, %v505
      %v507 = vpop.f32.mrb[0].mxu0
      %v508 = vadd.f32 0.0, %v507
      %v509 = vpop.f32.mrb[0].mxu0
      %v510 = vadd.f32 0.0, %v509
      %v511 = vpop.f32.mrb[0].mxu0
      %v512 = vadd.f32 0.0, %v511
      %513 = vdwg.mxu0
      %514 = vmatprep.subr.bf16.mxu0 %v374
      %515 = vmatpush1.bf16.msra.mxu0 %v373
      %516 = vmatprep.subr.bf16.mxu0 %v398
      %517 = vmatpush1.bf16.msra.mxu0 %v397
      %518 = vmatprep.subr.bf16.mxu0 0
      %519 = vmatpush1.bf16.msra.mxu0 0
      %520 = vmatprep.subr.bf16.mxu0 0
      %521 = vmatpush1.bf16.msra.mxu0 0
      %522 = vmatprep.subr.bf16.mxu0 0
      %523 = vmatpush1.bf16.msra.mxu0 0
      %524 = vmatprep.subr.bf16.mxu0 0
      %525 = vmatpush1.bf16.msra.mxu0 0
      %526 = vmatprep.subr.bf16.mxu0 0
      %527 = vmatpush1.bf16.msra.mxu0 0
      %528 = vmatprep.subr.bf16.mxu0 0
      %529 = vmatpush1.bf16.msra.mxu0 0
      %530 = vmatprep.subr.bf16.mxu0 0
      %531 = vmatpush1.bf16.msra.mxu0 0
      %532 = vmatprep.subr.bf16.mxu0 0
      %533 = vmatpush1.bf16.msra.mxu0 0
      %534 = vmatprep.subr.bf16.mxu0 0
      %535 = vmatpush1.bf16.msra.mxu0 0
      %536 = vmatprep.subr.bf16.mxu0 0
      %537 = vmatpush1.bf16.msra.mxu0 0
      %538 = vmatprep.subr.bf16.mxu0 0
      %539 = vmatpush1.bf16.msra.mxu0 0
      %540 = vmatprep.subr.bf16.mxu0 0
      %541 = vmatpush1.bf16.msra.mxu0 0
      %542 = vmatprep.subr.bf16.mxu0 0
      %543 = vmatpush1.bf16.msra.mxu0 0
      %544 = vmatprep.subr.bf16.mxu0 0
      %545 = vmatpush1.bf16.msra.mxu0 0
      %546 = vmatprep.mubr.bf16.mxu0 0
      %547 = vmatmul.mubr.bf16.gmra.mrb[0].mxu0 %v469
      %v548 = vpop.f32.mrb[0].mxu0
      %v549 = vadd.f32 0.0, %v548
      %v550 = vpop.f32.mrb[0].mxu0
      %v551 = vadd.f32 0.0, %v550
      %v552 = vpop.f32.mrb[0].mxu0
      %v553 = vadd.f32 0.0, %v552
      %v554 = vpop.f32.mrb[0].mxu0
      %v555 = vadd.f32 0.0, %v554
      %556 = vdwg.mxu0
      %557 = vmatprep.subr.bf16.mxu0 %v376
      %558 = vmatpush1.bf16.msra.mxu0 %v375
      %559 = vmatprep.subr.bf16.mxu0 %v400
      %560 = vmatpush1.bf16.msra.mxu0 %v399
      %561 = vmatprep.subr.bf16.mxu0 0
      %562 = vmatpush1.bf16.msra.mxu0 0
      %563 = vmatprep.subr.bf16.mxu0 0
      %564 = vmatpush1.bf16.msra.mxu0 0
      %565 = vmatprep.subr.bf16.mxu0 0
      %566 = vmatpush1.bf16.msra.mxu0 0
      %567 = vmatprep.subr.bf16.mxu0 0
      %568 = vmatpush1.bf16.msra.mxu0 0
      %569 = vmatprep.subr.bf16.mxu0 0
      %570 = vmatpush1.bf16.msra.mxu0 0
      %571 = vmatprep.subr.bf16.mxu0 0
      %572 = vmatpush1.bf16.msra.mxu0 0
      %573 = vmatprep.subr.bf16.mxu0 0
      %574 = vmatpush1.bf16.msra.mxu0 0
      %575 = vmatprep.subr.bf16.mxu0 0
      %576 = vmatpush1.bf16.msra.mxu0 0
      %577 = vmatprep.subr.bf16.mxu0 0
      %578 = vmatpush1.bf16.msra.mxu0 0
      %579 = vmatprep.subr.bf16.mxu0 0
      %580 = vmatpush1.bf16.msra.mxu0 0
      %581 = vmatprep.subr.bf16.mxu0 0
      %582 = vmatpush1.bf16.msra.mxu0 0
      %583 = vmatprep.subr.bf16.mxu0 0
      %584 = vmatpush1.bf16.msra.mxu0 0
      %585 = vmatprep.subr.bf16.mxu0 0
      %586 = vmatpush1.bf16.msra.mxu0 0
      %587 = vmatprep.subr.bf16.mxu0 0
      %588 = vmatpush1.bf16.msra.mxu0 0
      %589 = vmatprep.mubr.bf16.mxu0 0
      %590 = vmatmul.mubr.bf16.gmra.mrb[0].mxu0 %v469
      %v591 = vpop.f32.mrb[0].mxu0
      %v592 = vadd.f32 0.0, %v591
      %v593 = vpop.f32.mrb[0].mxu0
      %v594 = vadd.f32 0.0, %v593
      %v595 = vpop.f32.mrb[0].mxu0
      %v596 = vadd.f32 0.0, %v595
      %v597 = vpop.f32.mrb[0].mxu0
      %v598 = vadd.f32 0.0, %v597
      %599 = vdwg.mxu0
      %600 = vmatprep.subr.bf16.mxu0 %v378
      %601 = vmatpush1.bf16.msra.mxu0 %v377
      %602 = vmatprep.subr.bf16.mxu0 %v402
      %603 = vmatpush1.bf16.msra.mxu0 %v401
      %604 = vmatprep.subr.bf16.mxu0 0
      %605 = vmatpush1.bf16.msra.mxu0 0
      %606 = vmatprep.subr.bf16.mxu0 0
      %607 = vmatpush1.bf16.msra.mxu0 0
      %608 = vmatprep.subr.bf16.mxu0 0
      %609 = vmatpush1.bf16.msra.mxu0 0
      %610 = vmatprep.subr.bf16.mxu0 0
      %611 = vmatpush1.bf16.msra.mxu0 0
      %612 = vmatprep.subr.bf16.mxu0 0
      %613 = vmatpush1.bf16.msra.mxu0 0
      %614 = vmatprep.subr.bf16.mxu0 0
      %615 = vmatpush1.bf16.msra.mxu0 0
      %616 = vmatprep.subr.bf16.mxu0 0
      %617 = vmatpush1.bf16.msra.mxu0 0
      %618 = vmatprep.subr.bf16.mxu0 0
      %619 = vmatpush1.bf16.msra.mxu0 0
      %620 = vmatprep.subr.bf16.mxu0 0
      %621 = vmatpush1.bf16.msra.mxu0 0
      %622 = vmatprep.subr.bf16.mxu0 0
      %623 = vmatpush1.bf16.msra.mxu0 0
      %624 = vmatprep.subr.bf16.mxu0 0
      %625 = vmatpush1.bf16.msra.mxu0 0
      %626 = vmatprep.subr.bf16.mxu0 0
      %627 = vmatpush1.bf16.msra.mxu0 0
      %628 = vmatprep.subr.bf16.mxu0 0
      %629 = vmatpush1.bf16.msra.mxu0 0
      %630 = vmatprep.subr.bf16.mxu0 0
      %631 = vmatpush1.bf16.msra.mxu0 0
      %632 = vmatprep.mubr.bf16.mxu0 0
      %633 = vmatmul.mubr.bf16.gmra.mrb[0].mxu0 %v469
      %v634 = vpop.f32.mrb[0].mxu0
      %v635 = vadd.f32 0.0, %v634
      %v636 = vpop.f32.mrb[0].mxu0
      %v637 = vadd.f32 0.0, %v636
      %v638 = vpop.f32.mrb[0].mxu0
      %v639 = vadd.f32 0.0, %v638
      %v640 = vpop.f32.mrb[0].mxu0
      %v641 = vadd.f32 0.0, %v640
      %642 = vdwg.mxu0
      %643 = vmatprep.subr.bf16.mxu0 %v380
      %644 = vmatpush1.bf16.msra.mxu0 %v379
      %645 = vmatprep.subr.bf16.mxu0 %v404
      %646 = vmatpush1.bf16.msra.mxu0 %v403
      %647 = vmatprep.subr.bf16.mxu0 0
      %648 = vmatpush1.bf16.msra.mxu0 0
      %649 = vmatprep.subr.bf16.mxu0 0
      %650 = vmatpush1.bf16.msra.mxu0 0
      %651 = vmatprep.subr.bf16.mxu0 0
      %652 = vmatpush1.bf16.msra.mxu0 0
      %653 = vmatprep.subr.bf16.mxu0 0
      %654 = vmatpush1.bf16.msra.mxu0 0
      %655 = vmatprep.subr.bf16.mxu0 0
      %656 = vmatpush1.bf16.msra.mxu0 0
      %657 = vmatprep.subr.bf16.mxu0 0
      %658 = vmatpush1.bf16.msra.mxu0 0
      %659 = vmatprep.subr.bf16.mxu0 0
      %660 = vmatpush1.bf16.msra.mxu0 0
      %661 = vmatprep.subr.bf16.mxu0 0
      %662 = vmatpush1.bf16.msra.mxu0 0
      %663 = vmatprep.subr.bf16.mxu0 0
      %664 = vmatpush1.bf16.msra.mxu0 0
      %665 = vmatprep.subr.bf16.mxu0 0
      %666 = vmatpush1.bf16.msra.mxu0 0
      %667 = vmatprep.subr.bf16.mxu0 0
      %668 = vmatpush1.bf16.msra.mxu0 0
      %669 = vmatprep.subr.bf16.mxu0 0
      %670 = vmatpush1.bf16.msra.mxu0 0
      %671 = vmatprep.subr.bf16.mxu0 0
      %672 = vmatpush1.bf16.msra.mxu0 0
      %673 = vmatprep.subr.bf16.mxu0 0
      %674 = vmatpush1.bf16.msra.mxu0 0
      %675 = vmatprep.mubr.bf16.mxu0 0
      %676 = vmatmul.mubr.bf16.gmra.mrb[0].mxu0 %v469
      %v677 = vpop.f32.mrb[0].mxu0
      %v678 = vadd.f32 0.0, %v677
      %v679 = vpop.f32.mrb[0].mxu0
      %v680 = vadd.f32 0.0, %v679
      %v681 = vpop.f32.mrb[0].mxu0
      %v682 = vadd.f32 0.0, %v681
      %v683 = vpop.f32.mrb[0].mxu0
      %v684 = vadd.f32 0.0, %v683
      %685 = vdwg.mxu0
      %686 = vmatprep.subr.bf16.mxu0 %v382
      %687 = vmatpush1.bf16.msra.mxu0 %v381
      %688 = vmatprep.subr.bf16.mxu0 %v406
      %689 = vmatpush1.bf16.msra.mxu0 %v405
      %690 = vmatprep.subr.bf16.mxu0 0
      %691 = vmatpush1.bf16.msra.mxu0 0
      %692 = vmatprep.subr.bf16.mxu0 0
      %693 = vmatpush1.bf16.msra.mxu0 0
      %694 = vmatprep.subr.bf16.mxu0 0
      %695 = vmatpush1.bf16.msra.mxu0 0
      %696 = vmatprep.subr.bf16.mxu0 0
      %697 = vmatpush1.bf16.msra.mxu0 0
      %698 = vmatprep.subr.bf16.mxu0 0
      %699 = vmatpush1.bf16.msra.mxu0 0
      %700 = vmatprep.subr.bf16.mxu0 0
      %701 = vmatpush1.bf16.msra.mxu0 0
      %702 = vmatprep.subr.bf16.mxu0 0
      %703 = vmatpush1.bf16.msra.mxu0 0
      %704 = vmatprep.subr.bf16.mxu0 0
      %705 = vmatpush1.bf16.msra.mxu0 0
      %706 = vmatprep.subr.bf16.mxu0 0
      %707 = vmatpush1.bf16.msra.mxu0 0
      %708 = vmatprep.subr.bf16.mxu0 0
      %709 = vmatpush1.bf16.msra.mxu0 0
      %710 = vmatprep.subr.bf16.mxu0 0
      %711 = vmatpush1.bf16.msra.mxu0 0
      %712 = vmatprep.subr.bf16.mxu0 0
      %713 = vmatpush1.bf16.msra.mxu0 0
      %714 = vmatprep.subr.bf16.mxu0 0
      %715 = vmatpush1.bf16.msra.mxu0 0
      %716 = vmatprep.subr.bf16.mxu0 0
      %717 = vmatpush1.bf16.msra.mxu0 0
      %718 = vmatprep.mubr.bf16.mxu0 0
      %719 = vmatmul.mubr.bf16.gmra.mrb[0].mxu0 %v469
      %v720 = vpop.f32.mrb[0].mxu0
      %v721 = vadd.f32 0.0, %v720
      %v722 = vpop.f32.mrb[0].mxu0
      %v723 = vadd.f32 0.0, %v722
      %v724 = vpop.f32.mrb[0].mxu0
      %v725 = vadd.f32 0.0, %v724
      %v726 = vpop.f32.mrb[0].mxu0
      %v727 = vadd.f32 0.0, %v726
      %728 = vdwg.mxu0
      %729 = vmatprep.subr.bf16.mxu0 %v384
      %730 = vmatpush1.bf16.msra.mxu0 %v383
      %731 = vmatprep.subr.bf16.mxu0 %v408
      %732 = vmatpush1.bf16.msra.mxu0 %v407
      %733 = vmatprep.subr.bf16.mxu0 0
      %734 = vmatpush1.bf16.msra.mxu0 0
      %735 = vmatprep.subr.bf16.mxu0 0
      %736 = vmatpush1.bf16.msra.mxu0 0
      %737 = vmatprep.subr.bf16.mxu0 0
      %738 = vmatpush1.bf16.msra.mxu0 0
      %739 = vmatprep.subr.bf16.mxu0 0
      %740 = vmatpush1.bf16.msra.mxu0 0
      %741 = vmatprep.subr.bf16.mxu0 0
      %742 = vmatpush1.bf16.msra.mxu0 0
      %743 = vmatprep.subr.bf16.mxu0 0
      %744 = vmatpush1.bf16.msra.mxu0 0
      %745 = vmatprep.subr.bf16.mxu0 0
      %746 = vmatpush1.bf16.msra.mxu0 0
      %747 = vmatprep.subr.bf16.mxu0 0
      %748 = vmatpush1.bf16.msra.mxu0 0
      %749 = vmatprep.subr.bf16.mxu0 0
      %750 = vmatpush1.bf16.msra.mxu0 0
      %751 = vmatprep.subr.bf16.mxu0 0
      %752 = vmatpush1.bf16.msra.mxu0 0
      %753 = vmatprep.subr.bf16.mxu0 0
      %754 = vmatpush1.bf16.msra.mxu0 0
      %755 = vmatprep.subr.bf16.mxu0 0
      %756 = vmatpush1.bf16.msra.mxu0 0
      %757 = vmatprep.subr.bf16.mxu0 0
      %758 = vmatpush1.bf16.msra.mxu0 0
      %759 = vmatprep.subr.bf16.mxu0 0
      %760 = vmatpush1.bf16.msra.mxu0 0
      %761 = vmatprep.mubr.bf16.mxu0 0
      %762 = vmatmul.mubr.bf16.gmra.mrb[0].mxu0 %v469
      %v763 = vpop.f32.mrb[0].mxu0
      %v764 = vadd.f32 0.0, %v763
      %v765 = vpop.f32.mrb[0].mxu0
      %v766 = vadd.f32 0.0, %v765
      %v767 = vpop.f32.mrb[0].mxu0
      %v768 = vadd.f32 0.0, %v767
      %v769 = vpop.f32.mrb[0].mxu0
      %v770 = vadd.f32 0.0, %v769
      %771 = vdwg.mxu0
      %772 = vmatprep.subr.bf16.mxu0 %v386
      %773 = vmatpush1.bf16.msra.mxu0 %v385
      %774 = vmatprep.subr.bf16.mxu0 %v410
      %775 = vmatpush1.bf16.msra.mxu0 %v409
      %776 = vmatprep.subr.bf16.mxu0 0
      %777 = vmatpush1.bf16.msra.mxu0 0
      %778 = vmatprep.subr.bf16.mxu0 0
      %779 = vmatpush1.bf16.msra.mxu0 0
      %780 = vmatprep.subr.bf16.mxu0 0
      %781 = vmatpush1.bf16.msra.mxu0 0
      %782 = vmatprep.subr.bf16.mxu0 0
      %783 = vmatpush1.bf16.msra.mxu0 0
      %784 = vmatprep.subr.bf16.mxu0 0
      %785 = vmatpush1.bf16.msra.mxu0 0
      %786 = vmatprep.subr.bf16.mxu0 0
      %787 = vmatpush1.bf16.msra.mxu0 0
      %788 = vmatprep.subr.bf16.mxu0 0
      %789 = vmatpush1.bf16.msra.mxu0 0
      %790 = vmatprep.subr.bf16.mxu0 0
      %791 = vmatpush1.bf16.msra.mxu0 0
      %792 = vmatprep.subr.bf16.mxu0 0
      %793 = vmatpush1.bf16.msra.mxu0 0
      %794 = vmatprep.subr.bf16.mxu0 0
      %795 = vmatpush1.bf16.msra.mxu0 0
      %796 = vmatprep.subr.bf16.mxu0 0
      %797 = vmatpush1.bf16.msra.mxu0 0
      %798 = vmatprep.subr.bf16.mxu0 0
      %799 = vmatpush1.bf16.msra.mxu0 0
      %800 = vmatprep.subr.bf16.mxu0 0
      %801 = vmatpush1.bf16.msra.mxu0 0
      %802 = vmatprep.subr.bf16.mxu0 0
      %803 = vmatpush1.bf16.msra.mxu0 0
      %804 = vmatprep.mubr.bf16.mxu0 0
      %805 = vmatmul.mubr.bf16.gmra.mrb[0].mxu0 %v469
      %v806 = vpop.f32.mrb[0].mxu0
      %v807 = vadd.f32 0.0, %v806
      %v808 = vpop.f32.mrb[0].mxu0
      %v809 = vadd.f32 0.0, %v808
      %v810 = vpop.f32.mrb[0].mxu0
      %v811 = vadd.f32 0.0, %v810
      %v812 = vpop.f32.mrb[0].mxu0
      %v813 = vadd.f32 0.0, %v812
      %814 = vdwg.mxu0
      %815 = vmatprep.subr.bf16.mxu0 %v388
      %816 = vmatpush1.bf16.msra.mxu0 %v387
      %817 = vmatprep.subr.bf16.mxu0 %v412
      %818 = vmatpush1.bf16.msra.mxu0 %v411
      %819 = vmatprep.subr.bf16.mxu0 0
      %820 = vmatpush1.bf16.msra.mxu0 0
      %821 = vmatprep.subr.bf16.mxu0 0
      %822 = vmatpush1.bf16.msra.mxu0 0
      %823 = vmatprep.subr.bf16.mxu0 0
      %824 = vmatpush1.bf16.msra.mxu0 0
      %825 = vmatprep.subr.bf16.mxu0 0
      %826 = vmatpush1.bf16.msra.mxu0 0
      %827 = vmatprep.subr.bf16.mxu0 0
      %828 = vmatpush1.bf16.msra.mxu0 0
      %829 = vmatprep.subr.bf16.mxu0 0
      %830 = vmatpush1.bf16.msra.mxu0 0
      %831 = vmatprep.subr.bf16.mxu0 0
      %832 = vmatpush1.bf16.msra.mxu0 0
      %833 = vmatprep.subr.bf16.mxu0 0
      %834 = vmatpush1.bf16.msra.mxu0 0
      %835 = vmatprep.subr.bf16.mxu0 0
      %836 = vmatpush1.bf16.msra.mxu0 0
      %837 = vmatprep.subr.bf16.mxu0 0
      %838 = vmatpush1.bf16.msra.mxu0 0
      %839 = vmatprep.subr.bf16.mxu0 0
      %840 = vmatpush1.bf16.msra.mxu0 0
      %841 = vmatprep.subr.bf16.mxu0 0
      %842 = vmatpush1.bf16.msra.mxu0 0
      %843 = vmatprep.subr.bf16.mxu0 0
      %844 = vmatpush1.bf16.msra.mxu0 0
      %845 = vmatprep.subr.bf16.mxu0 0
      %846 = vmatpush1.bf16.msra.mxu0 0
      %847 = vmatprep.mubr.bf16.mxu0 0
      %848 = vmatmul.mubr.bf16.gmra.mrb[0].mxu0 %v469
      %v849 = vpop.f32.mrb[0].mxu0
      %v850 = vadd.f32 0.0, %v849
      %v851 = vpop.f32.mrb[0].mxu0
      %v852 = vadd.f32 0.0, %v851
      %v853 = vpop.f32.mrb[0].mxu0
      %v854 = vadd.f32 0.0, %v853
      %v855 = vpop.f32.mrb[0].mxu0
      %v856 = vadd.f32 0.0, %v855
      %857 = vdwg.mxu0
      %858 = vmatprep.subr.bf16.mxu0 %v390
      %859 = vmatpush1.bf16.msra.mxu0 %v389
      %860 = vmatprep.subr.bf16.mxu0 %v414
      %861 = vmatpush1.bf16.msra.mxu0 %v413
      %862 = vmatprep.subr.bf16.mxu0 0
      %863 = vmatpush1.bf16.msra.mxu0 0
      %864 = vmatprep.subr.bf16.mxu0 0
      %865 = vmatpush1.bf16.msra.mxu0 0
      %866 = vmatprep.subr.bf16.mxu0 0
      %867 = vmatpush1.bf16.msra.mxu0 0
      %868 = vmatprep.subr.bf16.mxu0 0
      %869 = vmatpush1.bf16.msra.mxu0 0
      %870 = vmatprep.subr.bf16.mxu0 0
      %871 = vmatpush1.bf16.msra.mxu0 0
      %872 = vmatprep.subr.bf16.mxu0 0
      %873 = vmatpush1.bf16.msra.mxu0 0
      %874 = vmatprep.subr.bf16.mxu0 0
      %875 = vmatpush1.bf16.msra.mxu0 0
      %876 = vmatprep.subr.bf16.mxu0 0
      %877 = vmatpush1.bf16.msra.mxu0 0
      %878 = vmatprep.subr.bf16.mxu0 0
      %879 = vmatpush1.bf16.msra.mxu0 0
      %880 = vmatprep.subr.bf16.mxu0 0
      %881 = vmatpush1.bf16.msra.mxu0 0
      %882 = vmatprep.subr.bf16.mxu0 0
      %883 = vmatpush1.bf16.msra.mxu0 0
      %884 = vmatprep.subr.bf16.mxu0 0
      %885 = vmatpush1.bf16.msra.mxu0 0
      %886 = vmatprep.subr.bf16.mxu0 0
      %887 = vmatpush1.bf16.msra.mxu0 0
      %888 = vmatprep.subr.bf16.mxu0 0
      %889 = vmatpush1.bf16.msra.mxu0 0
      %890 = vmatprep.mubr.bf16.mxu0 0
      %891 = vmatmul.mubr.bf16.gmra.mrb[0].mxu0 %v469
      %v892 = vpop.f32.mrb[0].mxu0
      %v893 = vadd.f32 0.0, %v892
      %v894 = vpop.f32.mrb[0].mxu0
      %v895 = vadd.f32 0.0, %v894
      %v896 = vpop.f32.mrb[0].mxu0
      %v897 = vadd.f32 0.0, %v896
      %v898 = vpop.f32.mrb[0].mxu0
      %v899 = vadd.f32 0.0, %v898
      %900 = vdwg.mxu0
      %901 = vmatprep.subr.bf16.mxu0 %v392
      %902 = vmatpush1.bf16.msra.mxu0 %v391
      %903 = vmatprep.subr.bf16.mxu0 %v416
      %904 = vmatpush1.bf16.msra.mxu0 %v415
      %905 = vmatprep.subr.bf16.mxu0 0
      %906 = vmatpush1.bf16.msra.mxu0 0
      %907 = vmatprep.subr.bf16.mxu0 0
      %908 = vmatpush1.bf16.msra.mxu0 0
      %909 = vmatprep.subr.bf16.mxu0 0
      %910 = vmatpush1.bf16.msra.mxu0 0
      %911 = vmatprep.subr.bf16.mxu0 0
      %912 = vmatpush1.bf16.msra.mxu0 0
      %913 = vmatprep.subr.bf16.mxu0 0
      %914 = vmatpush1.bf16.msra.mxu0 0
      %915 = vmatprep.subr.bf16.mxu0 0
      %916 = vmatpush1.bf16.msra.mxu0 0
      %917 = vmatprep.subr.bf16.mxu0 0
      %918 = vmatpush1.bf16.msra.mxu0 0
      %919 = vmatprep.subr.bf16.mxu0 0
      %920 = vmatpush1.bf16.msra.mxu0 0
      %921 = vmatprep.subr.bf16.mxu0 0
      %922 = vmatpush1.bf16.msra.mxu0 0
      %923 = vmatprep.subr.bf16.mxu0 0
      %924 = vmatpush1.bf16.msra.mxu0 0
      %925 = vmatprep.subr.bf16.mxu0 0
      %926 = vmatpush1.bf16.msra.mxu0 0
      %927 = vmatprep.subr.bf16.mxu0 0
      %928 = vmatpush1.bf16.msra.mxu0 0
      %929 = vmatprep.subr.bf16.mxu0 0
      %930 = vmatpush1.bf16.msra.mxu0 0
      %931 = vmatprep.subr.bf16.mxu0 0
      %932 = vmatpush1.bf16.msra.mxu0 0
      %933 = vmatprep.mubr.bf16.mxu0 0
      %934 = vmatmul.mubr.bf16.gmra.mrb[0].mxu0 %v469
      %v935 = vpop.f32.mrb[0].mxu0
      %v936 = vadd.f32 0.0, %v935
      %v937 = vpop.f32.mrb[0].mxu0
      %v938 = vadd.f32 0.0, %v937
      %v939 = vpop.f32.mrb[0].mxu0
      %v940 = vadd.f32 0.0, %v939
      %v941 = vpop.f32.mrb[0].mxu0
      %v942 = vadd.f32 0.0, %v941
      %943 = vdwg.mxu0
      %944 = vmatprep.subr.bf16.mxu0 %v394
      %945 = vmatpush1.bf16.msra.mxu0 %v393
      %946 = vmatprep.subr.bf16.mxu0 %v418
      %947 = vmatpush1.bf16.msra.mxu0 %v417
      %948 = vmatprep.subr.bf16.mxu0 0
      %949 = vmatpush1.bf16.msra.mxu0 0
      %950 = vmatprep.subr.bf16.mxu0 0
      %951 = vmatpush1.bf16.msra.mxu0 0
      %952 = vmatprep.subr.bf16.mxu0 0
      %953 = vmatpush1.bf16.msra.mxu0 0
      %954 = vmatprep.subr.bf16.mxu0 0
      %955 = vmatpush1.bf16.msra.mxu0 0
      %956 = vmatprep.subr.bf16.mxu0 0
      %957 = vmatpush1.bf16.msra.mxu0 0
      %958 = vmatprep.subr.bf16.mxu0 0
      %959 = vmatpush1.bf16.msra.mxu0 0
      %960 = vmatprep.subr.bf16.mxu0 0
      %961 = vmatpush1.bf16.msra.mxu0 0
      %962 = vmatprep.subr.bf16.mxu0 0
      %963 = vmatpush1.bf16.msra.mxu0 0
      %964 = vmatprep.subr.bf16.mxu0 0
      %965 = vmatpush1.bf16.msra.mxu0 0
      %966 = vmatprep.subr.bf16.mxu0 0
      %967 = vmatpush1.bf16.msra.mxu0 0
      %968 = vmatprep.subr.bf16.mxu0 0
      %969 = vmatpush1.bf16.msra.mxu0 0
      %970 = vmatprep.subr.bf16.mxu0 0
      %971 = vmatpush1.bf16.msra.mxu0 0
      %972 = vmatprep.subr.bf16.mxu0 0
      %973 = vmatpush1.bf16.msra.mxu0 0
      %974 = vmatprep.subr.bf16.mxu0 0
      %975 = vmatpush1.bf16.msra.mxu0 0
      %976 = vmatprep.mubr.bf16.mxu0 0
      %977 = vmatmul.mubr.bf16.gmra.mrb[0].mxu0 %v469
      %v978 = vpop.f32.mrb[0].mxu0
      %v979 = vadd.f32 0.0, %v978
      %v980 = vpop.f32.mrb[0].mxu0
      %v981 = vadd.f32 0.0, %v980
      %v982 = vpop.f32.mrb[0].mxu0
      %v983 = vadd.f32 0.0, %v982
      %v984 = vpop.f32.mrb[0].mxu0
      %v985 = vadd.f32 0.0, %v984
      %986 = vdwg.mxu0
      %s987 = scalar_lea.vmem %s165, 384
      %v988 = vld [vmem:[%s987] sm:$0xff]
      %v989 = vld [vmem:[%s987 + $0x8] sm:$0xff]
      %v990 = vld [vmem:[%s987 + $0x10] sm:$0xff]
      %v991 = vld [vmem:[%s987 + $0x18] sm:$0xff]
      %v992 = vld [vmem:[%s987 + $0x20] sm:$0xff]
      %v993 = vld [vmem:[%s987 + $0x28] sm:$0xff]
      %v994 = vld [vmem:[%s987 + $0x30] sm:$0xff]
      %v995 = vld [vmem:[%s987 + $0x38] sm:$0xff]
      %v996 = vld [vmem:[%s987 + $0x40] sm:$0xff]
      %v997 = vld [vmem:[%s987 + $0x48] sm:$0xff]
      %v998 = vld [vmem:[%s987 + $0x50] sm:$0xff]
      %v999 = vld [vmem:[%s987 + $0x58] sm:$0xff]
      %v1000 = vld [vmem:[%s987 + $0x60] sm:$0xff]
      %v1001 = vld [vmem:[%s987 + $0x68] sm:$0xff]
      %v1002 = vld [vmem:[%s987 + $0x70] sm:$0xff]
      %v1003 = vld [vmem:[%s987 + $0x78] sm:$0xff]
      %v1004 = vld [vmem:[%s987 + $0x80] sm:$0xff]
      %v1005 = vld [vmem:[%s987 + $0x88] sm:$0xff]
      %v1006 = vld [vmem:[%s987 + $0x90] sm:$0xff]
      %v1007 = vld [vmem:[%s987 + $0x98] sm:$0xff]
      %v1008 = vld [vmem:[%s987 + $0xa0] sm:$0xff]
      %v1009 = vld [vmem:[%s987 + $0xa8] sm:$0xff]
      %v1010 = vld [vmem:[%s987 + $0xb0] sm:$0xff]
      %v1011 = vld [vmem:[%s987 + $0xb8] sm:$0xff]
      %v1012 = vld [vmem:[%s987 + $0xc0] sm:$0xff]
      %v1013 = vld [vmem:[%s987 + $0xc8] sm:$0xff]
      %v1014 = vld [vmem:[%s987 + $0xd0] sm:$0xff]
      %v1015 = vld [vmem:[%s987 + $0xd8] sm:$0xff]
      %v1016 = vld [vmem:[%s987 + $0xe0] sm:$0xff]
      %v1017 = vld [vmem:[%s987 + $0xe8] sm:$0xff]
      %v1018 = vld [vmem:[%s987 + $0xf0] sm:$0xff]
      %v1019 = vld [vmem:[%s987 + $0xf8] sm:$0xff]
      %v1020 = vld [vmem:[%s987 + $0x100] sm:$0xff]
      %v1021 = vld [vmem:[%s987 + $0x108] sm:$0xff]
      %v1022 = vld [vmem:[%s987 + $0x110] sm:$0xff]
      %v1023 = vld [vmem:[%s987 + $0x118] sm:$0xff]
      %v1024 = vld [vmem:[%s987 + $0x120] sm:$0xff]
      %v1025 = vld [vmem:[%s987 + $0x128] sm:$0xff]
      %v1026 = vld [vmem:[%s987 + $0x130] sm:$0xff]
      %v1027 = vld [vmem:[%s987 + $0x138] sm:$0xff]
      %v1028 = vld [vmem:[%s987 + $0x140] sm:$0xff]
      %v1029 = vld [vmem:[%s987 + $0x148] sm:$0xff]
      %v1030 = vld [vmem:[%s987 + $0x150] sm:$0xff]
      %v1031 = vld [vmem:[%s987 + $0x158] sm:$0xff]
      %v1032 = vld [vmem:[%s987 + $0x160] sm:$0xff]
      %v1033 = vld [vmem:[%s987 + $0x168] sm:$0xff]
      %v1034 = vld [vmem:[%s987 + $0x170] sm:$0xff]
      %v1035 = vld [vmem:[%s987 + $0x178] sm:$0xff]
      %v1084 = vunpack.c.l.b16 %v988
      %v1085 = vunpack.c.h.b16 %v988
      %v1086 = vunpack.c.l.b16 %v989
      %v1087 = vunpack.c.h.b16 %v989
      %v1088 = vunpack.c.l.b16 %v990
      %v1089 = vunpack.c.h.b16 %v990
      %v1090 = vunpack.c.l.b16 %v991
      %v1091 = vunpack.c.h.b16 %v991
      %v1092 = vunpack.c.l.b16 %v992
      %v1093 = vunpack.c.h.b16 %v992
      %v1094 = vunpack.c.l.b16 %v993
      %v1095 = vunpack.c.h.b16 %v993
      %v1096 = vunpack.c.l.b16 %v994
      %v1097 = vunpack.c.h.b16 %v994
      %v1098 = vunpack.c.l.b16 %v995
      %v1099 = vunpack.c.h.b16 %v995
      %v1100 = vunpack.c.l.b16 %v996
      %v1101 = vunpack.c.h.b16 %v996
      %v1102 = vunpack.c.l.b16 %v997
      %v1103 = vunpack.c.h.b16 %v997
      %v1104 = vunpack.c.l.b16 %v998
      %v1105 = vunpack.c.h.b16 %v998
      %v1106 = vunpack.c.l.b16 %v999
      %v1107 = vunpack.c.h.b16 %v999
      %v1108 = vunpack.c.l.b16 %v1000
      %v1109 = vunpack.c.h.b16 %v1000
      %v1110 = vunpack.c.l.b16 %v1001
      %v1111 = vunpack.c.h.b16 %v1001
      %v1112 = vunpack.c.l.b16 %v1002
      %v1113 = vunpack.c.h.b16 %v1002
      %v1114 = vunpack.c.l.b16 %v1003
      %v1115 = vunpack.c.h.b16 %v1003
      %v1116 = vunpack.c.l.b16 %v1004
      %v1117 = vunpack.c.h.b16 %v1004
      %v1118 = vunpack.c.l.b16 %v1005
      %v1119 = vunpack.c.h.b16 %v1005
      %v1120 = vunpack.c.l.b16 %v1006
      %v1121 = vunpack.c.h.b16 %v1006
      %v1122 = vunpack.c.l.b16 %v1007
      %v1123 = vunpack.c.h.b16 %v1007
      %v1124 = vunpack.c.l.b16 %v1008
      %v1125 = vunpack.c.h.b16 %v1008
      %v1126 = vunpack.c.l.b16 %v1009
      %v1127 = vunpack.c.h.b16 %v1009
      %v1128 = vunpack.c.l.b16 %v1010
      %v1129 = vunpack.c.h.b16 %v1010
      %v1130 = vunpack.c.l.b16 %v1011
      %v1131 = vunpack.c.h.b16 %v1011
      %v1132 = vunpack.c.l.b16 %v1012
      %v1133 = vunpack.c.h.b16 %v1012
      %v1134 = vunpack.c.l.b16 %v1013
      %v1135 = vunpack.c.h.b16 %v1013
      %v1136 = vunpack.c.l.b16 %v1014
      %v1137 = vunpack.c.h.b16 %v1014
      %v1138 = vunpack.c.l.b16 %v1015
      %v1139 = vunpack.c.h.b16 %v1015
      %v1140 = vunpack.c.l.b16 %v1016
      %v1141 = vunpack.c.h.b16 %v1016
      %v1142 = vunpack.c.l.b16 %v1017
      %v1143 = vunpack.c.h.b16 %v1017
      %v1144 = vunpack.c.l.b16 %v1018
      %v1145 = vunpack.c.h.b16 %v1018
      %v1146 = vunpack.c.l.b16 %v1019
      %v1147 = vunpack.c.h.b16 %v1019
      %v1148 = vunpack.c.l.b16 %v1020
      %v1149 = vunpack.c.h.b16 %v1020
      %v1150 = vunpack.c.l.b16 %v1021
      %v1151 = vunpack.c.h.b16 %v1021
      %v1152 = vunpack.c.l.b16 %v1022
      %v1153 = vunpack.c.h.b16 %v1022
      %v1154 = vunpack.c.l.b16 %v1023
      %v1155 = vunpack.c.h.b16 %v1023
      %v1156 = vunpack.c.l.b16 %v1024
      %v1157 = vunpack.c.h.b16 %v1024
      %v1158 = vunpack.c.l.b16 %v1025
      %v1159 = vunpack.c.h.b16 %v1025
      %v1160 = vunpack.c.l.b16 %v1026
      %v1161 = vunpack.c.h.b16 %v1026
      %v1162 = vunpack.c.l.b16 %v1027
      %v1163 = vunpack.c.h.b16 %v1027
      %v1164 = vunpack.c.l.b16 %v1028
      %v1165 = vunpack.c.h.b16 %v1028
      %v1166 = vunpack.c.l.b16 %v1029
      %v1167 = vunpack.c.h.b16 %v1029
      %v1168 = vunpack.c.l.b16 %v1030
      %v1169 = vunpack.c.h.b16 %v1030
      %v1170 = vunpack.c.l.b16 %v1031
      %v1171 = vunpack.c.h.b16 %v1031
      %v1172 = vunpack.c.l.b16 %v1032
      %v1173 = vunpack.c.h.b16 %v1032
      %v1174 = vunpack.c.l.b16 %v1033
      %v1175 = vunpack.c.h.b16 %v1033
      %v1176 = vunpack.c.l.b16 %v1034
      %v1177 = vunpack.c.h.b16 %v1034
      %v1178 = vunpack.c.l.b16 %v1035
      %v1179 = vunpack.c.h.b16 %v1035
      %v1180 = vpack.c.b16 %v1108, %v1084
      %v1181 = vpack.c.b16 %v1109, %v1085
      %v1182 = vpack.c.b16 %v1110, %v1086
      %v1183 = vpack.c.b16 %v1111, %v1087
      %v1184 = vpack.c.b16 %v1112, %v1088
      %v1185 = vpack.c.b16 %v1113, %v1089
      %v1186 = vpack.c.b16 %v1114, %v1090
      %v1187 = vpack.c.b16 %v1115, %v1091
      %v1188 = vpack.c.b16 %v1116, %v1092
      %v1189 = vpack.c.b16 %v1117, %v1093
      %v1190 = vpack.c.b16 %v1118, %v1094
      %v1191 = vpack.c.b16 %v1119, %v1095
      %v1192 = vpack.c.b16 %v1120, %v1096
      %v1193 = vpack.c.b16 %v1121, %v1097
      %v1194 = vpack.c.b16 %v1122, %v1098
      %v1195 = vpack.c.b16 %v1123, %v1099
      %v1196 = vpack.c.b16 %v1124, %v1100
      %v1197 = vpack.c.b16 %v1125, %v1101
      %v1198 = vpack.c.b16 %v1126, %v1102
      %v1199 = vpack.c.b16 %v1127, %v1103
      %v1200 = vpack.c.b16 %v1128, %v1104
      %v1201 = vpack.c.b16 %v1129, %v1105
      %v1202 = vpack.c.b16 %v1130, %v1106
      %v1203 = vpack.c.b16 %v1131, %v1107
      %v1204 = vpack.c.b16 %v1156, %v1132
      %v1205 = vpack.c.b16 %v1157, %v1133
      %v1206 = vpack.c.b16 %v1158, %v1134
      %v1207 = vpack.c.b16 %v1159, %v1135
      %v1208 = vpack.c.b16 %v1160, %v1136
      %v1209 = vpack.c.b16 %v1161, %v1137
      %v1210 = vpack.c.b16 %v1162, %v1138
      %v1211 = vpack.c.b16 %v1163, %v1139
      %v1212 = vpack.c.b16 %v1164, %v1140
      %v1213 = vpack.c.b16 %v1165, %v1141
      %v1214 = vpack.c.b16 %v1166, %v1142
      %v1215 = vpack.c.b16 %v1167, %v1143
      %v1216 = vpack.c.b16 %v1168, %v1144
      %v1217 = vpack.c.b16 %v1169, %v1145
      %v1218 = vpack.c.b16 %v1170, %v1146
      %v1219 = vpack.c.b16 %v1171, %v1147
      %v1220 = vpack.c.b16 %v1172, %v1148
      %v1221 = vpack.c.b16 %v1173, %v1149
      %v1222 = vpack.c.b16 %v1174, %v1150
      %v1223 = vpack.c.b16 %v1175, %v1151
      %v1224 = vpack.c.b16 %v1176, %v1152
      %v1225 = vpack.c.b16 %v1177, %v1153
      %v1226 = vpack.c.b16 %v1178, %v1154
      %v1227 = vpack.c.b16 %v1179, %v1155
      %1276 = vmatprep.subr.bf16.mxu0 %v1181
      %1277 = vmatpush1.bf16.msra.mxu0 %v1180
      %1278 = vmatprep.subr.bf16.mxu0 %v1205
      %1279 = vmatpush1.bf16.msra.mxu0 %v1204
      %1280 = vmatprep.subr.bf16.mxu0 0
      %1281 = vmatpush1.bf16.msra.mxu0 0
      %1282 = vmatprep.subr.bf16.mxu0 0
      %1283 = vmatpush1.bf16.msra.mxu0 0
      %1284 = vmatprep.subr.bf16.mxu0 0
      %1285 = vmatpush1.bf16.msra.mxu0 0
      %1286 = vmatprep.subr.bf16.mxu0 0
      %1287 = vmatpush1.bf16.msra.mxu0 0
      %1288 = vmatprep.subr.bf16.mxu0 0
      %1289 = vmatpush1.bf16.msra.mxu0 0
      %1290 = vmatprep.subr.bf16.mxu0 0
      %1291 = vmatpush1.bf16.msra.mxu0 0
      %1292 = vmatprep.subr.bf16.mxu0 0
      %1293 = vmatpush1.bf16.msra.mxu0 0
      %1294 = vmatprep.subr.bf16.mxu0 0
      %1295 = vmatpush1.bf16.msra.mxu0 0
      %1296 = vmatprep.subr.bf16.mxu0 0
      %1297 = vmatpush1.bf16.msra.mxu0 0
      %1298 = vmatprep.subr.bf16.mxu0 0
      %1299 = vmatpush1.bf16.msra.mxu0 0
      %1300 = vmatprep.subr.bf16.mxu0 0
      %1301 = vmatpush1.bf16.msra.mxu0 0
      %1302 = vmatprep.subr.bf16.mxu0 0
      %1303 = vmatpush1.bf16.msra.mxu0 0
      %1304 = vmatprep.subr.bf16.mxu0 0
      %1305 = vmatpush1.bf16.msra.mxu0 0
      %1306 = vmatprep.subr.bf16.mxu0 0
      %1307 = vmatpush1.bf16.msra.mxu0 0
      %1308 = vmatprep.mubr.bf16.mxu0 0
      %1309 = vmatmul.mubr.bf16.gmra.mrb[0].mxu0 %v469
      %v1310 = vpop.f32.mrb[0].mxu0
      %v1311 = vadd.f32 0.0, %v1310
      %v1312 = vpop.f32.mrb[0].mxu0
      %v1313 = vadd.f32 0.0, %v1312
      %v1314 = vpop.f32.mrb[0].mxu0
      %v1315 = vadd.f32 0.0, %v1314
      %v1316 = vpop.f32.mrb[0].mxu0
      %v1317 = vadd.f32 0.0, %v1316
      %1318 = vdwg.mxu0
      %1319 = vmatprep.subr.bf16.mxu0 %v1183
      %1320 = vmatpush1.bf16.msra.mxu0 %v1182
      %1321 = vmatprep.subr.bf16.mxu0 %v1207
      %1322 = vmatpush1.bf16.msra.mxu0 %v1206
      %1323 = vmatprep.subr.bf16.mxu0 0
      %1324 = vmatpush1.bf16.msra.mxu0 0
      %1325 = vmatprep.subr.bf16.mxu0 0
      %1326 = vmatpush1.bf16.msra.mxu0 0
      %1327 = vmatprep.subr.bf16.mxu0 0
      %1328 = vmatpush1.bf16.msra.mxu0 0
      %1329 = vmatprep.subr.bf16.mxu0 0
      %1330 = vmatpush1.bf16.msra.mxu0 0
      %1331 = vmatprep.subr.bf16.mxu0 0
      %1332 = vmatpush1.bf16.msra.mxu0 0
      %1333 = vmatprep.subr.bf16.mxu0 0
      %1334 = vmatpush1.bf16.msra.mxu0 0
      %1335 = vmatprep.subr.bf16.mxu0 0
      %1336 = vmatpush1.bf16.msra.mxu0 0
      %1337 = vmatprep.subr.bf16.mxu0 0
      %1338 = vmatpush1.bf16.msra.mxu0 0
      %1339 = vmatprep.subr.bf16.mxu0 0
      %1340 = vmatpush1.bf16.msra.mxu0 0
      %1341 = vmatprep.subr.bf16.mxu0 0
      %1342 = vmatpush1.bf16.msra.mxu0 0
      %1343 = vmatprep.subr.bf16.mxu0 0
      %1344 = vmatpush1.bf16.msra.mxu0 0
      %1345 = vmatprep.subr.bf16.mxu0 0
      %1346 = vmatpush1.bf16.msra.mxu0 0
      %1347 = vmatprep.subr.bf16.mxu0 0
      %1348 = vmatpush1.bf16.msra.mxu0 0
      %1349 = vmatprep.subr.bf16.mxu0 0
      %1350 = vmatpush1.bf16.msra.mxu0 0
      %1351 = vmatprep.mubr.bf16.mxu0 0
      %1352 = vmatmul.mubr.bf16.gmra.mrb[0].mxu0 %v469
      %v1353 = vpop.f32.mrb[0].mxu0
      %v1354 = vadd.f32 0.0, %v1353
      %v1355 = vpop.f32.mrb[0].mxu0
      %v1356 = vadd.f32 0.0, %v1355
      %v1357 = vpop.f32.mrb[0].mxu0
      %v1358 = vadd.f32 0.0, %v1357
      %v1359 = vpop.f32.mrb[0].mxu0
      %v1360 = vadd.f32 0.0, %v1359
      %1361 = vdwg.mxu0
      %1362 = vmatprep.subr.bf16.mxu0 %v1185
      %1363 = vmatpush1.bf16.msra.mxu0 %v1184
      %1364 = vmatprep.subr.bf16.mxu0 %v1209
      %1365 = vmatpush1.bf16.msra.mxu0 %v1208
      %1366 = vmatprep.subr.bf16.mxu0 0
      %1367 = vmatpush1.bf16.msra.mxu0 0
      %1368 = vmatprep.subr.bf16.mxu0 0
      %1369 = vmatpush1.bf16.msra.mxu0 0
      %1370 = vmatprep.subr.bf16.mxu0 0
      %1371 = vmatpush1.bf16.msra.mxu0 0
      %1372 = vmatprep.subr.bf16.mxu0 0
      %1373 = vmatpush1.bf16.msra.mxu0 0
      %1374 = vmatprep.subr.bf16.mxu0 0
      %1375 = vmatpush1.bf16.msra.mxu0 0
      %1376 = vmatprep.subr.bf16.mxu0 0
      %1377 = vmatpush1.bf16.msra.mxu0 0
      %1378 = vmatprep.subr.bf16.mxu0 0
      %1379 = vmatpush1.bf16.msra.mxu0 0
      %1380 = vmatprep.subr.bf16.mxu0 0
      %1381 = vmatpush1.bf16.msra.mxu0 0
      %1382 = vmatprep.subr.bf16.mxu0 0
      %1383 = vmatpush1.bf16.msra.mxu0 0
      %1384 = vmatprep.subr.bf16.mxu0 0
      %1385 = vmatpush1.bf16.msra.mxu0 0
      %1386 = vmatprep.subr.bf16.mxu0 0
      %1387 = vmatpush1.bf16.msra.mxu0 0
      %1388 = vmatprep.subr.bf16.mxu0 0
      %1389 = vmatpush1.bf16.msra.mxu0 0
      %1390 = vmatprep.subr.bf16.mxu0 0
      %1391 = vmatpush1.bf16.msra.mxu0 0
      %1392 = vmatprep.subr.bf16.mxu0 0
      %1393 = vmatpush1.bf16.msra.mxu0 0
      %1394 = vmatprep.mubr.bf16.mxu0 0
      %1395 = vmatmul.mubr.bf16.gmra.mrb[0].mxu0 %v469
      %v1396 = vpop.f32.mrb[0].mxu0
      %v1397 = vadd.f32 0.0, %v1396
      %v1398 = vpop.f32.mrb[0].mxu0
      %v1399 = vadd.f32 0.0, %v1398
      %v1400 = vpop.f32.mrb[0].mxu0
      %v1401 = vadd.f32 0.0, %v1400
      %v1402 = vpop.f32.mrb[0].mxu0
      %v1403 = vadd.f32 0.0, %v1402
      %1404 = vdwg.mxu0
      %1405 = vmatprep.subr.bf16.mxu0 %v1187
      %1406 = vmatpush1.bf16.msra.mxu0 %v1186
      %1407 = vmatprep.subr.bf16.mxu0 %v1211
      %1408 = vmatpush1.bf16.msra.mxu0 %v1210
      %1409 = vmatprep.subr.bf16.mxu0 0
      %1410 = vmatpush1.bf16.msra.mxu0 0
      %1411 = vmatprep.subr.bf16.mxu0 0
      %1412 = vmatpush1.bf16.msra.mxu0 0
      %1413 = vmatprep.subr.bf16.mxu0 0
      %1414 = vmatpush1.bf16.msra.mxu0 0
      %1415 = vmatprep.subr.bf16.mxu0 0
      %1416 = vmatpush1.bf16.msra.mxu0 0
      %1417 = vmatprep.subr.bf16.mxu0 0
      %1418 = vmatpush1.bf16.msra.mxu0 0
      %1419 = vmatprep.subr.bf16.mxu0 0
      %1420 = vmatpush1.bf16.msra.mxu0 0
      %1421 = vmatprep.subr.bf16.mxu0 0
      %1422 = vmatpush1.bf16.msra.mxu0 0
      %1423 = vmatprep.subr.bf16.mxu0 0
      %1424 = vmatpush1.bf16.msra.mxu0 0
      %1425 = vmatprep.subr.bf16.mxu0 0
      %1426 = vmatpush1.bf16.msra.mxu0 0
      %1427 = vmatprep.subr.bf16.mxu0 0
      %1428 = vmatpush1.bf16.msra.mxu0 0
      %1429 = vmatprep.subr.bf16.mxu0 0
      %1430 = vmatpush1.bf16.msra.mxu0 0
      %1431 = vmatprep.subr.bf16.mxu0 0
      %1432 = vmatpush1.bf16.msra.mxu0 0
      %1433 = vmatprep.subr.bf16.mxu0 0
      %1434 = vmatpush1.bf16.msra.mxu0 0
      %1435 = vmatprep.subr.bf16.mxu0 0
      %1436 = vmatpush1.bf16.msra.mxu0 0
      %1437 = vmatprep.mubr.bf16.mxu0 0
      %1438 = vmatmul.mubr.bf16.gmra.mrb[0].mxu0 %v469
      %v1439 = vpop.f32.mrb[0].mxu0
      %v1440 = vadd.f32 0.0, %v1439
      %v1441 = vpop.f32.mrb[0].mxu0
      %v1442 = vadd.f32 0.0, %v1441
      %v1443 = vpop.f32.mrb[0].mxu0
      %v1444 = vadd.f32 0.0, %v1443
      %v1445 = vpop.f32.mrb[0].mxu0
      %v1446 = vadd.f32 0.0, %v1445
      %1447 = vdwg.mxu0
      %1448 = vmatprep.subr.bf16.mxu0 %v1189
      %1449 = vmatpush1.bf16.msra.mxu0 %v1188
      %1450 = vmatprep.subr.bf16.mxu0 %v1213
      %1451 = vmatpush1.bf16.msra.mxu0 %v1212
      %1452 = vmatprep.subr.bf16.mxu0 0
      %1453 = vmatpush1.bf16.msra.mxu0 0
      %1454 = vmatprep.subr.bf16.mxu0 0
      %1455 = vmatpush1.bf16.msra.mxu0 0
      %1456 = vmatprep.subr.bf16.mxu0 0
      %1457 = vmatpush1.bf16.msra.mxu0 0
      %1458 = vmatprep.subr.bf16.mxu0 0
      %1459 = vmatpush1.bf16.msra.mxu0 0
      %1460 = vmatprep.subr.bf16.mxu0 0
      %1461 = vmatpush1.bf16.msra.mxu0 0
      %1462 = vmatprep.subr.bf16.mxu0 0
      %1463 = vmatpush1.bf16.msra.mxu0 0
      %1464 = vmatprep.subr.bf16.mxu0 0
      %1465 = vmatpush1.bf16.msra.mxu0 0
      %1466 = vmatprep.subr.bf16.mxu0 0
      %1467 = vmatpush1.bf16.msra.mxu0 0
      %1468 = vmatprep.subr.bf16.mxu0 0
      %1469 = vmatpush1.bf16.msra.mxu0 0
      %1470 = vmatprep.subr.bf16.mxu0 0
      %1471 = vmatpush1.bf16.msra.mxu0 0
      %1472 = vmatprep.subr.bf16.mxu0 0
      %1473 = vmatpush1.bf16.msra.mxu0 0
      %1474 = vmatprep.subr.bf16.mxu0 0
      %1475 = vmatpush1.bf16.msra.mxu0 0
      %1476 = vmatprep.subr.bf16.mxu0 0
      %1477 = vmatpush1.bf16.msra.mxu0 0
      %1478 = vmatprep.subr.bf16.mxu0 0
      %1479 = vmatpush1.bf16.msra.mxu0 0
      %1480 = vmatprep.mubr.bf16.mxu0 0
      %1481 = vmatmul.mubr.bf16.gmra.mrb[0].mxu0 %v469
      %v1482 = vpop.f32.mrb[0].mxu0
      %v1483 = vadd.f32 0.0, %v1482
      %v1484 = vpop.f32.mrb[0].mxu0
      %v1485 = vadd.f32 0.0, %v1484
      %v1486 = vpop.f32.mrb[0].mxu0
      %v1487 = vadd.f32 0.0, %v1486
      %v1488 = vpop.f32.mrb[0].mxu0
      %v1489 = vadd.f32 0.0, %v1488
      %1490 = vdwg.mxu0
      %1491 = vmatprep.subr.bf16.mxu0 %v1191
      %1492 = vmatpush1.bf16.msra.mxu0 %v1190
      %1493 = vmatprep.subr.bf16.mxu0 %v1215
      %1494 = vmatpush1.bf16.msra.mxu0 %v1214
      %1495 = vmatprep.subr.bf16.mxu0 0
      %1496 = vmatpush1.bf16.msra.mxu0 0
      %1497 = vmatprep.subr.bf16.mxu0 0
      %1498 = vmatpush1.bf16.msra.mxu0 0
      %1499 = vmatprep.subr.bf16.mxu0 0
      %1500 = vmatpush1.bf16.msra.mxu0 0
      %1501 = vmatprep.subr.bf16.mxu0 0
      %1502 = vmatpush1.bf16.msra.mxu0 0
      %1503 = vmatprep.subr.bf16.mxu0 0
      %1504 = vmatpush1.bf16.msra.mxu0 0
      %1505 = vmatprep.subr.bf16.mxu0 0
      %1506 = vmatpush1.bf16.msra.mxu0 0
      %1507 = vmatprep.subr.bf16.mxu0 0
      %1508 = vmatpush1.bf16.msra.mxu0 0
      %1509 = vmatprep.subr.bf16.mxu0 0
      %1510 = vmatpush1.bf16.msra.mxu0 0
      %1511 = vmatprep.subr.bf16.mxu0 0
      %1512 = vmatpush1.bf16.msra.mxu0 0
      %1513 = vmatprep.subr.bf16.mxu0 0
      %1514 = vmatpush1.bf16.msra.mxu0 0
      %1515 = vmatprep.subr.bf16.mxu0 0
      %1516 = vmatpush1.bf16.msra.mxu0 0
      %1517 = vmatprep.subr.bf16.mxu0 0
      %1518 = vmatpush1.bf16.msra.mxu0 0
      %1519 = vmatprep.subr.bf16.mxu0 0
      %1520 = vmatpush1.bf16.msra.mxu0 0
      %1521 = vmatprep.subr.bf16.mxu0 0
      %1522 = vmatpush1.bf16.msra.mxu0 0
      %1523 = vmatprep.mubr.bf16.mxu0 0
      %1524 = vmatmul.mubr.bf16.gmra.mrb[0].mxu0 %v469
      %v1525 = vpop.f32.mrb[0].mxu0
      %v1526 = vadd.f32 0.0, %v1525
      %v1527 = vpop.f32.mrb[0].mxu0
      %v1528 = vadd.f32 0.0, %v1527
      %v1529 = vpop.f32.mrb[0].mxu0
      %v1530 = vadd.f32 0.0, %v1529
      %v1531 = vpop.f32.mrb[0].mxu0
      %v1532 = vadd.f32 0.0, %v1531
      %1533 = vdwg.mxu0
      %1534 = vmatprep.subr.bf16.mxu0 %v1193
      %1535 = vmatpush1.bf16.msra.mxu0 %v1192
      %1536 = vmatprep.subr.bf16.mxu0 %v1217
      %1537 = vmatpush1.bf16.msra.mxu0 %v1216
      %1538 = vmatprep.subr.bf16.mxu0 0
      %1539 = vmatpush1.bf16.msra.mxu0 0
      %1540 = vmatprep.subr.bf16.mxu0 0
      %1541 = vmatpush1.bf16.msra.mxu0 0
      %1542 = vmatprep.subr.bf16.mxu0 0
      %1543 = vmatpush1.bf16.msra.mxu0 0
      %1544 = vmatprep.subr.bf16.mxu0 0
      %1545 = vmatpush1.bf16.msra.mxu0 0
      %1546 = vmatprep.subr.bf16.mxu0 0
      %1547 = vmatpush1.bf16.msra.mxu0 0
      %1548 = vmatprep.subr.bf16.mxu0 0
      %1549 = vmatpush1.bf16.msra.mxu0 0
      %1550 = vmatprep.subr.bf16.mxu0 0
      %1551 = vmatpush1.bf16.msra.mxu0 0
      %1552 = vmatprep.subr.bf16.mxu0 0
      %1553 = vmatpush1.bf16.msra.mxu0 0
      %1554 = vmatprep.subr.bf16.mxu0 0
      %1555 = vmatpush1.bf16.msra.mxu0 0
      %1556 = vmatprep.subr.bf16.mxu0 0
      %1557 = vmatpush1.bf16.msra.mxu0 0
      %1558 = vmatprep.subr.bf16.mxu0 0
      %1559 = vmatpush1.bf16.msra.mxu0 0
      %1560 = vmatprep.subr.bf16.mxu0 0
      %1561 = vmatpush1.bf16.msra.mxu0 0
      %1562 = vmatprep.subr.bf16.mxu0 0
      %1563 = vmatpush1.bf16.msra.mxu0 0
      %1564 = vmatprep.subr.bf16.mxu0 0
      %1565 = vmatpush1.bf16.msra.mxu0 0
      %1566 = vmatprep.mubr.bf16.mxu0 0
      %1567 = vmatmul.mubr.bf16.gmra.mrb[0].mxu0 %v469
      %v1568 = vpop.f32.mrb[0].mxu0
      %v1569 = vadd.f32 0.0, %v1568
      %v1570 = vpop.f32.mrb[0].mxu0
      %v1571 = vadd.f32 0.0, %v1570
      %v1572 = vpop.f32.mrb[0].mxu0
      %v1573 = vadd.f32 0.0, %v1572
      %v1574 = vpop.f32.mrb[0].mxu0
      %v1575 = vadd.f32 0.0, %v1574
      %1576 = vdwg.mxu0
      %1577 = vmatprep.subr.bf16.mxu0 %v1195
      %1578 = vmatpush1.bf16.msra.mxu0 %v1194
      %1579 = vmatprep.subr.bf16.mxu0 %v1219
      %1580 = vmatpush1.bf16.msra.mxu0 %v1218
      %1581 = vmatprep.subr.bf16.mxu0 0
      %1582 = vmatpush1.bf16.msra.mxu0 0
      %1583 = vmatprep.subr.bf16.mxu0 0
      %1584 = vmatpush1.bf16.msra.mxu0 0
      %1585 = vmatprep.subr.bf16.mxu0 0
      %1586 = vmatpush1.bf16.msra.mxu0 0
      %1587 = vmatprep.subr.bf16.mxu0 0
      %1588 = vmatpush1.bf16.msra.mxu0 0
      %1589 = vmatprep.subr.bf16.mxu0 0
      %1590 = vmatpush1.bf16.msra.mxu0 0
      %1591 = vmatprep.subr.bf16.mxu0 0
      %1592 = vmatpush1.bf16.msra.mxu0 0
      %1593 = vmatprep.subr.bf16.mxu0 0
      %1594 = vmatpush1.bf16.msra.mxu0 0
      %1595 = vmatprep.subr.bf16.mxu0 0
      %1596 = vmatpush1.bf16.msra.mxu0 0
      %1597 = vmatprep.subr.bf16.mxu0 0
      %1598 = vmatpush1.bf16.msra.mxu0 0
      %1599 = vmatprep.subr.bf16.mxu0 0
      %1600 = vmatpush1.bf16.msra.mxu0 0
      %1601 = vmatprep.subr.bf16.mxu0 0
      %1602 = vmatpush1.bf16.msra.mxu0 0
      %1603 = vmatprep.subr.bf16.mxu0 0
      %1604 = vmatpush1.bf16.msra.mxu0 0
      %1605 = vmatprep.subr.bf16.mxu0 0
      %1606 = vmatpush1.bf16.msra.mxu0 0
      %1607 = vmatprep.subr.bf16.mxu0 0
      %1608 = vmatpush1.bf16.msra.mxu0 0
      %1609 = vmatprep.mubr.bf16.mxu0 0
      %1610 = vmatmul.mubr.bf16.gmra.mrb[0].mxu0 %v469
      %v1611 = vpop.f32.mrb[0].mxu0
      %v1612 = vadd.f32 0.0, %v1611
      %v1613 = vpop.f32.mrb[0].mxu0
      %v1614 = vadd.f32 0.0, %v1613
      %v1615 = vpop.f32.mrb[0].mxu0
      %v1616 = vadd.f32 0.0, %v1615
      %v1617 = vpop.f32.mrb[0].mxu0
      %v1618 = vadd.f32 0.0, %v1617
      %1619 = vdwg.mxu0
      %1620 = vmatprep.subr.bf16.mxu0 %v1197
      %1621 = vmatpush1.bf16.msra.mxu0 %v1196
      %1622 = vmatprep.subr.bf16.mxu0 %v1221
      %1623 = vmatpush1.bf16.msra.mxu0 %v1220
      %1624 = vmatprep.subr.bf16.mxu0 0
      %1625 = vmatpush1.bf16.msra.mxu0 0
      %1626 = vmatprep.subr.bf16.mxu0 0
      %1627 = vmatpush1.bf16.msra.mxu0 0
      %1628 = vmatprep.subr.bf16.mxu0 0
      %1629 = vmatpush1.bf16.msra.mxu0 0
      %1630 = vmatprep.subr.bf16.mxu0 0
      %1631 = vmatpush1.bf16.msra.mxu0 0
      %1632 = vmatprep.subr.bf16.mxu0 0
      %1633 = vmatpush1.bf16.msra.mxu0 0
      %1634 = vmatprep.subr.bf16.mxu0 0
      %1635 = vmatpush1.bf16.msra.mxu0 0
      %1636 = vmatprep.subr.bf16.mxu0 0
      %1637 = vmatpush1.bf16.msra.mxu0 0
      %1638 = vmatprep.subr.bf16.mxu0 0
      %1639 = vmatpush1.bf16.msra.mxu0 0
      %1640 = vmatprep.subr.bf16.mxu0 0
      %1641 = vmatpush1.bf16.msra.mxu0 0
      %1642 = vmatprep.subr.bf16.mxu0 0
      %1643 = vmatpush1.bf16.msra.mxu0 0
      %1644 = vmatprep.subr.bf16.mxu0 0
      %1645 = vmatpush1.bf16.msra.mxu0 0
      %1646 = vmatprep.subr.bf16.mxu0 0
      %1647 = vmatpush1.bf16.msra.mxu0 0
      %1648 = vmatprep.subr.bf16.mxu0 0
      %1649 = vmatpush1.bf16.msra.mxu0 0
      %1650 = vmatprep.subr.bf16.mxu0 0
      %1651 = vmatpush1.bf16.msra.mxu0 0
      %1652 = vmatprep.mubr.bf16.mxu0 0
      %1653 = vmatmul.mubr.bf16.gmra.mrb[0].mxu0 %v469
      %v1654 = vpop.f32.mrb[0].mxu0
      %v1655 = vadd.f32 0.0, %v1654
      %v1656 = vpop.f32.mrb[0].mxu0
      %v1657 = vadd.f32 0.0, %v1656
      %v1658 = vpop.f32.mrb[0].mxu0
      %v1659 = vadd.f32 0.0, %v1658
      %v1660 = vpop.f32.mrb[0].mxu0
      %v1661 = vadd.f32 0.0, %v1660
      %1662 = vdwg.mxu0
      %1663 = vmatprep.subr.bf16.mxu0 %v1199
      %1664 = vmatpush1.bf16.msra.mxu0 %v1198
      %1665 = vmatprep.subr.bf16.mxu0 %v1223
      %1666 = vmatpush1.bf16.msra.mxu0 %v1222
      %1667 = vmatprep.subr.bf16.mxu0 0
      %1668 = vmatpush1.bf16.msra.mxu0 0
      %1669 = vmatprep.subr.bf16.mxu0 0
      %1670 = vmatpush1.bf16.msra.mxu0 0
      %1671 = vmatprep.subr.bf16.mxu0 0
      %1672 = vmatpush1.bf16.msra.mxu0 0
      %1673 = vmatprep.subr.bf16.mxu0 0
      %1674 = vmatpush1.bf16.msra.mxu0 0
      %1675 = vmatprep.subr.bf16.mxu0 0
      %1676 = vmatpush1.bf16.msra.mxu0 0
      %1677 = vmatprep.subr.bf16.mxu0 0
      %1678 = vmatpush1.bf16.msra.mxu0 0
      %1679 = vmatprep.subr.bf16.mxu0 0
      %1680 = vmatpush1.bf16.msra.mxu0 0
      %1681 = vmatprep.subr.bf16.mxu0 0
      %1682 = vmatpush1.bf16.msra.mxu0 0
      %1683 = vmatprep.subr.bf16.mxu0 0
      %1684 = vmatpush1.bf16.msra.mxu0 0
      %1685 = vmatprep.subr.bf16.mxu0 0
      %1686 = vmatpush1.bf16.msra.mxu0 0
      %1687 = vmatprep.subr.bf16.mxu0 0
      %1688 = vmatpush1.bf16.msra.mxu0 0
      %1689 = vmatprep.subr.bf16.mxu0 0
      %1690 = vmatpush1.bf16.msra.mxu0 0
      %1691 = vmatprep.subr.bf16.mxu0 0
      %1692 = vmatpush1.bf16.msra.mxu0 0
      %1693 = vmatprep.subr.bf16.mxu0 0
      %1694 = vmatpush1.bf16.msra.mxu0 0
      %1695 = vmatprep.mubr.bf16.mxu0 0
      %1696 = vmatmul.mubr.bf16.gmra.mrb[0].mxu0 %v469
      %v1697 = vpop.f32.mrb[0].mxu0
      %v1698 = vadd.f32 0.0, %v1697
      %v1699 = vpop.f32.mrb[0].mxu0
      %v1700 = vadd.f32 0.0, %v1699
      %v1701 = vpop.f32.mrb[0].mxu0
      %v1702 = vadd.f32 0.0, %v1701
      %v1703 = vpop.f32.mrb[0].mxu0
      %v1704 = vadd.f32 0.0, %v1703
      %1705 = vdwg.mxu0
      %1706 = vmatprep.subr.bf16.mxu0 %v1201
      %1707 = vmatpush1.bf16.msra.mxu0 %v1200
      %1708 = vmatprep.subr.bf16.mxu0 %v1225
      %1709 = vmatpush1.bf16.msra.mxu0 %v1224
      %1710 = vmatprep.subr.bf16.mxu0 0
      %1711 = vmatpush1.bf16.msra.mxu0 0
      %1712 = vmatprep.subr.bf16.mxu0 0
      %1713 = vmatpush1.bf16.msra.mxu0 0
      %1714 = vmatprep.subr.bf16.mxu0 0
      %1715 = vmatpush1.bf16.msra.mxu0 0
      %1716 = vmatprep.subr.bf16.mxu0 0
      %1717 = vmatpush1.bf16.msra.mxu0 0
      %1718 = vmatprep.subr.bf16.mxu0 0
      %1719 = vmatpush1.bf16.msra.mxu0 0
      %1720 = vmatprep.subr.bf16.mxu0 0
      %1721 = vmatpush1.bf16.msra.mxu0 0
      %1722 = vmatprep.subr.bf16.mxu0 0
      %1723 = vmatpush1.bf16.msra.mxu0 0
      %1724 = vmatprep.subr.bf16.mxu0 0
      %1725 = vmatpush1.bf16.msra.mxu0 0
      %1726 = vmatprep.subr.bf16.mxu0 0
      %1727 = vmatpush1.bf16.msra.mxu0 0
      %1728 = vmatprep.subr.bf16.mxu0 0
      %1729 = vmatpush1.bf16.msra.mxu0 0
      %1730 = vmatprep.subr.bf16.mxu0 0
      %1731 = vmatpush1.bf16.msra.mxu0 0
      %1732 = vmatprep.subr.bf16.mxu0 0
      %1733 = vmatpush1.bf16.msra.mxu0 0
      %1734 = vmatprep.subr.bf16.mxu0 0
      %1735 = vmatpush1.bf16.msra.mxu0 0
      %1736 = vmatprep.subr.bf16.mxu0 0
      %1737 = vmatpush1.bf16.msra.mxu0 0
      %1738 = vmatprep.mubr.bf16.mxu0 0
      %1739 = vmatmul.mubr.bf16.gmra.mrb[0].mxu0 %v469
      %v1740 = vpop.f32.mrb[0].mxu0
      %v1741 = vadd.f32 0.0, %v1740
      %v1742 = vpop.f32.mrb[0].mxu0
      %v1743 = vadd.f32 0.0, %v1742
      %v1744 = vpop.f32.mrb[0].mxu0
      %v1745 = vadd.f32 0.0, %v1744
      %v1746 = vpop.f32.mrb[0].mxu0
      %v1747 = vadd.f32 0.0, %v1746
      %1748 = vdwg.mxu0
      %1749 = vmatprep.subr.bf16.mxu0 %v1203
      %1750 = vmatpush1.bf16.msra.mxu0 %v1202
      %1751 = vmatprep.subr.bf16.mxu0 %v1227
      %1752 = vmatpush1.bf16.msra.mxu0 %v1226
      %1753 = vmatprep.subr.bf16.mxu0 0
      %1754 = vmatpush1.bf16.msra.mxu0 0
      %1755 = vmatprep.subr.bf16.mxu0 0
      %1756 = vmatpush1.bf16.msra.mxu0 0
      %1757 = vmatprep.subr.bf16.mxu0 0
      %1758 = vmatpush1.bf16.msra.mxu0 0
      %1759 = vmatprep.subr.bf16.mxu0 0
      %1760 = vmatpush1.bf16.msra.mxu0 0
      %1761 = vmatprep.subr.bf16.mxu0 0
      %1762 = vmatpush1.bf16.msra.mxu0 0
      %1763 = vmatprep.subr.bf16.mxu0 0
      %1764 = vmatpush1.bf16.msra.mxu0 0
      %1765 = vmatprep.subr.bf16.mxu0 0
      %1766 = vmatpush1.bf16.msra.mxu0 0
      %1767 = vmatprep.subr.bf16.mxu0 0
      %1768 = vmatpush1.bf16.msra.mxu0 0
      %1769 = vmatprep.subr.bf16.mxu0 0
      %1770 = vmatpush1.bf16.msra.mxu0 0
      %1771 = vmatprep.subr.bf16.mxu0 0
      %1772 = vmatpush1.bf16.msra.mxu0 0
      %1773 = vmatprep.subr.bf16.mxu0 0
      %1774 = vmatpush1.bf16.msra.mxu0 0
      %1775 = vmatprep.subr.bf16.mxu0 0
      %1776 = vmatpush1.bf16.msra.mxu0 0
      %1777 = vmatprep.subr.bf16.mxu0 0
      %1778 = vmatpush1.bf16.msra.mxu0 0
      %1779 = vmatprep.subr.bf16.mxu0 0
      %1780 = vmatpush1.bf16.msra.mxu0 0
      %1781 = vmatprep.mubr.bf16.mxu0 0
      %1782 = vmatmul.mubr.bf16.gmra.mrb[0].mxu0 %v469
      %v1783 = vpop.f32.mrb[0].mxu0
      %v1784 = vadd.f32 0.0, %v1783
      %v1785 = vpop.f32.mrb[0].mxu0
      %v1786 = vadd.f32 0.0, %v1785
      %v1787 = vpop.f32.mrb[0].mxu0
      %v1788 = vadd.f32 0.0, %v1787
      %v1789 = vpop.f32.mrb[0].mxu0
      %v1790 = vadd.f32 0.0, %v1789
      %1791 = vdwg.mxu0
      %s1792 = scalar_lea.vmem %s165, 768
      %v1793 = vld [vmem:[%s1792] sm:$0xff]
      %v1794 = vld [vmem:[%s1792 + $0x8] sm:$0xff]
      %v1795 = vld [vmem:[%s1792 + $0x10] sm:$0xff]
      %v1796 = vld [vmem:[%s1792 + $0x18] sm:$0xff]
      %v1797 = vld [vmem:[%s1792 + $0x20] sm:$0xff]
      %v1798 = vld [vmem:[%s1792 + $0x28] sm:$0xff]
      %v1799 = vld [vmem:[%s1792 + $0x30] sm:$0xff]
      %v1800 = vld [vmem:[%s1792 + $0x38] sm:$0xff]
      %v1801 = vld [vmem:[%s1792 + $0x40] sm:$0xff]
      %v1802 = vld [vmem:[%s1792 + $0x48] sm:$0xff]
      %v1803 = vld [vmem:[%s1792 + $0x50] sm:$0xff]
      %v1804 = vld [vmem:[%s1792 + $0x58] sm:$0xff]
      %v1805 = vld [vmem:[%s1792 + $0x60] sm:$0xff]
      %v1806 = vld [vmem:[%s1792 + $0x68] sm:$0xff]
      %v1807 = vld [vmem:[%s1792 + $0x70] sm:$0xff]
      %v1808 = vld [vmem:[%s1792 + $0x78] sm:$0xff]
      %v1809 = vld [vmem:[%s1792 + $0x80] sm:$0xff]
      %v1810 = vld [vmem:[%s1792 + $0x88] sm:$0xff]
      %v1811 = vld [vmem:[%s1792 + $0x90] sm:$0xff]
      %v1812 = vld [vmem:[%s1792 + $0x98] sm:$0xff]
      %v1813 = vld [vmem:[%s1792 + $0xa0] sm:$0xff]
      %v1814 = vld [vmem:[%s1792 + $0xa8] sm:$0xff]
      %v1815 = vld [vmem:[%s1792 + $0xb0] sm:$0xff]
      %v1816 = vld [vmem:[%s1792 + $0xb8] sm:$0xff]
      %v1817 = vld [vmem:[%s1792 + $0xc0] sm:$0xff]
      %v1818 = vld [vmem:[%s1792 + $0xc8] sm:$0xff]
      %v1819 = vld [vmem:[%s1792 + $0xd0] sm:$0xff]
      %v1820 = vld [vmem:[%s1792 + $0xd8] sm:$0xff]
      %v1821 = vld [vmem:[%s1792 + $0xe0] sm:$0xff]
      %v1822 = vld [vmem:[%s1792 + $0xe8] sm:$0xff]
      %v1823 = vld [vmem:[%s1792 + $0xf0] sm:$0xff]
      %v1824 = vld [vmem:[%s1792 + $0xf8] sm:$0xff]
      %v1825 = vld [vmem:[%s1792 + $0x100] sm:$0xff]
      %v1826 = vld [vmem:[%s1792 + $0x108] sm:$0xff]
      %v1827 = vld [vmem:[%s1792 + $0x110] sm:$0xff]
      %v1828 = vld [vmem:[%s1792 + $0x118] sm:$0xff]
      %v1829 = vld [vmem:[%s1792 + $0x120] sm:$0xff]
      %v1830 = vld [vmem:[%s1792 + $0x128] sm:$0xff]
      %v1831 = vld [vmem:[%s1792 + $0x130] sm:$0xff]
      %v1832 = vld [vmem:[%s1792 + $0x138] sm:$0xff]
      %v1833 = vld [vmem:[%s1792 + $0x140] sm:$0xff]
      %v1834 = vld [vmem:[%s1792 + $0x148] sm:$0xff]
      %v1835 = vld [vmem:[%s1792 + $0x150] sm:$0xff]
      %v1836 = vld [vmem:[%s1792 + $0x158] sm:$0xff]
      %v1837 = vld [vmem:[%s1792 + $0x160] sm:$0xff]
      %v1838 = vld [vmem:[%s1792 + $0x168] sm:$0xff]
      %v1839 = vld [vmem:[%s1792 + $0x170] sm:$0xff]
      %v1840 = vld [vmem:[%s1792 + $0x178] sm:$0xff]
      %v1889 = vunpack.c.l.b16 %v1793
      %v1890 = vunpack.c.h.b16 %v1793
      %v1891 = vunpack.c.l.b16 %v1794
      %v1892 = vunpack.c.h.b16 %v1794
      %v1893 = vunpack.c.l.b16 %v1795
      %v1894 = vunpack.c.h.b16 %v1795
      %v1895 = vunpack.c.l.b16 %v1796
      %v1896 = vunpack.c.h.b16 %v1796
      %v1897 = vunpack.c.l.b16 %v1797
      %v1898 = vunpack.c.h.b16 %v1797
      %v1899 = vunpack.c.l.b16 %v1798
      %v1900 = vunpack.c.h.b16 %v1798
      %v1901 = vunpack.c.l.b16 %v1799
      %v1902 = vunpack.c.h.b16 %v1799
      %v1903 = vunpack.c.l.b16 %v1800
      %v1904 = vunpack.c.h.b16 %v1800
      %v1905 = vunpack.c.l.b16 %v1801
      %v1906 = vunpack.c.h.b16 %v1801
      %v1907 = vunpack.c.l.b16 %v1802
      %v1908 = vunpack.c.h.b16 %v1802
      %v1909 = vunpack.c.l.b16 %v1803
      %v1910 = vunpack.c.h.b16 %v1803
      %v1911 = vunpack.c.l.b16 %v1804
      %v1912 = vunpack.c.h.b16 %v1804
      %v1913 = vunpack.c.l.b16 %v1805
      %v1914 = vunpack.c.h.b16 %v1805
      %v1915 = vunpack.c.l.b16 %v1806
      %v1916 = vunpack.c.h.b16 %v1806
      %v1917 = vunpack.c.l.b16 %v1807
      %v1918 = vunpack.c.h.b16 %v1807
      %v1919 = vunpack.c.l.b16 %v1808
      %v1920 = vunpack.c.h.b16 %v1808
      %v1921 = vunpack.c.l.b16 %v1809
      %v1922 = vunpack.c.h.b16 %v1809
      %v1923 = vunpack.c.l.b16 %v1810
      %v1924 = vunpack.c.h.b16 %v1810
      %v1925 = vunpack.c.l.b16 %v1811
      %v1926 = vunpack.c.h.b16 %v1811
      %v1927 = vunpack.c.l.b16 %v1812
      %v1928 = vunpack.c.h.b16 %v1812
      %v1929 = vunpack.c.l.b16 %v1813
      %v1930 = vunpack.c.h.b16 %v1813
      %v1931 = vunpack.c.l.b16 %v1814
      %v1932 = vunpack.c.h.b16 %v1814
      %v1933 = vunpack.c.l.b16 %v1815
      %v1934 = vunpack.c.h.b16 %v1815
      %v1935 = vunpack.c.l.b16 %v1816
      %v1936 = vunpack.c.h.b16 %v1816
      %v1937 = vunpack.c.l.b16 %v1817
      %v1938 = vunpack.c.h.b16 %v1817
      %v1939 = vunpack.c.l.b16 %v1818
      %v1940 = vunpack.c.h.b16 %v1818
      %v1941 = vunpack.c.l.b16 %v1819
      %v1942 = vunpack.c.h.b16 %v1819
      %v1943 = vunpack.c.l.b16 %v1820
      %v1944 = vunpack.c.h.b16 %v1820
      %v1945 = vunpack.c.l.b16 %v1821
      %v1946 = vunpack.c.h.b16 %v1821
      %v1947 = vunpack.c.l.b16 %v1822
      %v1948 = vunpack.c.h.b16 %v1822
      %v1949 = vunpack.c.l.b16 %v1823
      %v1950 = vunpack.c.h.b16 %v1823
      %v1951 = vunpack.c.l.b16 %v1824
      %v1952 = vunpack.c.h.b16 %v1824
      %v1953 = vunpack.c.l.b16 %v1825
      %v1954 = vunpack.c.h.b16 %v1825
      %v1955 = vunpack.c.l.b16 %v1826
      %v1956 = vunpack.c.h.b16 %v1826
      %v1957 = vunpack.c.l.b16 %v1827
      %v1958 = vunpack.c.h.b16 %v1827
      %v1959 = vunpack.c.l.b16 %v1828
      %v1960 = vunpack.c.h.b16 %v1828
      %v1961 = vunpack.c.l.b16 %v1829
      %v1962 = vunpack.c.h.b16 %v1829
      %v1963 = vunpack.c.l.b16 %v1830
      %v1964 = vunpack.c.h.b16 %v1830
      %v1965 = vunpack.c.l.b16 %v1831
      %v1966 = vunpack.c.h.b16 %v1831
      %v1967 = vunpack.c.l.b16 %v1832
      %v1968 = vunpack.c.h.b16 %v1832
      %v1969 = vunpack.c.l.b16 %v1833
      %v1970 = vunpack.c.h.b16 %v1833
      %v1971 = vunpack.c.l.b16 %v1834
      %v1972 = vunpack.c.h.b16 %v1834
      %v1973 = vunpack.c.l.b16 %v1835
      %v1974 = vunpack.c.h.b16 %v1835
      %v1975 = vunpack.c.l.b16 %v1836
      %v1976 = vunpack.c.h.b16 %v1836
      %v1977 = vunpack.c.l.b16 %v1837
      %v1978 = vunpack.c.h.b16 %v1837
      %v1979 = vunpack.c.l.b16 %v1838
      %v1980 = vunpack.c.h.b16 %v1838
      %v1981 = vunpack.c.l.b16 %v1839
      %v1982 = vunpack.c.h.b16 %v1839
      %v1983 = vunpack.c.l.b16 %v1840
      %v1984 = vunpack.c.h.b16 %v1840
      %v1985 = vpack.c.b16 %v1913, %v1889
      %v1986 = vpack.c.b16 %v1914, %v1890
      %v1987 = vpack.c.b16 %v1915, %v1891
      %v1988 = vpack.c.b16 %v1916, %v1892
      %v1989 = vpack.c.b16 %v1917, %v1893
      %v1990 = vpack.c.b16 %v1918, %v1894
      %v1991 = vpack.c.b16 %v1919, %v1895
      %v1992 = vpack.c.b16 %v1920, %v1896
      %v1993 = vpack.c.b16 %v1921, %v1897
      %v1994 = vpack.c.b16 %v1922, %v1898
      %v1995 = vpack.c.b16 %v1923, %v1899
      %v1996 = vpack.c.b16 %v1924, %v1900
      %v1997 = vpack.c.b16 %v1925, %v1901
      %v1998 = vpack.c.b16 %v1926, %v1902
      %v1999 = vpack.c.b16 %v1927, %v1903
      %v2000 = vpack.c.b16 %v1928, %v1904
      %v2001 = vpack.c.b16 %v1929, %v1905
      %v2002 = vpack.c.b16 %v1930, %v1906
      %v2003 = vpack.c.b16 %v1931, %v1907
      %v2004 = vpack.c.b16 %v1932, %v1908
      %v2005 = vpack.c.b16 %v1933, %v1909
      %v2006 = vpack.c.b16 %v1934, %v1910
      %v2007 = vpack.c.b16 %v1935, %v1911
      %v2008 = vpack.c.b16 %v1936, %v1912
      %v2009 = vpack.c.b16 %v1961, %v1937
      %v2010 = vpack.c.b16 %v1962, %v1938
      %v2011 = vpack.c.b16 %v1963, %v1939
      %v2012 = vpack.c.b16 %v1964, %v1940
      %v2013 = vpack.c.b16 %v1965, %v1941
      %v2014 = vpack.c.b16 %v1966, %v1942
      %v2015 = vpack.c.b16 %v1967, %v1943
      %v2016 = vpack.c.b16 %v1968, %v1944
      %v2017 = vpack.c.b16 %v1969, %v1945
      %v2018 = vpack.c.b16 %v1970, %v1946
      %v2019 = vpack.c.b16 %v1971, %v1947
      %v2020 = vpack.c.b16 %v1972, %v1948
      %v2021 = vpack.c.b16 %v1973, %v1949
      %v2022 = vpack.c.b16 %v1974, %v1950
      %v2023 = vpack.c.b16 %v1975, %v1951
      %v2024 = vpack.c.b16 %v1976, %v1952
      %v2025 = vpack.c.b16 %v1977, %v1953
      %v2026 = vpack.c.b16 %v1978, %v1954
      %v2027 = vpack.c.b16 %v1979, %v1955
      %v2028 = vpack.c.b16 %v1980, %v1956
      %v2029 = vpack.c.b16 %v1981, %v1957
      %v2030 = vpack.c.b16 %v1982, %v1958
      %v2031 = vpack.c.b16 %v1983, %v1959
      %v2032 = vpack.c.b16 %v1984, %v1960
      %2081 = vmatprep.subr.bf16.mxu0 %v1986
      %2082 = vmatpush1.bf16.msra.mxu0 %v1985
      %2083 = vmatprep.subr.bf16.mxu0 %v2010
      %2084 = vmatpush1.bf16.msra.mxu0 %v2009
      %2085 = vmatprep.subr.bf16.mxu0 0
      %2086 = vmatpush1.bf16.msra.mxu0 0
      %2087 = vmatprep.subr.bf16.mxu0 0
      %2088 = vmatpush1.bf16.msra.mxu0 0
      %2089 = vmatprep.subr.bf16.mxu0 0
      %2090 = vmatpush1.bf16.msra.mxu0 0
      %2091 = vmatprep.subr.bf16.mxu0 0
      %2092 = vmatpush1.bf16.msra.mxu0 0
      %2093 = vmatprep.subr.bf16.mxu0 0
      %2094 = vmatpush1.bf16.msra.mxu0 0
      %2095 = vmatprep.subr.bf16.mxu0 0
      %2096 = vmatpush1.bf16.msra.mxu0 0
      %2097 = vmatprep.subr.bf16.mxu0 0
      %2098 = vmatpush1.bf16.msra.mxu0 0
      %2099 = vmatprep.subr.bf16.mxu0 0
      %2100 = vmatpush1.bf16.msra.mxu0 0
      %2101 = vmatprep.subr.bf16.mxu0 0
      %2102 = vmatpush1.bf16.msra.mxu0 0
      %2103 = vmatprep.subr.bf16.mxu0 0
      %2104 = vmatpush1.bf16.msra.mxu0 0
      %2105 = vmatprep.subr.bf16.mxu0 0
      %2106 = vmatpush1.bf16.msra.mxu0 0
      %2107 = vmatprep.subr.bf16.mxu0 0
      %2108 = vmatpush1.bf16.msra.mxu0 0
      %2109 = vmatprep.subr.bf16.mxu0 0
      %2110 = vmatpush1.bf16.msra.mxu0 0
      %2111 = vmatprep.subr.bf16.mxu0 0
      %2112 = vmatpush1.bf16.msra.mxu0 0
      %2113 = vmatprep.mubr.bf16.mxu0 0
      %2114 = vmatmul.mubr.bf16.gmra.mrb[0].mxu0 %v469
      %v2115 = vpop.f32.mrb[0].mxu0
      %v2116 = vadd.f32 0.0, %v2115
      %v2117 = vpop.f32.mrb[0].mxu0
      %v2118 = vadd.f32 0.0, %v2117
      %v2119 = vpop.f32.mrb[0].mxu0
      %v2120 = vadd.f32 0.0, %v2119
      %v2121 = vpop.f32.mrb[0].mxu0
      %v2122 = vadd.f32 0.0, %v2121
      %2123 = vdwg.mxu0
      %2124 = vmatprep.subr.bf16.mxu0 %v1988
      %2125 = vmatpush1.bf16.msra.mxu0 %v1987
      %2126 = vmatprep.subr.bf16.mxu0 %v2012
      %2127 = vmatpush1.bf16.msra.mxu0 %v2011
      %2128 = vmatprep.subr.bf16.mxu0 0
      %2129 = vmatpush1.bf16.msra.mxu0 0
      %2130 = vmatprep.subr.bf16.mxu0 0
      %2131 = vmatpush1.bf16.msra.mxu0 0
      %2132 = vmatprep.subr.bf16.mxu0 0
      %2133 = vmatpush1.bf16.msra.mxu0 0
      %2134 = vmatprep.subr.bf16.mxu0 0
      %2135 = vmatpush1.bf16.msra.mxu0 0
      %2136 = vmatprep.subr.bf16.mxu0 0
      %2137 = vmatpush1.bf16.msra.mxu0 0
      %2138 = vmatprep.subr.bf16.mxu0 0
      %2139 = vmatpush1.bf16.msra.mxu0 0
      %2140 = vmatprep.subr.bf16.mxu0 0
      %2141 = vmatpush1.bf16.msra.mxu0 0
      %2142 = vmatprep.subr.bf16.mxu0 0
      %2143 = vmatpush1.bf16.msra.mxu0 0
      %2144 = vmatprep.subr.bf16.mxu0 0
      %2145 = vmatpush1.bf16.msra.mxu0 0
      %2146 = vmatprep.subr.bf16.mxu0 0
      %2147 = vmatpush1.bf16.msra.mxu0 0
      %2148 = vmatprep.subr.bf16.mxu0 0
      %2149 = vmatpush1.bf16.msra.mxu0 0
      %2150 = vmatprep.subr.bf16.mxu0 0
      %2151 = vmatpush1.bf16.msra.mxu0 0
      %2152 = vmatprep.subr.bf16.mxu0 0
      %2153 = vmatpush1.bf16.msra.mxu0 0
      %2154 = vmatprep.subr.bf16.mxu0 0
      %2155 = vmatpush1.bf16.msra.mxu0 0
      %2156 = vmatprep.mubr.bf16.mxu0 0
      %2157 = vmatmul.mubr.bf16.gmra.mrb[0].mxu0 %v469
      %v2158 = vpop.f32.mrb[0].mxu0
      %v2159 = vadd.f32 0.0, %v2158
      %v2160 = vpop.f32.mrb[0].mxu0
      %v2161 = vadd.f32 0.0, %v2160
      %v2162 = vpop.f32.mrb[0].mxu0
      %v2163 = vadd.f32 0.0, %v2162
      %v2164 = vpop.f32.mrb[0].mxu0
      %v2165 = vadd.f32 0.0, %v2164
      %2166 = vdwg.mxu0
      %2167 = vmatprep.subr.bf16.mxu0 %v1990
      %2168 = vmatpush1.bf16.msra.mxu0 %v1989
      %2169 = vmatprep.subr.bf16.mxu0 %v2014
      %2170 = vmatpush1.bf16.msra.mxu0 %v2013
      %2171 = vmatprep.subr.bf16.mxu0 0
      %2172 = vmatpush1.bf16.msra.mxu0 0
      %2173 = vmatprep.subr.bf16.mxu0 0
      %2174 = vmatpush1.bf16.msra.mxu0 0
      %2175 = vmatprep.subr.bf16.mxu0 0
      %2176 = vmatpush1.bf16.msra.mxu0 0
      %2177 = vmatprep.subr.bf16.mxu0 0
      %2178 = vmatpush1.bf16.msra.mxu0 0
      %2179 = vmatprep.subr.bf16.mxu0 0
      %2180 = vmatpush1.bf16.msra.mxu0 0
      %2181 = vmatprep.subr.bf16.mxu0 0
      %2182 = vmatpush1.bf16.msra.mxu0 0
      %2183 = vmatprep.subr.bf16.mxu0 0
      %2184 = vmatpush1.bf16.msra.mxu0 0
      %2185 = vmatprep.subr.bf16.mxu0 0
      %2186 = vmatpush1.bf16.msra.mxu0 0
      %2187 = vmatprep.subr.bf16.mxu0 0
      %2188 = vmatpush1.bf16.msra.mxu0 0
      %2189 = vmatprep.subr.bf16.mxu0 0
      %2190 = vmatpush1.bf16.msra.mxu0 0
      %2191 = vmatprep.subr.bf16.mxu0 0
      %2192 = vmatpush1.bf16.msra.mxu0 0
      %2193 = vmatprep.subr.bf16.mxu0 0
      %2194 = vmatpush1.bf16.msra.mxu0 0
      %2195 = vmatprep.subr.bf16.mxu0 0
      %2196 = vmatpush1.bf16.msra.mxu0 0
      %2197 = vmatprep.subr.bf16.mxu0 0
      %2198 = vmatpush1.bf16.msra.mxu0 0
      %2199 = vmatprep.mubr.bf16.mxu0 0
      %2200 = vmatmul.mubr.bf16.gmra.mrb[0].mxu0 %v469
      %v2201 = vpop.f32.mrb[0].mxu0
      %v2202 = vadd.f32 0.0, %v2201
      %v2203 = vpop.f32.mrb[0].mxu0
      %v2204 = vadd.f32 0.0, %v2203
      %v2205 = vpop.f32.mrb[0].mxu0
      %v2206 = vadd.f32 0.0, %v2205
      %v2207 = vpop.f32.mrb[0].mxu0
      %v2208 = vadd.f32 0.0, %v2207
      %2209 = vdwg.mxu0
      %2210 = vmatprep.subr.bf16.mxu0 %v1992
      %2211 = vmatpush1.bf16.msra.mxu0 %v1991
      %2212 = vmatprep.subr.bf16.mxu0 %v2016
      %2213 = vmatpush1.bf16.msra.mxu0 %v2015
      %2214 = vmatprep.subr.bf16.mxu0 0
      %2215 = vmatpush1.bf16.msra.mxu0 0
      %2216 = vmatprep.subr.bf16.mxu0 0
      %2217 = vmatpush1.bf16.msra.mxu0 0
      %2218 = vmatprep.subr.bf16.mxu0 0
      %2219 = vmatpush1.bf16.msra.mxu0 0
      %2220 = vmatprep.subr.bf16.mxu0 0
      %2221 = vmatpush1.bf16.msra.mxu0 0
      %2222 = vmatprep.subr.bf16.mxu0 0
      %2223 = vmatpush1.bf16.msra.mxu0 0
      %2224 = vmatprep.subr.bf16.mxu0 0
      %2225 = vmatpush1.bf16.msra.mxu0 0
      %2226 = vmatprep.subr.bf16.mxu0 0
      %2227 = vmatpush1.bf16.msra.mxu0 0
      %2228 = vmatprep.subr.bf16.mxu0 0
      %2229 = vmatpush1.bf16.msra.mxu0 0
      %2230 = vmatprep.subr.bf16.mxu0 0
      %2231 = vmatpush1.bf16.msra.mxu0 0
      %2232 = vmatprep.subr.bf16.mxu0 0
      %2233 = vmatpush1.bf16.msra.mxu0 0
      %2234 = vmatprep.subr.bf16.mxu0 0
      %2235 = vmatpush1.bf16.msra.mxu0 0
      %2236 = vmatprep.subr.bf16.mxu0 0
      %2237 = vmatpush1.bf16.msra.mxu0 0
      %2238 = vmatprep.subr.bf16.mxu0 0
      %2239 = vmatpush1.bf16.msra.mxu0 0
      %2240 = vmatprep.subr.bf16.mxu0 0
      %2241 = vmatpush1.bf16.msra.mxu0 0
      %2242 = vmatprep.mubr.bf16.mxu0 0
      %2243 = vmatmul.mubr.bf16.gmra.mrb[0].mxu0 %v469
      %v2244 = vpop.f32.mrb[0].mxu0
      %v2245 = vadd.f32 0.0, %v2244
      %v2246 = vpop.f32.mrb[0].mxu0
      %v2247 = vadd.f32 0.0, %v2246
      %v2248 = vpop.f32.mrb[0].mxu0
      %v2249 = vadd.f32 0.0, %v2248
      %v2250 = vpop.f32.mrb[0].mxu0
      %v2251 = vadd.f32 0.0, %v2250
      %2252 = vdwg.mxu0
      %2253 = vmatprep.subr.bf16.mxu0 %v1994
      %2254 = vmatpush1.bf16.msra.mxu0 %v1993
      %2255 = vmatprep.subr.bf16.mxu0 %v2018
      %2256 = vmatpush1.bf16.msra.mxu0 %v2017
      %2257 = vmatprep.subr.bf16.mxu0 0
      %2258 = vmatpush1.bf16.msra.mxu0 0
      %2259 = vmatprep.subr.bf16.mxu0 0
      %2260 = vmatpush1.bf16.msra.mxu0 0
      %2261 = vmatprep.subr.bf16.mxu0 0
      %2262 = vmatpush1.bf16.msra.mxu0 0
      %2263 = vmatprep.subr.bf16.mxu0 0
      %2264 = vmatpush1.bf16.msra.mxu0 0
      %2265 = vmatprep.subr.bf16.mxu0 0
      %2266 = vmatpush1.bf16.msra.mxu0 0
      %2267 = vmatprep.subr.bf16.mxu0 0
      %2268 = vmatpush1.bf16.msra.mxu0 0
      %2269 = vmatprep.subr.bf16.mxu0 0
      %2270 = vmatpush1.bf16.msra.mxu0 0
      %2271 = vmatprep.subr.bf16.mxu0 0
      %2272 = vmatpush1.bf16.msra.mxu0 0
      %2273 = vmatprep.subr.bf16.mxu0 0
      %2274 = vmatpush1.bf16.msra.mxu0 0
      %2275 = vmatprep.subr.bf16.mxu0 0
      %2276 = vmatpush1.bf16.msra.mxu0 0
      %2277 = vmatprep.subr.bf16.mxu0 0
      %2278 = vmatpush1.bf16.msra.mxu0 0
      %2279 = vmatprep.subr.bf16.mxu0 0
      %2280 = vmatpush1.bf16.msra.mxu0 0
      %2281 = vmatprep.subr.bf16.mxu0 0
      %2282 = vmatpush1.bf16.msra.mxu0 0
      %2283 = vmatprep.subr.bf16.mxu0 0
      %2284 = vmatpush1.bf16.msra.mxu0 0
      %2285 = vmatprep.mubr.bf16.mxu0 0
      %2286 = vmatmul.mubr.bf16.gmra.mrb[0].mxu0 %v469
      %v2287 = vpop.f32.mrb[0].mxu0
      %v2288 = vadd.f32 0.0, %v2287
      %v2289 = vpop.f32.mrb[0].mxu0
      %v2290 = vadd.f32 0.0, %v2289
      %v2291 = vpop.f32.mrb[0].mxu0
      %v2292 = vadd.f32 0.0, %v2291
      %v2293 = vpop.f32.mrb[0].mxu0
      %v2294 = vadd.f32 0.0, %v2293
      %2295 = vdwg.mxu0
      %2296 = vmatprep.subr.bf16.mxu0 %v1996
      %2297 = vmatpush1.bf16.msra.mxu0 %v1995
      %2298 = vmatprep.subr.bf16.mxu0 %v2020
      %2299 = vmatpush1.bf16.msra.mxu0 %v2019
      %2300 = vmatprep.subr.bf16.mxu0 0
      %2301 = vmatpush1.bf16.msra.mxu0 0
      %2302 = vmatprep.subr.bf16.mxu0 0
      %2303 = vmatpush1.bf16.msra.mxu0 0
      %2304 = vmatprep.subr.bf16.mxu0 0
      %2305 = vmatpush1.bf16.msra.mxu0 0
      %2306 = vmatprep.subr.bf16.mxu0 0
      %2307 = vmatpush1.bf16.msra.mxu0 0
      %2308 = vmatprep.subr.bf16.mxu0 0
      %2309 = vmatpush1.bf16.msra.mxu0 0
      %2310 = vmatprep.subr.bf16.mxu0 0
      %2311 = vmatpush1.bf16.msra.mxu0 0
      %2312 = vmatprep.subr.bf16.mxu0 0
      %2313 = vmatpush1.bf16.msra.mxu0 0
      %2314 = vmatprep.subr.bf16.mxu0 0
      %2315 = vmatpush1.bf16.msra.mxu0 0
      %2316 = vmatprep.subr.bf16.mxu0 0
      %2317 = vmatpush1.bf16.msra.mxu0 0
      %2318 = vmatprep.subr.bf16.mxu0 0
      %2319 = vmatpush1.bf16.msra.mxu0 0
      %2320 = vmatprep.subr.bf16.mxu0 0
      %2321 = vmatpush1.bf16.msra.mxu0 0
      %2322 = vmatprep.subr.bf16.mxu0 0
      %2323 = vmatpush1.bf16.msra.mxu0 0
      %2324 = vmatprep.subr.bf16.mxu0 0
      %2325 = vmatpush1.bf16.msra.mxu0 0
      %2326 = vmatprep.subr.bf16.mxu0 0
      %2327 = vmatpush1.bf16.msra.mxu0 0
      %2328 = vmatprep.mubr.bf16.mxu0 0
      %2329 = vmatmul.mubr.bf16.gmra.mrb[0].mxu0 %v469
      %v2330 = vpop.f32.mrb[0].mxu0
      %v2331 = vadd.f32 0.0, %v2330
      %v2332 = vpop.f32.mrb[0].mxu0
      %v2333 = vadd.f32 0.0, %v2332
      %v2334 = vpop.f32.mrb[0].mxu0
      %v2335 = vadd.f32 0.0, %v2334
      %v2336 = vpop.f32.mrb[0].mxu0
      %v2337 = vadd.f32 0.0, %v2336
      %2338 = vdwg.mxu0
      %2339 = vmatprep.subr.bf16.mxu0 %v1998
      %2340 = vmatpush1.bf16.msra.mxu0 %v1997
      %2341 = vmatprep.subr.bf16.mxu0 %v2022
      %2342 = vmatpush1.bf16.msra.mxu0 %v2021
      %2343 = vmatprep.subr.bf16.mxu0 0
      %2344 = vmatpush1.bf16.msra.mxu0 0
      %2345 = vmatprep.subr.bf16.mxu0 0
      %2346 = vmatpush1.bf16.msra.mxu0 0
      %2347 = vmatprep.subr.bf16.mxu0 0
      %2348 = vmatpush1.bf16.msra.mxu0 0
      %2349 = vmatprep.subr.bf16.mxu0 0
      %2350 = vmatpush1.bf16.msra.mxu0 0
      %2351 = vmatprep.subr.bf16.mxu0 0
      %2352 = vmatpush1.bf16.msra.mxu0 0
      %2353 = vmatprep.subr.bf16.mxu0 0
      %2354 = vmatpush1.bf16.msra.mxu0 0
      %2355 = vmatprep.subr.bf16.mxu0 0
      %2356 = vmatpush1.bf16.msra.mxu0 0
      %2357 = vmatprep.subr.bf16.mxu0 0
      %2358 = vmatpush1.bf16.msra.mxu0 0
      %2359 = vmatprep.subr.bf16.mxu0 0
      %2360 = vmatpush1.bf16.msra.mxu0 0
      %2361 = vmatprep.subr.bf16.mxu0 0
      %2362 = vmatpush1.bf16.msra.mxu0 0
      %2363 = vmatprep.subr.bf16.mxu0 0
      %2364 = vmatpush1.bf16.msra.mxu0 0
      %2365 = vmatprep.subr.bf16.mxu0 0
      %2366 = vmatpush1.bf16.msra.mxu0 0
      %2367 = vmatprep.subr.bf16.mxu0 0
      %2368 = vmatpush1.bf16.msra.mxu0 0
      %2369 = vmatprep.subr.bf16.mxu0 0
      %2370 = vmatpush1.bf16.msra.mxu0 0
      %2371 = vmatprep.mubr.bf16.mxu0 0
      %2372 = vmatmul.mubr.bf16.gmra.mrb[0].mxu0 %v469
      %v2373 = vpop.f32.mrb[0].mxu0
      %v2374 = vadd.f32 0.0, %v2373
      %v2375 = vpop.f32.mrb[0].mxu0
      %v2376 = vadd.f32 0.0, %v2375
      %v2377 = vpop.f32.mrb[0].mxu0
      %v2378 = vadd.f32 0.0, %v2377
      %v2379 = vpop.f32.mrb[0].mxu0
      %v2380 = vadd.f32 0.0, %v2379
      %2381 = vdwg.mxu0
      %2382 = vmatprep.subr.bf16.mxu0 %v2000
      %2383 = vmatpush1.bf16.msra.mxu0 %v1999
      %2384 = vmatprep.subr.bf16.mxu0 %v2024
      %2385 = vmatpush1.bf16.msra.mxu0 %v2023
      %2386 = vmatprep.subr.bf16.mxu0 0
      %2387 = vmatpush1.bf16.msra.mxu0 0
      %2388 = vmatprep.subr.bf16.mxu0 0
      %2389 = vmatpush1.bf16.msra.mxu0 0
      %2390 = vmatprep.subr.bf16.mxu0 0
      %2391 = vmatpush1.bf16.msra.mxu0 0
      %2392 = vmatprep.subr.bf16.mxu0 0
      %2393 = vmatpush1.bf16.msra.mxu0 0
      %2394 = vmatprep.subr.bf16.mxu0 0
      %2395 = vmatpush1.bf16.msra.mxu0 0
      %2396 = vmatprep.subr.bf16.mxu0 0
      %2397 = vmatpush1.bf16.msra.mxu0 0
      %2398 = vmatprep.subr.bf16.mxu0 0
      %2399 = vmatpush1.bf16.msra.mxu0 0
      %2400 = vmatprep.subr.bf16.mxu0 0
      %2401 = vmatpush1.bf16.msra.mxu0 0
      %2402 = vmatprep.subr.bf16.mxu0 0
      %2403 = vmatpush1.bf16.msra.mxu0 0
      %2404 = vmatprep.subr.bf16.mxu0 0
      %2405 = vmatpush1.bf16.msra.mxu0 0
      %2406 = vmatprep.subr.bf16.mxu0 0
      %2407 = vmatpush1.bf16.msra.mxu0 0
      %2408 = vmatprep.subr.bf16.mxu0 0
      %2409 = vmatpush1.bf16.msra.mxu0 0
      %2410 = vmatprep.subr.bf16.mxu0 0
      %2411 = vmatpush1.bf16.msra.mxu0 0
      %2412 = vmatprep.subr.bf16.mxu0 0
      %2413 = vmatpush1.bf16.msra.mxu0 0
      %2414 = vmatprep.mubr.bf16.mxu0 0
      %2415 = vmatmul.mubr.bf16.gmra.mrb[0].mxu0 %v469
      %v2416 = vpop.f32.mrb[0].mxu0
      %v2417 = vadd.f32 0.0, %v2416
      %v2418 = vpop.f32.mrb[0].mxu0
      %v2419 = vadd.f32 0.0, %v2418
      %v2420 = vpop.f32.mrb[0].mxu0
      %v2421 = vadd.f32 0.0, %v2420
      %v2422 = vpop.f32.mrb[0].mxu0
      %v2423 = vadd.f32 0.0, %v2422
      %2424 = vdwg.mxu0
      %2425 = vmatprep.subr.bf16.mxu0 %v2002
      %2426 = vmatpush1.bf16.msra.mxu0 %v2001
      %2427 = vmatprep.subr.bf16.mxu0 %v2026
      %2428 = vmatpush1.bf16.msra.mxu0 %v2025
      %2429 = vmatprep.subr.bf16.mxu0 0
      %2430 = vmatpush1.bf16.msra.mxu0 0
      %2431 = vmatprep.subr.bf16.mxu0 0
      %2432 = vmatpush1.bf16.msra.mxu0 0
      %2433 = vmatprep.subr.bf16.mxu0 0
      %2434 = vmatpush1.bf16.msra.mxu0 0
      %2435 = vmatprep.subr.bf16.mxu0 0
      %2436 = vmatpush1.bf16.msra.mxu0 0
      %2437 = vmatprep.subr.bf16.mxu0 0
      %2438 = vmatpush1.bf16.msra.mxu0 0
      %2439 = vmatprep.subr.bf16.mxu0 0
      %2440 = vmatpush1.bf16.msra.mxu0 0
      %2441 = vmatprep.subr.bf16.mxu0 0
      %2442 = vmatpush1.bf16.msra.mxu0 0
      %2443 = vmatprep.subr.bf16.mxu0 0
      %2444 = vmatpush1.bf16.msra.mxu0 0
      %2445 = vmatprep.subr.bf16.mxu0 0
      %2446 = vmatpush1.bf16.msra.mxu0 0
      %2447 = vmatprep.subr.bf16.mxu0 0
      %2448 = vmatpush1.bf16.msra.mxu0 0
      %2449 = vmatprep.subr.bf16.mxu0 0
      %2450 = vmatpush1.bf16.msra.mxu0 0
      %2451 = vmatprep.subr.bf16.mxu0 0
      %2452 = vmatpush1.bf16.msra.mxu0 0
      %2453 = vmatprep.subr.bf16.mxu0 0
      %2454 = vmatpush1.bf16.msra.mxu0 0
      %2455 = vmatprep.subr.bf16.mxu0 0
      %2456 = vmatpush1.bf16.msra.mxu0 0
      %2457 = vmatprep.mubr.bf16.mxu0 0
      %2458 = vmatmul.mubr.bf16.gmra.mrb[0].mxu0 %v469
      %v2459 = vpop.f32.mrb[0].mxu0
      %v2460 = vadd.f32 0.0, %v2459
      %v2461 = vpop.f32.mrb[0].mxu0
      %v2462 = vadd.f32 0.0, %v2461
      %v2463 = vpop.f32.mrb[0].mxu0
      %v2464 = vadd.f32 0.0, %v2463
      %v2465 = vpop.f32.mrb[0].mxu0
      %v2466 = vadd.f32 0.0, %v2465
      %2467 = vdwg.mxu0
      %2468 = vmatprep.subr.bf16.mxu0 %v2004
      %2469 = vmatpush1.bf16.msra.mxu0 %v2003
      %2470 = vmatprep.subr.bf16.mxu0 %v2028
      %2471 = vmatpush1.bf16.msra.mxu0 %v2027
      %2472 = vmatprep.subr.bf16.mxu0 0
      %2473 = vmatpush1.bf16.msra.mxu0 0
      %2474 = vmatprep.subr.bf16.mxu0 0
      %2475 = vmatpush1.bf16.msra.mxu0 0
      %2476 = vmatprep.subr.bf16.mxu0 0
      %2477 = vmatpush1.bf16.msra.mxu0 0
      %2478 = vmatprep.subr.bf16.mxu0 0
      %2479 = vmatpush1.bf16.msra.mxu0 0
      %2480 = vmatprep.subr.bf16.mxu0 0
      %2481 = vmatpush1.bf16.msra.mxu0 0
      %2482 = vmatprep.subr.bf16.mxu0 0
      %2483 = vmatpush1.bf16.msra.mxu0 0
      %2484 = vmatprep.subr.bf16.mxu0 0
      %2485 = vmatpush1.bf16.msra.mxu0 0
      %2486 = vmatprep.subr.bf16.mxu0 0
      %2487 = vmatpush1.bf16.msra.mxu0 0
      %2488 = vmatprep.subr.bf16.mxu0 0
      %2489 = vmatpush1.bf16.msra.mxu0 0
      %2490 = vmatprep.subr.bf16.mxu0 0
      %2491 = vmatpush1.bf16.msra.mxu0 0
      %2492 = vmatprep.subr.bf16.mxu0 0
      %2493 = vmatpush1.bf16.msra.mxu0 0
      %2494 = vmatprep.subr.bf16.mxu0 0
      %2495 = vmatpush1.bf16.msra.mxu0 0
      %2496 = vmatprep.subr.bf16.mxu0 0
      %2497 = vmatpush1.bf16.msra.mxu0 0
      %2498 = vmatprep.subr.bf16.mxu0 0
      %2499 = vmatpush1.bf16.msra.mxu0 0
      %2500 = vmatprep.mubr.bf16.mxu0 0
      %2501 = vmatmul.mubr.bf16.gmra.mrb[0].mxu0 %v469
      %v2502 = vpop.f32.mrb[0].mxu0
      %v2503 = vadd.f32 0.0, %v2502
      %v2504 = vpop.f32.mrb[0].mxu0
      %v2505 = vadd.f32 0.0, %v2504
      %v2506 = vpop.f32.mrb[0].mxu0
      %v2507 = vadd.f32 0.0, %v2506
      %v2508 = vpop.f32.mrb[0].mxu0
      %v2509 = vadd.f32 0.0, %v2508
      %2510 = vdwg.mxu0
      %2511 = vmatprep.subr.bf16.mxu0 %v2006
      %2512 = vmatpush1.bf16.msra.mxu0 %v2005
      %2513 = vmatprep.subr.bf16.mxu0 %v2030
      %2514 = vmatpush1.bf16.msra.mxu0 %v2029
      %2515 = vmatprep.subr.bf16.mxu0 0
      %2516 = vmatpush1.bf16.msra.mxu0 0
      %2517 = vmatprep.subr.bf16.mxu0 0
      %2518 = vmatpush1.bf16.msra.mxu0 0
      %2519 = vmatprep.subr.bf16.mxu0 0
      %2520 = vmatpush1.bf16.msra.mxu0 0
      %2521 = vmatprep.subr.bf16.mxu0 0
      %2522 = vmatpush1.bf16.msra.mxu0 0
      %2523 = vmatprep.subr.bf16.mxu0 0
      %2524 = vmatpush1.bf16.msra.mxu0 0
      %2525 = vmatprep.subr.bf16.mxu0 0
      %2526 = vmatpush1.bf16.msra.mxu0 0
      %2527 = vmatprep.subr.bf16.mxu0 0
      %2528 = vmatpush1.bf16.msra.mxu0 0
      %2529 = vmatprep.subr.bf16.mxu0 0
      %2530 = vmatpush1.bf16.msra.mxu0 0
      %2531 = vmatprep.subr.bf16.mxu0 0
      %2532 = vmatpush1.bf16.msra.mxu0 0
      %2533 = vmatprep.subr.bf16.mxu0 0
      %2534 = vmatpush1.bf16.msra.mxu0 0
      %2535 = vmatprep.subr.bf16.mxu0 0
      %2536 = vmatpush1.bf16.msra.mxu0 0
      %2537 = vmatprep.subr.bf16.mxu0 0
      %2538 = vmatpush1.bf16.msra.mxu0 0
      %2539 = vmatprep.subr.bf16.mxu0 0
      %2540 = vmatpush1.bf16.msra.mxu0 0
      %2541 = vmatprep.subr.bf16.mxu0 0
      %2542 = vmatpush1.bf16.msra.mxu0 0
      %2543 = vmatprep.mubr.bf16.mxu0 0
      %2544 = vmatmul.mubr.bf16.gmra.mrb[0].mxu0 %v469
      %v2545 = vpop.f32.mrb[0].mxu0
      %v2546 = vadd.f32 0.0, %v2545
      %v2547 = vpop.f32.mrb[0].mxu0
      %v2548 = vadd.f32 0.0, %v2547
      %v2549 = vpop.f32.mrb[0].mxu0
      %v2550 = vadd.f32 0.0, %v2549
      %v2551 = vpop.f32.mrb[0].mxu0
      %v2552 = vadd.f32 0.0, %v2551
      %2553 = vdwg.mxu0
      %2554 = vmatprep.subr.bf16.mxu0 %v2008
      %2555 = vmatpush1.bf16.msra.mxu0 %v2007
      %2556 = vmatprep.subr.bf16.mxu0 %v2032
      %2557 = vmatpush1.bf16.msra.mxu0 %v2031
      %2558 = vmatprep.subr.bf16.mxu0 0
      %2559 = vmatpush1.bf16.msra.mxu0 0
      %2560 = vmatprep.subr.bf16.mxu0 0
      %2561 = vmatpush1.bf16.msra.mxu0 0
      %2562 = vmatprep.subr.bf16.mxu0 0
      %2563 = vmatpush1.bf16.msra.mxu0 0
      %2564 = vmatprep.subr.bf16.mxu0 0
      %2565 = vmatpush1.bf16.msra.mxu0 0
      %2566 = vmatprep.subr.bf16.mxu0 0
      %2567 = vmatpush1.bf16.msra.mxu0 0
      %2568 = vmatprep.subr.bf16.mxu0 0
      %2569 = vmatpush1.bf16.msra.mxu0 0
      %2570 = vmatprep.subr.bf16.mxu0 0
      %2571 = vmatpush1.bf16.msra.mxu0 0
      %2572 = vmatprep.subr.bf16.mxu0 0
      %2573 = vmatpush1.bf16.msra.mxu0 0
      %2574 = vmatprep.subr.bf16.mxu0 0
      %2575 = vmatpush1.bf16.msra.mxu0 0
      %2576 = vmatprep.subr.bf16.mxu0 0
      %2577 = vmatpush1.bf16.msra.mxu0 0
      %2578 = vmatprep.subr.bf16.mxu0 0
      %2579 = vmatpush1.bf16.msra.mxu0 0
      %2580 = vmatprep.subr.bf16.mxu0 0
      %2581 = vmatpush1.bf16.msra.mxu0 0
      %2582 = vmatprep.subr.bf16.mxu0 0
      %2583 = vmatpush1.bf16.msra.mxu0 0
      %2584 = vmatprep.subr.bf16.mxu0 0
      %2585 = vmatpush1.bf16.msra.mxu0 0
      %2586 = vmatprep.mubr.bf16.mxu0 0
      %2587 = vmatmul.mubr.bf16.gmra.mrb[0].mxu0 %v469
      %v2588 = vpop.f32.mrb[0].mxu0
      %v2589 = vadd.f32 0.0, %v2588
      %v2590 = vpop.f32.mrb[0].mxu0
      %v2591 = vadd.f32 0.0, %v2590
      %v2592 = vpop.f32.mrb[0].mxu0
      %v2593 = vadd.f32 0.0, %v2592
      %v2594 = vpop.f32.mrb[0].mxu0
      %v2595 = vadd.f32 0.0, %v2594
      %2596 = vdwg.mxu0
      %s2597 = scalar_lea.vmem %s165, 1152
      %v2598 = vld [vmem:[%s2597] sm:$0xff]
      %v2599 = vld [vmem:[%s2597 + $0x8] sm:$0xff]
      %v2600 = vld [vmem:[%s2597 + $0x10] sm:$0xff]
      %v2601 = vld [vmem:[%s2597 + $0x18] sm:$0xff]
      %v2602 = vld [vmem:[%s2597 + $0x20] sm:$0xff]
      %v2603 = vld [vmem:[%s2597 + $0x28] sm:$0xff]
      %v2604 = vld [vmem:[%s2597 + $0x30] sm:$0xff]
      %v2605 = vld [vmem:[%s2597 + $0x38] sm:$0xff]
      %v2606 = vld [vmem:[%s2597 + $0x40] sm:$0xff]
      %v2607 = vld [vmem:[%s2597 + $0x48] sm:$0xff]
      %v2608 = vld [vmem:[%s2597 + $0x50] sm:$0xff]
      %v2609 = vld [vmem:[%s2597 + $0x58] sm:$0xff]
      %v2610 = vld [vmem:[%s2597 + $0x60] sm:$0xff]
      %v2611 = vld [vmem:[%s2597 + $0x68] sm:$0xff]
      %v2612 = vld [vmem:[%s2597 + $0x70] sm:$0xff]
      %v2613 = vld [vmem:[%s2597 + $0x78] sm:$0xff]
      %v2614 = vld [vmem:[%s2597 + $0x80] sm:$0xff]
      %v2615 = vld [vmem:[%s2597 + $0x88] sm:$0xff]
      %v2616 = vld [vmem:[%s2597 + $0x90] sm:$0xff]
      %v2617 = vld [vmem:[%s2597 + $0x98] sm:$0xff]
      %v2618 = vld [vmem:[%s2597 + $0xa0] sm:$0xff]
      %v2619 = vld [vmem:[%s2597 + $0xa8] sm:$0xff]
      %v2620 = vld [vmem:[%s2597 + $0xb0] sm:$0xff]
      %v2621 = vld [vmem:[%s2597 + $0xb8] sm:$0xff]
      %v2622 = vld [vmem:[%s2597 + $0xc0] sm:$0xff]
      %v2623 = vld [vmem:[%s2597 + $0xc8] sm:$0xff]
      %v2624 = vld [vmem:[%s2597 + $0xd0] sm:$0xff]
      %v2625 = vld [vmem:[%s2597 + $0xd8] sm:$0xff]
      %v2626 = vld [vmem:[%s2597 + $0xe0] sm:$0xff]
      %v2627 = vld [vmem:[%s2597 + $0xe8] sm:$0xff]
      %v2628 = vld [vmem:[%s2597 + $0xf0] sm:$0xff]
      %v2629 = vld [vmem:[%s2597 + $0xf8] sm:$0xff]
      %v2630 = vld [vmem:[%s2597 + $0x100] sm:$0xff]
      %v2631 = vld [vmem:[%s2597 + $0x108] sm:$0xff]
      %v2632 = vld [vmem:[%s2597 + $0x110] sm:$0xff]
      %v2633 = vld [vmem:[%s2597 + $0x118] sm:$0xff]
      %v2634 = vld [vmem:[%s2597 + $0x120] sm:$0xff]
      %v2635 = vld [vmem:[%s2597 + $0x128] sm:$0xff]
      %v2636 = vld [vmem:[%s2597 + $0x130] sm:$0xff]
      %v2637 = vld [vmem:[%s2597 + $0x138] sm:$0xff]
      %v2638 = vld [vmem:[%s2597 + $0x140] sm:$0xff]
      %v2639 = vld [vmem:[%s2597 + $0x148] sm:$0xff]
      %v2640 = vld [vmem:[%s2597 + $0x150] sm:$0xff]
      %v2641 = vld [vmem:[%s2597 + $0x158] sm:$0xff]
      %v2642 = vld [vmem:[%s2597 + $0x160] sm:$0xff]
      %v2643 = vld [vmem:[%s2597 + $0x168] sm:$0xff]
      %v2644 = vld [vmem:[%s2597 + $0x170] sm:$0xff]
      %v2645 = vld [vmem:[%s2597 + $0x178] sm:$0xff]
      %v2694 = vunpack.c.l.b16 %v2598
      %v2695 = vunpack.c.h.b16 %v2598
      %v2696 = vunpack.c.l.b16 %v2599
      %v2697 = vunpack.c.h.b16 %v2599
      %v2698 = vunpack.c.l.b16 %v2600
      %v2699 = vunpack.c.h.b16 %v2600
      %v2700 = vunpack.c.l.b16 %v2601
      %v2701 = vunpack.c.h.b16 %v2601
      %v2702 = vunpack.c.l.b16 %v2602
      %v2703 = vunpack.c.h.b16 %v2602
      %v2704 = vunpack.c.l.b16 %v2603
      %v2705 = vunpack.c.h.b16 %v2603
      %v2706 = vunpack.c.l.b16 %v2604
      %v2707 = vunpack.c.h.b16 %v2604
      %v2708 = vunpack.c.l.b16 %v2605
      %v2709 = vunpack.c.h.b16 %v2605
      %v2710 = vunpack.c.l.b16 %v2606
      %v2711 = vunpack.c.h.b16 %v2606
      %v2712 = vunpack.c.l.b16 %v2607
      %v2713 = vunpack.c.h.b16 %v2607
      %v2714 = vunpack.c.l.b16 %v2608
      %v2715 = vunpack.c.h.b16 %v2608
      %v2716 = vunpack.c.l.b16 %v2609
      %v2717 = vunpack.c.h.b16 %v2609
      %v2718 = vunpack.c.l.b16 %v2610
      %v2719 = vunpack.c.h.b16 %v2610
      %v2720 = vunpack.c.l.b16 %v2611
      %v2721 = vunpack.c.h.b16 %v2611
      %v2722 = vunpack.c.l.b16 %v2612
      %v2723 = vunpack.c.h.b16 %v2612
      %v2724 = vunpack.c.l.b16 %v2613
      %v2725 = vunpack.c.h.b16 %v2613
      %v2726 = vunpack.c.l.b16 %v2614
      %v2727 = vunpack.c.h.b16 %v2614
      %v2728 = vunpack.c.l.b16 %v2615
      %v2729 = vunpack.c.h.b16 %v2615
      %v2730 = vunpack.c.l.b16 %v2616
      %v2731 = vunpack.c.h.b16 %v2616
      %v2732 = vunpack.c.l.b16 %v2617
      %v2733 = vunpack.c.h.b16 %v2617
      %v2734 = vunpack.c.l.b16 %v2618
      %v2735 = vunpack.c.h.b16 %v2618
      %v2736 = vunpack.c.l.b16 %v2619
      %v2737 = vunpack.c.h.b16 %v2619
      %v2738 = vunpack.c.l.b16 %v2620
      %v2739 = vunpack.c.h.b16 %v2620
      %v2740 = vunpack.c.l.b16 %v2621
      %v2741 = vunpack.c.h.b16 %v2621
      %v2742 = vunpack.c.l.b16 %v2622
      %v2743 = vunpack.c.h.b16 %v2622
      %v2744 = vunpack.c.l.b16 %v2623
      %v2745 = vunpack.c.h.b16 %v2623
      %v2746 = vunpack.c.l.b16 %v2624
      %v2747 = vunpack.c.h.b16 %v2624
      %v2748 = vunpack.c.l.b16 %v2625
      %v2749 = vunpack.c.h.b16 %v2625
      %v2750 = vunpack.c.l.b16 %v2626
      %v2751 = vunpack.c.h.b16 %v2626
      %v2752 = vunpack.c.l.b16 %v2627
      %v2753 = vunpack.c.h.b16 %v2627
      %v2754 = vunpack.c.l.b16 %v2628
      %v2755 = vunpack.c.h.b16 %v2628
      %v2756 = vunpack.c.l.b16 %v2629
      %v2757 = vunpack.c.h.b16 %v2629
      %v2758 = vunpack.c.l.b16 %v2630
      %v2759 = vunpack.c.h.b16 %v2630
      %v2760 = vunpack.c.l.b16 %v2631
      %v2761 = vunpack.c.h.b16 %v2631
      %v2762 = vunpack.c.l.b16 %v2632
      %v2763 = vunpack.c.h.b16 %v2632
      %v2764 = vunpack.c.l.b16 %v2633
      %v2765 = vunpack.c.h.b16 %v2633
      %v2766 = vunpack.c.l.b16 %v2634
      %v2767 = vunpack.c.h.b16 %v2634
      %v2768 = vunpack.c.l.b16 %v2635
      %v2769 = vunpack.c.h.b16 %v2635
      %v2770 = vunpack.c.l.b16 %v2636
      %v2771 = vunpack.c.h.b16 %v2636
      %v2772 = vunpack.c.l.b16 %v2637
      %v2773 = vunpack.c.h.b16 %v2637
      %v2774 = vunpack.c.l.b16 %v2638
      %v2775 = vunpack.c.h.b16 %v2638
      %v2776 = vunpack.c.l.b16 %v2639
      %v2777 = vunpack.c.h.b16 %v2639
      %v2778 = vunpack.c.l.b16 %v2640
      %v2779 = vunpack.c.h.b16 %v2640
      %v2780 = vunpack.c.l.b16 %v2641
      %v2781 = vunpack.c.h.b16 %v2641
      %v2782 = vunpack.c.l.b16 %v2642
      %v2783 = vunpack.c.h.b16 %v2642
      %v2784 = vunpack.c.l.b16 %v2643
      %v2785 = vunpack.c.h.b16 %v2643
      %v2786 = vunpack.c.l.b16 %v2644
      %v2787 = vunpack.c.h.b16 %v2644
      %v2788 = vunpack.c.l.b16 %v2645
      %v2789 = vunpack.c.h.b16 %v2645
      %v2790 = vpack.c.b16 %v2718, %v2694
      %v2791 = vpack.c.b16 %v2719, %v2695
      %v2792 = vpack.c.b16 %v2720, %v2696
      %v2793 = vpack.c.b16 %v2721, %v2697
      %v2794 = vpack.c.b16 %v2722, %v2698
      %v2795 = vpack.c.b16 %v2723, %v2699
      %v2796 = vpack.c.b16 %v2724, %v2700
      %v2797 = vpack.c.b16 %v2725, %v2701
      %v2798 = vpack.c.b16 %v2726, %v2702
      %v2799 = vpack.c.b16 %v2727, %v2703
      %v2800 = vpack.c.b16 %v2728, %v2704
      %v2801 = vpack.c.b16 %v2729, %v2705
      %v2802 = vpack.c.b16 %v2730, %v2706
      %v2803 = vpack.c.b16 %v2731, %v2707
      %v2804 = vpack.c.b16 %v2732, %v2708
      %v2805 = vpack.c.b16 %v2733, %v2709
      %v2806 = vpack.c.b16 %v2734, %v2710
      %v2807 = vpack.c.b16 %v2735, %v2711
      %v2808 = vpack.c.b16 %v2736, %v2712
      %v2809 = vpack.c.b16 %v2737, %v2713
      %v2810 = vpack.c.b16 %v2738, %v2714
      %v2811 = vpack.c.b16 %v2739, %v2715
      %v2812 = vpack.c.b16 %v2740, %v2716
      %v2813 = vpack.c.b16 %v2741, %v2717
      %v2814 = vpack.c.b16 %v2766, %v2742
      %v2815 = vpack.c.b16 %v2767, %v2743
      %v2816 = vpack.c.b16 %v2768, %v2744
      %v2817 = vpack.c.b16 %v2769, %v2745
      %v2818 = vpack.c.b16 %v2770, %v2746
      %v2819 = vpack.c.b16 %v2771, %v2747
      %v2820 = vpack.c.b16 %v2772, %v2748
      %v2821 = vpack.c.b16 %v2773, %v2749
      %v2822 = vpack.c.b16 %v2774, %v2750
      %v2823 = vpack.c.b16 %v2775, %v2751
      %v2824 = vpack.c.b16 %v2776, %v2752
      %v2825 = vpack.c.b16 %v2777, %v2753
      %v2826 = vpack.c.b16 %v2778, %v2754
      %v2827 = vpack.c.b16 %v2779, %v2755
      %v2828 = vpack.c.b16 %v2780, %v2756
      %v2829 = vpack.c.b16 %v2781, %v2757
      %v2830 = vpack.c.b16 %v2782, %v2758
      %v2831 = vpack.c.b16 %v2783, %v2759
      %v2832 = vpack.c.b16 %v2784, %v2760
      %v2833 = vpack.c.b16 %v2785, %v2761
      %v2834 = vpack.c.b16 %v2786, %v2762
      %v2835 = vpack.c.b16 %v2787, %v2763
      %v2836 = vpack.c.b16 %v2788, %v2764
      %v2837 = vpack.c.b16 %v2789, %v2765
      %2886 = vmatprep.subr.bf16.mxu0 %v2791
      %2887 = vmatpush1.bf16.msra.mxu0 %v2790
      %2888 = vmatprep.subr.bf16.mxu0 %v2815
      %2889 = vmatpush1.bf16.msra.mxu0 %v2814
      %2890 = vmatprep.subr.bf16.mxu0 0
      %2891 = vmatpush1.bf16.msra.mxu0 0
      %2892 = vmatprep.subr.bf16.mxu0 0
      %2893 = vmatpush1.bf16.msra.mxu0 0
      %2894 = vmatprep.subr.bf16.mxu0 0
      %2895 = vmatpush1.bf16.msra.mxu0 0
      %2896 = vmatprep.subr.bf16.mxu0 0
      %2897 = vmatpush1.bf16.msra.mxu0 0
      %2898 = vmatprep.subr.bf16.mxu0 0
      %2899 = vmatpush1.bf16.msra.mxu0 0
      %2900 = vmatprep.subr.bf16.mxu0 0
      %2901 = vmatpush1.bf16.msra.mxu0 0
      %2902 = vmatprep.subr.bf16.mxu0 0
      %2903 = vmatpush1.bf16.msra.mxu0 0
      %2904 = vmatprep.subr.bf16.mxu0 0
      %2905 = vmatpush1.bf16.msra.mxu0 0
      %2906 = vmatprep.subr.bf16.mxu0 0
      %2907 = vmatpush1.bf16.msra.mxu0 0
      %2908 = vmatprep.subr.bf16.mxu0 0
      %2909 = vmatpush1.bf16.msra.mxu0 0
      %2910 = vmatprep.subr.bf16.mxu0 0
      %2911 = vmatpush1.bf16.msra.mxu0 0
      %2912 = vmatprep.subr.bf16.mxu0 0
      %2913 = vmatpush1.bf16.msra.mxu0 0
      %2914 = vmatprep.subr.bf16.mxu0 0
      %2915 = vmatpush1.bf16.msra.mxu0 0
      %2916 = vmatprep.subr.bf16.mxu0 0
      %2917 = vmatpush1.bf16.msra.mxu0 0
      %2918 = vmatprep.mubr.bf16.mxu0 0
      %2919 = vmatmul.mubr.bf16.gmra.mrb[0].mxu0 %v469
      %v2920 = vpop.f32.mrb[0].mxu0
      %v2921 = vadd.f32 0.0, %v2920
      %v2922 = vpop.f32.mrb[0].mxu0
      %v2923 = vadd.f32 0.0, %v2922
      %v2924 = vpop.f32.mrb[0].mxu0
      %v2925 = vadd.f32 0.0, %v2924
      %v2926 = vpop.f32.mrb[0].mxu0
      %v2927 = vadd.f32 0.0, %v2926
      %2928 = vdwg.mxu0
      %2929 = vmatprep.subr.bf16.mxu0 %v2793
      %2930 = vmatpush1.bf16.msra.mxu0 %v2792
      %2931 = vmatprep.subr.bf16.mxu0 %v2817
      %2932 = vmatpush1.bf16.msra.mxu0 %v2816
      %2933 = vmatprep.subr.bf16.mxu0 0
      %2934 = vmatpush1.bf16.msra.mxu0 0
      %2935 = vmatprep.subr.bf16.mxu0 0
      %2936 = vmatpush1.bf16.msra.mxu0 0
      %2937 = vmatprep.subr.bf16.mxu0 0
      %2938 = vmatpush1.bf16.msra.mxu0 0
      %2939 = vmatprep.subr.bf16.mxu0 0
      %2940 = vmatpush1.bf16.msra.mxu0 0
      %2941 = vmatprep.subr.bf16.mxu0 0
      %2942 = vmatpush1.bf16.msra.mxu0 0
      %2943 = vmatprep.subr.bf16.mxu0 0
      %2944 = vmatpush1.bf16.msra.mxu0 0
      %2945 = vmatprep.subr.bf16.mxu0 0
      %2946 = vmatpush1.bf16.msra.mxu0 0
      %2947 = vmatprep.subr.bf16.mxu0 0
      %2948 = vmatpush1.bf16.msra.mxu0 0
      %2949 = vmatprep.subr.bf16.mxu0 0
      %2950 = vmatpush1.bf16.msra.mxu0 0
      %2951 = vmatprep.subr.bf16.mxu0 0
      %2952 = vmatpush1.bf16.msra.mxu0 0
      %2953 = vmatprep.subr.bf16.mxu0 0
      %2954 = vmatpush1.bf16.msra.mxu0 0
      %2955 = vmatprep.subr.bf16.mxu0 0
      %2956 = vmatpush1.bf16.msra.mxu0 0
      %2957 = vmatprep.subr.bf16.mxu0 0
      %2958 = vmatpush1.bf16.msra.mxu0 0
      %2959 = vmatprep.subr.bf16.mxu0 0
      %2960 = vmatpush1.bf16.msra.mxu0 0
      %2961 = vmatprep.mubr.bf16.mxu0 0
      %2962 = vmatmul.mubr.bf16.gmra.mrb[0].mxu0 %v469
      %v2963 = vpop.f32.mrb[0].mxu0
      %v2964 = vadd.f32 0.0, %v2963
      %v2965 = vpop.f32.mrb[0].mxu0
      %v2966 = vadd.f32 0.0, %v2965
      %v2967 = vpop.f32.mrb[0].mxu0
      %v2968 = vadd.f32 0.0, %v2967
      %v2969 = vpop.f32.mrb[0].mxu0
      %v2970 = vadd.f32 0.0, %v2969
      %2971 = vdwg.mxu0
      %2972 = vmatprep.subr.bf16.mxu0 %v2795
      %2973 = vmatpush1.bf16.msra.mxu0 %v2794
      %2974 = vmatprep.subr.bf16.mxu0 %v2819
      %2975 = vmatpush1.bf16.msra.mxu0 %v2818
      %2976 = vmatprep.subr.bf16.mxu0 0
      %2977 = vmatpush1.bf16.msra.mxu0 0
      %2978 = vmatprep.subr.bf16.mxu0 0
      %2979 = vmatpush1.bf16.msra.mxu0 0
      %2980 = vmatprep.subr.bf16.mxu0 0
      %2981 = vmatpush1.bf16.msra.mxu0 0
      %2982 = vmatprep.subr.bf16.mxu0 0
      %2983 = vmatpush1.bf16.msra.mxu0 0
      %2984 = vmatprep.subr.bf16.mxu0 0
      %2985 = vmatpush1.bf16.msra.mxu0 0
      %2986 = vmatprep.subr.bf16.mxu0 0
      %2987 = vmatpush1.bf16.msra.mxu0 0
      %2988 = vmatprep.subr.bf16.mxu0 0
      %2989 = vmatpush1.bf16.msra.mxu0 0
      %2990 = vmatprep.subr.bf16.mxu0 0
      %2991 = vmatpush1.bf16.msra.mxu0 0
      %2992 = vmatprep.subr.bf16.mxu0 0
      %2993 = vmatpush1.bf16.msra.mxu0 0
      %2994 = vmatprep.subr.bf16.mxu0 0
      %2995 = vmatpush1.bf16.msra.mxu0 0
      %2996 = vmatprep.subr.bf16.mxu0 0
      %2997 = vmatpush1.bf16.msra.mxu0 0
      %2998 = vmatprep.subr.bf16.mxu0 0
      %2999 = vmatpush1.bf16.msra.mxu0 0
      %3000 = vmatprep.subr.bf16.mxu0 0
      %3001 = vmatpush1.bf16.msra.mxu0 0
      %3002 = vmatprep.subr.bf16.mxu0 0
      %3003 = vmatpush1.bf16.msra.mxu0 0
      %3004 = vmatprep.mubr.bf16.mxu0 0
      %3005 = vmatmul.mubr.bf16.gmra.mrb[0].mxu0 %v469
      %v3006 = vpop.f32.mrb[0].mxu0
      %v3007 = vadd.f32 0.0, %v3006
      %v3008 = vpop.f32.mrb[0].mxu0
      %v3009 = vadd.f32 0.0, %v3008
      %v3010 = vpop.f32.mrb[0].mxu0
      %v3011 = vadd.f32 0.0, %v3010
      %v3012 = vpop.f32.mrb[0].mxu0
      %v3013 = vadd.f32 0.0, %v3012
      %3014 = vdwg.mxu0
      %3015 = vmatprep.subr.bf16.mxu0 %v2797
      %3016 = vmatpush1.bf16.msra.mxu0 %v2796
      %3017 = vmatprep.subr.bf16.mxu0 %v2821
      %3018 = vmatpush1.bf16.msra.mxu0 %v2820
      %3019 = vmatprep.subr.bf16.mxu0 0
      %3020 = vmatpush1.bf16.msra.mxu0 0
      %3021 = vmatprep.subr.bf16.mxu0 0
      %3022 = vmatpush1.bf16.msra.mxu0 0
      %3023 = vmatprep.subr.bf16.mxu0 0
      %3024 = vmatpush1.bf16.msra.mxu0 0
      %3025 = vmatprep.subr.bf16.mxu0 0
      %3026 = vmatpush1.bf16.msra.mxu0 0
      %3027 = vmatprep.subr.bf16.mxu0 0
      %3028 = vmatpush1.bf16.msra.mxu0 0
      %3029 = vmatprep.subr.bf16.mxu0 0
      %3030 = vmatpush1.bf16.msra.mxu0 0
      %3031 = vmatprep.subr.bf16.mxu0 0
      %3032 = vmatpush1.bf16.msra.mxu0 0
      %3033 = vmatprep.subr.bf16.mxu0 0
      %3034 = vmatpush1.bf16.msra.mxu0 0
      %3035 = vmatprep.subr.bf16.mxu0 0
      %3036 = vmatpush1.bf16.msra.mxu0 0
      %3037 = vmatprep.subr.bf16.mxu0 0
      %3038 = vmatpush1.bf16.msra.mxu0 0
      %3039 = vmatprep.subr.bf16.mxu0 0
      %3040 = vmatpush1.bf16.msra.mxu0 0
      %3041 = vmatprep.subr.bf16.mxu0 0
      %3042 = vmatpush1.bf16.msra.mxu0 0
      %3043 = vmatprep.subr.bf16.mxu0 0
      %3044 = vmatpush1.bf16.msra.mxu0 0
      %3045 = vmatprep.subr.bf16.mxu0 0
      %3046 = vmatpush1.bf16.msra.mxu0 0
      %3047 = vmatprep.mubr.bf16.mxu0 0
      %3048 = vmatmul.mubr.bf16.gmra.mrb[0].mxu0 %v469
      %v3049 = vpop.f32.mrb[0].mxu0
      %v3050 = vadd.f32 0.0, %v3049
      %v3051 = vpop.f32.mrb[0].mxu0
      %v3052 = vadd.f32 0.0, %v3051
      %v3053 = vpop.f32.mrb[0].mxu0
      %v3054 = vadd.f32 0.0, %v3053
      %v3055 = vpop.f32.mrb[0].mxu0
      %v3056 = vadd.f32 0.0, %v3055
      %3057 = vdwg.mxu0
      %3058 = vmatprep.subr.bf16.mxu0 %v2799
      %3059 = vmatpush1.bf16.msra.mxu0 %v2798
      %3060 = vmatprep.subr.bf16.mxu0 %v2823
      %3061 = vmatpush1.bf16.msra.mxu0 %v2822
      %3062 = vmatprep.subr.bf16.mxu0 0
      %3063 = vmatpush1.bf16.msra.mxu0 0
      %3064 = vmatprep.subr.bf16.mxu0 0
      %3065 = vmatpush1.bf16.msra.mxu0 0
      %3066 = vmatprep.subr.bf16.mxu0 0
      %3067 = vmatpush1.bf16.msra.mxu0 0
      %3068 = vmatprep.subr.bf16.mxu0 0
      %3069 = vmatpush1.bf16.msra.mxu0 0
      %3070 = vmatprep.subr.bf16.mxu0 0
      %3071 = vmatpush1.bf16.msra.mxu0 0
      %3072 = vmatprep.subr.bf16.mxu0 0
      %3073 = vmatpush1.bf16.msra.mxu0 0
      %3074 = vmatprep.subr.bf16.mxu0 0
      %3075 = vmatpush1.bf16.msra.mxu0 0
      %3076 = vmatprep.subr.bf16.mxu0 0
      %3077 = vmatpush1.bf16.msra.mxu0 0
      %3078 = vmatprep.subr.bf16.mxu0 0
      %3079 = vmatpush1.bf16.msra.mxu0 0
      %3080 = vmatprep.subr.bf16.mxu0 0
      %3081 = vmatpush1.bf16.msra.mxu0 0
      %3082 = vmatprep.subr.bf16.mxu0 0
      %3083 = vmatpush1.bf16.msra.mxu0 0
      %3084 = vmatprep.subr.bf16.mxu0 0
      %3085 = vmatpush1.bf16.msra.mxu0 0
      %3086 = vmatprep.subr.bf16.mxu0 0
      %3087 = vmatpush1.bf16.msra.mxu0 0
      %3088 = vmatprep.subr.bf16.mxu0 0
      %3089 = vmatpush1.bf16.msra.mxu0 0
      %3090 = vmatprep.mubr.bf16.mxu0 0
      %3091 = vmatmul.mubr.bf16.gmra.mrb[0].mxu0 %v469
      %v3092 = vpop.f32.mrb[0].mxu0
      %v3093 = vadd.f32 0.0, %v3092
      %v3094 = vpop.f32.mrb[0].mxu0
      %v3095 = vadd.f32 0.0, %v3094
      %v3096 = vpop.f32.mrb[0].mxu0
      %v3097 = vadd.f32 0.0, %v3096
      %v3098 = vpop.f32.mrb[0].mxu0
      %v3099 = vadd.f32 0.0, %v3098
      %3100 = vdwg.mxu0
      %3101 = vmatprep.subr.bf16.mxu0 %v2801
      %3102 = vmatpush1.bf16.msra.mxu0 %v2800
      %3103 = vmatprep.subr.bf16.mxu0 %v2825
      %3104 = vmatpush1.bf16.msra.mxu0 %v2824
      %3105 = vmatprep.subr.bf16.mxu0 0
      %3106 = vmatpush1.bf16.msra.mxu0 0
      %3107 = vmatprep.subr.bf16.mxu0 0
      %3108 = vmatpush1.bf16.msra.mxu0 0
      %3109 = vmatprep.subr.bf16.mxu0 0
      %3110 = vmatpush1.bf16.msra.mxu0 0
      %3111 = vmatprep.subr.bf16.mxu0 0
      %3112 = vmatpush1.bf16.msra.mxu0 0
      %3113 = vmatprep.subr.bf16.mxu0 0
      %3114 = vmatpush1.bf16.msra.mxu0 0
      %3115 = vmatprep.subr.bf16.mxu0 0
      %3116 = vmatpush1.bf16.msra.mxu0 0
      %3117 = vmatprep.subr.bf16.mxu0 0
      %3118 = vmatpush1.bf16.msra.mxu0 0
      %3119 = vmatprep.subr.bf16.mxu0 0
      %3120 = vmatpush1.bf16.msra.mxu0 0
      %3121 = vmatprep.subr.bf16.mxu0 0
      %3122 = vmatpush1.bf16.msra.mxu0 0
      %3123 = vmatprep.subr.bf16.mxu0 0
      %3124 = vmatpush1.bf16.msra.mxu0 0
      %3125 = vmatprep.subr.bf16.mxu0 0
      %3126 = vmatpush1.bf16.msra.mxu0 0
      %3127 = vmatprep.subr.bf16.mxu0 0
      %3128 = vmatpush1.bf16.msra.mxu0 0
      %3129 = vmatprep.subr.bf16.mxu0 0
      %3130 = vmatpush1.bf16.msra.mxu0 0
      %3131 = vmatprep.subr.bf16.mxu0 0
      %3132 = vmatpush1.bf16.msra.mxu0 0
      %3133 = vmatprep.mubr.bf16.mxu0 0
      %3134 = vmatmul.mubr.bf16.gmra.mrb[0].mxu0 %v469
      %v3135 = vpop.f32.mrb[0].mxu0
      %v3136 = vadd.f32 0.0, %v3135
      %v3137 = vpop.f32.mrb[0].mxu0
      %v3138 = vadd.f32 0.0, %v3137
      %v3139 = vpop.f32.mrb[0].mxu0
      %v3140 = vadd.f32 0.0, %v3139
      %v3141 = vpop.f32.mrb[0].mxu0
      %v3142 = vadd.f32 0.0, %v3141
      %3143 = vdwg.mxu0
      %3144 = vmatprep.subr.bf16.mxu0 %v2803
      %3145 = vmatpush1.bf16.msra.mxu0 %v2802
      %3146 = vmatprep.subr.bf16.mxu0 %v2827
      %3147 = vmatpush1.bf16.msra.mxu0 %v2826
      %3148 = vmatprep.subr.bf16.mxu0 0
      %3149 = vmatpush1.bf16.msra.mxu0 0
      %3150 = vmatprep.subr.bf16.mxu0 0
      %3151 = vmatpush1.bf16.msra.mxu0 0
      %3152 = vmatprep.subr.bf16.mxu0 0
      %3153 = vmatpush1.bf16.msra.mxu0 0
      %3154 = vmatprep.subr.bf16.mxu0 0
      %3155 = vmatpush1.bf16.msra.mxu0 0
      %3156 = vmatprep.subr.bf16.mxu0 0
      %3157 = vmatpush1.bf16.msra.mxu0 0
      %3158 = vmatprep.subr.bf16.mxu0 0
      %3159 = vmatpush1.bf16.msra.mxu0 0
      %3160 = vmatprep.subr.bf16.mxu0 0
      %3161 = vmatpush1.bf16.msra.mxu0 0
      %3162 = vmatprep.subr.bf16.mxu0 0
      %3163 = vmatpush1.bf16.msra.mxu0 0
      %3164 = vmatprep.subr.bf16.mxu0 0
      %3165 = vmatpush1.bf16.msra.mxu0 0
      %3166 = vmatprep.subr.bf16.mxu0 0
      %3167 = vmatpush1.bf16.msra.mxu0 0
      %3168 = vmatprep.subr.bf16.mxu0 0
      %3169 = vmatpush1.bf16.msra.mxu0 0
      %3170 = vmatprep.subr.bf16.mxu0 0
      %3171 = vmatpush1.bf16.msra.mxu0 0
      %3172 = vmatprep.subr.bf16.mxu0 0
      %3173 = vmatpush1.bf16.msra.mxu0 0
      %3174 = vmatprep.subr.bf16.mxu0 0
      %3175 = vmatpush1.bf16.msra.mxu0 0
      %3176 = vmatprep.mubr.bf16.mxu0 0
      %3177 = vmatmul.mubr.bf16.gmra.mrb[0].mxu0 %v469
      %v3178 = vpop.f32.mrb[0].mxu0
      %v3179 = vadd.f32 0.0, %v3178
      %v3180 = vpop.f32.mrb[0].mxu0
      %v3181 = vadd.f32 0.0, %v3180
      %v3182 = vpop.f32.mrb[0].mxu0
      %v3183 = vadd.f32 0.0, %v3182
      %v3184 = vpop.f32.mrb[0].mxu0
      %v3185 = vadd.f32 0.0, %v3184
      %3186 = vdwg.mxu0
      %3187 = vmatprep.subr.bf16.mxu0 %v2805
      %3188 = vmatpush1.bf16.msra.mxu0 %v2804
      %3189 = vmatprep.subr.bf16.mxu0 %v2829
      %3190 = vmatpush1.bf16.msra.mxu0 %v2828
      %3191 = vmatprep.subr.bf16.mxu0 0
      %3192 = vmatpush1.bf16.msra.mxu0 0
      %3193 = vmatprep.subr.bf16.mxu0 0
      %3194 = vmatpush1.bf16.msra.mxu0 0
      %3195 = vmatprep.subr.bf16.mxu0 0
      %3196 = vmatpush1.bf16.msra.mxu0 0
      %3197 = vmatprep.subr.bf16.mxu0 0
      %3198 = vmatpush1.bf16.msra.mxu0 0
      %3199 = vmatprep.subr.bf16.mxu0 0
      %3200 = vmatpush1.bf16.msra.mxu0 0
      %3201 = vmatprep.subr.bf16.mxu0 0
      %3202 = vmatpush1.bf16.msra.mxu0 0
      %3203 = vmatprep.subr.bf16.mxu0 0
      %3204 = vmatpush1.bf16.msra.mxu0 0
      %3205 = vmatprep.subr.bf16.mxu0 0
      %3206 = vmatpush1.bf16.msra.mxu0 0
      %3207 = vmatprep.subr.bf16.mxu0 0
      %3208 = vmatpush1.bf16.msra.mxu0 0
      %3209 = vmatprep.subr.bf16.mxu0 0
      %3210 = vmatpush1.bf16.msra.mxu0 0
      %3211 = vmatprep.subr.bf16.mxu0 0
      %3212 = vmatpush1.bf16.msra.mxu0 0
      %3213 = vmatprep.subr.bf16.mxu0 0
      %3214 = vmatpush1.bf16.msra.mxu0 0
      %3215 = vmatprep.subr.bf16.mxu0 0
      %3216 = vmatpush1.bf16.msra.mxu0 0
      %3217 = vmatprep.subr.bf16.mxu0 0
      %3218 = vmatpush1.bf16.msra.mxu0 0
      %3219 = vmatprep.mubr.bf16.mxu0 0
      %3220 = vmatmul.mubr.bf16.gmra.mrb[0].mxu0 %v469
      %v3221 = vpop.f32.mrb[0].mxu0
      %v3222 = vadd.f32 0.0, %v3221
      %v3223 = vpop.f32.mrb[0].mxu0
      %v3224 = vadd.f32 0.0, %v3223
      %v3225 = vpop.f32.mrb[0].mxu0
      %v3226 = vadd.f32 0.0, %v3225
      %v3227 = vpop.f32.mrb[0].mxu0
      %v3228 = vadd.f32 0.0, %v3227
      %3229 = vdwg.mxu0
      %3230 = vmatprep.subr.bf16.mxu0 %v2807
      %3231 = vmatpush1.bf16.msra.mxu0 %v2806
      %3232 = vmatprep.subr.bf16.mxu0 %v2831
      %3233 = vmatpush1.bf16.msra.mxu0 %v2830
      %3234 = vmatprep.subr.bf16.mxu0 0
      %3235 = vmatpush1.bf16.msra.mxu0 0
      %3236 = vmatprep.subr.bf16.mxu0 0
      %3237 = vmatpush1.bf16.msra.mxu0 0
      %3238 = vmatprep.subr.bf16.mxu0 0
      %3239 = vmatpush1.bf16.msra.mxu0 0
      %3240 = vmatprep.subr.bf16.mxu0 0
      %3241 = vmatpush1.bf16.msra.mxu0 0
      %3242 = vmatprep.subr.bf16.mxu0 0
      %3243 = vmatpush1.bf16.msra.mxu0 0
      %3244 = vmatprep.subr.bf16.mxu0 0
      %3245 = vmatpush1.bf16.msra.mxu0 0
      %3246 = vmatprep.subr.bf16.mxu0 0
      %3247 = vmatpush1.bf16.msra.mxu0 0
      %3248 = vmatprep.subr.bf16.mxu0 0
      %3249 = vmatpush1.bf16.msra.mxu0 0
      %3250 = vmatprep.subr.bf16.mxu0 0
      %3251 = vmatpush1.bf16.msra.mxu0 0
      %3252 = vmatprep.subr.bf16.mxu0 0
      %3253 = vmatpush1.bf16.msra.mxu0 0
      %3254 = vmatprep.subr.bf16.mxu0 0
      %3255 = vmatpush1.bf16.msra.mxu0 0
      %3256 = vmatprep.subr.bf16.mxu0 0
      %3257 = vmatpush1.bf16.msra.mxu0 0
      %3258 = vmatprep.subr.bf16.mxu0 0
      %3259 = vmatpush1.bf16.msra.mxu0 0
      %3260 = vmatprep.subr.bf16.mxu0 0
      %3261 = vmatpush1.bf16.msra.mxu0 0
      %3262 = vmatprep.mubr.bf16.mxu0 0
      %3263 = vmatmul.mubr.bf16.gmra.mrb[0].mxu0 %v469
      %v3264 = vpop.f32.mrb[0].mxu0
      %v3265 = vadd.f32 0.0, %v3264
      %v3266 = vpop.f32.mrb[0].mxu0
      %v3267 = vadd.f32 0.0, %v3266
      %v3268 = vpop.f32.mrb[0].mxu0
      %v3269 = vadd.f32 0.0, %v3268
      %v3270 = vpop.f32.mrb[0].mxu0
      %v3271 = vadd.f32 0.0, %v3270
      %3272 = vdwg.mxu0
      %3273 = vmatprep.subr.bf16.mxu0 %v2809
      %3274 = vmatpush1.bf16.msra.mxu0 %v2808
      %3275 = vmatprep.subr.bf16.mxu0 %v2833
      %3276 = vmatpush1.bf16.msra.mxu0 %v2832
      %3277 = vmatprep.subr.bf16.mxu0 0
      %3278 = vmatpush1.bf16.msra.mxu0 0
      %3279 = vmatprep.subr.bf16.mxu0 0
      %3280 = vmatpush1.bf16.msra.mxu0 0
      %3281 = vmatprep.subr.bf16.mxu0 0
      %3282 = vmatpush1.bf16.msra.mxu0 0
      %3283 = vmatprep.subr.bf16.mxu0 0
      %3284 = vmatpush1.bf16.msra.mxu0 0
      %3285 = vmatprep.subr.bf16.mxu0 0
      %3286 = vmatpush1.bf16.msra.mxu0 0
      %3287 = vmatprep.subr.bf16.mxu0 0
      %3288 = vmatpush1.bf16.msra.mxu0 0
      %3289 = vmatprep.subr.bf16.mxu0 0
      %3290 = vmatpush1.bf16.msra.mxu0 0
      %3291 = vmatprep.subr.bf16.mxu0 0
      %3292 = vmatpush1.bf16.msra.mxu0 0
      %3293 = vmatprep.subr.bf16.mxu0 0
      %3294 = vmatpush1.bf16.msra.mxu0 0
      %3295 = vmatprep.subr.bf16.mxu0 0
      %3296 = vmatpush1.bf16.msra.mxu0 0
      %3297 = vmatprep.subr.bf16.mxu0 0
      %3298 = vmatpush1.bf16.msra.mxu0 0
      %3299 = vmatprep.subr.bf16.mxu0 0
      %3300 = vmatpush1.bf16.msra.mxu0 0
      %3301 = vmatprep.subr.bf16.mxu0 0
      %3302 = vmatpush1.bf16.msra.mxu0 0
      %3303 = vmatprep.subr.bf16.mxu0 0
      %3304 = vmatpush1.bf16.msra.mxu0 0
      %3305 = vmatprep.mubr.bf16.mxu0 0
      %3306 = vmatmul.mubr.bf16.gmra.mrb[0].mxu0 %v469
      %v3307 = vpop.f32.mrb[0].mxu0
      %v3308 = vadd.f32 0.0, %v3307
      %v3309 = vpop.f32.mrb[0].mxu0
      %v3310 = vadd.f32 0.0, %v3309
      %v3311 = vpop.f32.mrb[0].mxu0
      %v3312 = vadd.f32 0.0, %v3311
      %v3313 = vpop.f32.mrb[0].mxu0
      %v3314 = vadd.f32 0.0, %v3313
      %3315 = vdwg.mxu0
      %3316 = vmatprep.subr.bf16.mxu0 %v2811
      %3317 = vmatpush1.bf16.msra.mxu0 %v2810
      %3318 = vmatprep.subr.bf16.mxu0 %v2835
      %3319 = vmatpush1.bf16.msra.mxu0 %v2834
      %3320 = vmatprep.subr.bf16.mxu0 0
      %3321 = vmatpush1.bf16.msra.mxu0 0
      %3322 = vmatprep.subr.bf16.mxu0 0
      %3323 = vmatpush1.bf16.msra.mxu0 0
      %3324 = vmatprep.subr.bf16.mxu0 0
      %3325 = vmatpush1.bf16.msra.mxu0 0
      %3326 = vmatprep.subr.bf16.mxu0 0
      %3327 = vmatpush1.bf16.msra.mxu0 0
      %3328 = vmatprep.subr.bf16.mxu0 0
      %3329 = vmatpush1.bf16.msra.mxu0 0
      %3330 = vmatprep.subr.bf16.mxu0 0
      %3331 = vmatpush1.bf16.msra.mxu0 0
      %3332 = vmatprep.subr.bf16.mxu0 0
      %3333 = vmatpush1.bf16.msra.mxu0 0
      %3334 = vmatprep.subr.bf16.mxu0 0
      %3335 = vmatpush1.bf16.msra.mxu0 0
      %3336 = vmatprep.subr.bf16.mxu0 0
      %3337 = vmatpush1.bf16.msra.mxu0 0
      %3338 = vmatprep.subr.bf16.mxu0 0
      %3339 = vmatpush1.bf16.msra.mxu0 0
      %3340 = vmatprep.subr.bf16.mxu0 0
      %3341 = vmatpush1.bf16.msra.mxu0 0
      %3342 = vmatprep.subr.bf16.mxu0 0
      %3343 = vmatpush1.bf16.msra.mxu0 0
      %3344 = vmatprep.subr.bf16.mxu0 0
      %3345 = vmatpush1.bf16.msra.mxu0 0
      %3346 = vmatprep.subr.bf16.mxu0 0
      %3347 = vmatpush1.bf16.msra.mxu0 0
      %3348 = vmatprep.mubr.bf16.mxu0 0
      %3349 = vmatmul.mubr.bf16.gmra.mrb[0].mxu0 %v469
      %v3350 = vpop.f32.mrb[0].mxu0
      %v3351 = vadd.f32 0.0, %v3350
      %v3352 = vpop.f32.mrb[0].mxu0
      %v3353 = vadd.f32 0.0, %v3352
      %v3354 = vpop.f32.mrb[0].mxu0
      %v3355 = vadd.f32 0.0, %v3354
      %v3356 = vpop.f32.mrb[0].mxu0
      %v3357 = vadd.f32 0.0, %v3356
      %3358 = vdwg.mxu0
      %3359 = vmatprep.subr.bf16.mxu0 %v2813
      %3360 = vmatpush1.bf16.msra.mxu0 %v2812
      %3361 = vmatprep.subr.bf16.mxu0 %v2837
      %3362 = vmatpush1.bf16.msra.mxu0 %v2836
      %3363 = vmatprep.subr.bf16.mxu0 0
      %3364 = vmatpush1.bf16.msra.mxu0 0
      %3365 = vmatprep.subr.bf16.mxu0 0
      %3366 = vmatpush1.bf16.msra.mxu0 0
      %3367 = vmatprep.subr.bf16.mxu0 0
      %3368 = vmatpush1.bf16.msra.mxu0 0
      %3369 = vmatprep.subr.bf16.mxu0 0
      %3370 = vmatpush1.bf16.msra.mxu0 0
      %3371 = vmatprep.subr.bf16.mxu0 0
      %3372 = vmatpush1.bf16.msra.mxu0 0
      %3373 = vmatprep.subr.bf16.mxu0 0
      %3374 = vmatpush1.bf16.msra.mxu0 0
      %3375 = vmatprep.subr.bf16.mxu0 0
      %3376 = vmatpush1.bf16.msra.mxu0 0
      %3377 = vmatprep.subr.bf16.mxu0 0
      %3378 = vmatpush1.bf16.msra.mxu0 0
      %3379 = vmatprep.subr.bf16.mxu0 0
      %3380 = vmatpush1.bf16.msra.mxu0 0
      %3381 = vmatprep.subr.bf16.mxu0 0
      %3382 = vmatpush1.bf16.msra.mxu0 0
      %3383 = vmatprep.subr.bf16.mxu0 0
      %3384 = vmatpush1.bf16.msra.mxu0 0
      %3385 = vmatprep.subr.bf16.mxu0 0
      %3386 = vmatpush1.bf16.msra.mxu0 0
      %3387 = vmatprep.subr.bf16.mxu0 0
      %3388 = vmatpush1.bf16.msra.mxu0 0
      %3389 = vmatprep.subr.bf16.mxu0 0
      %3390 = vmatpush1.bf16.msra.mxu0 0
      %3391 = vmatprep.mubr.bf16.mxu0 0
      %3392 = vmatmul.mubr.bf16.gmra.mrb[0].mxu0 %v469
      %v3393 = vpop.f32.mrb[0].mxu0
      %v3394 = vadd.f32 0.0, %v3393
      %v3395 = vpop.f32.mrb[0].mxu0
      %v3396 = vadd.f32 0.0, %v3395
      %v3397 = vpop.f32.mrb[0].mxu0
      %v3398 = vadd.f32 0.0, %v3397
      %v3399 = vpop.f32.mrb[0].mxu0
      %v3400 = vadd.f32 0.0, %v3399
      %3401 = vdwg.mxu0
      %v3402 = vmax.f32 %v506, %v1311
      %v3403 = vmax.f32 %v508, %v1313
      %v3404 = vmax.f32 %v549, %v1354
      %v3405 = vmax.f32 %v551, %v1356
      %v3406 = vmax.f32 %v592, %v1397
      %v3407 = vmax.f32 %v594, %v1399
      %v3408 = vmax.f32 %v635, %v1440
      %v3409 = vmax.f32 %v637, %v1442
      %v3410 = vmax.f32 %v678, %v1483
      %v3411 = vmax.f32 %v680, %v1485
      %v3412 = vmax.f32 %v721, %v1526
      %v3413 = vmax.f32 %v723, %v1528
      %v3414 = vmax.f32 %v764, %v1569
      %v3415 = vmax.f32 %v766, %v1571
      %v3416 = vmax.f32 %v807, %v1612
      %v3417 = vmax.f32 %v809, %v1614
      %v3418 = vmax.f32 %v850, %v1655
      %v3419 = vmax.f32 %v852, %v1657
      %v3420 = vmax.f32 %v893, %v1698
      %v3421 = vmax.f32 %v895, %v1700
      %v3422 = vmax.f32 %v936, %v1741
      %v3423 = vmax.f32 %v938, %v1743
      %v3424 = vmax.f32 %v979, %v1784
      %v3425 = vmax.f32 %v981, %v1786
      %v3426 = vmax.f32 %v510, %v1315
      %v3427 = vmax.f32 %v512, %v1317
      %v3428 = vmax.f32 %v553, %v1358
      %v3429 = vmax.f32 %v555, %v1360
      %v3430 = vmax.f32 %v596, %v1401
      %v3431 = vmax.f32 %v598, %v1403
      %v3432 = vmax.f32 %v639, %v1444
      %v3433 = vmax.f32 %v641, %v1446
      %v3434 = vmax.f32 %v682, %v1487
      %v3435 = vmax.f32 %v684, %v1489
      %v3436 = vmax.f32 %v725, %v1530
      %v3437 = vmax.f32 %v727, %v1532
      %v3438 = vmax.f32 %v768, %v1573
      %v3439 = vmax.f32 %v770, %v1575
      %v3440 = vmax.f32 %v811, %v1616
      %v3441 = vmax.f32 %v813, %v1618
      %v3442 = vmax.f32 %v854, %v1659
      %v3443 = vmax.f32 %v856, %v1661
      %v3444 = vmax.f32 %v897, %v1702
      %v3445 = vmax.f32 %v899, %v1704
      %v3446 = vmax.f32 %v940, %v1745
      %v3447 = vmax.f32 %v942, %v1747
      %v3448 = vmax.f32 %v983, %v1788
      %v3449 = vmax.f32 %v985, %v1790
      %v3450 = vmax.f32 %v2116, %v2921
      %v3451 = vmax.f32 %v2118, %v2923
      %v3452 = vmax.f32 %v2159, %v2964
      %v3453 = vmax.f32 %v2161, %v2966
      %v3454 = vmax.f32 %v2202, %v3007
      %v3455 = vmax.f32 %v2204, %v3009
      %v3456 = vmax.f32 %v2245, %v3050
      %v3457 = vmax.f32 %v2247, %v3052
      %v3458 = vmax.f32 %v2288, %v3093
      %v3459 = vmax.f32 %v2290, %v3095
      %v3460 = vmax.f32 %v2331, %v3136
      %v3461 = vmax.f32 %v2333, %v3138
      %v3462 = vmax.f32 %v2374, %v3179
      %v3463 = vmax.f32 %v2376, %v3181
      %v3464 = vmax.f32 %v2417, %v3222
      %v3465 = vmax.f32 %v2419, %v3224
      %v3466 = vmax.f32 %v2460, %v3265
      %v3467 = vmax.f32 %v2462, %v3267
      %v3468 = vmax.f32 %v2503, %v3308
      %v3469 = vmax.f32 %v2505, %v3310
      %v3470 = vmax.f32 %v2546, %v3351
      %v3471 = vmax.f32 %v2548, %v3353
      %v3472 = vmax.f32 %v2589, %v3394
      %v3473 = vmax.f32 %v2591, %v3396
      %v3474 = vmax.f32 %v2120, %v2925
      %v3475 = vmax.f32 %v2122, %v2927
      %v3476 = vmax.f32 %v2163, %v2968
      %v3477 = vmax.f32 %v2165, %v2970
      %v3478 = vmax.f32 %v2206, %v3011
      %v3479 = vmax.f32 %v2208, %v3013
      %v3480 = vmax.f32 %v2249, %v3054
      %v3481 = vmax.f32 %v2251, %v3056
      %v3482 = vmax.f32 %v2292, %v3097
      %v3483 = vmax.f32 %v2294, %v3099
      %v3484 = vmax.f32 %v2335, %v3140
      %v3485 = vmax.f32 %v2337, %v3142
      %v3486 = vmax.f32 %v2378, %v3183
      %v3487 = vmax.f32 %v2380, %v3185
      %v3488 = vmax.f32 %v2421, %v3226
      %v3489 = vmax.f32 %v2423, %v3228
      %v3490 = vmax.f32 %v2464, %v3269
      %v3491 = vmax.f32 %v2466, %v3271
      %v3492 = vmax.f32 %v2507, %v3312
      %v3493 = vmax.f32 %v2509, %v3314
      %v3494 = vmax.f32 %v2550, %v3355
      %v3495 = vmax.f32 %v2552, %v3357
      %v3496 = vmax.f32 %v2593, %v3398
      %v3497 = vmax.f32 %v2595, %v3400
      %v3498 = vmax.f32 %v3402, %v3450
      %v3499 = vmax.f32 %v3403, %v3451
      %v3500 = vmax.f32 %v3404, %v3452
      %v3501 = vmax.f32 %v3405, %v3453
      %v3502 = vmax.f32 %v3406, %v3454
      %v3503 = vmax.f32 %v3407, %v3455
      %v3504 = vmax.f32 %v3408, %v3456
      %v3505 = vmax.f32 %v3409, %v3457
      %v3506 = vmax.f32 %v3410, %v3458
      %v3507 = vmax.f32 %v3411, %v3459
      %v3508 = vmax.f32 %v3412, %v3460
      %v3509 = vmax.f32 %v3413, %v3461
      %v3510 = vmax.f32 %v3414, %v3462
      %v3511 = vmax.f32 %v3415, %v3463
      %v3512 = vmax.f32 %v3416, %v3464
      %v3513 = vmax.f32 %v3417, %v3465
      %v3514 = vmax.f32 %v3418, %v3466
      %v3515 = vmax.f32 %v3419, %v3467
      %v3516 = vmax.f32 %v3420, %v3468
      %v3517 = vmax.f32 %v3421, %v3469
      %v3518 = vmax.f32 %v3422, %v3470
      %v3519 = vmax.f32 %v3423, %v3471
      %v3520 = vmax.f32 %v3424, %v3472
      %v3521 = vmax.f32 %v3425, %v3473
      %v3522 = vmax.f32 %v3426, %v3474
      %v3523 = vmax.f32 %v3427, %v3475
      %v3524 = vmax.f32 %v3428, %v3476
      %v3525 = vmax.f32 %v3429, %v3477
      %v3526 = vmax.f32 %v3430, %v3478
      %v3527 = vmax.f32 %v3431, %v3479
      %v3528 = vmax.f32 %v3432, %v3480
      %v3529 = vmax.f32 %v3433, %v3481
      %v3530 = vmax.f32 %v3434, %v3482
      %v3531 = vmax.f32 %v3435, %v3483
      %v3532 = vmax.f32 %v3436, %v3484
      %v3533 = vmax.f32 %v3437, %v3485
      %v3534 = vmax.f32 %v3438, %v3486
      %v3535 = vmax.f32 %v3439, %v3487
      %v3536 = vmax.f32 %v3440, %v3488
      %v3537 = vmax.f32 %v3441, %v3489
      %v3538 = vmax.f32 %v3442, %v3490
      %v3539 = vmax.f32 %v3443, %v3491
      %v3540 = vmax.f32 %v3444, %v3492
      %v3541 = vmax.f32 %v3445, %v3493
      %v3542 = vmax.f32 %v3446, %v3494
      %v3543 = vmax.f32 %v3447, %v3495
      %v3544 = vmax.f32 %v3448, %v3496
      %v3545 = vmax.f32 %v3449, %v3497
      %v3546 = vld [vmem:[%s2] sm:$0xff]
      %v3547 = vld [vmem:[%s2 + $0x8] sm:$0xff]
      %3549 = vset.pattern.permute.xlu0 0
      %3550 = vperm.xlu0 %3549, %v3546
      %v3551 = vpop.permute.xlu0 %3550
      %3554 = vset.pattern.permute.xlu0 0
      %3555 = vperm.xlu0 %3554, %v3547
      %v3556 = vpop.permute.xlu0 %3555
      %v3558 = vadd.f32 %v3498, %v3551
      %v3559 = vadd.f32 %v3499, %v3551
      %v3560 = vadd.f32 %v3500, %v3551
      %v3561 = vadd.f32 %v3501, %v3551
      %v3562 = vadd.f32 %v3502, %v3551
      %v3563 = vadd.f32 %v3503, %v3551
      %v3564 = vadd.f32 %v3504, %v3551
      %v3565 = vadd.f32 %v3505, %v3551
      %v3566 = vadd.f32 %v3506, %v3551
      %v3567 = vadd.f32 %v3507, %v3551
      %v3568 = vadd.f32 %v3508, %v3551
      %v3569 = vadd.f32 %v3509, %v3551
      %v3570 = vadd.f32 %v3510, %v3551
      %v3571 = vadd.f32 %v3511, %v3551
      %v3572 = vadd.f32 %v3512, %v3551
      %v3573 = vadd.f32 %v3513, %v3551
      %v3574 = vadd.f32 %v3514, %v3551
      %v3575 = vadd.f32 %v3515, %v3551
      %v3576 = vadd.f32 %v3516, %v3551
      %v3577 = vadd.f32 %v3517, %v3551
      %v3578 = vadd.f32 %v3518, %v3551
      %v3579 = vadd.f32 %v3519, %v3551
      %v3580 = vadd.f32 %v3520, %v3551
      %v3581 = vadd.f32 %v3521, %v3551
      %v3582 = vadd.f32 %v3522, %v3556
      %v3583 = vadd.f32 %v3523, %v3556
      %v3584 = vadd.f32 %v3524, %v3556
      %v3585 = vadd.f32 %v3525, %v3556
      %v3586 = vadd.f32 %v3526, %v3556
      %v3587 = vadd.f32 %v3527, %v3556
      %v3588 = vadd.f32 %v3528, %v3556
      %v3589 = vadd.f32 %v3529, %v3556
      %v3590 = vadd.f32 %v3530, %v3556
      %v3591 = vadd.f32 %v3531, %v3556
      %v3592 = vadd.f32 %v3532, %v3556
      %v3593 = vadd.f32 %v3533, %v3556
      %v3594 = vadd.f32 %v3534, %v3556
      %v3595 = vadd.f32 %v3535, %v3556
      %v3596 = vadd.f32 %v3536, %v3556
      %v3597 = vadd.f32 %v3537, %v3556
      %v3598 = vadd.f32 %v3538, %v3556
      %v3599 = vadd.f32 %v3539, %v3556
      %v3600 = vadd.f32 %v3540, %v3556
      %v3601 = vadd.f32 %v3541, %v3556
      %v3602 = vadd.f32 %v3542, %v3556
      %v3603 = vadd.f32 %v3543, %v3556
      %v3604 = vadd.f32 %v3544, %v3556
      %v3605 = vadd.f32 %v3545, %v3556
      %v3606 = vmax.f32 %v3558, 0.0
      %v3607 = vmax.f32 %v3559, 0.0
      %v3608 = vmax.f32 %v3560, 0.0
      %v3609 = vmax.f32 %v3561, 0.0
      %v3610 = vmax.f32 %v3562, 0.0
      %v3611 = vmax.f32 %v3563, 0.0
      %v3612 = vmax.f32 %v3564, 0.0
      %v3613 = vmax.f32 %v3565, 0.0
      %v3614 = vmax.f32 %v3566, 0.0
      %v3615 = vmax.f32 %v3567, 0.0
      %v3616 = vmax.f32 %v3568, 0.0
      %v3617 = vmax.f32 %v3569, 0.0
      %v3618 = vmax.f32 %v3570, 0.0
      %v3619 = vmax.f32 %v3571, 0.0
      %v3620 = vmax.f32 %v3572, 0.0
      %v3621 = vmax.f32 %v3573, 0.0
      %v3622 = vmax.f32 %v3574, 0.0
      %v3623 = vmax.f32 %v3575, 0.0
      %v3624 = vmax.f32 %v3576, 0.0
      %v3625 = vmax.f32 %v3577, 0.0
      %v3626 = vmax.f32 %v3578, 0.0
      %v3627 = vmax.f32 %v3579, 0.0
      %v3628 = vmax.f32 %v3580, 0.0
      %v3629 = vmax.f32 %v3581, 0.0
      %v3630 = vmax.f32 %v3582, 0.0
      %v3631 = vmax.f32 %v3583, 0.0
      %v3632 = vmax.f32 %v3584, 0.0
      %v3633 = vmax.f32 %v3585, 0.0
      %v3634 = vmax.f32 %v3586, 0.0
      %v3635 = vmax.f32 %v3587, 0.0
      %v3636 = vmax.f32 %v3588, 0.0
      %v3637 = vmax.f32 %v3589, 0.0
      %v3638 = vmax.f32 %v3590, 0.0
      %v3639 = vmax.f32 %v3591, 0.0
      %v3640 = vmax.f32 %v3592, 0.0
      %v3641 = vmax.f32 %v3593, 0.0
      %v3642 = vmax.f32 %v3594, 0.0
      %v3643 = vmax.f32 %v3595, 0.0
      %v3644 = vmax.f32 %v3596, 0.0
      %v3645 = vmax.f32 %v3597, 0.0
      %v3646 = vmax.f32 %v3598, 0.0
      %v3647 = vmax.f32 %v3599, 0.0
      %v3648 = vmax.f32 %v3600, 0.0
      %v3649 = vmax.f32 %v3601, 0.0
      %v3650 = vmax.f32 %v3602, 0.0
      %v3651 = vmax.f32 %v3603, 0.0
      %v3652 = vmax.f32 %v3604, 0.0
      %v3653 = vmax.f32 %v3605, 0.0
      %v3654 = vpack.c.bf16 %v3630, %v3606
      %v3655 = vpack.c.bf16 %v3631, %v3607
      %v3656 = vpack.c.bf16 %v3632, %v3608
      %v3657 = vpack.c.bf16 %v3633, %v3609
      %v3658 = vpack.c.bf16 %v3634, %v3610
      %v3659 = vpack.c.bf16 %v3635, %v3611
      %v3660 = vpack.c.bf16 %v3636, %v3612
      %v3661 = vpack.c.bf16 %v3637, %v3613
      %v3662 = vpack.c.bf16 %v3638, %v3614
      %v3663 = vpack.c.bf16 %v3639, %v3615
      %v3664 = vpack.c.bf16 %v3640, %v3616
      %v3665 = vpack.c.bf16 %v3641, %v3617
      %v3666 = vpack.c.bf16 %v3642, %v3618
      %v3667 = vpack.c.bf16 %v3643, %v3619
      %v3668 = vpack.c.bf16 %v3644, %v3620
      %v3669 = vpack.c.bf16 %v3645, %v3621
      %v3670 = vpack.c.bf16 %v3646, %v3622
      %v3671 = vpack.c.bf16 %v3647, %v3623
      %v3672 = vpack.c.bf16 %v3648, %v3624
      %v3673 = vpack.c.bf16 %v3649, %v3625
      %v3674 = vpack.c.bf16 %v3650, %v3626
      %v3675 = vpack.c.bf16 %v3651, %v3627
      %v3676 = vpack.c.bf16 %v3652, %v3628
      %v3677 = vpack.c.bf16 %v3653, %v3629
      %v3702 = vunpack.c.l.b16 %v3654
      %v3703 = vunpack.c.l.b16 %v3655
      %v3704 = vunpack.c.l.b16 %v3656
      %v3705 = vunpack.c.l.b16 %v3657
      %v3706 = vunpack.c.l.b16 %v3658
      %v3707 = vunpack.c.l.b16 %v3659
      %v3708 = vunpack.c.l.b16 %v3660
      %v3709 = vunpack.c.l.b16 %v3661
      %v3710 = vunpack.c.l.b16 %v3662
      %v3711 = vunpack.c.l.b16 %v3663
      %v3712 = vunpack.c.l.b16 %v3664
      %v3713 = vunpack.c.l.b16 %v3665
      %v3714 = vunpack.c.l.b16 %v3666
      %v3715 = vunpack.c.l.b16 %v3667
      %v3716 = vunpack.c.l.b16 %v3668
      %v3717 = vunpack.c.l.b16 %v3669
      %v3718 = vunpack.c.l.b16 %v3670
      %v3719 = vunpack.c.l.b16 %v3671
      %v3720 = vunpack.c.l.b16 %v3672
      %v3721 = vunpack.c.l.b16 %v3673
      %v3722 = vunpack.c.l.b16 %v3674
      %v3723 = vunpack.c.l.b16 %v3675
      %v3724 = vunpack.c.l.b16 %v3676
      %v3725 = vunpack.c.l.b16 %v3677
      %v3726 = vunpack.c.h.b16 %v3654
      %v3727 = vunpack.c.h.b16 %v3655
      %v3728 = vunpack.c.h.b16 %v3656
      %v3729 = vunpack.c.h.b16 %v3657
      %v3730 = vunpack.c.h.b16 %v3658
      %v3731 = vunpack.c.h.b16 %v3659
      %v3732 = vunpack.c.h.b16 %v3660
      %v3733 = vunpack.c.h.b16 %v3661
      %v3734 = vunpack.c.h.b16 %v3662
      %v3735 = vunpack.c.h.b16 %v3663
      %v3736 = vunpack.c.h.b16 %v3664
      %v3737 = vunpack.c.h.b16 %v3665
      %v3738 = vunpack.c.h.b16 %v3666
      %v3739 = vunpack.c.h.b16 %v3667
      %v3740 = vunpack.c.h.b16 %v3668
      %v3741 = vunpack.c.h.b16 %v3669
      %v3742 = vunpack.c.h.b16 %v3670
      %v3743 = vunpack.c.h.b16 %v3671
      %v3744 = vunpack.c.h.b16 %v3672
      %v3745 = vunpack.c.h.b16 %v3673
      %v3746 = vunpack.c.h.b16 %v3674
      %v3747 = vunpack.c.h.b16 %v3675
      %v3748 = vunpack.c.h.b16 %v3676
      %v3749 = vunpack.c.h.b16 %v3677
      %v3750 = vpack.c.b16 %v3703, %v3702
      %v3751 = vpack.c.b16 %v3705, %v3704
      %v3752 = vpack.c.b16 %v3707, %v3706
      %v3753 = vpack.c.b16 %v3709, %v3708
      %v3754 = vpack.c.b16 %v3711, %v3710
      %v3755 = vpack.c.b16 %v3713, %v3712
      %v3756 = vpack.c.b16 %v3715, %v3714
      %v3757 = vpack.c.b16 %v3717, %v3716
      %v3758 = vpack.c.b16 %v3719, %v3718
      %v3759 = vpack.c.b16 %v3721, %v3720
      %v3760 = vpack.c.b16 %v3723, %v3722
      %v3761 = vpack.c.b16 %v3725, %v3724
      %v3762 = vpack.c.b16 %v3727, %v3726
      %v3763 = vpack.c.b16 %v3729, %v3728
      %v3764 = vpack.c.b16 %v3731, %v3730
      %v3765 = vpack.c.b16 %v3733, %v3732
      %v3766 = vpack.c.b16 %v3735, %v3734
      %v3767 = vpack.c.b16 %v3737, %v3736
      %v3768 = vpack.c.b16 %v3739, %v3738
      %v3769 = vpack.c.b16 %v3741, %v3740
      %v3770 = vpack.c.b16 %v3743, %v3742
      %v3771 = vpack.c.b16 %v3745, %v3744
      %v3772 = vpack.c.b16 %v3747, %v3746
      %v3773 = vpack.c.b16 %v3749, %v3748
      %3798 = vst [vmem:[%s170] sm:$0xff] %v3750
      %3799 = vst [vmem:[%s170 + $0x8] sm:$0xff] %v3751
      %3800 = vst [vmem:[%s170 + $0x10] sm:$0xff] %v3752
      %3801 = vst [vmem:[%s170 + $0x18] sm:$0xff] %v3753
      %3802 = vst [vmem:[%s170 + $0x20] sm:$0xff] %v3754
      %3803 = vst [vmem:[%s170 + $0x28] sm:$0xff] %v3755
      %3804 = vst [vmem:[%s170 + $0x30] sm:$0xff] %v3756
      %3805 = vst [vmem:[%s170 + $0x38] sm:$0xff] %v3757
      %3806 = vst [vmem:[%s170 + $0x40] sm:$0xff] %v3758
      %3807 = vst [vmem:[%s170 + $0x48] sm:$0xff] %v3759
      %3808 = vst [vmem:[%s170 + $0x50] sm:$0xff] %v3760
      %vm3809 = vcmask 1043456
      %vm3810 = vcmask 662532
      %vm3811 = vmor %vm3810, %vm3809
      %3812 = vst.msk [vmem:[%s170 + $0x58] sm:$0xff] %vm3811, %v3761
      %3813 = vst [vmem:[%s170 + $0x60] sm:$0xff] %v3762
      %3814 = vst [vmem:[%s170 + $0x68] sm:$0xff] %v3763
      %3815 = vst [vmem:[%s170 + $0x70] sm:$0xff] %v3764
      %3816 = vst [vmem:[%s170 + $0x78] sm:$0xff] %v3765
      %3817 = vst [vmem:[%s170 + $0x80] sm:$0xff] %v3766
      %3818 = vst [vmem:[%s170 + $0x88] sm:$0xff] %v3767
      %3819 = vst [vmem:[%s170 + $0x90] sm:$0xff] %v3768
      %3820 = vst [vmem:[%s170 + $0x98] sm:$0xff] %v3769
      %3821 = vst [vmem:[%s170 + $0xa0] sm:$0xff] %v3770
      %3822 = vst [vmem:[%s170 + $0xa8] sm:$0xff] %v3771
      %3823 = vst [vmem:[%s170 + $0xb0] sm:$0xff] %v3772
      %3824 = vst.msk [vmem:[%s170 + $0xb8] sm:$0xff] %vm3811, %v3773
      %p3825 = scmp.lt.s32.totalorder %s14, 1
      %s3826 = scalar_select %p3825, %s14, 1
      %s3827 = smul.addr %s3826, 48
      %s3828 = smul.addr %s3827, 4
      %s3829 = scalar_lea.vmem %s3, %s3828
      // Predicated region
      $region33: #{cnn_forward.4} parent=31 // pred_check
        %p3830 = pneg %p100
      $region34: #{cnn_forward.4} parent=31 // pred_check_branch
        %3832 = sbr.rel (%p3830) target = $region36
      $region35: #{cnn_forward.4} parent=31 // pred_region
        _
      $region36: #{cnn_forward.4} parent=31 // pred_fallthru
        _
    $region32: #{cnn_forward.4} parent=5 // pred_fallthru
      _
    %p3833 = scmp.le.s32.totalorder 2, %s9
    // Predicated region
    $region37: #{cnn_forward.4} parent=5 // pred_check
      %p3834 = pneg %p3833
    $region38: #{cnn_forward.4} parent=5 // pred_check_branch
      %3836 = sbr.rel (%p3834) target = $region40
    $region39: #{cnn_forward.4} parent=5 // pred_region
      %s3837 = ssub.s32 %s9, 2
      // Predicated region
      $region41: #{cnn_forward.4} parent=39 // pred_check
        %p3838 = pneg %p106
      $region42: #{cnn_forward.4} parent=39 // pred_check_branch
        %3840 = sbr.rel (%p3838) target = $region44
      $region43: #{cnn_forward.4} parent=39 // pred_region
        %p3841 = scmp.lt.s32.totalorder %s15, 1
        %s3842 = scalar_select %p3841, %s15, 1
        %s3843 = smul.addr %s3842, 48
        %s3844 = smul.addr %s3843, 4
        %s3845 = scalar_lea.vmem %s3, %s3844
      $region44: #{cnn_forward.4} parent=39 // pred_fallthru
        _
    $region40: #{cnn_forward.4} parent=5 // pred_fallthru
      _
  $region6: #{cnn_forward.4} parent=0 // loop_footer
    %s13 = sadd.s32 1, %s9
  $region7: #{cnn_forward.4} parent=0 // loop_footer_branch
    %8 = sbr.rel target = $region3
  $region8: #{cnn_forward.4} parent=0 // loop_exit
    _

// kernel: cnn_forward.5
$region0: #{cnn_forward.5}
  #allocation0 [shape = 'u32[]', space=smem, size = 0x4, offset = 0x4, fixed_abs, tag = 'smem constant byte address 0x4 - core index']
  #allocation1 [shape = 'u32[144,128]{1,0:T(1,128)}', space=vmem, size = 0x12000, scoped, tag = 'internal scratch']
  %s0 = inlined_call_operand.vmem [shape: bf16[2,4,144,169], index: 0, kind: input, shape index: {}]
  %s1 = inlined_call_operand.vmem [shape: bf16[32,144], index: 1, kind: input, shape index: {}]
  %s2 = inlined_call_operand.vmem [shape: f32[32,1], index: 2, kind: input, shape index: {}]
  %s3 = inlined_call_operand.vmem [shape: bf16[2,32,169], index: 3, kind: output, shape index: {}]
  %s4 = sld [smem:[#allocation0]]
  $region45: #{cnn_forward.5} parent=0
    _
  %s6 = ssub.s32 1, %s4
  %s7 = scalar_select 0, %s6, %s4
  loop: start=0, step=1, limit=4
  $region2: #{cnn_forward.5} parent=0 // loop_pre_header
    _
  $region3: #{cnn_forward.5} parent=0 // loop_header
    %s9 = sphi 0, %s13
    %p10 = scmp.ge.s32.totalorder %s9, 4
    %s19 = sphi 0, %s21
    %s22 = sphi 0, %s19
    %s23 = sphi 0, %s22
    %s39 = sphi 0, %s23
    %s43 = sphi 0, %s43
    %s45 = sphi 0, %s43
    %s46 = sphi 0, %s45
    %s60 = sphi 0, %s46
    %s64 = sphi 0, %s64
    %s66 = sphi 0, %s64
    %s67 = sphi 0, %s66
    %s81 = sphi 0, %s67
    %s87 = sphi 0, %s89
    %s90 = sphi 0, %s87
    %s91 = sphi 0, %s90
    %s107 = sphi 0, %s91
  $region4: #{cnn_forward.5} parent=0 // loop_header_branch
    %12 = sbr.rel (%p10) target = $region8
  $region5: #{cnn_forward.5} parent=0 // loop_body
    %s14 = ssub.s32 %s9, 1
    %s15 = ssub.s32 %s9, 2
    %s16 = sadd.s32 %s9, 1
    %s17 = ssub.s32 %s9, %s16
    %p18 = scmp.eq.s32.totalorder %s17, 0
    %s20 = sadd.s32 %s19, 1
    %s21 = scalar_select %p18, %s19, %s20
    %p24 = pneg %p18
    %p25 = scmp.eq.s32.totalorder %s9, 1
    %p26 = por %p24, %p25
    %p27 = scmp.ne.s32.totalorder %s19, %s22
    %p28 = scmp.eq.s32.totalorder %s9, 0
    %p29 = por %p27, %p28
    %p30 = scmp.ne.s32.totalorder %s19, %s22
    %p31 = scmp.eq.s32.totalorder %s14, 1
    %p32 = por %p30, %p31
    %p33 = scmp.ne.s32.totalorder %s22, %s23
    %p34 = scmp.eq.s32.totalorder %s14, 0
    %p35 = por %p33, %p34
    %p36 = scmp.ne.s32.totalorder %s22, %s23
    %p37 = scmp.eq.s32.totalorder %s15, 1
    %p38 = por %p36, %p37
    %p40 = scmp.ne.s32.totalorder %s23, %s39
    %p41 = scmp.eq.s32.totalorder %s15, 0
    %p42 = por %p40, %p41
    %s44 = sadd.s32 %s43, 1
    %p47 = scmp.eq.s32.totalorder %s9, 1
    %p48 = scmp.ne.s32.totalorder %s43, %s45
    %p49 = scmp.eq.s32.totalorder %s9, 0
    %p50 = por %p48, %p49
    %p51 = scmp.ne.s32.totalorder %s43, %s45
    %p52 = scmp.eq.s32.totalorder %s14, 1
    %p53 = por %p51, %p52
    %p54 = scmp.ne.s32.totalorder %s45, %s46
    %p55 = scmp.eq.s32.totalorder %s14, 0
    %p56 = por %p54, %p55
    %p57 = scmp.ne.s32.totalorder %s45, %s46
    %p58 = scmp.eq.s32.totalorder %s15, 1
    %p59 = por %p57, %p58
    %p61 = scmp.ne.s32.totalorder %s46, %s60
    %p62 = scmp.eq.s32.totalorder %s15, 0
    %p63 = por %p61, %p62
    %s65 = sadd.s32 %s64, 1
    %p68 = scmp.eq.s32.totalorder %s9, 1
    %p69 = scmp.ne.s32.totalorder %s64, %s66
    %p70 = scmp.eq.s32.totalorder %s9, 0
    %p71 = por %p69, %p70
    %p72 = scmp.ne.s32.totalorder %s64, %s66
    %p73 = scmp.eq.s32.totalorder %s14, 1
    %p74 = por %p72, %p73
    %p75 = scmp.ne.s32.totalorder %s66, %s67
    %p76 = scmp.eq.s32.totalorder %s14, 0
    %p77 = por %p75, %p76
    %p78 = scmp.ne.s32.totalorder %s66, %s67
    %p79 = scmp.eq.s32.totalorder %s15, 1
    %p80 = por %p78, %p79
    %p82 = scmp.ne.s32.totalorder %s67, %s81
    %p83 = scmp.eq.s32.totalorder %s15, 0
    %p84 = por %p82, %p83
    %s85 = ssub.s32 %s9, %s16
    %p86 = scmp.eq.s32.totalorder %s85, 0
    %s88 = sadd.s32 %s87, 1
    %s89 = scalar_select %p86, %s87, %s88
    %p92 = pneg %p86
    %p93 = scmp.eq.s32.totalorder %s9, 1
    %p94 = por %p92, %p93
    %p95 = scmp.ne.s32.totalorder %s87, %s90
    %p96 = scmp.eq.s32.totalorder %s9, 0
    %p97 = por %p95, %p96
    %p98 = scmp.ne.s32.totalorder %s87, %s90
    %p99 = scmp.eq.s32.totalorder %s14, 1
    %p100 = por %p98, %p99
    %p101 = scmp.ne.s32.totalorder %s90, %s91
    %p102 = scmp.eq.s32.totalorder %s14, 0
    %p103 = por %p101, %p102
    %p104 = scmp.ne.s32.totalorder %s90, %s91
    %p105 = scmp.eq.s32.totalorder %s15, 1
    %p106 = por %p104, %p105
    %p108 = scmp.ne.s32.totalorder %s91, %s107
    %p109 = scmp.eq.s32.totalorder %s15, 0
    %p110 = por %p108, %p109
    %p111 = scmp.le.s32.totalorder 1, %s9
    %p112 = scmp.lt.s32.totalorder %s9, 3
    %p113 = pnand %p111, %p112
    %p114 = pneg %p113
    // Predicated region
    $region9: #{cnn_forward.5} parent=5 // pred_check
      _
    $region10: #{cnn_forward.5} parent=5 // pred_check_branch
      %116 = sbr.rel (%p113) target = $region12
    $region11: #{cnn_forward.5} parent=5 // pred_region
      %s117 = ssub.s32 %s9, 1
      // Predicated region
      $region13: #{cnn_forward.5} parent=11 // pred_check
        %p118 = pneg %p56
      $region14: #{cnn_forward.5} parent=11 // pred_check_branch
        %120 = sbr.rel (%p118) target = $region16
      $region15: #{cnn_forward.5} parent=11 // pred_region
        _
      $region16: #{cnn_forward.5} parent=11 // pred_fallthru
        _
      // Predicated region
      $region17: #{cnn_forward.5} parent=11 // pred_check
        %p121 = pneg %p77
      $region18: #{cnn_forward.5} parent=11 // pred_check_branch
        %123 = sbr.rel (%p121) target = $region20
      $region19: #{cnn_forward.5} parent=11 // pred_region
        _
      $region20: #{cnn_forward.5} parent=11 // pred_fallthru
        _
    $region12: #{cnn_forward.5} parent=5 // pred_fallthru
      _
    %p124 = scmp.lt.s32.totalorder %s9, 2
    // Predicated region
    $region21: #{cnn_forward.5} parent=5 // pred_check
      %p125 = pneg %p124
    $region22: #{cnn_forward.5} parent=5 // pred_check_branch
      %127 = sbr.rel (%p125) target = $region24
    $region23: #{cnn_forward.5} parent=5 // pred_region
      // Predicated region
      $region25: #{cnn_forward.5} parent=23 // pred_check
        %p128 = pneg %p29
      $region26: #{cnn_forward.5} parent=23 // pred_check_branch
        %130 = sbr.rel (%p128) target = $region28
      $region27: #{cnn_forward.5} parent=23 // pred_region
        %p131 = scmp.lt.s32.totalorder %s9, 1
        %s132 = scalar_select %p131, %s9, 1
        %s133 = smul.addr %s132, 144
        %s134 = smul.addr %s133, 4
        %s135 = scalar_lea.vmem %s0, %s134
      $region28: #{cnn_forward.5} parent=23 // pred_fallthru
        _
    $region24: #{cnn_forward.5} parent=5 // pred_fallthru
      _
    %p136 = scmp.le.s32.totalorder 1, %s9
    %p137 = scmp.lt.s32.totalorder %s9, 3
    %p138 = pnand %p136, %p137
    %p139 = pneg %p138
    // Predicated region
    $region29: #{cnn_forward.5} parent=5 // pred_check
      _
    $region30: #{cnn_forward.5} parent=5 // pred_check_branch
      %141 = sbr.rel (%p138) target = $region32
    $region31: #{cnn_forward.5} parent=5 // pred_region
      %s142 = ssub.s32 %s9, 1
      %p143 = scmp.lt.s32.totalorder %s14, 1
      %s144 = scalar_select %p143, %s14, 1
      %s145 = smul.addr %s144, 144
      %s146 = smul.addr %s145, 4
      %s147 = scalar_lea.vmem %s0, %s146
      %p148 = pneg %p35
      %p149 = pneg %p32
      %p150 = pneg %p56
      %p151 = pneg %p53
      %p152 = pneg %p77
      %p153 = pneg %p74
      %p154 = pneg %p103
      %p155 = pneg %p100
      %p156 = scmp.lt.s32.totalorder %s14, 1
      %s157 = scalar_select %p156, %s14, 1
      %s158 = smul.addr %s157, 8
      %s159 = smul.addr %s158, 4
      %s160 = scalar_lea.vmem %s3, %s159
      %p161 = scmp.lt.s32.totalorder %s14, 1
      %s162 = scalar_select %p161, %s14, 1
      %s163 = smul.addr %s162, 144
      %s164 = smul.addr %s163, 4
      %s165 = scalar_lea.vmem %s0, %s164
      %p166 = scmp.lt.s32.totalorder %s14, 1
      %s167 = scalar_select %p166, %s14, 1
      %s168 = smul.addr %s167, 8
      %s169 = smul.addr %s168, 4
      %s170 = scalar_lea.vmem %s3, %s169
      %v172 = vld [vmem:[%s1] sm:$0xff]
      %v173 = vld [vmem:[%s1 + $0x8] sm:$0xff]
      %v174 = vld [vmem:[%s1 + $0x10] sm:$0xff]
      %v175 = vld [vmem:[%s1 + $0x18] sm:$0xff]
      %v176 = vld [vmem:[%s165] sm:$0xff]
      %v177 = vld [vmem:[%s165 + $0x8] sm:$0xff]
      %v178 = vld [vmem:[%s165 + $0x10] sm:$0xff]
      %v179 = vld [vmem:[%s165 + $0x18] sm:$0xff]
      %v180 = vld [vmem:[%s165 + $0x20] sm:$0xff]
      %v181 = vld [vmem:[%s165 + $0x28] sm:$0xff]
      %v182 = vld [vmem:[%s165 + $0x30] sm:$0xff]
      %v183 = vld [vmem:[%s165 + $0x38] sm:$0xff]
      %v184 = vld [vmem:[%s165 + $0x40] sm:$0xff]
      %v185 = vld [vmem:[%s165 + $0x48] sm:$0xff]
      %v186 = vld [vmem:[%s165 + $0x50] sm:$0xff]
      %v187 = vld [vmem:[%s165 + $0x58] sm:$0xff]
      %v188 = vld [vmem:[%s165 + $0x60] sm:$0xff]
      %v189 = vld [vmem:[%s165 + $0x68] sm:$0xff]
      %v190 = vld [vmem:[%s165 + $0x70] sm:$0xff]
      %v191 = vld [vmem:[%s165 + $0x78] sm:$0xff]
      %v192 = vld [vmem:[%s165 + $0x80] sm:$0xff]
      %v193 = vld [vmem:[%s165 + $0x88] sm:$0xff]
      %v198 = vunpack.c.l.b16 %v172
      %v199 = vunpack.c.h.b16 %v172
      %v200 = vunpack.c.l.b16 %v173
      %v201 = vunpack.c.h.b16 %v173
      %v202 = vunpack.c.l.b16 %v174
      %v203 = vunpack.c.h.b16 %v174
      %v204 = vunpack.c.l.b16 %v175
      %v205 = vunpack.c.h.b16 %v175
      %v206 = vpack.c.b16 %v200, %v198
      %v207 = vpack.c.b16 %v201, %v199
      %v208 = vpack.c.b16 %v204, %v202
      %v209 = vpack.c.b16 %v205, %v203
      %v230 = vunpack.c.l.b16 %v176
      %v231 = vunpack.c.h.b16 %v176
      %v232 = vunpack.c.l.b16 %v177
      %v233 = vunpack.c.h.b16 %v177
      %v234 = vunpack.c.l.b16 %v178
      %v235 = vunpack.c.h.b16 %v178
      %v236 = vunpack.c.l.b16 %v179
      %v237 = vunpack.c.h.b16 %v179
      %v238 = vunpack.c.l.b16 %v180
      %v239 = vunpack.c.h.b16 %v180
      %v240 = vunpack.c.l.b16 %v181
      %v241 = vunpack.c.h.b16 %v181
      %v242 = vunpack.c.l.b16 %v182
      %v243 = vunpack.c.h.b16 %v182
      %v244 = vunpack.c.l.b16 %v183
      %v245 = vunpack.c.h.b16 %v183
      %v246 = vunpack.c.l.b16 %v184
      %v247 = vunpack.c.h.b16 %v184
      %v248 = vunpack.c.l.b16 %v185
      %v249 = vunpack.c.h.b16 %v185
      %v250 = vunpack.c.l.b16 %v186
      %v251 = vunpack.c.h.b16 %v186
      %v252 = vunpack.c.l.b16 %v187
      %v253 = vunpack.c.h.b16 %v187
      %v254 = vunpack.c.l.b16 %v188
      %v255 = vunpack.c.h.b16 %v188
      %v256 = vunpack.c.l.b16 %v189
      %v257 = vunpack.c.h.b16 %v189
      %v258 = vunpack.c.l.b16 %v190
      %v259 = vunpack.c.h.b16 %v190
      %v260 = vunpack.c.l.b16 %v191
      %v261 = vunpack.c.h.b16 %v191
      %v262 = vunpack.c.l.b16 %v192
      %v263 = vunpack.c.h.b16 %v192
      %v264 = vunpack.c.l.b16 %v193
      %v265 = vunpack.c.h.b16 %v193
      %v266 = vpack.c.b16 %v232, %v230
      %v267 = vpack.c.b16 %v233, %v231
      %v268 = vpack.c.b16 %v236, %v234
      %v269 = vpack.c.b16 %v237, %v235
      %v270 = vpack.c.b16 %v240, %v238
      %v271 = vpack.c.b16 %v241, %v239
      %v272 = vpack.c.b16 %v244, %v242
      %v273 = vpack.c.b16 %v245, %v243
      %v274 = vpack.c.b16 %v248, %v246
      %v275 = vpack.c.b16 %v249, %v247
      %v276 = vpack.c.b16 %v252, %v250
      %v277 = vpack.c.b16 %v253, %v251
      %v278 = vpack.c.b16 %v256, %v254
      %v279 = vpack.c.b16 %v257, %v255
      %v280 = vpack.c.b16 %v260, %v258
      %v281 = vpack.c.b16 %v261, %v259
      %v282 = vpack.c.b16 %v264, %v262
      %v283 = vpack.c.b16 %v265, %v263
      %vm302 = vcmask 130048
      %v304 = vsel %vm302, %v207, 0
      %v307 = vsel %vm302, %v209, 0
      %309 = vmatprep.subr.bf16.mxu0 %v267
      %310 = vmatpush1.bf16.msra.mxu0 %v266
      %311 = vmatprep.subr.bf16.mxu0 %v269
      %312 = vmatpush1.bf16.msra.mxu0 %v268
      %313 = vmatprep.subr.bf16.mxu0 %v271
      %314 = vmatpush1.bf16.msra.mxu0 %v270
      %315 = vmatprep.subr.bf16.mxu0 %v273
      %316 = vmatpush1.bf16.msra.mxu0 %v272
      %317 = vmatprep.subr.bf16.mxu0 %v275
      %318 = vmatpush1.bf16.msra.mxu0 %v274
      %319 = vmatprep.subr.bf16.mxu0 %v277
      %320 = vmatpush1.bf16.msra.mxu0 %v276
      %321 = vmatprep.subr.bf16.mxu0 %v279
      %322 = vmatpush1.bf16.msra.mxu0 %v278
      %323 = vmatprep.subr.bf16.mxu0 %v281
      %324 = vmatpush1.bf16.msra.mxu0 %v280
      %325 = vmatprep.subr.bf16.mxu0 %v283
      %326 = vmatpush1.bf16.msra.mxu0 %v282
      %327 = vmatprep.subr.bf16.mxu0 0
      %328 = vmatpush1.bf16.msra.mxu0 0
      %329 = vmatprep.subr.bf16.mxu0 0
      %330 = vmatpush1.bf16.msra.mxu0 0
      %331 = vmatprep.subr.bf16.mxu0 0
      %332 = vmatpush1.bf16.msra.mxu0 0
      %333 = vmatprep.subr.bf16.mxu0 0
      %334 = vmatpush1.bf16.msra.mxu0 0
      %335 = vmatprep.subr.bf16.mxu0 0
      %336 = vmatpush1.bf16.msra.mxu0 0
      %337 = vmatprep.subr.bf16.mxu0 0
      %338 = vmatpush1.bf16.msra.mxu0 0
      %339 = vmatprep.subr.bf16.mxu0 0
      %340 = vmatpush1.bf16.msra.mxu0 0
      %341 = vmatprep.mubr.bf16.mxu0 %v304
      %342 = vmatmul.mubr.bf16.gmra.mrb[0].mxu0 %v206
      %v343 = vpop.f32.mrb[0].mxu0
      %v344 = vadd.f32 0.0, %v343
      %v345 = vpop.f32.mrb[0].mxu0
      %v346 = vadd.f32 0.0, %v345
      %v347 = vpop.f32.mrb[0].mxu0
      %v348 = vadd.f32 0.0, %v347
      %v349 = vpop.f32.mrb[0].mxu0
      %v350 = vadd.f32 0.0, %v349
      %351 = vmatprep.mubr.bf16.mxu0 %v307
      %352 = vmatmul.mubr.bf16.gmra.mrb[0].mxu0 %v208
      %v353 = vpop.f32.mrb[0].mxu0
      %v354 = vadd.f32 0.0, %v353
      %v355 = vpop.f32.mrb[0].mxu0
      %v356 = vadd.f32 0.0, %v355
      %v357 = vpop.f32.mrb[0].mxu0
      %v358 = vadd.f32 0.0, %v357
      %v359 = vpop.f32.mrb[0].mxu0
      %v360 = vadd.f32 0.0, %v359
      %361 = vdwg.mxu0
      %s362 = scalar_lea.vmem %s165, 144
      %v363 = vld [vmem:[%s362] sm:$0xff]
      %v364 = vld [vmem:[%s362 + $0x8] sm:$0xff]
      %v365 = vld [vmem:[%s362 + $0x10] sm:$0xff]
      %v366 = vld [vmem:[%s362 + $0x18] sm:$0xff]
      %v367 = vld [vmem:[%s362 + $0x20] sm:$0xff]
      %v368 = vld [vmem:[%s362 + $0x28] sm:$0xff]
      %v369 = vld [vmem:[%s362 + $0x30] sm:$0xff]
      %v370 = vld [vmem:[%s362 + $0x38] sm:$0xff]
      %v371 = vld [vmem:[%s362 + $0x40] sm:$0xff]
      %v372 = vld [vmem:[%s362 + $0x48] sm:$0xff]
      %v373 = vld [vmem:[%s362 + $0x50] sm:$0xff]
      %v374 = vld [vmem:[%s362 + $0x58] sm:$0xff]
      %v375 = vld [vmem:[%s362 + $0x60] sm:$0xff]
      %v376 = vld [vmem:[%s362 + $0x68] sm:$0xff]
      %v377 = vld [vmem:[%s362 + $0x70] sm:$0xff]
      %v378 = vld [vmem:[%s362 + $0x78] sm:$0xff]
      %v379 = vld [vmem:[%s362 + $0x80] sm:$0xff]
      %v380 = vld [vmem:[%s362 + $0x88] sm:$0xff]
      %v399 = vunpack.c.l.b16 %v363
      %v400 = vunpack.c.h.b16 %v363
      %v401 = vunpack.c.l.b16 %v364
      %v402 = vunpack.c.h.b16 %v364
      %v403 = vunpack.c.l.b16 %v365
      %v404 = vunpack.c.h.b16 %v365
      %v405 = vunpack.c.l.b16 %v366
      %v406 = vunpack.c.h.b16 %v366
      %v407 = vunpack.c.l.b16 %v367
      %v408 = vunpack.c.h.b16 %v367
      %v409 = vunpack.c.l.b16 %v368
      %v410 = vunpack.c.h.b16 %v368
      %v411 = vunpack.c.l.b16 %v369
      %v412 = vunpack.c.h.b16 %v369
      %v413 = vunpack.c.l.b16 %v370
      %v414 = vunpack.c.h.b16 %v370
      %v415 = vunpack.c.l.b16 %v371
      %v416 = vunpack.c.h.b16 %v371
      %v417 = vunpack.c.l.b16 %v372
      %v418 = vunpack.c.h.b16 %v372
      %v419 = vunpack.c.l.b16 %v373
      %v420 = vunpack.c.h.b16 %v373
      %v421 = vunpack.c.l.b16 %v374
      %v422 = vunpack.c.h.b16 %v374
      %v423 = vunpack.c.l.b16 %v375
      %v424 = vunpack.c.h.b16 %v375
      %v425 = vunpack.c.l.b16 %v376
      %v426 = vunpack.c.h.b16 %v376
      %v427 = vunpack.c.l.b16 %v377
      %v428 = vunpack.c.h.b16 %v377
      %v429 = vunpack.c.l.b16 %v378
      %v430 = vunpack.c.h.b16 %v378
      %v431 = vunpack.c.l.b16 %v379
      %v432 = vunpack.c.h.b16 %v379
      %v433 = vunpack.c.l.b16 %v380
      %v434 = vunpack.c.h.b16 %v380
      %v435 = vpack.c.b16 %v401, %v399
      %v436 = vpack.c.b16 %v402, %v400
      %v437 = vpack.c.b16 %v405, %v403
      %v438 = vpack.c.b16 %v406, %v404
      %v439 = vpack.c.b16 %v409, %v407
      %v440 = vpack.c.b16 %v410, %v408
      %v441 = vpack.c.b16 %v413, %v411
      %v442 = vpack.c.b16 %v414, %v412
      %v443 = vpack.c.b16 %v417, %v415
      %v444 = vpack.c.b16 %v418, %v416
      %v445 = vpack.c.b16 %v421, %v419
      %v446 = vpack.c.b16 %v422, %v420
      %v447 = vpack.c.b16 %v425, %v423
      %v448 = vpack.c.b16 %v426, %v424
      %v449 = vpack.c.b16 %v429, %v427
      %v450 = vpack.c.b16 %v430, %v428
      %v451 = vpack.c.b16 %v433, %v431
      %v452 = vpack.c.b16 %v434, %v432
      %471 = vmatprep.subr.bf16.mxu0 %v436
      %472 = vmatpush1.bf16.msra.mxu0 %v435
      %473 = vmatprep.subr.bf16.mxu0 %v438
      %474 = vmatpush1.bf16.msra.mxu0 %v437
      %475 = vmatprep.subr.bf16.mxu0 %v440
      %476 = vmatpush1.bf16.msra.mxu0 %v439
      %477 = vmatprep.subr.bf16.mxu0 %v442
      %478 = vmatpush1.bf16.msra.mxu0 %v441
      %479 = vmatprep.subr.bf16.mxu0 %v444
      %480 = vmatpush1.bf16.msra.mxu0 %v443
      %481 = vmatprep.subr.bf16.mxu0 %v446
      %482 = vmatpush1.bf16.msra.mxu0 %v445
      %483 = vmatprep.subr.bf16.mxu0 %v448
      %484 = vmatpush1.bf16.msra.mxu0 %v447
      %485 = vmatprep.subr.bf16.mxu0 %v450
      %486 = vmatpush1.bf16.msra.mxu0 %v449
      %487 = vmatprep.subr.bf16.mxu0 %v452
      %488 = vmatpush1.bf16.msra.mxu0 %v451
      %489 = vmatprep.subr.bf16.mxu0 0
      %490 = vmatpush1.bf16.msra.mxu0 0
      %491 = vmatprep.subr.bf16.mxu0 0
      %492 = vmatpush1.bf16.msra.mxu0 0
      %493 = vmatprep.subr.bf16.mxu0 0
      %494 = vmatpush1.bf16.msra.mxu0 0
      %495 = vmatprep.subr.bf16.mxu0 0
      %496 = vmatpush1.bf16.msra.mxu0 0
      %497 = vmatprep.subr.bf16.mxu0 0
      %498 = vmatpush1.bf16.msra.mxu0 0
      %499 = vmatprep.subr.bf16.mxu0 0
      %500 = vmatpush1.bf16.msra.mxu0 0
      %501 = vmatprep.subr.bf16.mxu0 0
      %502 = vmatpush1.bf16.msra.mxu0 0
      %503 = vmatprep.mubr.bf16.mxu0 %v304
      %504 = vmatmul.mubr.bf16.gmra.mrb[0].mxu0 %v206
      %v505 = vpop.f32.mrb[0].mxu0
      %v506 = vadd.f32 0.0, %v505
      %v507 = vpop.f32.mrb[0].mxu0
      %v508 = vadd.f32 0.0, %v507
      %v509 = vpop.f32.mrb[0].mxu0
      %v510 = vadd.f32 0.0, %v509
      %v511 = vpop.f32.mrb[0].mxu0
      %v512 = vadd.f32 0.0, %v511
      %513 = vmatprep.mubr.bf16.mxu0 %v307
      %514 = vmatmul.mubr.bf16.gmra.mrb[0].mxu0 %v208
      %v515 = vpop.f32.mrb[0].mxu0
      %v516 = vadd.f32 0.0, %v515
      %v517 = vpop.f32.mrb[0].mxu0
      %v518 = vadd.f32 0.0, %v517
      %v519 = vpop.f32.mrb[0].mxu0
      %v520 = vadd.f32 0.0, %v519
      %v521 = vpop.f32.mrb[0].mxu0
      %v522 = vadd.f32 0.0, %v521
      %523 = vdwg.mxu0
      %s524 = scalar_lea.vmem %s165, 288
      %v525 = vld [vmem:[%s524] sm:$0xff]
      %v526 = vld [vmem:[%s524 + $0x8] sm:$0xff]
      %v527 = vld [vmem:[%s524 + $0x10] sm:$0xff]
      %v528 = vld [vmem:[%s524 + $0x18] sm:$0xff]
      %v529 = vld [vmem:[%s524 + $0x20] sm:$0xff]
      %v530 = vld [vmem:[%s524 + $0x28] sm:$0xff]
      %v531 = vld [vmem:[%s524 + $0x30] sm:$0xff]
      %v532 = vld [vmem:[%s524 + $0x38] sm:$0xff]
      %v533 = vld [vmem:[%s524 + $0x40] sm:$0xff]
      %v534 = vld [vmem:[%s524 + $0x48] sm:$0xff]
      %v535 = vld [vmem:[%s524 + $0x50] sm:$0xff]
      %v536 = vld [vmem:[%s524 + $0x58] sm:$0xff]
      %v537 = vld [vmem:[%s524 + $0x60] sm:$0xff]
      %v538 = vld [vmem:[%s524 + $0x68] sm:$0xff]
      %v539 = vld [vmem:[%s524 + $0x70] sm:$0xff]
      %v540 = vld [vmem:[%s524 + $0x78] sm:$0xff]
      %v541 = vld [vmem:[%s524 + $0x80] sm:$0xff]
      %v542 = vld [vmem:[%s524 + $0x88] sm:$0xff]
      %v561 = vunpack.c.l.b16 %v525
      %v562 = vunpack.c.h.b16 %v525
      %v563 = vunpack.c.l.b16 %v526
      %v564 = vunpack.c.h.b16 %v526
      %v565 = vunpack.c.l.b16 %v527
      %v566 = vunpack.c.h.b16 %v527
      %v567 = vunpack.c.l.b16 %v528
      %v568 = vunpack.c.h.b16 %v528
      %v569 = vunpack.c.l.b16 %v529
      %v570 = vunpack.c.h.b16 %v529
      %v571 = vunpack.c.l.b16 %v530
      %v572 = vunpack.c.h.b16 %v530
      %v573 = vunpack.c.l.b16 %v531
      %v574 = vunpack.c.h.b16 %v531
      %v575 = vunpack.c.l.b16 %v532
      %v576 = vunpack.c.h.b16 %v532
      %v577 = vunpack.c.l.b16 %v533
      %v578 = vunpack.c.h.b16 %v533
      %v579 = vunpack.c.l.b16 %v534
      %v580 = vunpack.c.h.b16 %v534
      %v581 = vunpack.c.l.b16 %v535
      %v582 = vunpack.c.h.b16 %v535
      %v583 = vunpack.c.l.b16 %v536
      %v584 = vunpack.c.h.b16 %v536
      %v585 = vunpack.c.l.b16 %v537
      %v586 = vunpack.c.h.b16 %v537
      %v587 = vunpack.c.l.b16 %v538
      %v588 = vunpack.c.h.b16 %v538
      %v589 = vunpack.c.l.b16 %v539
      %v590 = vunpack.c.h.b16 %v539
      %v591 = vunpack.c.l.b16 %v540
      %v592 = vunpack.c.h.b16 %v540
      %v593 = vunpack.c.l.b16 %v541
      %v594 = vunpack.c.h.b16 %v541
      %v595 = vunpack.c.l.b16 %v542
      %v596 = vunpack.c.h.b16 %v542
      %v597 = vpack.c.b16 %v563, %v561
      %v598 = vpack.c.b16 %v564, %v562
      %v599 = vpack.c.b16 %v567, %v565
      %v600 = vpack.c.b16 %v568, %v566
      %v601 = vpack.c.b16 %v571, %v569
      %v602 = vpack.c.b16 %v572, %v570
      %v603 = vpack.c.b16 %v575, %v573
      %v604 = vpack.c.b16 %v576, %v574
      %v605 = vpack.c.b16 %v579, %v577
      %v606 = vpack.c.b16 %v580, %v578
      %v607 = vpack.c.b16 %v583, %v581
      %v608 = vpack.c.b16 %v584, %v582
      %v609 = vpack.c.b16 %v587, %v585
      %v610 = vpack.c.b16 %v588, %v586
      %v611 = vpack.c.b16 %v591, %v589
      %v612 = vpack.c.b16 %v592, %v590
      %v613 = vpack.c.b16 %v595, %v593
      %v614 = vpack.c.b16 %v596, %v594
      %633 = vmatprep.subr.bf16.mxu0 %v598
      %634 = vmatpush1.bf16.msra.mxu0 %v597
      %635 = vmatprep.subr.bf16.mxu0 %v600
      %636 = vmatpush1.bf16.msra.mxu0 %v599
      %637 = vmatprep.subr.bf16.mxu0 %v602
      %638 = vmatpush1.bf16.msra.mxu0 %v601
      %639 = vmatprep.subr.bf16.mxu0 %v604
      %640 = vmatpush1.bf16.msra.mxu0 %v603
      %641 = vmatprep.subr.bf16.mxu0 %v606
      %642 = vmatpush1.bf16.msra.mxu0 %v605
      %643 = vmatprep.subr.bf16.mxu0 %v608
      %644 = vmatpush1.bf16.msra.mxu0 %v607
      %645 = vmatprep.subr.bf16.mxu0 %v610
      %646 = vmatpush1.bf16.msra.mxu0 %v609
      %647 = vmatprep.subr.bf16.mxu0 %v612
      %648 = vmatpush1.bf16.msra.mxu0 %v611
      %649 = vmatprep.subr.bf16.mxu0 %v614
      %650 = vmatpush1.bf16.msra.mxu0 %v613
      %651 = vmatprep.subr.bf16.mxu0 0
      %652 = vmatpush1.bf16.msra.mxu0 0
      %653 = vmatprep.subr.bf16.mxu0 0
      %654 = vmatpush1.bf16.msra.mxu0 0
      %655 = vmatprep.subr.bf16.mxu0 0
      %656 = vmatpush1.bf16.msra.mxu0 0
      %657 = vmatprep.subr.bf16.mxu0 0
      %658 = vmatpush1.bf16.msra.mxu0 0
      %659 = vmatprep.subr.bf16.mxu0 0
      %660 = vmatpush1.bf16.msra.mxu0 0
      %661 = vmatprep.subr.bf16.mxu0 0
      %662 = vmatpush1.bf16.msra.mxu0 0
      %663 = vmatprep.subr.bf16.mxu0 0
      %664 = vmatpush1.bf16.msra.mxu0 0
      %665 = vmatprep.mubr.bf16.mxu0 %v304
      %666 = vmatmul.mubr.bf16.gmra.mrb[0].mxu0 %v206
      %v667 = vpop.f32.mrb[0].mxu0
      %v668 = vadd.f32 0.0, %v667
      %v669 = vpop.f32.mrb[0].mxu0
      %v670 = vadd.f32 0.0, %v669
      %v671 = vpop.f32.mrb[0].mxu0
      %v672 = vadd.f32 0.0, %v671
      %v673 = vpop.f32.mrb[0].mxu0
      %v674 = vadd.f32 0.0, %v673
      %675 = vmatprep.mubr.bf16.mxu0 %v307
      %676 = vmatmul.mubr.bf16.gmra.mrb[0].mxu0 %v208
      %v677 = vpop.f32.mrb[0].mxu0
      %v678 = vadd.f32 0.0, %v677
      %v679 = vpop.f32.mrb[0].mxu0
      %v680 = vadd.f32 0.0, %v679
      %v681 = vpop.f32.mrb[0].mxu0
      %v682 = vadd.f32 0.0, %v681
      %v683 = vpop.f32.mrb[0].mxu0
      %v684 = vadd.f32 0.0, %v683
      %685 = vdwg.mxu0
      %s686 = scalar_lea.vmem %s165, 432
      %v687 = vld [vmem:[%s686] sm:$0xff]
      %v688 = vld [vmem:[%s686 + $0x8] sm:$0xff]
      %v689 = vld [vmem:[%s686 + $0x10] sm:$0xff]
      %v690 = vld [vmem:[%s686 + $0x18] sm:$0xff]
      %v691 = vld [vmem:[%s686 + $0x20] sm:$0xff]
      %v692 = vld [vmem:[%s686 + $0x28] sm:$0xff]
      %v693 = vld [vmem:[%s686 + $0x30] sm:$0xff]
      %v694 = vld [vmem:[%s686 + $0x38] sm:$0xff]
      %v695 = vld [vmem:[%s686 + $0x40] sm:$0xff]
      %v696 = vld [vmem:[%s686 + $0x48] sm:$0xff]
      %v697 = vld [vmem:[%s686 + $0x50] sm:$0xff]
      %v698 = vld [vmem:[%s686 + $0x58] sm:$0xff]
      %v699 = vld [vmem:[%s686 + $0x60] sm:$0xff]
      %v700 = vld [vmem:[%s686 + $0x68] sm:$0xff]
      %v701 = vld [vmem:[%s686 + $0x70] sm:$0xff]
      %v702 = vld [vmem:[%s686 + $0x78] sm:$0xff]
      %v703 = vld [vmem:[%s686 + $0x80] sm:$0xff]
      %v704 = vld [vmem:[%s686 + $0x88] sm:$0xff]
      %v723 = vunpack.c.l.b16 %v687
      %v724 = vunpack.c.h.b16 %v687
      %v725 = vunpack.c.l.b16 %v688
      %v726 = vunpack.c.h.b16 %v688
      %v727 = vunpack.c.l.b16 %v689
      %v728 = vunpack.c.h.b16 %v689
      %v729 = vunpack.c.l.b16 %v690
      %v730 = vunpack.c.h.b16 %v690
      %v731 = vunpack.c.l.b16 %v691
      %v732 = vunpack.c.h.b16 %v691
      %v733 = vunpack.c.l.b16 %v692
      %v734 = vunpack.c.h.b16 %v692
      %v735 = vunpack.c.l.b16 %v693
      %v736 = vunpack.c.h.b16 %v693
      %v737 = vunpack.c.l.b16 %v694
      %v738 = vunpack.c.h.b16 %v694
      %v739 = vunpack.c.l.b16 %v695
      %v740 = vunpack.c.h.b16 %v695
      %v741 = vunpack.c.l.b16 %v696
      %v742 = vunpack.c.h.b16 %v696
      %v743 = vunpack.c.l.b16 %v697
      %v744 = vunpack.c.h.b16 %v697
      %v745 = vunpack.c.l.b16 %v698
      %v746 = vunpack.c.h.b16 %v698
      %v747 = vunpack.c.l.b16 %v699
      %v748 = vunpack.c.h.b16 %v699
      %v749 = vunpack.c.l.b16 %v700
      %v750 = vunpack.c.h.b16 %v700
      %v751 = vunpack.c.l.b16 %v701
      %v752 = vunpack.c.h.b16 %v701
      %v753 = vunpack.c.l.b16 %v702
      %v754 = vunpack.c.h.b16 %v702
      %v755 = vunpack.c.l.b16 %v703
      %v756 = vunpack.c.h.b16 %v703
      %v757 = vunpack.c.l.b16 %v704
      %v758 = vunpack.c.h.b16 %v704
      %v759 = vpack.c.b16 %v725, %v723
      %v760 = vpack.c.b16 %v726, %v724
      %v761 = vpack.c.b16 %v729, %v727
      %v762 = vpack.c.b16 %v730, %v728
      %v763 = vpack.c.b16 %v733, %v731
      %v764 = vpack.c.b16 %v734, %v732
      %v765 = vpack.c.b16 %v737, %v735
      %v766 = vpack.c.b16 %v738, %v736
      %v767 = vpack.c.b16 %v741, %v739
      %v768 = vpack.c.b16 %v742, %v740
      %v769 = vpack.c.b16 %v745, %v743
      %v770 = vpack.c.b16 %v746, %v744
      %v771 = vpack.c.b16 %v749, %v747
      %v772 = vpack.c.b16 %v750, %v748
      %v773 = vpack.c.b16 %v753, %v751
      %v774 = vpack.c.b16 %v754, %v752
      %v775 = vpack.c.b16 %v757, %v755
      %v776 = vpack.c.b16 %v758, %v756
      %795 = vmatprep.subr.bf16.mxu0 %v760
      %796 = vmatpush1.bf16.msra.mxu0 %v759
      %797 = vmatprep.subr.bf16.mxu0 %v762
      %798 = vmatpush1.bf16.msra.mxu0 %v761
      %799 = vmatprep.subr.bf16.mxu0 %v764
      %800 = vmatpush1.bf16.msra.mxu0 %v763
      %801 = vmatprep.subr.bf16.mxu0 %v766
      %802 = vmatpush1.bf16.msra.mxu0 %v765
      %803 = vmatprep.subr.bf16.mxu0 %v768
      %804 = vmatpush1.bf16.msra.mxu0 %v767
      %805 = vmatprep.subr.bf16.mxu0 %v770
      %806 = vmatpush1.bf16.msra.mxu0 %v769
      %807 = vmatprep.subr.bf16.mxu0 %v772
      %808 = vmatpush1.bf16.msra.mxu0 %v771
      %809 = vmatprep.subr.bf16.mxu0 %v774
      %810 = vmatpush1.bf16.msra.mxu0 %v773
      %811 = vmatprep.subr.bf16.mxu0 %v776
      %812 = vmatpush1.bf16.msra.mxu0 %v775
      %813 = vmatprep.subr.bf16.mxu0 0
      %814 = vmatpush1.bf16.msra.mxu0 0
      %815 = vmatprep.subr.bf16.mxu0 0
      %816 = vmatpush1.bf16.msra.mxu0 0
      %817 = vmatprep.subr.bf16.mxu0 0
      %818 = vmatpush1.bf16.msra.mxu0 0
      %819 = vmatprep.subr.bf16.mxu0 0
      %820 = vmatpush1.bf16.msra.mxu0 0
      %821 = vmatprep.subr.bf16.mxu0 0
      %822 = vmatpush1.bf16.msra.mxu0 0
      %823 = vmatprep.subr.bf16.mxu0 0
      %824 = vmatpush1.bf16.msra.mxu0 0
      %825 = vmatprep.subr.bf16.mxu0 0
      %826 = vmatpush1.bf16.msra.mxu0 0
      %827 = vmatprep.mubr.bf16.mxu0 %v304
      %828 = vmatmul.mubr.bf16.gmra.mrb[0].mxu0 %v206
      %v829 = vpop.f32.mrb[0].mxu0
      %v830 = vadd.f32 0.0, %v829
      %v831 = vpop.f32.mrb[0].mxu0
      %v832 = vadd.f32 0.0, %v831
      %v833 = vpop.f32.mrb[0].mxu0
      %v834 = vadd.f32 0.0, %v833
      %v835 = vpop.f32.mrb[0].mxu0
      %v836 = vadd.f32 0.0, %v835
      %837 = vmatprep.mubr.bf16.mxu0 %v307
      %838 = vmatmul.mubr.bf16.gmra.mrb[0].mxu0 %v208
      %v839 = vpop.f32.mrb[0].mxu0
      %v840 = vadd.f32 0.0, %v839
      %v841 = vpop.f32.mrb[0].mxu0
      %v842 = vadd.f32 0.0, %v841
      %v843 = vpop.f32.mrb[0].mxu0
      %v844 = vadd.f32 0.0, %v843
      %v845 = vpop.f32.mrb[0].mxu0
      %v846 = vadd.f32 0.0, %v845
      %847 = vdwg.mxu0
      %v848 = vmax.f32 %v344, %v506
      %v849 = vmax.f32 %v346, %v508
      %v850 = vmax.f32 %v348, %v510
      %v851 = vmax.f32 %v350, %v512
      %v852 = vmax.f32 %v354, %v516
      %v853 = vmax.f32 %v356, %v518
      %v854 = vmax.f32 %v358, %v520
      %v855 = vmax.f32 %v360, %v522
      %v856 = vmax.f32 %v668, %v830
      %v857 = vmax.f32 %v670, %v832
      %v858 = vmax.f32 %v672, %v834
      %v859 = vmax.f32 %v674, %v836
      %v860 = vmax.f32 %v678, %v840
      %v861 = vmax.f32 %v680, %v842
      %v862 = vmax.f32 %v682, %v844
      %v863 = vmax.f32 %v684, %v846
      %v864 = vmax.f32 %v848, %v856
      %v865 = vmax.f32 %v849, %v857
      %v866 = vmax.f32 %v850, %v858
      %v867 = vmax.f32 %v851, %v859
      %v868 = vmax.f32 %v852, %v860
      %v869 = vmax.f32 %v853, %v861
      %v870 = vmax.f32 %v854, %v862
      %v871 = vmax.f32 %v855, %v863
      %v872 = vld [vmem:[%s2] sm:$0xff]
      %v873 = vld [vmem:[%s2 + $0x8] sm:$0xff]
      %v874 = vld [vmem:[%s2 + $0x10] sm:$0xff]
      %v875 = vld [vmem:[%s2 + $0x18] sm:$0xff]
      %877 = vset.pattern.permute.xlu0 0
      %878 = vperm.xlu0 %877, %v872
      %v879 = vpop.permute.xlu0 %878
      %882 = vset.pattern.permute.xlu0 0
      %883 = vperm.xlu0 %882, %v873
      %v884 = vpop.permute.xlu0 %883
      %887 = vset.pattern.permute.xlu0 0
      %888 = vperm.xlu0 %887, %v874
      %v889 = vpop.permute.xlu0 %888
      %892 = vset.pattern.permute.xlu0 0
      %893 = vperm.xlu0 %892, %v875
      %v894 = vpop.permute.xlu0 %893
      %v896 = vadd.f32 %v864, %v879
      %v897 = vadd.f32 %v865, %v879
      %v898 = vadd.f32 %v866, %v884
      %v899 = vadd.f32 %v867, %v884
      %v900 = vadd.f32 %v868, %v889
      %v901 = vadd.f32 %v869, %v889
      %v902 = vadd.f32 %v870, %v894
      %v903 = vadd.f32 %v871, %v894
      %v904 = vmax.f32 %v896, 0.0
      %v905 = vmax.f32 %v897, 0.0
      %v906 = vmax.f32 %v898, 0.0
      %v907 = vmax.f32 %v899, 0.0
      %v908 = vmax.f32 %v900, 0.0
      %v909 = vmax.f32 %v901, 0.0
      %v910 = vmax.f32 %v902, 0.0
      %v911 = vmax.f32 %v903, 0.0
      %v912 = vpack.c.bf16 %v906, %v904
      %v913 = vpack.c.bf16 %v907, %v905
      %v914 = vpack.c.bf16 %v910, %v908
      %v915 = vpack.c.bf16 %v911, %v909
      %v920 = vunpack.c.l.b16 %v912
      %v921 = vunpack.c.l.b16 %v913
      %v922 = vunpack.c.h.b16 %v912
      %v923 = vunpack.c.h.b16 %v913
      %v924 = vunpack.c.l.b16 %v914
      %v925 = vunpack.c.l.b16 %v915
      %v926 = vunpack.c.h.b16 %v914
      %v927 = vunpack.c.h.b16 %v915
      %v928 = vpack.c.b16 %v921, %v920
      %v929 = vpack.c.b16 %v923, %v922
      %v930 = vpack.c.b16 %v925, %v924
      %v931 = vpack.c.b16 %v927, %v926
      %vm936 = vcmask 1043456
      %vm937 = vcmask 334852
      %vm938 = vmor %vm937, %vm936
      %939 = vst.msk [vmem:[%s170] sm:$0xff] %vm938, %v928
      %940 = vst.msk [vmem:[%s170 + $0x8] sm:$0xff] %vm938, %v929
      %941 = vst.msk [vmem:[%s170 + $0x10] sm:$0xff] %vm938, %v930
      %942 = vst.msk [vmem:[%s170 + $0x18] sm:$0xff] %vm938, %v931
      %p943 = scmp.lt.s32.totalorder %s14, 1
      %s944 = scalar_select %p943, %s14, 1
      %s945 = smul.addr %s944, 8
      %s946 = smul.addr %s945, 4
      %s947 = scalar_lea.vmem %s3, %s946
      // Predicated region
      $region33: #{cnn_forward.5} parent=31 // pred_check
        %p948 = pneg %p100
      $region34: #{cnn_forward.5} parent=31 // pred_check_branch
        %950 = sbr.rel (%p948) target = $region36
      $region35: #{cnn_forward.5} parent=31 // pred_region
        _
      $region36: #{cnn_forward.5} parent=31 // pred_fallthru
        _
    $region32: #{cnn_forward.5} parent=5 // pred_fallthru
      _
    %p951 = scmp.le.s32.totalorder 2, %s9
    // Predicated region
    $region37: #{cnn_forward.5} parent=5 // pred_check
      %p952 = pneg %p951
    $region38: #{cnn_forward.5} parent=5 // pred_check_branch
      %954 = sbr.rel (%p952) target = $region40
    $region39: #{cnn_forward.5} parent=5 // pred_region
      %s955 = ssub.s32 %s9, 2
      // Predicated region
      $region41: #{cnn_forward.5} parent=39 // pred_check
        %p956 = pneg %p106
      $region42: #{cnn_forward.5} parent=39 // pred_check_branch
        %958 = sbr.rel (%p956) target = $region44
      $region43: #{cnn_forward.5} parent=39 // pred_region
        %p959 = scmp.lt.s32.totalorder %s15, 1
        %s960 = scalar_select %p959, %s15, 1
        %s961 = smul.addr %s960, 8
        %s962 = smul.addr %s961, 4
        %s963 = scalar_lea.vmem %s3, %s962
      $region44: #{cnn_forward.5} parent=39 // pred_fallthru
        _
    $region40: #{cnn_forward.5} parent=5 // pred_fallthru
      _
  $region6: #{cnn_forward.5} parent=0 // loop_footer
    %s13 = sadd.s32 1, %s9
  $region7: #{cnn_forward.5} parent=0 // loop_footer_branch
    %8 = sbr.rel target = $region3
  $region8: #{cnn_forward.5} parent=0 // loop_exit
    _

// kernel: cnn_forward.6
$region0: #{cnn_forward.6}
  #allocation0 [shape = 'u32[]', space=smem, size = 0x4, offset = 0x4, fixed_abs, tag = 'smem constant byte address 0x4 - core index']
  #allocation1 [shape = 'u32[144,128]{1,0:T(1,128)}', space=vmem, size = 0x12000, scoped, tag = 'internal scratch']
  %s0 = inlined_call_operand.vmem [shape: bf16[2,4,288,9], index: 0, kind: input, shape index: {}]
  %s1 = inlined_call_operand.vmem [shape: bf16[64,288], index: 1, kind: input, shape index: {}]
  %s2 = inlined_call_operand.vmem [shape: f32[64,1], index: 2, kind: input, shape index: {}]
  %s3 = inlined_call_operand.vmem [shape: f32[2,64,9], index: 3, kind: output, shape index: {}]
  %s4 = sld [smem:[#allocation0]]
  $region45: #{cnn_forward.6} parent=0
    _
  %s6 = ssub.s32 1, %s4
  %s7 = scalar_select 0, %s6, %s4
  loop: start=0, step=1, limit=4
  $region2: #{cnn_forward.6} parent=0 // loop_pre_header
    _
  $region3: #{cnn_forward.6} parent=0 // loop_header
    %s9 = sphi 0, %s13
    %p10 = scmp.ge.s32.totalorder %s9, 4
    %s19 = sphi 0, %s21
    %s22 = sphi 0, %s19
    %s23 = sphi 0, %s22
    %s39 = sphi 0, %s23
    %s43 = sphi 0, %s43
    %s45 = sphi 0, %s43
    %s46 = sphi 0, %s45
    %s60 = sphi 0, %s46
    %s64 = sphi 0, %s64
    %s66 = sphi 0, %s64
    %s67 = sphi 0, %s66
    %s81 = sphi 0, %s67
    %s87 = sphi 0, %s89
    %s90 = sphi 0, %s87
    %s91 = sphi 0, %s90
    %s107 = sphi 0, %s91
  $region4: #{cnn_forward.6} parent=0 // loop_header_branch
    %12 = sbr.rel (%p10) target = $region8
  $region5: #{cnn_forward.6} parent=0 // loop_body
    %s14 = ssub.s32 %s9, 1
    %s15 = ssub.s32 %s9, 2
    %s16 = sadd.s32 %s9, 1
    %s17 = ssub.s32 %s9, %s16
    %p18 = scmp.eq.s32.totalorder %s17, 0
    %s20 = sadd.s32 %s19, 1
    %s21 = scalar_select %p18, %s19, %s20
    %p24 = pneg %p18
    %p25 = scmp.eq.s32.totalorder %s9, 1
    %p26 = por %p24, %p25
    %p27 = scmp.ne.s32.totalorder %s19, %s22
    %p28 = scmp.eq.s32.totalorder %s9, 0
    %p29 = por %p27, %p28
    %p30 = scmp.ne.s32.totalorder %s19, %s22
    %p31 = scmp.eq.s32.totalorder %s14, 1
    %p32 = por %p30, %p31
    %p33 = scmp.ne.s32.totalorder %s22, %s23
    %p34 = scmp.eq.s32.totalorder %s14, 0
    %p35 = por %p33, %p34
    %p36 = scmp.ne.s32.totalorder %s22, %s23
    %p37 = scmp.eq.s32.totalorder %s15, 1
    %p38 = por %p36, %p37
    %p40 = scmp.ne.s32.totalorder %s23, %s39
    %p41 = scmp.eq.s32.totalorder %s15, 0
    %p42 = por %p40, %p41
    %s44 = sadd.s32 %s43, 1
    %p47 = scmp.eq.s32.totalorder %s9, 1
    %p48 = scmp.ne.s32.totalorder %s43, %s45
    %p49 = scmp.eq.s32.totalorder %s9, 0
    %p50 = por %p48, %p49
    %p51 = scmp.ne.s32.totalorder %s43, %s45
    %p52 = scmp.eq.s32.totalorder %s14, 1
    %p53 = por %p51, %p52
    %p54 = scmp.ne.s32.totalorder %s45, %s46
    %p55 = scmp.eq.s32.totalorder %s14, 0
    %p56 = por %p54, %p55
    %p57 = scmp.ne.s32.totalorder %s45, %s46
    %p58 = scmp.eq.s32.totalorder %s15, 1
    %p59 = por %p57, %p58
    %p61 = scmp.ne.s32.totalorder %s46, %s60
    %p62 = scmp.eq.s32.totalorder %s15, 0
    %p63 = por %p61, %p62
    %s65 = sadd.s32 %s64, 1
    %p68 = scmp.eq.s32.totalorder %s9, 1
    %p69 = scmp.ne.s32.totalorder %s64, %s66
    %p70 = scmp.eq.s32.totalorder %s9, 0
    %p71 = por %p69, %p70
    %p72 = scmp.ne.s32.totalorder %s64, %s66
    %p73 = scmp.eq.s32.totalorder %s14, 1
    %p74 = por %p72, %p73
    %p75 = scmp.ne.s32.totalorder %s66, %s67
    %p76 = scmp.eq.s32.totalorder %s14, 0
    %p77 = por %p75, %p76
    %p78 = scmp.ne.s32.totalorder %s66, %s67
    %p79 = scmp.eq.s32.totalorder %s15, 1
    %p80 = por %p78, %p79
    %p82 = scmp.ne.s32.totalorder %s67, %s81
    %p83 = scmp.eq.s32.totalorder %s15, 0
    %p84 = por %p82, %p83
    %s85 = ssub.s32 %s9, %s16
    %p86 = scmp.eq.s32.totalorder %s85, 0
    %s88 = sadd.s32 %s87, 1
    %s89 = scalar_select %p86, %s87, %s88
    %p92 = pneg %p86
    %p93 = scmp.eq.s32.totalorder %s9, 1
    %p94 = por %p92, %p93
    %p95 = scmp.ne.s32.totalorder %s87, %s90
    %p96 = scmp.eq.s32.totalorder %s9, 0
    %p97 = por %p95, %p96
    %p98 = scmp.ne.s32.totalorder %s87, %s90
    %p99 = scmp.eq.s32.totalorder %s14, 1
    %p100 = por %p98, %p99
    %p101 = scmp.ne.s32.totalorder %s90, %s91
    %p102 = scmp.eq.s32.totalorder %s14, 0
    %p103 = por %p101, %p102
    %p104 = scmp.ne.s32.totalorder %s90, %s91
    %p105 = scmp.eq.s32.totalorder %s15, 1
    %p106 = por %p104, %p105
    %p108 = scmp.ne.s32.totalorder %s91, %s107
    %p109 = scmp.eq.s32.totalorder %s15, 0
    %p110 = por %p108, %p109
    %p111 = scmp.le.s32.totalorder 1, %s9
    %p112 = scmp.lt.s32.totalorder %s9, 3
    %p113 = pnand %p111, %p112
    %p114 = pneg %p113
    // Predicated region
    $region9: #{cnn_forward.6} parent=5 // pred_check
      _
    $region10: #{cnn_forward.6} parent=5 // pred_check_branch
      %116 = sbr.rel (%p113) target = $region12
    $region11: #{cnn_forward.6} parent=5 // pred_region
      %s117 = ssub.s32 %s9, 1
      // Predicated region
      $region13: #{cnn_forward.6} parent=11 // pred_check
        %p118 = pneg %p56
      $region14: #{cnn_forward.6} parent=11 // pred_check_branch
        %120 = sbr.rel (%p118) target = $region16
      $region15: #{cnn_forward.6} parent=11 // pred_region
        _
      $region16: #{cnn_forward.6} parent=11 // pred_fallthru
        _
      // Predicated region
      $region17: #{cnn_forward.6} parent=11 // pred_check
        %p121 = pneg %p77
      $region18: #{cnn_forward.6} parent=11 // pred_check_branch
        %123 = sbr.rel (%p121) target = $region20
      $region19: #{cnn_forward.6} parent=11 // pred_region
        _
      $region20: #{cnn_forward.6} parent=11 // pred_fallthru
        _
    $region12: #{cnn_forward.6} parent=5 // pred_fallthru
      _
    %p124 = scmp.lt.s32.totalorder %s9, 2
    // Predicated region
    $region21: #{cnn_forward.6} parent=5 // pred_check
      %p125 = pneg %p124
    $region22: #{cnn_forward.6} parent=5 // pred_check_branch
      %127 = sbr.rel (%p125) target = $region24
    $region23: #{cnn_forward.6} parent=5 // pred_region
      // Predicated region
      $region25: #{cnn_forward.6} parent=23 // pred_check
        %p128 = pneg %p29
      $region26: #{cnn_forward.6} parent=23 // pred_check_branch
        %130 = sbr.rel (%p128) target = $region28
      $region27: #{cnn_forward.6} parent=23 // pred_region
        %p131 = scmp.lt.s32.totalorder %s9, 1
        %s132 = scalar_select %p131, %s9, 1
        %s133 = smul.addr %s132, 144
        %s134 = smul.addr %s133, 4
        %s135 = scalar_lea.vmem %s0, %s134
      $region28: #{cnn_forward.6} parent=23 // pred_fallthru
        _
    $region24: #{cnn_forward.6} parent=5 // pred_fallthru
      _
    %p136 = scmp.le.s32.totalorder 1, %s9
    %p137 = scmp.lt.s32.totalorder %s9, 3
    %p138 = pnand %p136, %p137
    %p139 = pneg %p138
    // Predicated region
    $region29: #{cnn_forward.6} parent=5 // pred_check
      _
    $region30: #{cnn_forward.6} parent=5 // pred_check_branch
      %141 = sbr.rel (%p138) target = $region32
    $region31: #{cnn_forward.6} parent=5 // pred_region
      %s142 = ssub.s32 %s9, 1
      %p143 = scmp.lt.s32.totalorder %s14, 1
      %s144 = scalar_select %p143, %s14, 1
      %s145 = smul.addr %s144, 144
      %s146 = smul.addr %s145, 4
      %s147 = scalar_lea.vmem %s0, %s146
      %p148 = pneg %p35
      %p149 = pneg %p32
      %p150 = pneg %p56
      %p151 = pneg %p53
      %p152 = pneg %p77
      %p153 = pneg %p74
      %p154 = pneg %p103
      %p155 = pneg %p100
      %p156 = scmp.lt.s32.totalorder %s14, 1
      %s157 = scalar_select %p156, %s14, 1
      %s158 = smul.addr %s157, 8
      %s159 = smul.addr %s158, 8
      %s160 = scalar_lea.vmem %s3, %s159
      %p161 = scmp.lt.s32.totalorder %s14, 1
      %s162 = scalar_select %p161, %s14, 1
      %s163 = smul.addr %s162, 144
      %s164 = smul.addr %s163, 4
      %s165 = scalar_lea.vmem %s0, %s164
      %p166 = scmp.lt.s32.totalorder %s14, 1
      %s167 = scalar_select %p166, %s14, 1
      %s168 = smul.addr %s167, 8
      %s169 = smul.addr %s168, 8
      %s170 = scalar_lea.vmem %s3, %s169
      %v172 = vld [vmem:[%s1] sm:$0xff]
      %v173 = vld [vmem:[%s1 + $0x8] sm:$0xf]
      %v174 = vld [vmem:[%s1 + $0xc] sm:$0xff]
      %v175 = vld [vmem:[%s1 + $0x14] sm:$0xf]
      %v176 = vld [vmem:[%s1 + $0x18] sm:$0xff]
      %v177 = vld [vmem:[%s1 + $0x20] sm:$0xf]
      %v178 = vld [vmem:[%s1 + $0x24] sm:$0xff]
      %v179 = vld [vmem:[%s1 + $0x2c] sm:$0xf]
      %v180 = vld [vmem:[%s1 + $0x30] sm:$0xff]
      %v181 = vld [vmem:[%s1 + $0x38] sm:$0xf]
      %v182 = vld [vmem:[%s1 + $0x3c] sm:$0xff]
      %v183 = vld [vmem:[%s1 + $0x44] sm:$0xf]
      %v184 = vld [vmem:[%s1 + $0x48] sm:$0xff]
      %v185 = vld [vmem:[%s1 + $0x50] sm:$0xf]
      %v186 = vld [vmem:[%s1 + $0x54] sm:$0xff]
      %v187 = vld [vmem:[%s1 + $0x5c] sm:$0xf]
      %v188 = vld [vmem:[%s165] sm:$0xf]
      %v189 = vld [vmem:[%s165 + $0x4] sm:$0xf]
      %v190 = vld [vmem:[%s165 + $0x8] sm:$0xf]
      %v191 = vld [vmem:[%s165 + $0xc] sm:$0xf]
      %v192 = vld [vmem:[%s165 + $0x10] sm:$0xf]
      %v193 = vld [vmem:[%s165 + $0x14] sm:$0xf]
      %v194 = vld [vmem:[%s165 + $0x18] sm:$0xf]
      %v195 = vld [vmem:[%s165 + $0x1c] sm:$0xf]
      %v196 = vld [vmem:[%s165 + $0x20] sm:$0xf]
      %v197 = vld [vmem:[%s165 + $0x24] sm:$0xf]
      %v198 = vld [vmem:[%s165 + $0x28] sm:$0xf]
      %v199 = vld [vmem:[%s165 + $0x2c] sm:$0xf]
      %v200 = vld [vmem:[%s165 + $0x30] sm:$0xf]
      %v201 = vld [vmem:[%s165 + $0x34] sm:$0xf]
      %v202 = vld [vmem:[%s165 + $0x38] sm:$0xf]
      %v203 = vld [vmem:[%s165 + $0x3c] sm:$0xf]
      %v204 = vld [vmem:[%s165 + $0x40] sm:$0xf]
      %v205 = vld [vmem:[%s165 + $0x44] sm:$0xf]
      %v206 = vld [vmem:[%s165 + $0x48] sm:$0xf]
      %v207 = vld [vmem:[%s165 + $0x4c] sm:$0xf]
      %v208 = vld [vmem:[%s165 + $0x50] sm:$0xf]
      %v209 = vld [vmem:[%s165 + $0x54] sm:$0xf]
      %v210 = vld [vmem:[%s165 + $0x58] sm:$0xf]
      %v211 = vld [vmem:[%s165 + $0x5c] sm:$0xf]
      %v212 = vld [vmem:[%s165 + $0x60] sm:$0xf]
      %v213 = vld [vmem:[%s165 + $0x64] sm:$0xf]
      %v214 = vld [vmem:[%s165 + $0x68] sm:$0xf]
      %v215 = vld [vmem:[%s165 + $0x6c] sm:$0xf]
      %v216 = vld [vmem:[%s165 + $0x70] sm:$0xf]
      %v217 = vld [vmem:[%s165 + $0x74] sm:$0xf]
      %v218 = vld [vmem:[%s165 + $0x78] sm:$0xf]
      %v219 = vld [vmem:[%s165 + $0x7c] sm:$0xf]
      %v220 = vld [vmem:[%s165 + $0x80] sm:$0xf]
      %v221 = vld [vmem:[%s165 + $0x84] sm:$0xf]
      %v222 = vld [vmem:[%s165 + $0x88] sm:$0xf]
      %v223 = vld [vmem:[%s165 + $0x8c] sm:$0xf]
      %v240 = vunpack.c.l.b16 %v172
      %v241 = vunpack.c.h.b16 %v172
      %v242 = vunpack.c.l.b16 %v173
      %v243 = vunpack.c.l.b16 %v174
      %v244 = vunpack.c.h.b16 %v174
      %v245 = vunpack.c.l.b16 %v175
      %v246 = vunpack.c.l.b16 %v176
      %v247 = vunpack.c.h.b16 %v176
      %v248 = vunpack.c.l.b16 %v177
      %v249 = vunpack.c.l.b16 %v178
      %v250 = vunpack.c.h.b16 %v178
      %v251 = vunpack.c.l.b16 %v179
      %v252 = vunpack.c.l.b16 %v180
      %v253 = vunpack.c.h.b16 %v180
      %v254 = vunpack.c.l.b16 %v181
      %v255 = vunpack.c.l.b16 %v182
      %v256 = vunpack.c.h.b16 %v182
      %v257 = vunpack.c.l.b16 %v183
      %v258 = vunpack.c.l.b16 %v184
      %v259 = vunpack.c.h.b16 %v184
      %v260 = vunpack.c.l.b16 %v185
      %v261 = vunpack.c.l.b16 %v186
      %v262 = vunpack.c.h.b16 %v186
      %v263 = vunpack.c.l.b16 %v187
      %v264 = vpack.c.b16 %v243, %v240
      %v265 = vpack.c.b16 %v244, %v241
      %v266 = vpack.c.b16 %v245, %v242
      %v267 = vpack.c.b16 %v249, %v246
      %v268 = vpack.c.b16 %v250, %v247
      %v269 = vpack.c.b16 %v251, %v248
      %v270 = vpack.c.b16 %v255, %v252
      %v271 = vpack.c.b16 %v256, %v253
      %v272 = vpack.c.b16 %v257, %v254
      %v273 = vpack.c.b16 %v261, %v258
      %v274 = vpack.c.b16 %v262, %v259
      %v275 = vpack.c.b16 %v263, %v260
      %v320 = vunpack.c.l.b16 %v188
      %v321 = vunpack.c.l.b16 %v189
      %v322 = vunpack.c.l.b16 %v190
      %v323 = vunpack.c.l.b16 %v191
      %v324 = vunpack.c.l.b16 %v192
      %v325 = vunpack.c.l.b16 %v193
      %v326 = vunpack.c.l.b16 %v194
      %v327 = vunpack.c.l.b16 %v195
      %v328 = vunpack.c.l.b16 %v196
      %v329 = vunpack.c.l.b16 %v197
      %v330 = vunpack.c.l.b16 %v198
      %v331 = vunpack.c.l.b16 %v199
      %v332 = vunpack.c.l.b16 %v200
      %v333 = vunpack.c.l.b16 %v201
      %v334 = vunpack.c.l.b16 %v202
      %v335 = vunpack.c.l.b16 %v203
      %v336 = vunpack.c.l.b16 %v204
      %v337 = vunpack.c.l.b16 %v205
      %v338 = vunpack.c.l.b16 %v206
      %v339 = vunpack.c.l.b16 %v207
      %v340 = vunpack.c.l.b16 %v208
      %v341 = vunpack.c.l.b16 %v209
      %v342 = vunpack.c.l.b16 %v210
      %v343 = vunpack.c.l.b16 %v211
      %v344 = vunpack.c.l.b16 %v212
      %v345 = vunpack.c.l.b16 %v213
      %v346 = vunpack.c.l.b16 %v214
      %v347 = vunpack.c.l.b16 %v215
      %v348 = vunpack.c.l.b16 %v216
      %v349 = vunpack.c.l.b16 %v217
      %v350 = vunpack.c.l.b16 %v218
      %v351 = vunpack.c.l.b16 %v219
      %v352 = vunpack.c.l.b16 %v220
      %v353 = vunpack.c.l.b16 %v221
      %v354 = vunpack.c.l.b16 %v222
      %v355 = vunpack.c.l.b16 %v223
      %v356 = vpack.c.b16 %v321, %v320
      %v357 = vpack.c.b16 %v323, %v322
      %v358 = vpack.c.b16 %v325, %v324
      %v359 = vpack.c.b16 %v327, %v326
      %v360 = vpack.c.b16 %v329, %v328
      %v361 = vpack.c.b16 %v331, %v330
      %v362 = vpack.c.b16 %v333, %v332
      %v363 = vpack.c.b16 %v335, %v334
      %v364 = vpack.c.b16 %v337, %v336
      %v365 = vpack.c.b16 %v339, %v338
      %v366 = vpack.c.b16 %v341, %v340
      %v367 = vpack.c.b16 %v343, %v342
      %v368 = vpack.c.b16 %v345, %v344
      %v369 = vpack.c.b16 %v347, %v346
      %v370 = vpack.c.b16 %v349, %v348
      %v371 = vpack.c.b16 %v351, %v350
      %v372 = vpack.c.b16 %v353, %v352
      %v373 = vpack.c.b16 %v355, %v354
      %vm392 = vcmask 261120
      %v394 = vsel %vm392, %v266, 0
      %v397 = vsel %vm392, %v269, 0
      %v400 = vsel %vm392, %v272, 0
      %v403 = vsel %vm392, %v275, 0
      %405 = vmatprep.subr.bf16.mxu0 0
      %406 = vmatpush1.bf16.msra.mxu0 %v356
      %407 = vmatprep.subr.bf16.mxu0 0
      %408 = vmatpush1.bf16.msra.mxu0 %v357
      %409 = vmatprep.subr.bf16.mxu0 0
      %410 = vmatpush1.bf16.msra.mxu0 %v358
      %411 = vmatprep.subr.bf16.mxu0 0
      %412 = vmatpush1.bf16.msra.mxu0 %v359
      %413 = vmatprep.subr.bf16.mxu0 0
      %414 = vmatpush1.bf16.msra.mxu0 %v360
      %415 = vmatprep.subr.bf16.mxu0 0
      %416 = vmatpush1.bf16.msra.mxu0 %v361
      %417 = vmatprep.subr.bf16.mxu0 0
      %418 = vmatpush1.bf16.msra.mxu0 %v362
      %419 = vmatprep.subr.bf16.mxu0 0
      %420 = vmatpush1.bf16.msra.mxu0 %v363
      %421 = vmatprep.subr.bf16.mxu0 0
      %422 = vmatpush1.bf16.msra.mxu0 %v364
      %423 = vmatprep.subr.bf16.mxu0 0
      %424 = vmatpush1.bf16.msra.mxu0 %v365
      %425 = vmatprep.subr.bf16.mxu0 0
      %426 = vmatpush1.bf16.msra.mxu0 %v366
      %427 = vmatprep.subr.bf16.mxu0 0
      %428 = vmatpush1.bf16.msra.mxu0 %v367
      %429 = vmatprep.subr.bf16.mxu0 0
      %430 = vmatpush1.bf16.msra.mxu0 %v368
      %431 = vmatprep.subr.bf16.mxu0 0
      %432 = vmatpush1.bf16.msra.mxu0 %v369
      %433 = vmatprep.subr.bf16.mxu0 0
      %434 = vmatpush1.bf16.msra.mxu0 %v370
      %435 = vmatprep.subr.bf16.mxu0 0
      %436 = vmatpush1.bf16.msra.mxu0 %v371
      %437 = vmatprep.mubr.bf16.mxu0 %v265
      %438 = vmatmul.mubr.bf16.gmra.mrb[0].mxu0 %v264
      %v439 = vpop.f32.mrb[0].mxu0
      %v440 = vadd.f32 0.0, %v439
      %v441 = vpop.f32.mrb[0].mxu0
      %v442 = vpop.f32.mrb[0].mxu0
      %v443 = vadd.f32 0.0, %v442
      %v444 = vpop.f32.mrb[0].mxu0
      %445 = vmatprep.mubr.bf16.mxu0 %v268
      %446 = vmatmul.mubr.bf16.gmra.mrb[0].mxu0 %v267
      %v447 = vpop.f32.mrb[0].mxu0
      %v448 = vadd.f32 0.0, %v447
      %v449 = vpop.f32.mrb[0].mxu0
      %v450 = vpop.f32.mrb[0].mxu0
      %v451 = vadd.f32 0.0, %v450
      %v452 = vpop.f32.mrb[0].mxu0
      %453 = vmatprep.mubr.bf16.mxu0 %v271
      %454 = vmatmul.mubr.bf16.gmra.mrb[0].mxu0 %v270
      %v455 = vpop.f32.mrb[0].mxu0
      %v456 = vadd.f32 0.0, %v455
      %v457 = vpop.f32.mrb[0].mxu0
      %v458 = vpop.f32.mrb[0].mxu0
      %v459 = vadd.f32 0.0, %v458
      %v460 = vpop.f32.mrb[0].mxu0
      %461 = vmatprep.mubr.bf16.mxu0 %v274
      %462 = vmatmul.mubr.bf16.gmra.mrb[0].mxu0 %v273
      %v463 = vpop.f32.mrb[0].mxu0
      %v464 = vadd.f32 0.0, %v463
      %v465 = vpop.f32.mrb[0].mxu0
      %v466 = vpop.f32.mrb[0].mxu0
      %v467 = vadd.f32 0.0, %v466
      %v468 = vpop.f32.mrb[0].mxu0
      %469 = vdwg.mxu0
      %470 = vmatprep.subr.bf16.mxu0 0
      %471 = vmatpush1.bf16.msra.mxu0 %v372
      %472 = vmatprep.subr.bf16.mxu0 0
      %473 = vmatpush1.bf16.msra.mxu0 %v373
      %474 = vmatprep.subr.bf16.mxu0 0
      %475 = vmatpush1.bf16.msra.mxu0 0
      %476 = vmatprep.subr.bf16.mxu0 0
      %477 = vmatpush1.bf16.msra.mxu0 0
      %478 = vmatprep.subr.bf16.mxu0 0
      %479 = vmatpush1.bf16.msra.mxu0 0
      %480 = vmatprep.subr.bf16.mxu0 0
      %481 = vmatpush1.bf16.msra.mxu0 0
      %482 = vmatprep.subr.bf16.mxu0 0
      %483 = vmatpush1.bf16.msra.mxu0 0
      %484 = vmatprep.subr.bf16.mxu0 0
      %485 = vmatpush1.bf16.msra.mxu0 0
      %486 = vmatprep.subr.bf16.mxu0 0
      %487 = vmatpush1.bf16.msra.mxu0 0
      %488 = vmatprep.subr.bf16.mxu0 0
      %489 = vmatpush1.bf16.msra.mxu0 0
      %490 = vmatprep.subr.bf16.mxu0 0
      %491 = vmatpush1.bf16.msra.mxu0 0
      %492 = vmatprep.subr.bf16.mxu0 0
      %493 = vmatpush1.bf16.msra.mxu0 0
      %494 = vmatprep.subr.bf16.mxu0 0
      %495 = vmatpush1.bf16.msra.mxu0 0
      %496 = vmatprep.subr.bf16.mxu0 0
      %497 = vmatpush1.bf16.msra.mxu0 0
      %498 = vmatprep.subr.bf16.mxu0 0
      %499 = vmatpush1.bf16.msra.mxu0 0
      %500 = vmatprep.subr.bf16.mxu0 0
      %501 = vmatpush1.bf16.msra.mxu0 0
      %502 = vmatprep.mubr.bf16.mxu0 0
      %503 = vmatmul.mubr.bf16.gmra.mrb[0].mxu0 %v394
      %v504 = vpop.f32.mrb[0].mxu0
      %v505 = vadd.f32 %v440, %v504
      %v506 = vpop.f32.mrb[0].mxu0
      %v507 = vpop.f32.mrb[0].mxu0
      %v508 = vadd.f32 %v443, %v507
      %v509 = vpop.f32.mrb[0].mxu0
      %510 = vmatprep.mubr.bf16.mxu0 0
      %511 = vmatmul.mubr.bf16.gmra.mrb[0].mxu0 %v397
      %v512 = vpop.f32.mrb[0].mxu0
      %v513 = vadd.f32 %v448, %v512
      %v514 = vpop.f32.mrb[0].mxu0
      %v515 = vpop.f32.mrb[0].mxu0
      %v516 = vadd.f32 %v451, %v515
      %v517 = vpop.f32.mrb[0].mxu0
      %518 = vmatprep.mubr.bf16.mxu0 0
      %519 = vmatmul.mubr.bf16.gmra.mrb[0].mxu0 %v400
      %v520 = vpop.f32.mrb[0].mxu0
      %v521 = vadd.f32 %v456, %v520
      %v522 = vpop.f32.mrb[0].mxu0
      %v523 = vpop.f32.mrb[0].mxu0
      %v524 = vadd.f32 %v459, %v523
      %v525 = vpop.f32.mrb[0].mxu0
      %526 = vmatprep.mubr.bf16.mxu0 0
      %527 = vmatmul.mubr.bf16.gmra.mrb[0].mxu0 %v403
      %v528 = vpop.f32.mrb[0].mxu0
      %v529 = vadd.f32 %v464, %v528
      %v530 = vpop.f32.mrb[0].mxu0
      %v531 = vpop.f32.mrb[0].mxu0
      %v532 = vadd.f32 %v467, %v531
      %v533 = vpop.f32.mrb[0].mxu0
      %534 = vdwg.mxu0
      %s535 = scalar_lea.vmem %s165, 144
      %v536 = vld [vmem:[%s535] sm:$0xf]
      %v537 = vld [vmem:[%s535 + $0x4] sm:$0xf]
      %v538 = vld [vmem:[%s535 + $0x8] sm:$0xf]
      %v539 = vld [vmem:[%s535 + $0xc] sm:$0xf]
      %v540 = vld [vmem:[%s535 + $0x10] sm:$0xf]
      %v541 = vld [vmem:[%s535 + $0x14] sm:$0xf]
      %v542 = vld [vmem:[%s535 + $0x18] sm:$0xf]
      %v543 = vld [vmem:[%s535 + $0x1c] sm:$0xf]
      %v544 = vld [vmem:[%s535 + $0x20] sm:$0xf]
      %v545 = vld [vmem:[%s535 + $0x24] sm:$0xf]
      %v546 = vld [vmem:[%s535 + $0x28] sm:$0xf]
      %v547 = vld [vmem:[%s535 + $0x2c] sm:$0xf]
      %v548 = vld [vmem:[%s535 + $0x30] sm:$0xf]
      %v549 = vld [vmem:[%s535 + $0x34] sm:$0xf]
      %v550 = vld [vmem:[%s535 + $0x38] sm:$0xf]
      %v551 = vld [vmem:[%s535 + $0x3c] sm:$0xf]
      %v552 = vld [vmem:[%s535 + $0x40] sm:$0xf]
      %v553 = vld [vmem:[%s535 + $0x44] sm:$0xf]
      %v554 = vld [vmem:[%s535 + $0x48] sm:$0xf]
      %v555 = vld [vmem:[%s535 + $0x4c] sm:$0xf]
      %v556 = vld [vmem:[%s535 + $0x50] sm:$0xf]
      %v557 = vld [vmem:[%s535 + $0x54] sm:$0xf]
      %v558 = vld [vmem:[%s535 + $0x58] sm:$0xf]
      %v559 = vld [vmem:[%s535 + $0x5c] sm:$0xf]
      %v560 = vld [vmem:[%s535 + $0x60] sm:$0xf]
      %v561 = vld [vmem:[%s535 + $0x64] sm:$0xf]
      %v562 = vld [vmem:[%s535 + $0x68] sm:$0xf]
      %v563 = vld [vmem:[%s535 + $0x6c] sm:$0xf]
      %v564 = vld [vmem:[%s535 + $0x70] sm:$0xf]
      %v565 = vld [vmem:[%s535 + $0x74] sm:$0xf]
      %v566 = vld [vmem:[%s535 + $0x78] sm:$0xf]
      %v567 = vld [vmem:[%s535 + $0x7c] sm:$0xf]
      %v568 = vld [vmem:[%s535 + $0x80] sm:$0xf]
      %v569 = vld [vmem:[%s535 + $0x84] sm:$0xf]
      %v570 = vld [vmem:[%s535 + $0x88] sm:$0xf]
      %v571 = vld [vmem:[%s535 + $0x8c] sm:$0xf]
      %v608 = vunpack.c.l.b16 %v536
      %v609 = vunpack.c.l.b16 %v537
      %v610 = vunpack.c.l.b16 %v538
      %v611 = vunpack.c.l.b16 %v539
      %v612 = vunpack.c.l.b16 %v540
      %v613 = vunpack.c.l.b16 %v541
      %v614 = vunpack.c.l.b16 %v542
      %v615 = vunpack.c.l.b16 %v543
      %v616 = vunpack.c.l.b16 %v544
      %v617 = vunpack.c.l.b16 %v545
      %v618 = vunpack.c.l.b16 %v546
      %v619 = vunpack.c.l.b16 %v547
      %v620 = vunpack.c.l.b16 %v548
      %v621 = vunpack.c.l.b16 %v549
      %v622 = vunpack.c.l.b16 %v550
      %v623 = vunpack.c.l.b16 %v551
      %v624 = vunpack.c.l.b16 %v552
      %v625 = vunpack.c.l.b16 %v553
      %v626 = vunpack.c.l.b16 %v554
      %v627 = vunpack.c.l.b16 %v555
      %v628 = vunpack.c.l.b16 %v556
      %v629 = vunpack.c.l.b16 %v557
      %v630 = vunpack.c.l.b16 %v558
      %v631 = vunpack.c.l.b16 %v559
      %v632 = vunpack.c.l.b16 %v560
      %v633 = vunpack.c.l.b16 %v561
      %v634 = vunpack.c.l.b16 %v562
      %v635 = vunpack.c.l.b16 %v563
      %v636 = vunpack.c.l.b16 %v564
      %v637 = vunpack.c.l.b16 %v565
      %v638 = vunpack.c.l.b16 %v566
      %v639 = vunpack.c.l.b16 %v567
      %v640 = vunpack.c.l.b16 %v568
      %v641 = vunpack.c.l.b16 %v569
      %v642 = vunpack.c.l.b16 %v570
      %v643 = vunpack.c.l.b16 %v571
      %v644 = vpack.c.b16 %v609, %v608
      %v645 = vpack.c.b16 %v611, %v610
      %v646 = vpack.c.b16 %v613, %v612
      %v647 = vpack.c.b16 %v615, %v614
      %v648 = vpack.c.b16 %v617, %v616
      %v649 = vpack.c.b16 %v619, %v618
      %v650 = vpack.c.b16 %v621, %v620
      %v651 = vpack.c.b16 %v623, %v622
      %v652 = vpack.c.b16 %v625, %v624
      %v653 = vpack.c.b16 %v627, %v626
      %v654 = vpack.c.b16 %v629, %v628
      %v655 = vpack.c.b16 %v631, %v630
      %v656 = vpack.c.b16 %v633, %v632
      %v657 = vpack.c.b16 %v635, %v634
      %v658 = vpack.c.b16 %v637, %v636
      %v659 = vpack.c.b16 %v639, %v638
      %v660 = vpack.c.b16 %v641, %v640
      %v661 = vpack.c.b16 %v643, %v642
      %680 = vmatprep.subr.bf16.mxu0 0
      %681 = vmatpush1.bf16.msra.mxu0 %v644
      %682 = vmatprep.subr.bf16.mxu0 0
      %683 = vmatpush1.bf16.msra.mxu0 %v645
      %684 = vmatprep.subr.bf16.mxu0 0
      %685 = vmatpush1.bf16.msra.mxu0 %v646
      %686 = vmatprep.subr.bf16.mxu0 0
      %687 = vmatpush1.bf16.msra.mxu0 %v647
      %688 = vmatprep.subr.bf16.mxu0 0
      %689 = vmatpush1.bf16.msra.mxu0 %v648
      %690 = vmatprep.subr.bf16.mxu0 0
      %691 = vmatpush1.bf16.msra.mxu0 %v649
      %692 = vmatprep.subr.bf16.mxu0 0
      %693 = vmatpush1.bf16.msra.mxu0 %v650
      %694 = vmatprep.subr.bf16.mxu0 0
      %695 = vmatpush1.bf16.msra.mxu0 %v651
      %696 = vmatprep.subr.bf16.mxu0 0
      %697 = vmatpush1.bf16.msra.mxu0 %v652
      %698 = vmatprep.subr.bf16.mxu0 0
      %699 = vmatpush1.bf16.msra.mxu0 %v653
      %700 = vmatprep.subr.bf16.mxu0 0
      %701 = vmatpush1.bf16.msra.mxu0 %v654
      %702 = vmatprep.subr.bf16.mxu0 0
      %703 = vmatpush1.bf16.msra.mxu0 %v655
      %704 = vmatprep.subr.bf16.mxu0 0
      %705 = vmatpush1.bf16.msra.mxu0 %v656
      %706 = vmatprep.subr.bf16.mxu0 0
      %707 = vmatpush1.bf16.msra.mxu0 %v657
      %708 = vmatprep.subr.bf16.mxu0 0
      %709 = vmatpush1.bf16.msra.mxu0 %v658
      %710 = vmatprep.subr.bf16.mxu0 0
      %711 = vmatpush1.bf16.msra.mxu0 %v659
      %712 = vmatprep.mubr.bf16.mxu0 %v265
      %713 = vmatmul.mubr.bf16.gmra.mrb[0].mxu0 %v264
      %v714 = vpop.f32.mrb[0].mxu0
      %v715 = vadd.f32 0.0, %v714
      %v716 = vpop.f32.mrb[0].mxu0
      %v717 = vpop.f32.mrb[0].mxu0
      %v718 = vadd.f32 0.0, %v717
      %v719 = vpop.f32.mrb[0].mxu0
      %720 = vmatprep.mubr.bf16.mxu0 %v268
      %721 = vmatmul.mubr.bf16.gmra.mrb[0].mxu0 %v267
      %v722 = vpop.f32.mrb[0].mxu0
      %v723 = vadd.f32 0.0, %v722
      %v724 = vpop.f32.mrb[0].mxu0
      %v725 = vpop.f32.mrb[0].mxu0
      %v726 = vadd.f32 0.0, %v725
      %v727 = vpop.f32.mrb[0].mxu0
      %728 = vmatprep.mubr.bf16.mxu0 %v271
      %729 = vmatmul.mubr.bf16.gmra.mrb[0].mxu0 %v270
      %v730 = vpop.f32.mrb[0].mxu0
      %v731 = vadd.f32 0.0, %v730
      %v732 = vpop.f32.mrb[0].mxu0
      %v733 = vpop.f32.mrb[0].mxu0
      %v734 = vadd.f32 0.0, %v733
      %v735 = vpop.f32.mrb[0].mxu0
      %736 = vmatprep.mubr.bf16.mxu0 %v274
      %737 = vmatmul.mubr.bf16.gmra.mrb[0].mxu0 %v273
      %v738 = vpop.f32.mrb[0].mxu0
      %v739 = vadd.f32 0.0, %v738
      %v740 = vpop.f32.mrb[0].mxu0
      %v741 = vpop.f32.mrb[0].mxu0
      %v742 = vadd.f32 0.0, %v741
      %v743 = vpop.f32.mrb[0].mxu0
      %744 = vdwg.mxu0
      %745 = vmatprep.subr.bf16.mxu0 0
      %746 = vmatpush1.bf16.msra.mxu0 %v660
      %747 = vmatprep.subr.bf16.mxu0 0
      %748 = vmatpush1.bf16.msra.mxu0 %v661
      %749 = vmatprep.subr.bf16.mxu0 0
      %750 = vmatpush1.bf16.msra.mxu0 0
      %751 = vmatprep.subr.bf16.mxu0 0
      %752 = vmatpush1.bf16.msra.mxu0 0
      %753 = vmatprep.subr.bf16.mxu0 0
      %754 = vmatpush1.bf16.msra.mxu0 0
      %755 = vmatprep.subr.bf16.mxu0 0
      %756 = vmatpush1.bf16.msra.mxu0 0
      %757 = vmatprep.subr.bf16.mxu0 0
      %758 = vmatpush1.bf16.msra.mxu0 0
      %759 = vmatprep.subr.bf16.mxu0 0
      %760 = vmatpush1.bf16.msra.mxu0 0
      %761 = vmatprep.subr.bf16.mxu0 0
      %762 = vmatpush1.bf16.msra.mxu0 0
      %763 = vmatprep.subr.bf16.mxu0 0
      %764 = vmatpush1.bf16.msra.mxu0 0
      %765 = vmatprep.subr.bf16.mxu0 0
      %766 = vmatpush1.bf16.msra.mxu0 0
      %767 = vmatprep.subr.bf16.mxu0 0
      %768 = vmatpush1.bf16.msra.mxu0 0
      %769 = vmatprep.subr.bf16.mxu0 0
      %770 = vmatpush1.bf16.msra.mxu0 0
      %771 = vmatprep.subr.bf16.mxu0 0
      %772 = vmatpush1.bf16.msra.mxu0 0
      %773 = vmatprep.subr.bf16.mxu0 0
      %774 = vmatpush1.bf16.msra.mxu0 0
      %775 = vmatprep.subr.bf16.mxu0 0
      %776 = vmatpush1.bf16.msra.mxu0 0
      %777 = vmatprep.mubr.bf16.mxu0 0
      %778 = vmatmul.mubr.bf16.gmra.mrb[0].mxu0 %v394
      %v779 = vpop.f32.mrb[0].mxu0
      %v780 = vadd.f32 %v715, %v779
      %v781 = vpop.f32.mrb[0].mxu0
      %v782 = vpop.f32.mrb[0].mxu0
      %v783 = vadd.f32 %v718, %v782
      %v784 = vpop.f32.mrb[0].mxu0
      %785 = vmatprep.mubr.bf16.mxu0 0
      %786 = vmatmul.mubr.bf16.gmra.mrb[0].mxu0 %v397
      %v787 = vpop.f32.mrb[0].mxu0
      %v788 = vadd.f32 %v723, %v787
      %v789 = vpop.f32.mrb[0].mxu0
      %v790 = vpop.f32.mrb[0].mxu0
      %v791 = vadd.f32 %v726, %v790
      %v792 = vpop.f32.mrb[0].mxu0
      %793 = vmatprep.mubr.bf16.mxu0 0
      %794 = vmatmul.mubr.bf16.gmra.mrb[0].mxu0 %v400
      %v795 = vpop.f32.mrb[0].mxu0
      %v796 = vadd.f32 %v731, %v795
      %v797 = vpop.f32.mrb[0].mxu0
      %v798 = vpop.f32.mrb[0].mxu0
      %v799 = vadd.f32 %v734, %v798
      %v800 = vpop.f32.mrb[0].mxu0
      %801 = vmatprep.mubr.bf16.mxu0 0
      %802 = vmatmul.mubr.bf16.gmra.mrb[0].mxu0 %v403
      %v803 = vpop.f32.mrb[0].mxu0
      %v804 = vadd.f32 %v739, %v803
      %v805 = vpop.f32.mrb[0].mxu0
      %v806 = vpop.f32.mrb[0].mxu0
      %v807 = vadd.f32 %v742, %v806
      %v808 = vpop.f32.mrb[0].mxu0
      %809 = vdwg.mxu0
      %s810 = scalar_lea.vmem %s165, 288
      %v811 = vld [vmem:[%s810] sm:$0xf]
      %v812 = vld [vmem:[%s810 + $0x4] sm:$0xf]
      %v813 = vld [vmem:[%s810 + $0x8] sm:$0xf]
      %v814 = vld [vmem:[%s810 + $0xc] sm:$0xf]
      %v815 = vld [vmem:[%s810 + $0x10] sm:$0xf]
      %v816 = vld [vmem:[%s810 + $0x14] sm:$0xf]
      %v817 = vld [vmem:[%s810 + $0x18] sm:$0xf]
      %v818 = vld [vmem:[%s810 + $0x1c] sm:$0xf]
      %v819 = vld [vmem:[%s810 + $0x20] sm:$0xf]
      %v820 = vld [vmem:[%s810 + $0x24] sm:$0xf]
      %v821 = vld [vmem:[%s810 + $0x28] sm:$0xf]
      %v822 = vld [vmem:[%s810 + $0x2c] sm:$0xf]
      %v823 = vld [vmem:[%s810 + $0x30] sm:$0xf]
      %v824 = vld [vmem:[%s810 + $0x34] sm:$0xf]
      %v825 = vld [vmem:[%s810 + $0x38] sm:$0xf]
      %v826 = vld [vmem:[%s810 + $0x3c] sm:$0xf]
      %v827 = vld [vmem:[%s810 + $0x40] sm:$0xf]
      %v828 = vld [vmem:[%s810 + $0x44] sm:$0xf]
      %v829 = vld [vmem:[%s810 + $0x48] sm:$0xf]
      %v830 = vld [vmem:[%s810 + $0x4c] sm:$0xf]
      %v831 = vld [vmem:[%s810 + $0x50] sm:$0xf]
      %v832 = vld [vmem:[%s810 + $0x54] sm:$0xf]
      %v833 = vld [vmem:[%s810 + $0x58] sm:$0xf]
      %v834 = vld [vmem:[%s810 + $0x5c] sm:$0xf]
      %v835 = vld [vmem:[%s810 + $0x60] sm:$0xf]
      %v836 = vld [vmem:[%s810 + $0x64] sm:$0xf]
      %v837 = vld [vmem:[%s810 + $0x68] sm:$0xf]
      %v838 = vld [vmem:[%s810 + $0x6c] sm:$0xf]
      %v839 = vld [vmem:[%s810 + $0x70] sm:$0xf]
      %v840 = vld [vmem:[%s810 + $0x74] sm:$0xf]
      %v841 = vld [vmem:[%s810 + $0x78] sm:$0xf]
      %v842 = vld [vmem:[%s810 + $0x7c] sm:$0xf]
      %v843 = vld [vmem:[%s810 + $0x80] sm:$0xf]
      %v844 = vld [vmem:[%s810 + $0x84] sm:$0xf]
      %v845 = vld [vmem:[%s810 + $0x88] sm:$0xf]
      %v846 = vld [vmem:[%s810 + $0x8c] sm:$0xf]
      %v883 = vunpack.c.l.b16 %v811
      %v884 = vunpack.c.l.b16 %v812
      %v885 = vunpack.c.l.b16 %v813
      %v886 = vunpack.c.l.b16 %v814
      %v887 = vunpack.c.l.b16 %v815
      %v888 = vunpack.c.l.b16 %v816
      %v889 = vunpack.c.l.b16 %v817
      %v890 = vunpack.c.l.b16 %v818
      %v891 = vunpack.c.l.b16 %v819
      %v892 = vunpack.c.l.b16 %v820
      %v893 = vunpack.c.l.b16 %v821
      %v894 = vunpack.c.l.b16 %v822
      %v895 = vunpack.c.l.b16 %v823
      %v896 = vunpack.c.l.b16 %v824
      %v897 = vunpack.c.l.b16 %v825
      %v898 = vunpack.c.l.b16 %v826
      %v899 = vunpack.c.l.b16 %v827
      %v900 = vunpack.c.l.b16 %v828
      %v901 = vunpack.c.l.b16 %v829
      %v902 = vunpack.c.l.b16 %v830
      %v903 = vunpack.c.l.b16 %v831
      %v904 = vunpack.c.l.b16 %v832
      %v905 = vunpack.c.l.b16 %v833
      %v906 = vunpack.c.l.b16 %v834
      %v907 = vunpack.c.l.b16 %v835
      %v908 = vunpack.c.l.b16 %v836
      %v909 = vunpack.c.l.b16 %v837
      %v910 = vunpack.c.l.b16 %v838
      %v911 = vunpack.c.l.b16 %v839
      %v912 = vunpack.c.l.b16 %v840
      %v913 = vunpack.c.l.b16 %v841
      %v914 = vunpack.c.l.b16 %v842
      %v915 = vunpack.c.l.b16 %v843
      %v916 = vunpack.c.l.b16 %v844
      %v917 = vunpack.c.l.b16 %v845
      %v918 = vunpack.c.l.b16 %v846
      %v919 = vpack.c.b16 %v884, %v883
      %v920 = vpack.c.b16 %v886, %v885
      %v921 = vpack.c.b16 %v888, %v887
      %v922 = vpack.c.b16 %v890, %v889
      %v923 = vpack.c.b16 %v892, %v891
      %v924 = vpack.c.b16 %v894, %v893
      %v925 = vpack.c.b16 %v896, %v895
      %v926 = vpack.c.b16 %v898, %v897
      %v927 = vpack.c.b16 %v900, %v899
      %v928 = vpack.c.b16 %v902, %v901
      %v929 = vpack.c.b16 %v904, %v903
      %v930 = vpack.c.b16 %v906, %v905
      %v931 = vpack.c.b16 %v908, %v907
      %v932 = vpack.c.b16 %v910, %v909
      %v933 = vpack.c.b16 %v912, %v911
      %v934 = vpack.c.b16 %v914, %v913
      %v935 = vpack.c.b16 %v916, %v915
      %v936 = vpack.c.b16 %v918, %v917
      %955 = vmatprep.subr.bf16.mxu0 0
      %956 = vmatpush1.bf16.msra.mxu0 %v919
      %957 = vmatprep.subr.bf16.mxu0 0
      %958 = vmatpush1.bf16.msra.mxu0 %v920
      %959 = vmatprep.subr.bf16.mxu0 0
      %960 = vmatpush1.bf16.msra.mxu0 %v921
      %961 = vmatprep.subr.bf16.mxu0 0
      %962 = vmatpush1.bf16.msra.mxu0 %v922
      %963 = vmatprep.subr.bf16.mxu0 0
      %964 = vmatpush1.bf16.msra.mxu0 %v923
      %965 = vmatprep.subr.bf16.mxu0 0
      %966 = vmatpush1.bf16.msra.mxu0 %v924
      %967 = vmatprep.subr.bf16.mxu0 0
      %968 = vmatpush1.bf16.msra.mxu0 %v925
      %969 = vmatprep.subr.bf16.mxu0 0
      %970 = vmatpush1.bf16.msra.mxu0 %v926
      %971 = vmatprep.subr.bf16.mxu0 0
      %972 = vmatpush1.bf16.msra.mxu0 %v927
      %973 = vmatprep.subr.bf16.mxu0 0
      %974 = vmatpush1.bf16.msra.mxu0 %v928
      %975 = vmatprep.subr.bf16.mxu0 0
      %976 = vmatpush1.bf16.msra.mxu0 %v929
      %977 = vmatprep.subr.bf16.mxu0 0
      %978 = vmatpush1.bf16.msra.mxu0 %v930
      %979 = vmatprep.subr.bf16.mxu0 0
      %980 = vmatpush1.bf16.msra.mxu0 %v931
      %981 = vmatprep.subr.bf16.mxu0 0
      %982 = vmatpush1.bf16.msra.mxu0 %v932
      %983 = vmatprep.subr.bf16.mxu0 0
      %984 = vmatpush1.bf16.msra.mxu0 %v933
      %985 = vmatprep.subr.bf16.mxu0 0
      %986 = vmatpush1.bf16.msra.mxu0 %v934
      %987 = vmatprep.mubr.bf16.mxu0 %v265
      %988 = vmatmul.mubr.bf16.gmra.mrb[0].mxu0 %v264
      %v989 = vpop.f32.mrb[0].mxu0
      %v990 = vadd.f32 0.0, %v989
      %v991 = vpop.f32.mrb[0].mxu0
      %v992 = vpop.f32.mrb[0].mxu0
      %v993 = vadd.f32 0.0, %v992
      %v994 = vpop.f32.mrb[0].mxu0
      %995 = vmatprep.mubr.bf16.mxu0 %v268
      %996 = vmatmul.mubr.bf16.gmra.mrb[0].mxu0 %v267
      %v997 = vpop.f32.mrb[0].mxu0
      %v998 = vadd.f32 0.0, %v997
      %v999 = vpop.f32.mrb[0].mxu0
      %v1000 = vpop.f32.mrb[0].mxu0
      %v1001 = vadd.f32 0.0, %v1000
      %v1002 = vpop.f32.mrb[0].mxu0
      %1003 = vmatprep.mubr.bf16.mxu0 %v271
      %1004 = vmatmul.mubr.bf16.gmra.mrb[0].mxu0 %v270
      %v1005 = vpop.f32.mrb[0].mxu0
      %v1006 = vadd.f32 0.0, %v1005
      %v1007 = vpop.f32.mrb[0].mxu0
      %v1008 = vpop.f32.mrb[0].mxu0
      %v1009 = vadd.f32 0.0, %v1008
      %v1010 = vpop.f32.mrb[0].mxu0
      %1011 = vmatprep.mubr.bf16.mxu0 %v274
      %1012 = vmatmul.mubr.bf16.gmra.mrb[0].mxu0 %v273
      %v1013 = vpop.f32.mrb[0].mxu0
      %v1014 = vadd.f32 0.0, %v1013
      %v1015 = vpop.f32.mrb[0].mxu0
      %v1016 = vpop.f32.mrb[0].mxu0
      %v1017 = vadd.f32 0.0, %v1016
      %v1018 = vpop.f32.mrb[0].mxu0
      %1019 = vdwg.mxu0
      %1020 = vmatprep.subr.bf16.mxu0 0
      %1021 = vmatpush1.bf16.msra.mxu0 %v935
      %1022 = vmatprep.subr.bf16.mxu0 0
      %1023 = vmatpush1.bf16.msra.mxu0 %v936
      %1024 = vmatprep.subr.bf16.mxu0 0
      %1025 = vmatpush1.bf16.msra.mxu0 0
      %1026 = vmatprep.subr.bf16.mxu0 0
      %1027 = vmatpush1.bf16.msra.mxu0 0
      %1028 = vmatprep.subr.bf16.mxu0 0
      %1029 = vmatpush1.bf16.msra.mxu0 0
      %1030 = vmatprep.subr.bf16.mxu0 0
      %1031 = vmatpush1.bf16.msra.mxu0 0
      %1032 = vmatprep.subr.bf16.mxu0 0
      %1033 = vmatpush1.bf16.msra.mxu0 0
      %1034 = vmatprep.subr.bf16.mxu0 0
      %1035 = vmatpush1.bf16.msra.mxu0 0
      %1036 = vmatprep.subr.bf16.mxu0 0
      %1037 = vmatpush1.bf16.msra.mxu0 0
      %1038 = vmatprep.subr.bf16.mxu0 0
      %1039 = vmatpush1.bf16.msra.mxu0 0
      %1040 = vmatprep.subr.bf16.mxu0 0
      %1041 = vmatpush1.bf16.msra.mxu0 0
      %1042 = vmatprep.subr.bf16.mxu0 0
      %1043 = vmatpush1.bf16.msra.mxu0 0
      %1044 = vmatprep.subr.bf16.mxu0 0
      %1045 = vmatpush1.bf16.msra.mxu0 0
      %1046 = vmatprep.subr.bf16.mxu0 0
      %1047 = vmatpush1.bf16.msra.mxu0 0
      %1048 = vmatprep.subr.bf16.mxu0 0
      %1049 = vmatpush1.bf16.msra.mxu0 0
      %1050 = vmatprep.subr.bf16.mxu0 0
      %1051 = vmatpush1.bf16.msra.mxu0 0
      %1052 = vmatprep.mubr.bf16.mxu0 0
      %1053 = vmatmul.mubr.bf16.gmra.mrb[0].mxu0 %v394
      %v1054 = vpop.f32.mrb[0].mxu0
      %v1055 = vadd.f32 %v990, %v1054
      %v1056 = vpop.f32.mrb[0].mxu0
      %v1057 = vpop.f32.mrb[0].mxu0
      %v1058 = vadd.f32 %v993, %v1057
      %v1059 = vpop.f32.mrb[0].mxu0
      %1060 = vmatprep.mubr.bf16.mxu0 0
      %1061 = vmatmul.mubr.bf16.gmra.mrb[0].mxu0 %v397
      %v1062 = vpop.f32.mrb[0].mxu0
      %v1063 = vadd.f32 %v998, %v1062
      %v1064 = vpop.f32.mrb[0].mxu0
      %v1065 = vpop.f32.mrb[0].mxu0
      %v1066 = vadd.f32 %v1001, %v1065
      %v1067 = vpop.f32.mrb[0].mxu0
      %1068 = vmatprep.mubr.bf16.mxu0 0
      %1069 = vmatmul.mubr.bf16.gmra.mrb[0].mxu0 %v400
      %v1070 = vpop.f32.mrb[0].mxu0
      %v1071 = vadd.f32 %v1006, %v1070
      %v1072 = vpop.f32.mrb[0].mxu0
      %v1073 = vpop.f32.mrb[0].mxu0
      %v1074 = vadd.f32 %v1009, %v1073
      %v1075 = vpop.f32.mrb[0].mxu0
      %1076 = vmatprep.mubr.bf16.mxu0 0
      %1077 = vmatmul.mubr.bf16.gmra.mrb[0].mxu0 %v403
      %v1078 = vpop.f32.mrb[0].mxu0
      %v1079 = vadd.f32 %v1014, %v1078
      %v1080 = vpop.f32.mrb[0].mxu0
      %v1081 = vpop.f32.mrb[0].mxu0
      %v1082 = vadd.f32 %v1017, %v1081
      %v1083 = vpop.f32.mrb[0].mxu0
      %1084 = vdwg.mxu0
      %s1085 = scalar_lea.vmem %s165, 432
      %v1086 = vld [vmem:[%s1085] sm:$0xf]
      %v1087 = vld [vmem:[%s1085 + $0x4] sm:$0xf]
      %v1088 = vld [vmem:[%s1085 + $0x8] sm:$0xf]
      %v1089 = vld [vmem:[%s1085 + $0xc] sm:$0xf]
      %v1090 = vld [vmem:[%s1085 + $0x10] sm:$0xf]
      %v1091 = vld [vmem:[%s1085 + $0x14] sm:$0xf]
      %v1092 = vld [vmem:[%s1085 + $0x18] sm:$0xf]
      %v1093 = vld [vmem:[%s1085 + $0x1c] sm:$0xf]
      %v1094 = vld [vmem:[%s1085 + $0x20] sm:$0xf]
      %v1095 = vld [vmem:[%s1085 + $0x24] sm:$0xf]
      %v1096 = vld [vmem:[%s1085 + $0x28] sm:$0xf]
      %v1097 = vld [vmem:[%s1085 + $0x2c] sm:$0xf]
      %v1098 = vld [vmem:[%s1085 + $0x30] sm:$0xf]
      %v1099 = vld [vmem:[%s1085 + $0x34] sm:$0xf]
      %v1100 = vld [vmem:[%s1085 + $0x38] sm:$0xf]
      %v1101 = vld [vmem:[%s1085 + $0x3c] sm:$0xf]
      %v1102 = vld [vmem:[%s1085 + $0x40] sm:$0xf]
      %v1103 = vld [vmem:[%s1085 + $0x44] sm:$0xf]
      %v1104 = vld [vmem:[%s1085 + $0x48] sm:$0xf]
      %v1105 = vld [vmem:[%s1085 + $0x4c] sm:$0xf]
      %v1106 = vld [vmem:[%s1085 + $0x50] sm:$0xf]
      %v1107 = vld [vmem:[%s1085 + $0x54] sm:$0xf]
      %v1108 = vld [vmem:[%s1085 + $0x58] sm:$0xf]
      %v1109 = vld [vmem:[%s1085 + $0x5c] sm:$0xf]
      %v1110 = vld [vmem:[%s1085 + $0x60] sm:$0xf]
      %v1111 = vld [vmem:[%s1085 + $0x64] sm:$0xf]
      %v1112 = vld [vmem:[%s1085 + $0x68] sm:$0xf]
      %v1113 = vld [vmem:[%s1085 + $0x6c] sm:$0xf]
      %v1114 = vld [vmem:[%s1085 + $0x70] sm:$0xf]
      %v1115 = vld [vmem:[%s1085 + $0x74] sm:$0xf]
      %v1116 = vld [vmem:[%s1085 + $0x78] sm:$0xf]
      %v1117 = vld [vmem:[%s1085 + $0x7c] sm:$0xf]
      %v1118 = vld [vmem:[%s1085 + $0x80] sm:$0xf]
      %v1119 = vld [vmem:[%s1085 + $0x84] sm:$0xf]
      %v1120 = vld [vmem:[%s1085 + $0x88] sm:$0xf]
      %v1121 = vld [vmem:[%s1085 + $0x8c] sm:$0xf]
      %v1158 = vunpack.c.l.b16 %v1086
      %v1159 = vunpack.c.l.b16 %v1087
      %v1160 = vunpack.c.l.b16 %v1088
      %v1161 = vunpack.c.l.b16 %v1089
      %v1162 = vunpack.c.l.b16 %v1090
      %v1163 = vunpack.c.l.b16 %v1091
      %v1164 = vunpack.c.l.b16 %v1092
      %v1165 = vunpack.c.l.b16 %v1093
      %v1166 = vunpack.c.l.b16 %v1094
      %v1167 = vunpack.c.l.b16 %v1095
      %v1168 = vunpack.c.l.b16 %v1096
      %v1169 = vunpack.c.l.b16 %v1097
      %v1170 = vunpack.c.l.b16 %v1098
      %v1171 = vunpack.c.l.b16 %v1099
      %v1172 = vunpack.c.l.b16 %v1100
      %v1173 = vunpack.c.l.b16 %v1101
      %v1174 = vunpack.c.l.b16 %v1102
      %v1175 = vunpack.c.l.b16 %v1103
      %v1176 = vunpack.c.l.b16 %v1104
      %v1177 = vunpack.c.l.b16 %v1105
      %v1178 = vunpack.c.l.b16 %v1106
      %v1179 = vunpack.c.l.b16 %v1107
      %v1180 = vunpack.c.l.b16 %v1108
      %v1181 = vunpack.c.l.b16 %v1109
      %v1182 = vunpack.c.l.b16 %v1110
      %v1183 = vunpack.c.l.b16 %v1111
      %v1184 = vunpack.c.l.b16 %v1112
      %v1185 = vunpack.c.l.b16 %v1113
      %v1186 = vunpack.c.l.b16 %v1114
      %v1187 = vunpack.c.l.b16 %v1115
      %v1188 = vunpack.c.l.b16 %v1116
      %v1189 = vunpack.c.l.b16 %v1117
      %v1190 = vunpack.c.l.b16 %v1118
      %v1191 = vunpack.c.l.b16 %v1119
      %v1192 = vunpack.c.l.b16 %v1120
      %v1193 = vunpack.c.l.b16 %v1121
      %v1194 = vpack.c.b16 %v1159, %v1158
      %v1195 = vpack.c.b16 %v1161, %v1160
      %v1196 = vpack.c.b16 %v1163, %v1162
      %v1197 = vpack.c.b16 %v1165, %v1164
      %v1198 = vpack.c.b16 %v1167, %v1166
      %v1199 = vpack.c.b16 %v1169, %v1168
      %v1200 = vpack.c.b16 %v1171, %v1170
      %v1201 = vpack.c.b16 %v1173, %v1172
      %v1202 = vpack.c.b16 %v1175, %v1174
      %v1203 = vpack.c.b16 %v1177, %v1176
      %v1204 = vpack.c.b16 %v1179, %v1178
      %v1205 = vpack.c.b16 %v1181, %v1180
      %v1206 = vpack.c.b16 %v1183, %v1182
      %v1207 = vpack.c.b16 %v1185, %v1184
      %v1208 = vpack.c.b16 %v1187, %v1186
      %v1209 = vpack.c.b16 %v1189, %v1188
      %v1210 = vpack.c.b16 %v1191, %v1190
      %v1211 = vpack.c.b16 %v1193, %v1192
      %1230 = vmatprep.subr.bf16.mxu0 0
      %1231 = vmatpush1.bf16.msra.mxu0 %v1194
      %1232 = vmatprep.subr.bf16.mxu0 0
      %1233 = vmatpush1.bf16.msra.mxu0 %v1195
      %1234 = vmatprep.subr.bf16.mxu0 0
      %1235 = vmatpush1.bf16.msra.mxu0 %v1196
      %1236 = vmatprep.subr.bf16.mxu0 0
      %1237 = vmatpush1.bf16.msra.mxu0 %v1197
      %1238 = vmatprep.subr.bf16.mxu0 0
      %1239 = vmatpush1.bf16.msra.mxu0 %v1198
      %1240 = vmatprep.subr.bf16.mxu0 0
      %1241 = vmatpush1.bf16.msra.mxu0 %v1199
      %1242 = vmatprep.subr.bf16.mxu0 0
      %1243 = vmatpush1.bf16.msra.mxu0 %v1200
      %1244 = vmatprep.subr.bf16.mxu0 0
      %1245 = vmatpush1.bf16.msra.mxu0 %v1201
      %1246 = vmatprep.subr.bf16.mxu0 0
      %1247 = vmatpush1.bf16.msra.mxu0 %v1202
      %1248 = vmatprep.subr.bf16.mxu0 0
      %1249 = vmatpush1.bf16.msra.mxu0 %v1203
      %1250 = vmatprep.subr.bf16.mxu0 0
      %1251 = vmatpush1.bf16.msra.mxu0 %v1204
      %1252 = vmatprep.subr.bf16.mxu0 0
      %1253 = vmatpush1.bf16.msra.mxu0 %v1205
      %1254 = vmatprep.subr.bf16.mxu0 0
      %1255 = vmatpush1.bf16.msra.mxu0 %v1206
      %1256 = vmatprep.subr.bf16.mxu0 0
      %1257 = vmatpush1.bf16.msra.mxu0 %v1207
      %1258 = vmatprep.subr.bf16.mxu0 0
      %1259 = vmatpush1.bf16.msra.mxu0 %v1208
      %1260 = vmatprep.subr.bf16.mxu0 0
      %1261 = vmatpush1.bf16.msra.mxu0 %v1209
      %1262 = vmatprep.mubr.bf16.mxu0 %v265
      %1263 = vmatmul.mubr.bf16.gmra.mrb[0].mxu0 %v264
      %v1264 = vpop.f32.mrb[0].mxu0
      %v1265 = vadd.f32 0.0, %v1264
      %v1266 = vpop.f32.mrb[0].mxu0
      %v1267 = vpop.f32.mrb[0].mxu0
      %v1268 = vadd.f32 0.0, %v1267
      %v1269 = vpop.f32.mrb[0].mxu0
      %1270 = vmatprep.mubr.bf16.mxu0 %v268
      %1271 = vmatmul.mubr.bf16.gmra.mrb[0].mxu0 %v267
      %v1272 = vpop.f32.mrb[0].mxu0
      %v1273 = vadd.f32 0.0, %v1272
      %v1274 = vpop.f32.mrb[0].mxu0
      %v1275 = vpop.f32.mrb[0].mxu0
      %v1276 = vadd.f32 0.0, %v1275
      %v1277 = vpop.f32.mrb[0].mxu0
      %1278 = vmatprep.mubr.bf16.mxu0 %v271
      %1279 = vmatmul.mubr.bf16.gmra.mrb[0].mxu0 %v270
      %v1280 = vpop.f32.mrb[0].mxu0
      %v1281 = vadd.f32 0.0, %v1280
      %v1282 = vpop.f32.mrb[0].mxu0
      %v1283 = vpop.f32.mrb[0].mxu0
      %v1284 = vadd.f32 0.0, %v1283
      %v1285 = vpop.f32.mrb[0].mxu0
      %1286 = vmatprep.mubr.bf16.mxu0 %v274
      %1287 = vmatmul.mubr.bf16.gmra.mrb[0].mxu0 %v273
      %v1288 = vpop.f32.mrb[0].mxu0
      %v1289 = vadd.f32 0.0, %v1288
      %v1290 = vpop.f32.mrb[0].mxu0
      %v1291 = vpop.f32.mrb[0].mxu0
      %v1292 = vadd.f32 0.0, %v1291
      %v1293 = vpop.f32.mrb[0].mxu0
      %1294 = vdwg.mxu0
      %1295 = vmatprep.subr.bf16.mxu0 0
      %1296 = vmatpush1.bf16.msra.mxu0 %v1210
      %1297 = vmatprep.subr.bf16.mxu0 0
      %1298 = vmatpush1.bf16.msra.mxu0 %v1211
      %1299 = vmatprep.subr.bf16.mxu0 0
      %1300 = vmatpush1.bf16.msra.mxu0 0
      %1301 = vmatprep.subr.bf16.mxu0 0
      %1302 = vmatpush1.bf16.msra.mxu0 0
      %1303 = vmatprep.subr.bf16.mxu0 0
      %1304 = vmatpush1.bf16.msra.mxu0 0
      %1305 = vmatprep.subr.bf16.mxu0 0
      %1306 = vmatpush1.bf16.msra.mxu0 0
      %1307 = vmatprep.subr.bf16.mxu0 0
      %1308 = vmatpush1.bf16.msra.mxu0 0
      %1309 = vmatprep.subr.bf16.mxu0 0
      %1310 = vmatpush1.bf16.msra.mxu0 0
      %1311 = vmatprep.subr.bf16.mxu0 0
      %1312 = vmatpush1.bf16.msra.mxu0 0
      %1313 = vmatprep.subr.bf16.mxu0 0
      %1314 = vmatpush1.bf16.msra.mxu0 0
      %1315 = vmatprep.subr.bf16.mxu0 0
      %1316 = vmatpush1.bf16.msra.mxu0 0
      %1317 = vmatprep.subr.bf16.mxu0 0
      %1318 = vmatpush1.bf16.msra.mxu0 0
      %1319 = vmatprep.subr.bf16.mxu0 0
      %1320 = vmatpush1.bf16.msra.mxu0 0
      %1321 = vmatprep.subr.bf16.mxu0 0
      %1322 = vmatpush1.bf16.msra.mxu0 0
      %1323 = vmatprep.subr.bf16.mxu0 0
      %1324 = vmatpush1.bf16.msra.mxu0 0
      %1325 = vmatprep.subr.bf16.mxu0 0
      %1326 = vmatpush1.bf16.msra.mxu0 0
      %1327 = vmatprep.mubr.bf16.mxu0 0
      %1328 = vmatmul.mubr.bf16.gmra.mrb[0].mxu0 %v394
      %v1329 = vpop.f32.mrb[0].mxu0
      %v1330 = vadd.f32 %v1265, %v1329
      %v1331 = vpop.f32.mrb[0].mxu0
      %v1332 = vpop.f32.mrb[0].mxu0
      %v1333 = vadd.f32 %v1268, %v1332
      %v1334 = vpop.f32.mrb[0].mxu0
      %1335 = vmatprep.mubr.bf16.mxu0 0
      %1336 = vmatmul.mubr.bf16.gmra.mrb[0].mxu0 %v397
      %v1337 = vpop.f32.mrb[0].mxu0
      %v1338 = vadd.f32 %v1273, %v1337
      %v1339 = vpop.f32.mrb[0].mxu0
      %v1340 = vpop.f32.mrb[0].mxu0
      %v1341 = vadd.f32 %v1276, %v1340
      %v1342 = vpop.f32.mrb[0].mxu0
      %1343 = vmatprep.mubr.bf16.mxu0 0
      %1344 = vmatmul.mubr.bf16.gmra.mrb[0].mxu0 %v400
      %v1345 = vpop.f32.mrb[0].mxu0
      %v1346 = vadd.f32 %v1281, %v1345
      %v1347 = vpop.f32.mrb[0].mxu0
      %v1348 = vpop.f32.mrb[0].mxu0
      %v1349 = vadd.f32 %v1284, %v1348
      %v1350 = vpop.f32.mrb[0].mxu0
      %1351 = vmatprep.mubr.bf16.mxu0 0
      %1352 = vmatmul.mubr.bf16.gmra.mrb[0].mxu0 %v403
      %v1353 = vpop.f32.mrb[0].mxu0
      %v1354 = vadd.f32 %v1289, %v1353
      %v1355 = vpop.f32.mrb[0].mxu0
      %v1356 = vpop.f32.mrb[0].mxu0
      %v1357 = vadd.f32 %v1292, %v1356
      %v1358 = vpop.f32.mrb[0].mxu0
      %1359 = vdwg.mxu0
      %v1360 = vmax.f32 %v505, %v780
      %v1361 = vmax.f32 %v508, %v783
      %v1362 = vmax.f32 %v513, %v788
      %v1363 = vmax.f32 %v516, %v791
      %v1364 = vmax.f32 %v521, %v796
      %v1365 = vmax.f32 %v524, %v799
      %v1366 = vmax.f32 %v529, %v804
      %v1367 = vmax.f32 %v532, %v807
      %v1368 = vmax.f32 %v1055, %v1330
      %v1369 = vmax.f32 %v1058, %v1333
      %v1370 = vmax.f32 %v1063, %v1338
      %v1371 = vmax.f32 %v1066, %v1341
      %v1372 = vmax.f32 %v1071, %v1346
      %v1373 = vmax.f32 %v1074, %v1349
      %v1374 = vmax.f32 %v1079, %v1354
      %v1375 = vmax.f32 %v1082, %v1357
      %v1376 = vmax.f32 %v1360, %v1368
      %v1377 = vmax.f32 %v1361, %v1369
      %v1378 = vmax.f32 %v1362, %v1370
      %v1379 = vmax.f32 %v1363, %v1371
      %v1380 = vmax.f32 %v1364, %v1372
      %v1381 = vmax.f32 %v1365, %v1373
      %v1382 = vmax.f32 %v1366, %v1374
      %v1383 = vmax.f32 %v1367, %v1375
      %v1384 = vld [vmem:[%s2] sm:$0xff]
      %v1385 = vld [vmem:[%s2 + $0x8] sm:$0xff]
      %v1386 = vld [vmem:[%s2 + $0x10] sm:$0xff]
      %v1387 = vld [vmem:[%s2 + $0x18] sm:$0xff]
      %v1388 = vld [vmem:[%s2 + $0x20] sm:$0xff]
      %v1389 = vld [vmem:[%s2 + $0x28] sm:$0xff]
      %v1390 = vld [vmem:[%s2 + $0x30] sm:$0xff]
      %v1391 = vld [vmem:[%s2 + $0x38] sm:$0xff]
      %1393 = vset.pattern.permute.xlu0 0
      %1394 = vperm.xlu0 %1393, %v1384
      %v1395 = vpop.permute.xlu0 %1394
      %1398 = vset.pattern.permute.xlu0 0
      %1399 = vperm.xlu0 %1398, %v1385
      %v1400 = vpop.permute.xlu0 %1399
      %1403 = vset.pattern.permute.xlu0 0
      %1404 = vperm.xlu0 %1403, %v1386
      %v1405 = vpop.permute.xlu0 %1404
      %1408 = vset.pattern.permute.xlu0 0
      %1409 = vperm.xlu0 %1408, %v1387
      %v1410 = vpop.permute.xlu0 %1409
      %1413 = vset.pattern.permute.xlu0 0
      %1414 = vperm.xlu0 %1413, %v1388
      %v1415 = vpop.permute.xlu0 %1414
      %1418 = vset.pattern.permute.xlu0 0
      %1419 = vperm.xlu0 %1418, %v1389
      %v1420 = vpop.permute.xlu0 %1419
      %1423 = vset.pattern.permute.xlu0 0
      %1424 = vperm.xlu0 %1423, %v1390
      %v1425 = vpop.permute.xlu0 %1424
      %1428 = vset.pattern.permute.xlu0 0
      %1429 = vperm.xlu0 %1428, %v1391
      %v1430 = vpop.permute.xlu0 %1429
      %v1432 = vadd.f32 %v1376, %v1395
      %v1433 = vadd.f32 %v1377, %v1400
      %v1434 = vadd.f32 %v1378, %v1405
      %v1435 = vadd.f32 %v1379, %v1410
      %v1436 = vadd.f32 %v1380, %v1415
      %v1437 = vadd.f32 %v1381, %v1420
      %v1438 = vadd.f32 %v1382, %v1425
      %v1439 = vadd.f32 %v1383, %v1430
      %v1440 = vmax.f32 %v1432, 0.0
      %v1441 = vmax.f32 %v1433, 0.0
      %v1442 = vmax.f32 %v1434, 0.0
      %v1443 = vmax.f32 %v1435, 0.0
      %v1444 = vmax.f32 %v1436, 0.0
      %v1445 = vmax.f32 %v1437, 0.0
      %v1446 = vmax.f32 %v1438, 0.0
      %v1447 = vmax.f32 %v1439, 0.0
      %vm1448 = vcmask 72704
      %1449 = vst.msk [vmem:[%s170] sm:$0xff] %vm1448, %v1440
      %1450 = vst.msk [vmem:[%s170 + $0x8] sm:$0xff] %vm1448, %v1441
      %1451 = vst.msk [vmem:[%s170 + $0x10] sm:$0xff] %vm1448, %v1442
      %1452 = vst.msk [vmem:[%s170 + $0x18] sm:$0xff] %vm1448, %v1443
      %1453 = vst.msk [vmem:[%s170 + $0x20] sm:$0xff] %vm1448, %v1444
      %1454 = vst.msk [vmem:[%s170 + $0x28] sm:$0xff] %vm1448, %v1445
      %1455 = vst.msk [vmem:[%s170 + $0x30] sm:$0xff] %vm1448, %v1446
      %1456 = vst.msk [vmem:[%s170 + $0x38] sm:$0xff] %vm1448, %v1447
      %p1457 = scmp.lt.s32.totalorder %s14, 1
      %s1458 = scalar_select %p1457, %s14, 1
      %s1459 = smul.addr %s1458, 8
      %s1460 = smul.addr %s1459, 8
      %s1461 = scalar_lea.vmem %s3, %s1460
      // Predicated region
      $region33: #{cnn_forward.6} parent=31 // pred_check
        %p1462 = pneg %p100
      $region34: #{cnn_forward.6} parent=31 // pred_check_branch
        %1464 = sbr.rel (%p1462) target = $region36
      $region35: #{cnn_forward.6} parent=31 // pred_region
        _
      $region36: #{cnn_forward.6} parent=31 // pred_fallthru
        _
    $region32: #{cnn_forward.6} parent=5 // pred_fallthru
      _
    %p1465 = scmp.le.s32.totalorder 2, %s9
    // Predicated region
    $region37: #{cnn_forward.6} parent=5 // pred_check
      %p1466 = pneg %p1465
    $region38: #{cnn_forward.6} parent=5 // pred_check_branch
      %1468 = sbr.rel (%p1466) target = $region40
    $region39: #{cnn_forward.6} parent=5 // pred_region
      %s1469 = ssub.s32 %s9, 2
      // Predicated region
      $region41: #{cnn_forward.6} parent=39 // pred_check
        %p1470 = pneg %p106
      $region42: #{cnn_forward.6} parent=39 // pred_check_branch
        %1472 = sbr.rel (%p1470) target = $region44
      $region43: #{cnn_forward.6} parent=39 // pred_region
        %p1473 = scmp.lt.s32.totalorder %s15, 1
        %s1474 = scalar_select %p1473, %s15, 1
        %s1475 = smul.addr %s1474, 8
        %s1476 = smul.addr %s1475, 8
        %s1477 = scalar_lea.vmem %s3, %s1476
      $region44: #{cnn_forward.6} parent=39 // pred_fallthru
        _
    $region40: #{cnn_forward.6} parent=5 // pred_fallthru
      _
  $region6: #{cnn_forward.6} parent=0 // loop_footer
    %s13 = sadd.s32 1, %s9
  $region7: #{cnn_forward.6} parent=0 // loop_footer_branch
    %8 = sbr.rel target = $region3
  $region8: #{cnn_forward.6} parent=0 // loop_exit
    _

// kernel: cnn_forward.7
$region0: #{cnn_forward.7}
  #allocation0 [shape = 'u32[]', space=smem, size = 0x4, offset = 0x4, fixed_abs, tag = 'smem constant byte address 0x4 - core index']
  #allocation1 [shape = 'u32[144,128]{1,0:T(1,128)}', space=vmem, size = 0x12000, scoped, tag = 'internal scratch']
  %s0 = inlined_call_operand.vmem [shape: f32[2,576], index: 0, kind: input, shape index: {}]
  %s1 = inlined_call_operand.vmem [shape: f32[576,10], index: 1, kind: input, shape index: {}]
  %s2 = inlined_call_operand.vmem [shape: f32[1,10], index: 2, kind: input, shape index: {}]
  %s3 = inlined_call_operand.vmem [shape: f32[10,2], index: 3, kind: input, shape index: {}]
  %s4 = inlined_call_operand.vmem [shape: f32[1,2], index: 4, kind: input, shape index: {}]
  %s5 = inlined_call_operand.hbm [shape: f32[2,2], index: 5, kind: output, shape index: {}]
  %s6 = sld [smem:[#allocation0]]
  $region30: #{cnn_forward.7} parent=0
    _
  %s8 = ssub.s32 1, %s6
  %s9 = scalar_select 0, %s8, %s6
  $region1: #{cnn_forward.7} parent=0
    #allocation2 [shape = 'u8[1024]{0}', space=vmem, size = 0x400, scoped, tag = 'output window, operand 0, single buffered']
    #allocation3 [shape = 's32[1]{0}', space=sflag, size = 0x4, scoped, tag = 'scoped memory for cnn_forward.7']
    %10 = vsyncpa [#allocation3], 0
    // Predicated region
    $region2: #{cnn_forward.7} parent=1 // pred_check
      _
    $region3: #{cnn_forward.7} parent=1 // pred_check_branch
      %12 = sbr.rel (0) target = $region5
    $region4: #{cnn_forward.7} parent=1 // pred_region
      _
    $region5: #{cnn_forward.7} parent=1 // pred_fallthru
      _
    // Predicated region
    $region6: #{cnn_forward.7} parent=1 // pred_check
      _
    $region7: #{cnn_forward.7} parent=1 // pred_check_branch
      %14 = sbr.rel (0) target = $region9
    $region8: #{cnn_forward.7} parent=1 // pred_region
      _
    $region9: #{cnn_forward.7} parent=1 // pred_fallthru
      _
    // Predicated region
    $region10: #{cnn_forward.7} parent=1 // pred_check
      _
    $region11: #{cnn_forward.7} parent=1 // pred_check_branch
      %16 = sbr.rel (0) target = $region13
    $region12: #{cnn_forward.7} parent=1 // pred_region
      _
    $region13: #{cnn_forward.7} parent=1 // pred_fallthru
      _
    // Predicated region
    $region14: #{cnn_forward.7} parent=1 // pred_check
      _
    $region15: #{cnn_forward.7} parent=1 // pred_check_branch
      %18 = sbr.rel (0) target = $region17
    $region16: #{cnn_forward.7} parent=1 // pred_region
      _
    $region17: #{cnn_forward.7} parent=1 // pred_fallthru
      _
    // Predicated region
    $region18: #{cnn_forward.7} parent=1 // pred_check
      _
    $region19: #{cnn_forward.7} parent=1 // pred_check_branch
      %20 = sbr.rel (0) target = $region21
    $region20: #{cnn_forward.7} parent=1 // pred_region
      _
    $region21: #{cnn_forward.7} parent=1 // pred_fallthru
      _
    %v21 = vld [vmem:[%s0] sm:$0xff]
    %v22 = vld [vmem:[%s0 + $0x8] sm:$0x3]
    %v23 = vld [vmem:[%s1] sm:$0xff]
    %v24 = vld [vmem:[%s1 + $0x8] sm:$0xff]
    %v25 = vld [vmem:[%s1 + $0x10] sm:$0xff]
    %v26 = vld [vmem:[%s1 + $0x18] sm:$0xff]
    %v27 = vld [vmem:[%s1 + $0x20] sm:$0xff]
    %v28 = vld [vmem:[%s1 + $0x28] sm:$0xff]
    %v29 = vld [vmem:[%s1 + $0x30] sm:$0xff]
    %v30 = vld [vmem:[%s1 + $0x38] sm:$0xff]
    %v31 = vld [vmem:[%s1 + $0x40] sm:$0xff]
    %v32 = vld [vmem:[%s1 + $0x48] sm:$0xff]
    %v33 = vld [vmem:[%s1 + $0x50] sm:$0xff]
    %v34 = vld [vmem:[%s1 + $0x58] sm:$0xff]
    %v35 = vld [vmem:[%s1 + $0x60] sm:$0xff]
    %v36 = vld [vmem:[%s1 + $0x68] sm:$0xff]
    %v37 = vld [vmem:[%s1 + $0x70] sm:$0xff]
    %v38 = vld [vmem:[%s1 + $0x78] sm:$0xff]
    %v39 = vld [vmem:[%s1 + $0x80] sm:$0xff]
    %v40 = vld [vmem:[%s1 + $0x88] sm:$0xff]
    %v41 = vld [vmem:[%s1 + $0x90] sm:$0xff]
    %v42 = vld [vmem:[%s1 + $0x98] sm:$0xff]
    %v43 = vld [vmem:[%s1 + $0xa0] sm:$0xff]
    %v44 = vld [vmem:[%s1 + $0xa8] sm:$0xff]
    %v45 = vld [vmem:[%s1 + $0xb0] sm:$0xff]
    %v46 = vld [vmem:[%s1 + $0xb8] sm:$0xff]
    %v47 = vld [vmem:[%s1 + $0xc0] sm:$0xff]
    %v48 = vld [vmem:[%s1 + $0xc8] sm:$0xff]
    %v49 = vld [vmem:[%s1 + $0xd0] sm:$0xff]
    %v50 = vld [vmem:[%s1 + $0xd8] sm:$0xff]
    %v51 = vld [vmem:[%s1 + $0xe0] sm:$0xff]
    %v52 = vld [vmem:[%s1 + $0xe8] sm:$0xff]
    %v53 = vld [vmem:[%s1 + $0xf0] sm:$0xff]
    %v54 = vld [vmem:[%s1 + $0xf8] sm:$0xff]
    %v55 = vld [vmem:[%s1 + $0x100] sm:$0xff]
    %v56 = vld [vmem:[%s1 + $0x108] sm:$0xff]
    %v57 = vld [vmem:[%s1 + $0x110] sm:$0xff]
    %v58 = vld [vmem:[%s1 + $0x118] sm:$0xff]
    %v59 = vld [vmem:[%s1 + $0x120] sm:$0xff]
    %v60 = vld [vmem:[%s1 + $0x128] sm:$0xff]
    %v61 = vld [vmem:[%s1 + $0x130] sm:$0xff]
    %v62 = vld [vmem:[%s1 + $0x138] sm:$0xff]
    %v63 = vld [vmem:[%s1 + $0x140] sm:$0xff]
    %v64 = vld [vmem:[%s1 + $0x148] sm:$0xff]
    %v65 = vld [vmem:[%s1 + $0x150] sm:$0xff]
    %v66 = vld [vmem:[%s1 + $0x158] sm:$0xff]
    %v67 = vld [vmem:[%s1 + $0x160] sm:$0xff]
    %v68 = vld [vmem:[%s1 + $0x168] sm:$0xff]
    %v69 = vld [vmem:[%s1 + $0x170] sm:$0xff]
    %v70 = vld [vmem:[%s1 + $0x178] sm:$0xff]
    %v71 = vld [vmem:[%s1 + $0x180] sm:$0xff]
    %v72 = vld [vmem:[%s1 + $0x188] sm:$0xff]
    %v73 = vld [vmem:[%s1 + $0x190] sm:$0xff]
    %v74 = vld [vmem:[%s1 + $0x198] sm:$0xff]
    %v75 = vld [vmem:[%s1 + $0x1a0] sm:$0xff]
    %v76 = vld [vmem:[%s1 + $0x1a8] sm:$0xff]
    %v77 = vld [vmem:[%s1 + $0x1b0] sm:$0xff]
    %v78 = vld [vmem:[%s1 + $0x1b8] sm:$0xff]
    %v79 = vld [vmem:[%s1 + $0x1c0] sm:$0xff]
    %v80 = vld [vmem:[%s1 + $0x1c8] sm:$0xff]
    %v81 = vld [vmem:[%s1 + $0x1d0] sm:$0xff]
    %v82 = vld [vmem:[%s1 + $0x1d8] sm:$0xff]
    %v83 = vld [vmem:[%s1 + $0x1e0] sm:$0xff]
    %v84 = vld [vmem:[%s1 + $0x1e8] sm:$0xff]
    %v85 = vld [vmem:[%s1 + $0x1f0] sm:$0xff]
    %v86 = vld [vmem:[%s1 + $0x1f8] sm:$0xff]
    %v87 = vld [vmem:[%s1 + $0x200] sm:$0xff]
    %v88 = vld [vmem:[%s1 + $0x208] sm:$0xff]
    %v89 = vld [vmem:[%s1 + $0x210] sm:$0xff]
    %v90 = vld [vmem:[%s1 + $0x218] sm:$0xff]
    %v91 = vld [vmem:[%s1 + $0x220] sm:$0xff]
    %v92 = vld [vmem:[%s1 + $0x228] sm:$0xff]
    %v93 = vld [vmem:[%s1 + $0x230] sm:$0xff]
    %v94 = vld [vmem:[%s1 + $0x238] sm:$0xff]
    %v95 = vld [vmem:[%s2] sm:$0x1]
    %v97 = vlaneseq
    %v98 = vshrl.u32 %v97, 7
    %v99 = vsub.s32 0, %v98
    %v100 = vrot.slane %v95, %v99
    %v104 = vcombine.high %v21, %v21
    %v106 = vunpack.c.l.s4 1983009808
    %v107 = vunpack.c.0.s8 %v106
    %v108 = vlaneseq
    %v109 = vshrl.u32 %v108, 7
    %v110 = vsub.s32 %v107, %v109
    %v111 = vrot.slane %v21, %v110
    %v113 = vunpack.c.l.s4 1983009808
    %v114 = vunpack.c.0.s8 %v113
    %v115 = vlaneseq
    %v116 = vshrl.u32 %v115, 7
    %v117 = vsub.s32 %v114, %v116
    %v118 = vrot.slane %v104, %v117
    %v119 = vcombine.high %v111, %v111
    %v120 = vcombine.high %v118, %v118
    %v122 = vunpack.c.l.s4 1983009808
    %v123 = vunpack.c.0.s8 %v122
    %v124 = vlaneseq
    %v125 = vshrl.u32 %v124, 7
    %v126 = vsub.s32 %v123, %v125
    %v127 = vrot.slane %v22, %v126
    %vm132 = vcmask 523264
    %v133 = vsel %vm132, %v127, 0
    %135 = vmatprep.subr.mxu0 0.0
    %136 = vmatpush1.msra.mxu0 %v23
    %137 = vmatprep.subr.mxu0 0.0
    %138 = vmatpush1.msra.mxu0 %v24
    %139 = vmatprep.subr.mxu0 0.0
    %140 = vmatpush1.msra.mxu0 %v25
    %141 = vmatprep.subr.mxu0 0.0
    %142 = vmatpush1.msra.mxu0 %v26
    %143 = vmatprep.subr.mxu0 0.0
    %144 = vmatpush1.msra.mxu0 %v27
    %145 = vmatprep.subr.mxu0 0.0
    %146 = vmatpush1.msra.mxu0 %v28
    %147 = vmatprep.subr.mxu0 0.0
    %148 = vmatpush1.msra.mxu0 %v29
    %149 = vmatprep.subr.mxu0 0.0
    %150 = vmatpush1.msra.mxu0 %v30
    %151 = vmatprep.subr.mxu0 0.0
    %152 = vmatpush1.msra.mxu0 %v31
    %153 = vmatprep.subr.mxu0 0.0
    %154 = vmatpush1.msra.mxu0 %v32
    %155 = vmatprep.subr.mxu0 0.0
    %156 = vmatpush1.msra.mxu0 %v33
    %157 = vmatprep.subr.mxu0 0.0
    %158 = vmatpush1.msra.mxu0 %v34
    %159 = vmatprep.subr.mxu0 0.0
    %160 = vmatpush1.msra.mxu0 %v35
    %161 = vmatprep.subr.mxu0 0.0
    %162 = vmatpush1.msra.mxu0 %v36
    %163 = vmatprep.subr.mxu0 0.0
    %164 = vmatpush1.msra.mxu0 %v37
    %165 = vmatprep.subr.mxu0 0.0
    %166 = vmatpush1.msra.mxu0 %v38
    %167 = vmatprep.subr.mxu0 0.0
    %168 = vmatpush1.msra.mxu0 %v39
    %169 = vmatprep.subr.mxu0 0.0
    %170 = vmatpush1.msra.mxu0 %v40
    %171 = vmatprep.subr.mxu0 0.0
    %172 = vmatpush1.msra.mxu0 %v41
    %173 = vmatprep.subr.mxu0 0.0
    %174 = vmatpush1.msra.mxu0 %v42
    %175 = vmatprep.subr.mxu0 0.0
    %176 = vmatpush1.msra.mxu0 %v43
    %177 = vmatprep.subr.mxu0 0.0
    %178 = vmatpush1.msra.mxu0 %v44
    %179 = vmatprep.subr.mxu0 0.0
    %180 = vmatpush1.msra.mxu0 %v45
    %181 = vmatprep.subr.mxu0 0.0
    %182 = vmatpush1.msra.mxu0 %v46
    %183 = vmatprep.subr.mxu0 0.0
    %184 = vmatpush1.msra.mxu0 %v47
    %185 = vmatprep.subr.mxu0 0.0
    %186 = vmatpush1.msra.mxu0 %v48
    %187 = vmatprep.subr.mxu0 0.0
    %188 = vmatpush1.msra.mxu0 %v49
    %189 = vmatprep.subr.mxu0 0.0
    %190 = vmatpush1.msra.mxu0 %v50
    %191 = vmatprep.subr.mxu0 0.0
    %192 = vmatpush1.msra.mxu0 %v51
    %193 = vmatprep.subr.mxu0 0.0
    %194 = vmatpush1.msra.mxu0 %v52
    %195 = vmatprep.subr.mxu0 0.0
    %196 = vmatpush1.msra.mxu0 %v53
    %197 = vmatprep.subr.mxu0 0.0
    %198 = vmatpush1.msra.mxu0 %v54
    %199 = vmatprep.mubr.f32.mxu0 %v119
    %200 = vmatmul.mubr.f32.gmra.mrb[0].mxu0 %v111
    %v201 = vpop.f32.mrb[0].mxu0
    %v202 = vadd.f32 %v100, %v201
    %v203 = vpop.f32.mrb[0].mxu0
    %204 = vdwg.mxu0
    %205 = vmatprep.subr.mxu0 0.0
    %206 = vmatpush1.msra.mxu0 %v55
    %207 = vmatprep.subr.mxu0 0.0
    %208 = vmatpush1.msra.mxu0 %v56
    %209 = vmatprep.subr.mxu0 0.0
    %210 = vmatpush1.msra.mxu0 %v57
    %211 = vmatprep.subr.mxu0 0.0
    %212 = vmatpush1.msra.mxu0 %v58
    %213 = vmatprep.subr.mxu0 0.0
    %214 = vmatpush1.msra.mxu0 %v59
    %215 = vmatprep.subr.mxu0 0.0
    %216 = vmatpush1.msra.mxu0 %v60
    %217 = vmatprep.subr.mxu0 0.0
    %218 = vmatpush1.msra.mxu0 %v61
    %219 = vmatprep.subr.mxu0 0.0
    %220 = vmatpush1.msra.mxu0 %v62
    %221 = vmatprep.subr.mxu0 0.0
    %222 = vmatpush1.msra.mxu0 %v63
    %223 = vmatprep.subr.mxu0 0.0
    %224 = vmatpush1.msra.mxu0 %v64
    %225 = vmatprep.subr.mxu0 0.0
    %226 = vmatpush1.msra.mxu0 %v65
    %227 = vmatprep.subr.mxu0 0.0
    %228 = vmatpush1.msra.mxu0 %v66
    %229 = vmatprep.subr.mxu0 0.0
    %230 = vmatpush1.msra.mxu0 %v67
    %231 = vmatprep.subr.mxu0 0.0
    %232 = vmatpush1.msra.mxu0 %v68
    %233 = vmatprep.subr.mxu0 0.0
    %234 = vmatpush1.msra.mxu0 %v69
    %235 = vmatprep.subr.mxu0 0.0
    %236 = vmatpush1.msra.mxu0 %v70
    %237 = vmatprep.subr.mxu0 0.0
    %238 = vmatpush1.msra.mxu0 %v71
    %239 = vmatprep.subr.mxu0 0.0
    %240 = vmatpush1.msra.mxu0 %v72
    %241 = vmatprep.subr.mxu0 0.0
    %242 = vmatpush1.msra.mxu0 %v73
    %243 = vmatprep.subr.mxu0 0.0
    %244 = vmatpush1.msra.mxu0 %v74
    %245 = vmatprep.subr.mxu0 0.0
    %246 = vmatpush1.msra.mxu0 %v75
    %247 = vmatprep.subr.mxu0 0.0
    %248 = vmatpush1.msra.mxu0 %v76
    %249 = vmatprep.subr.mxu0 0.0
    %250 = vmatpush1.msra.mxu0 %v77
    %251 = vmatprep.subr.mxu0 0.0
    %252 = vmatpush1.msra.mxu0 %v78
    %253 = vmatprep.subr.mxu0 0.0
    %254 = vmatpush1.msra.mxu0 %v79
    %255 = vmatprep.subr.mxu0 0.0
    %256 = vmatpush1.msra.mxu0 %v80
    %257 = vmatprep.subr.mxu0 0.0
    %258 = vmatpush1.msra.mxu0 %v81
    %259 = vmatprep.subr.mxu0 0.0
    %260 = vmatpush1.msra.mxu0 %v82
    %261 = vmatprep.subr.mxu0 0.0
    %262 = vmatpush1.msra.mxu0 %v83
    %263 = vmatprep.subr.mxu0 0.0
    %264 = vmatpush1.msra.mxu0 %v84
    %265 = vmatprep.subr.mxu0 0.0
    %266 = vmatpush1.msra.mxu0 %v85
    %267 = vmatprep.subr.mxu0 0.0
    %268 = vmatpush1.msra.mxu0 %v86
    %269 = vmatprep.mubr.f32.mxu0 %v120
    %270 = vmatmul.mubr.f32.gmra.mrb[0].mxu0 %v118
    %v271 = vpop.f32.mrb[0].mxu0
    %v272 = vadd.f32 %v202, %v271
    %v273 = vpop.f32.mrb[0].mxu0
    %274 = vdwg.mxu0
    %275 = vmatprep.subr.mxu0 0.0
    %276 = vmatpush1.msra.mxu0 %v87
    %277 = vmatprep.subr.mxu0 0.0
    %278 = vmatpush1.msra.mxu0 %v88
    %279 = vmatprep.subr.mxu0 0.0
    %280 = vmatpush1.msra.mxu0 %v89
    %281 = vmatprep.subr.mxu0 0.0
    %282 = vmatpush1.msra.mxu0 %v90
    %283 = vmatprep.subr.mxu0 0.0
    %284 = vmatpush1.msra.mxu0 %v91
    %285 = vmatprep.subr.mxu0 0.0
    %286 = vmatpush1.msra.mxu0 %v92
    %287 = vmatprep.subr.mxu0 0.0
    %288 = vmatpush1.msra.mxu0 %v93
    %289 = vmatprep.subr.mxu0 0.0
    %290 = vmatpush1.msra.mxu0 %v94
    %291 = vmatprep.subr.mxu0 0.0
    %292 = vmatpush1.msra.mxu0 0.0
    %293 = vmatprep.subr.mxu0 0.0
    %294 = vmatpush1.msra.mxu0 0.0
    %295 = vmatprep.subr.mxu0 0.0
    %296 = vmatpush1.msra.mxu0 0.0
    %297 = vmatprep.subr.mxu0 0.0
    %298 = vmatpush1.msra.mxu0 0.0
    %299 = vmatprep.subr.mxu0 0.0
    %300 = vmatpush1.msra.mxu0 0.0
    %301 = vmatprep.subr.mxu0 0.0
    %302 = vmatpush1.msra.mxu0 0.0
    %303 = vmatprep.subr.mxu0 0.0
    %304 = vmatpush1.msra.mxu0 0.0
    %305 = vmatprep.subr.mxu0 0.0
    %306 = vmatpush1.msra.mxu0 0.0
    %307 = vmatprep.subr.mxu0 0.0
    %308 = vmatpush1.msra.mxu0 0.0
    %309 = vmatprep.subr.mxu0 0.0
    %310 = vmatpush1.msra.mxu0 0.0
    %311 = vmatprep.subr.mxu0 0.0
    %312 = vmatpush1.msra.mxu0 0.0
    %313 = vmatprep.subr.mxu0 0.0
    %314 = vmatpush1.msra.mxu0 0.0
    %315 = vmatprep.subr.mxu0 0.0
    %316 = vmatpush1.msra.mxu0 0.0
    %317 = vmatprep.subr.mxu0 0.0
    %318 = vmatpush1.msra.mxu0 0.0
    %319 = vmatprep.subr.mxu0 0.0
    %320 = vmatpush1.msra.mxu0 0.0
    %321 = vmatprep.subr.mxu0 0.0
    %322 = vmatpush1.msra.mxu0 0.0
    %323 = vmatprep.subr.mxu0 0.0
    %324 = vmatpush1.msra.mxu0 0.0
    %325 = vmatprep.subr.mxu0 0.0
    %326 = vmatpush1.msra.mxu0 0.0
    %327 = vmatprep.subr.mxu0 0.0
    %328 = vmatpush1.msra.mxu0 0.0
    %329 = vmatprep.subr.mxu0 0.0
    %330 = vmatpush1.msra.mxu0 0.0
    %331 = vmatprep.subr.mxu0 0.0
    %332 = vmatpush1.msra.mxu0 0.0
    %333 = vmatprep.subr.mxu0 0.0
    %334 = vmatpush1.msra.mxu0 0.0
    %335 = vmatprep.subr.mxu0 0.0
    %336 = vmatpush1.msra.mxu0 0.0
    %337 = vmatprep.subr.mxu0 0.0
    %338 = vmatpush1.msra.mxu0 0.0
    %339 = vmatprep.mubr.f32.mxu0 0.0
    %340 = vmatmul.mubr.f32.gmra.mrb[0].mxu0 %v133
    %v341 = vpop.f32.mrb[0].mxu0
    %v342 = vadd.f32 %v272, %v341
    %v343 = vpop.f32.mrb[0].mxu0
    %344 = vdwg.mxu0
    %v345 = vmax.f32 %v342, 0.0
    %v346 = vld [vmem:[%s3] sm:$0xff]
    %v347 = vld [vmem:[%s3 + $0x8] sm:$0x3]
    %v348 = vld [vmem:[%s4] sm:$0x1]
    %v350 = vlaneseq
    %v351 = vshrl.u32 %v350, 7
    %v352 = vsub.s32 0, %v351
    %v353 = vrot.slane %v348, %v352
    %vm355 = vcmask 80896
    %v357 = vsel %vm355, %v345, 0
    %vm359 = vcmask 1041408
    %v361 = vsel %vm359, %v347, 0
    %363 = vmatprep.subr.mxu0 0.0
    %364 = vmatpush1.msra.mxu0 %v346
    %365 = vmatprep.subr.mxu0 0.0
    %366 = vmatpush1.msra.mxu0 %v361
    %367 = vmatprep.subr.mxu0 0.0
    %368 = vmatpush1.msra.mxu0 0.0
    %369 = vmatprep.subr.mxu0 0.0
    %370 = vmatpush1.msra.mxu0 0.0
    %371 = vmatprep.subr.mxu0 0.0
    %372 = vmatpush1.msra.mxu0 0.0
    %373 = vmatprep.subr.mxu0 0.0
    %374 = vmatpush1.msra.mxu0 0.0
    %375 = vmatprep.subr.mxu0 0.0
    %376 = vmatpush1.msra.mxu0 0.0
    %377 = vmatprep.subr.mxu0 0.0
    %378 = vmatpush1.msra.mxu0 0.0
    %379 = vmatprep.subr.mxu0 0.0
    %380 = vmatpush1.msra.mxu0 0.0
    %381 = vmatprep.subr.mxu0 0.0
    %382 = vmatpush1.msra.mxu0 0.0
    %383 = vmatprep.subr.mxu0 0.0
    %384 = vmatpush1.msra.mxu0 0.0
    %385 = vmatprep.subr.mxu0 0.0
    %386 = vmatpush1.msra.mxu0 0.0
    %387 = vmatprep.subr.mxu0 0.0
    %388 = vmatpush1.msra.mxu0 0.0
    %389 = vmatprep.subr.mxu0 0.0
    %390 = vmatpush1.msra.mxu0 0.0
    %391 = vmatprep.subr.mxu0 0.0
    %392 = vmatpush1.msra.mxu0 0.0
    %393 = vmatprep.subr.mxu0 0.0
    %394 = vmatpush1.msra.mxu0 0.0
    %395 = vmatprep.subr.mxu0 0.0
    %396 = vmatpush1.msra.mxu0 0.0
    %397 = vmatprep.subr.mxu0 0.0
    %398 = vmatpush1.msra.mxu0 0.0
    %399 = vmatprep.subr.mxu0 0.0
    %400 = vmatpush1.msra.mxu0 0.0
    %401 = vmatprep.subr.mxu0 0.0
    %402 = vmatpush1.msra.mxu0 0.0
    %403 = vmatprep.subr.mxu0 0.0
    %404 = vmatpush1.msra.mxu0 0.0
    %405 = vmatprep.subr.mxu0 0.0
    %406 = vmatpush1.msra.mxu0 0.0
    %407 = vmatprep.subr.mxu0 0.0
    %408 = vmatpush1.msra.mxu0 0.0
    %409 = vmatprep.subr.mxu0 0.0
    %410 = vmatpush1.msra.mxu0 0.0
    %411 = vmatprep.subr.mxu0 0.0
    %412 = vmatpush1.msra.mxu0 0.0
    %413 = vmatprep.subr.mxu0 0.0
    %414 = vmatpush1.msra.mxu0 0.0
    %415 = vmatprep.subr.mxu0 0.0
    %416 = vmatpush1.msra.mxu0 0.0
    %417 = vmatprep.subr.mxu0 0.0
    %418 = vmatpush1.msra.mxu0 0.0
    %419 = vmatprep.subr.mxu0 0.0
    %420 = vmatpush1.msra.mxu0 0.0
    %421 = vmatprep.subr.mxu0 0.0
    %422 = vmatpush1.msra.mxu0 0.0
    %423 = vmatprep.subr.mxu0 0.0
    %424 = vmatpush1.msra.mxu0 0.0
    %425 = vmatprep.subr.mxu0 0.0
    %426 = vmatpush1.msra.mxu0 0.0
    %427 = vmatprep.mubr.f32.mxu0 0.0
    %428 = vmatmul.mubr.f32.gmra.mrb[0].mxu0 %v357
    %v429 = vpop.f32.mrb[0].mxu0
    %v430 = vadd.f32 %v353, %v429
    %v431 = vpop.f32.mrb[0].mxu0
    %432 = vdwg.mxu0
    %vm433 = vcmask 9216
    %434 = vst.msk [vmem:[#allocation2] sm:$0x3] %vm433, %v430
    // Predicated region
    $region22: #{cnn_forward.7} parent=1 // pred_check
      _
    $region23: #{cnn_forward.7} parent=1 // pred_check_branch
      %436 = sbr.rel (0) target = $region25
    $region24: #{cnn_forward.7} parent=1 // pred_region
      %s438 = ssub.s32 32, 32
      %439 = vsyncadd [#allocation3], %s438
      %s441 = sshll.u32 [#allocation2], 4
      %s442 = int_to_ptr.vmem [resolvable:$true] %s441
      %444 = dma.vmem_to_hbm [thread:$0]  %s442, 32, %s5, [#allocation3]
    $region25: #{cnn_forward.7} parent=1 // pred_fallthru
      _
    // Predicated region
    $region26: #{cnn_forward.7} parent=1 // pred_check
      _
    $region27: #{cnn_forward.7} parent=1 // pred_check_branch
      %446 = sbr.rel (0) target = $region29
    $region28: #{cnn_forward.7} parent=1 // pred_region
      %447 = dma.done [#allocation3], 32
    $region29: #{cnn_forward.7} parent=1 // pred_fallthru
      _
    %448 = vsyncpa [#allocation3], 1

</llo_original>
